<compile_context>
chip_gen: v7x
topology: tpu7x:2x2x1
jax: 0.10.0
libtpu: 0.0.40
codegen_flags: <defaults>
</compile_context>

<pallas_src>
import numpy as np
import jax
import jax.numpy as jnp
from jax.experimental import pallas as pl
from jax.experimental.pallas import tpu as pltpu

N_CLASSES = 10


# ----------------------------------------------------------------------------
# Kernel 1: fused (im2col'd) 3x3 "same" conv + folded BN + ReLU + 2x2 max-pool.
#
# The wrapper builds 4 im2col "phase" buffers, one per 2x2 pool-window parity
# (row parity rp, col parity cp).  Phase (rp, cp) holds, for each pooled output
# position (r, q), the 9*Cin patch feeding conv output (2r+rp, 2q+cp), flattened
# to (N, Hh*Wh, 9*Cin).  The kernel then does one matmul per phase against the
# tap-major (9*Cin, Cout) weight, applies the folded BN + ReLU, and the 2x2
# max-pool collapses to an elementwise max of the 4 phase results -- one
# contiguous (tile_rows*Wh, Cout) store per grid step.
# ----------------------------------------------------------------------------
def make_conv_pool_kernel(mt, cout):
    def kernel(p00_ref, p01_ref, p10_ref, p11_ref, w_ref, s_ref, b_ref, o_ref):
        # pXX_ref: (1, mt, 9*Cin) im2col phase tiles
        # w_ref:   (9*Cin, Cout) tap-major weights (tap = 3*dy + dx)
        # s_ref/b_ref: (1, Cout) folded BN scale / bias (incl. conv bias)
        # o_ref:   (1, mt, Cout) pooled output tile (flat rows = r*Wh + q)
        w = w_ref[...]
        # Broadcast once per invocation (JAX does not CSE broadcast_in_dim).
        scale = jnp.broadcast_to(s_ref[...], (mt, cout))
        bias = jnp.broadcast_to(b_ref[...], (mt, cout))

        def head(p_ref):
            y = jnp.dot(p_ref[0], w, preferred_element_type=jnp.float32)
            return jnp.maximum(y * scale + bias, 0.0)

        pooled = jnp.maximum(jnp.maximum(head(p00_ref), head(p01_ref)),
                             jnp.maximum(head(p10_ref), head(p11_ref)))
        o_ref[0] = pooled.astype(o_ref.dtype)

    return kernel


def conv3x3_bn_relu_pool(x_nhwc, w9, scale, bias, *, trp_tile, out_dtype):
    """x_nhwc: (N,H,W,Cin), w9: (9*Cin,Cout) tap-major.
    Returns pooled (N, H/2, W/2, Cout) after conv+BN+ReLU+2x2 max-pool."""
    N, H, W, Cin = x_nhwc.shape
    K9, Cout = w9.shape
    assert K9 == 9 * Cin
    assert H % 2 == 0 and W % 2 == 0
    Hh, Wh = H // 2, W // 2
    assert Hh % trp_tile == 0
    mt = trp_tile * Wh               # flat rows per grid step
    assert mt % 16 == 0              # sublane-aligned for f32 and bf16 tiles

    # "same" zero padding (1 on every side); im2col phase buffers, taps folded
    # into the channel (contraction) axis in (dy, dx, cin) order.
    xp = jnp.pad(x_nhwc, ((0, 0), (1, 1), (1, 1), (0, 0)))
    phases = []
    for rp in range(2):
        for cp in range(2):
            parts = [xp[:, rp + dy:rp + dy + H:2, cp + dx:cp + dx + W:2, :]
                     for dy in range(3) for dx in range(3)]
            phases.append(jnp.concatenate(parts, axis=-1).reshape(N, Hh * Wh, K9))

    phase_spec = pl.BlockSpec((1, mt, K9), lambda n, r: (n, r, 0))
    out = pl.pallas_call(
        make_conv_pool_kernel(mt, Cout),
        out_shape=jax.ShapeDtypeStruct((N, Hh * Wh, Cout), out_dtype),
        grid=(N, Hh // trp_tile),
        in_specs=[phase_spec, phase_spec, phase_spec, phase_spec,
                  pl.BlockSpec((K9, Cout), lambda n, r: (0, 0)),
                  pl.BlockSpec((1, Cout), lambda n, r: (0, 0)),
                  pl.BlockSpec((1, Cout), lambda n, r: (0, 0))],
        out_specs=pl.BlockSpec((1, mt, Cout), lambda n, r: (n, r, 0)),
        compiler_params=pltpu.CompilerParams(
            dimension_semantics=("parallel", "parallel")),
    )(*phases, w9, scale, bias)
    return out.reshape(N, Hh, Wh, Cout)


# ----------------------------------------------------------------------------
# Kernel 2: fc1 (bf16 weights/activations, f32 accumulate) + ReLU + fc2,
# with the 20480-wide contraction tiled over the grid (tk = 4096).
# ----------------------------------------------------------------------------
def mlp_kernel(x_ref, w1_ref, b1_ref, w2_ref, b2_ref, o_ref, acc_ref):
    k = pl.program_id(0)

    @pl.when(k == 0)
    def _():
        acc_ref[...] = jnp.zeros_like(acc_ref)

    acc_ref[...] += jnp.dot(x_ref[...], w1_ref[...],
                            preferred_element_type=jnp.float32)

    @pl.when(k == pl.num_programs(0) - 1)
    def _():
        h = jnp.maximum(acc_ref[...] + b1_ref[...], 0.0)
        o_ref[...] = (jnp.dot(h, w2_ref[...],
                              preferred_element_type=jnp.float32)
                      + b2_ref[...]).astype(o_ref.dtype)


def mlp(x, w1, b1, w2, b2, tk=4096):
    # fc1 is HBM-bound on the bf16 weight stream; tk=4096 keeps per-step DMA
    # (~1 MB) comfortably above the ~0.35us grid-step overhead.
    # TODO(synk): on v5e (~0.8 TB/s) tk=2048 or a deeper pipeline would overlap
    #             the weight DMA a bit better; kept at 4096 per v6e/v7x guidance.
    N, K = x.shape
    H1 = w1.shape[1]
    NC = w2.shape[1]
    assert K % tk == 0
    return pl.pallas_call(
        mlp_kernel,
        out_shape=jax.ShapeDtypeStruct((N, NC), jnp.float32),
        grid=(K // tk,),
        in_specs=[
            pl.BlockSpec((N, tk), lambda k: (0, k)),
            pl.BlockSpec((tk, H1), lambda k: (k, 0)),
            pl.BlockSpec((1, H1), lambda k: (0, 0)),
            pl.BlockSpec((H1, NC), lambda k: (0, 0)),
            pl.BlockSpec((1, NC), lambda k: (0, 0)),
        ],
        out_specs=pl.BlockSpec((N, NC), lambda k: (0, 0)),
        scratch_shapes=[pltpu.VMEM((N, H1), jnp.float32)],
        compiler_params=pltpu.CompilerParams(
            dimension_semantics=("arbitrary",)),
    )(x, w1, b1, w2, b2)


# ----------------------------------------------------------------------------
# Parameters, one-time prep (BN fold / weight re-layout / bf16 cast), forward,
# pure-JAX reference.
# ----------------------------------------------------------------------------
def init_params(key):
    ks = jax.random.split(key, 16)
    return {
        "conv1_w": 0.10 * jax.random.normal(ks[0], (3, 3, 10, 32), jnp.float32),
        "conv1_b": 0.05 * jax.random.normal(ks[1], (32,), jnp.float32),
        "bn1_gamma": 1.0 + 0.1 * jax.random.normal(ks[2], (32,), jnp.float32),
        "bn1_beta": 0.1 * jax.random.normal(ks[3], (32,), jnp.float32),
        "bn1_mean": 0.1 * jax.random.normal(ks[4], (32,), jnp.float32),
        "bn1_var": 0.5 + jax.random.uniform(ks[5], (32,), jnp.float32),
        "conv2_w": 0.05 * jax.random.normal(ks[6], (3, 3, 32, 64), jnp.float32),
        "conv2_b": 0.05 * jax.random.normal(ks[7], (64,), jnp.float32),
        "bn2_gamma": 1.0 + 0.1 * jax.random.normal(ks[8], (64,), jnp.float32),
        "bn2_beta": 0.1 * jax.random.normal(ks[9], (64,), jnp.float32),
        "bn2_mean": 0.1 * jax.random.normal(ks[10], (64,), jnp.float32),
        "bn2_var": 0.5 + jax.random.uniform(ks[11], (64,), jnp.float32),
        # stored already transposed vs. torch.nn.Linear.weight (out,in)
        "fc1_w": 0.01 * jax.random.normal(ks[12], (64 * 32 * 10, 128), jnp.float32),
        "fc1_b": 0.01 * jax.random.normal(ks[13], (128,), jnp.float32),
        "fc2_w": 0.10 * jax.random.normal(ks[14], (128, N_CLASSES), jnp.float32),
        "fc2_b": 0.05 * jax.random.normal(ks[15], (N_CLASSES,), jnp.float32),
    }


def fold_bn(conv_b, gamma, beta, mean, var, eps=1e-5):
    scale = gamma / jnp.sqrt(var + eps)
    bias = beta + (conv_b - mean) * scale
    return scale, bias


def prepare_params(params):
    """One-time, outside-the-hot-path parameter prep:
    - fold eval-mode BatchNorm into per-channel scale/bias,
    - reshape conv weights to tap-major (9*Cin, Cout) matmul form,
    - permute fc1_w rows from torch's NCHW-flatten order to NHWC-flatten order
      (so the forward never transposes activations) and cast it to bf16 once."""
    s1, b1 = fold_bn(params["conv1_b"], params["bn1_gamma"], params["bn1_beta"],
                     params["bn1_mean"], params["bn1_var"])
    s2, b2 = fold_bn(params["conv2_b"], params["bn2_gamma"], params["bn2_beta"],
                     params["bn2_mean"], params["bn2_var"])
    C2, H2, W2 = 64, 32, 10          # conv2 output (C, H, W) feeding fc1
    H1 = params["fc1_w"].shape[1]
    fc1_w_nhwc = jnp.transpose(params["fc1_w"].reshape(C2, H2, W2, H1),
                               (1, 2, 0, 3)).reshape(C2 * H2 * W2, H1)
    return {
        "conv1_w": params["conv1_w"].reshape(9 * 10, 32).astype(jnp.float32),
        "conv1_s": s1.reshape(1, 32).astype(jnp.float32),
        "conv1_b": b1.reshape(1, 32).astype(jnp.float32),
        "conv2_w": params["conv2_w"].reshape(9 * 32, 64).astype(jnp.float32),
        "conv2_s": s2.reshape(1, 64).astype(jnp.float32),
        "conv2_b": b2.reshape(1, 64).astype(jnp.float32),
        "fc1_w": fc1_w_nhwc.astype(jnp.bfloat16),
        "fc1_b": params["fc1_b"].reshape(1, H1).astype(jnp.float32),
        "fc2_w": params["fc2_w"].astype(jnp.float32),
        "fc2_b": params["fc2_b"].reshape(1, N_CLASSES).astype(jnp.float32),
    }


def music_cnn_forward(pp, x_nchw):
    # PyTorch: x = x.view(N, -1, H, W) -- identity for a 4-D NCHW input.
    n = x_nchw.shape[0]
    x = jnp.transpose(x_nchw, (0, 2, 3, 1)).astype(jnp.float32)  # NCHW -> NHWC
    # conv1 + bn1 + relu + pool1: (N,128,40,10) -> (N,64,20,32)
    x = conv3x3_bn_relu_pool(x, pp["conv1_w"], pp["conv1_s"], pp["conv1_b"],
                             trp_tile=16, out_dtype=jnp.float32)
    # conv2 + bn2 + relu + pool2: (N,64,20,32) -> (N,32,10,64), written as bf16
    # so the fc1 activation stream needs no separate cast.
    x = conv3x3_bn_relu_pool(x, pp["conv2_w"], pp["conv2_s"], pp["conv2_b"],
                             trp_tile=16, out_dtype=jnp.bfloat16)
    # NHWC flatten (free reshape); fc1_w rows were pre-permuted to match, so no
    # NCHW transpose is needed on the critical path.
    feat = x.reshape(n, -1)
    return mlp(feat, pp["fc1_w"], pp["fc1_b"], pp["fc2_w"], pp["fc2_b"])


def reference_forward(params, x_nchw):
    hi = jax.lax.Precision.HIGHEST

    def bnorm(x, g, b, m, v, eps=1e-5):
        g, b, m, v = (a[None, :, None, None] for a in (g, b, m, v))
        return (x - m) / jnp.sqrt(v + eps) * g + b

    def conv(x, w_hwio, b):
        y = jax.lax.conv_general_dilated(
            x, w_hwio, window_strides=(1, 1), padding=((1, 1), (1, 1)),
            dimension_numbers=("NCHW", "HWIO", "NCHW"), precision=hi)
        return y + b[None, :, None, None]

    def pool(x):
        n, c, h, w = x.shape
        return x.reshape(n, c, h // 2, 2, w // 2, 2).max(axis=(3, 5))

    x = x_nchw.astype(jnp.float32)
    x = pool(jnp.maximum(bnorm(conv(x, params["conv1_w"], params["conv1_b"]),
                               params["bn1_gamma"], params["bn1_beta"],
                               params["bn1_mean"], params["bn1_var"]), 0.0))
    x = pool(jnp.maximum(bnorm(conv(x, params["conv2_w"], params["conv2_b"]),
                               params["bn2_gamma"], params["bn2_beta"],
                               params["bn2_mean"], params["bn2_var"]), 0.0))
    x = x.reshape(x.shape[0], -1)
    x = jnp.maximum(jnp.dot(x, params["fc1_w"], precision=hi) + params["fc1_b"], 0.0)
    return jnp.dot(x, params["fc2_w"], precision=hi) + params["fc2_b"]


if __name__ == "__main__":
    root = jax.random.PRNGKey(0)
    kx, kp = jax.random.split(root)
    # input shape pinned by fc1 in_features = 64*32*10  ->  (N, 10, 128, 40)
    x = jax.random.normal(kx, (2, 10, 128, 40), jnp.float32)
    params = init_params(kp)

    prepared = prepare_params(params)          # one-time prep, outside the jit
    out = jax.jit(music_cnn_forward)(prepared, x)
    out = jax.block_until_ready(out)
    assert out.shape == (2, N_CLASSES) and out.dtype == jnp.float32

    ref = reference_forward(params, x)
    np.testing.assert_allclose(np.asarray(out), np.asarray(ref),
                               rtol=5e-2, atol=5e-2)
    print("KERNEL_OK")
</pallas_src>

<mosaic_0001>
module attributes {stable_mosaic.version = 11 : i64} {
  func.func @kernel(%arg0: i32, %arg1: i32, %arg2: memref<1x320x90xf32, #tpu.memory_space<vmem>>, %arg3: memref<1x320x90xf32, #tpu.memory_space<vmem>>, %arg4: memref<1x320x90xf32, #tpu.memory_space<vmem>>, %arg5: memref<1x320x90xf32, #tpu.memory_space<vmem>>, %arg6: memref<90x32xf32, #tpu.memory_space<vmem>>, %arg7: memref<1x32xf32, #tpu.memory_space<vmem>>, %arg8: memref<1x32xf32, #tpu.memory_space<vmem>>, %arg9: memref<1x320x32xf32, #tpu.memory_space<vmem>>) attributes {dimension_semantics = [#tpu.dimension_semantics<parallel>, #tpu.dimension_semantics<parallel>], iteration_bounds = array<i64: 2, 4>, scalar_prefetch = 0 : i64, scratch_operands = 0 : i64, tpu.core_type = #tpu.core_type<tc>, window_params = [{transform_indices = @transform_0, window_bounds = array<i64: 1, 320, 90>}, {transform_indices = @transform_1, window_bounds = array<i64: 1, 320, 90>}, {transform_indices = @transform_2, window_bounds = array<i64: 1, 320, 90>}, {transform_indices = @transform_3, window_bounds = array<i64: 1, 320, 90>}, {pipeline_mode = #tpu.pipeline_mode<synchronous>, transform_indices = @transform_4, window_bounds = array<i64: 90, 32>}, {pipeline_mode = #tpu.pipeline_mode<synchronous>, transform_indices = @transform_5, window_bounds = array<i64: 1, 32>}, {pipeline_mode = #tpu.pipeline_mode<synchronous>, transform_indices = @transform_6, window_bounds = array<i64: 1, 32>}, {transform_indices = @transform_7, window_bounds = array<i64: 1, 320, 32>}]} {
    %c0 = arith.constant 0 : index
    %c0_0 = arith.constant 0 : index
    %0 = vector.load %arg6[%c0, %c0_0] : memref<90x32xf32, #tpu.memory_space<vmem>>, vector<90x32xf32>
    %c0_1 = arith.constant 0 : index
    %c0_2 = arith.constant 0 : index
    %1 = vector.load %arg7[%c0_1, %c0_2] : memref<1x32xf32, #tpu.memory_space<vmem>>, vector<1x32xf32>
    %2 = vector.shape_cast %1 : vector<1x32xf32> to vector<1x32xf32>
    %3 = vector.broadcast %2 : vector<1x32xf32> to vector<320x32xf32>
    %c0_3 = arith.constant 0 : index
    %c0_4 = arith.constant 0 : index
    %4 = vector.load %arg8[%c0_3, %c0_4] : memref<1x32xf32, #tpu.memory_space<vmem>>, vector<1x32xf32>
    %5 = vector.shape_cast %4 : vector<1x32xf32> to vector<1x32xf32>
    %6 = vector.broadcast %5 : vector<1x32xf32> to vector<320x32xf32>
    %c0_5 = arith.constant 0 : index
    %c0_6 = arith.constant 0 : index
    %c0_7 = arith.constant 0 : index
    %7 = vector.load %arg2[%c0_5, %c0_6, %c0_7] : memref<1x320x90xf32, #tpu.memory_space<vmem>>, vector<1x320x90xf32>
    %8 = vector.shape_cast %7 : vector<1x320x90xf32> to vector<320x90xf32>
    %cst = arith.constant dense<0.000000e+00> : vector<320x32xf32>
    %9 = tpu.matmul %8, %0, %cst {dimension_numbers = #tpu.dot_dimension_numbers<[1], [0], [0], [1], [0, 0, 1, 1], [], []>} : vector<320x90xf32>, vector<90x32xf32>, vector<320x32xf32> -> vector<320x32xf32>
    %10 = arith.mulf %9, %3 : vector<320x32xf32>
    %11 = arith.addf %10, %6 : vector<320x32xf32>
    %cst_8 = arith.constant 0.000000e+00 : f32
    %12 = vector.broadcast %cst_8 : f32 to vector<320x32xf32>
    %13 = arith.maximumf %11, %12 : vector<320x32xf32>
    %c0_9 = arith.constant 0 : index
    %c0_10 = arith.constant 0 : index
    %c0_11 = arith.constant 0 : index
    %14 = vector.load %arg3[%c0_9, %c0_10, %c0_11] : memref<1x320x90xf32, #tpu.memory_space<vmem>>, vector<1x320x90xf32>
    %15 = vector.shape_cast %14 : vector<1x320x90xf32> to vector<320x90xf32>
    %cst_12 = arith.constant dense<0.000000e+00> : vector<320x32xf32>
    %16 = tpu.matmul %15, %0, %cst_12 {dimension_numbers = #tpu.dot_dimension_numbers<[1], [0], [0], [1], [0, 0, 1, 1], [], []>} : vector<320x90xf32>, vector<90x32xf32>, vector<320x32xf32> -> vector<320x32xf32>
    %17 = arith.mulf %16, %3 : vector<320x32xf32>
    %18 = arith.addf %17, %6 : vector<320x32xf32>
    %cst_13 = arith.constant 0.000000e+00 : f32
    %19 = vector.broadcast %cst_13 : f32 to vector<320x32xf32>
    %20 = arith.maximumf %18, %19 : vector<320x32xf32>
    %21 = arith.maximumf %13, %20 : vector<320x32xf32>
    %c0_14 = arith.constant 0 : index
    %c0_15 = arith.constant 0 : index
    %c0_16 = arith.constant 0 : index
    %22 = vector.load %arg4[%c0_14, %c0_15, %c0_16] : memref<1x320x90xf32, #tpu.memory_space<vmem>>, vector<1x320x90xf32>
    %23 = vector.shape_cast %22 : vector<1x320x90xf32> to vector<320x90xf32>
    %cst_17 = arith.constant dense<0.000000e+00> : vector<320x32xf32>
    %24 = tpu.matmul %23, %0, %cst_17 {dimension_numbers = #tpu.dot_dimension_numbers<[1], [0], [0], [1], [0, 0, 1, 1], [], []>} : vector<320x90xf32>, vector<90x32xf32>, vector<320x32xf32> -> vector<320x32xf32>
    %25 = arith.mulf %24, %3 : vector<320x32xf32>
    %26 = arith.addf %25, %6 : vector<320x32xf32>
    %cst_18 = arith.constant 0.000000e+00 : f32
    %27 = vector.broadcast %cst_18 : f32 to vector<320x32xf32>
    %28 = arith.maximumf %26, %27 : vector<320x32xf32>
    %c0_19 = arith.constant 0 : index
    %c0_20 = arith.constant 0 : index
    %c0_21 = arith.constant 0 : index
    %29 = vector.load %arg5[%c0_19, %c0_20, %c0_21] : memref<1x320x90xf32, #tpu.memory_space<vmem>>, vector<1x320x90xf32>
    %30 = vector.shape_cast %29 : vector<1x320x90xf32> to vector<320x90xf32>
    %cst_22 = arith.constant dense<0.000000e+00> : vector<320x32xf32>
    %31 = tpu.matmul %30, %0, %cst_22 {dimension_numbers = #tpu.dot_dimension_numbers<[1], [0], [0], [1], [0, 0, 1, 1], [], []>} : vector<320x90xf32>, vector<90x32xf32>, vector<320x32xf32> -> vector<320x32xf32>
    %32 = arith.mulf %31, %3 : vector<320x32xf32>
    %33 = arith.addf %32, %6 : vector<320x32xf32>
    %cst_23 = arith.constant 0.000000e+00 : f32
    %34 = vector.broadcast %cst_23 : f32 to vector<320x32xf32>
    %35 = arith.maximumf %33, %34 : vector<320x32xf32>
    %36 = arith.maximumf %28, %35 : vector<320x32xf32>
    %37 = arith.maximumf %21, %36 : vector<320x32xf32>
    %c0_24 = arith.constant 0 : index
    %c0_25 = arith.constant 0 : index
    %c0_26 = arith.constant 0 : index
    %38 = vector.load %arg9[%c0_24, %c0_25, %c0_26] : memref<1x320x32xf32, #tpu.memory_space<vmem>>, vector<1x320x32xf32>
    %39 = vector.shape_cast %38 : vector<1x320x32xf32> to vector<320x32xf32>
    %40 = vector.shape_cast %37 : vector<320x32xf32> to vector<1x320x32xf32>
    tpu.vector_store %arg9[%c0_24, %c0_25, %c0_26], %40 {strides = array<i32>} : memref<1x320x32xf32, #tpu.memory_space<vmem>>, vector<1x320x32xf32>,
    return
  }
  func.func @transform_0(%arg0: i32, %arg1: i32) -> (i32, i32, i32) {
    %c0_i32 = arith.constant 0 : i32
    %c0_i32_0 = arith.constant 0 : i32
    return %arg0, %arg1, %c0_i32 : i32, i32, i32
  }
  func.func @transform_1(%arg0: i32, %arg1: i32) -> (i32, i32, i32) {
    %c0_i32 = arith.constant 0 : i32
    %c0_i32_0 = arith.constant 0 : i32
    return %arg0, %arg1, %c0_i32 : i32, i32, i32
  }
  func.func @transform_2(%arg0: i32, %arg1: i32) -> (i32, i32, i32) {
    %c0_i32 = arith.constant 0 : i32
    %c0_i32_0 = arith.constant 0 : i32
    return %arg0, %arg1, %c0_i32 : i32, i32, i32
  }
  func.func @transform_3(%arg0: i32, %arg1: i32) -> (i32, i32, i32) {
    %c0_i32 = arith.constant 0 : i32
    %c0_i32_0 = arith.constant 0 : i32
    return %arg0, %arg1, %c0_i32 : i32, i32, i32
  }
  func.func @transform_4(%arg0: i32, %arg1: i32) -> (i32, i32) {
    %c0_i32 = arith.constant 0 : i32
    %c0_i32_0 = arith.constant 0 : i32
    %c0_i32_1 = arith.constant 0 : i32
    return %c0_i32, %c0_i32_0 : i32, i32
  }
  func.func @transform_5(%arg0: i32, %arg1: i32) -> (i32, i32) {
    %c0_i32 = arith.constant 0 : i32
    %c0_i32_0 = arith.constant 0 : i32
    %c0_i32_1 = arith.constant 0 : i32
    return %c0_i32, %c0_i32_0 : i32, i32
  }
  func.func @transform_6(%arg0: i32, %arg1: i32) -> (i32, i32) {
    %c0_i32 = arith.constant 0 : i32
    %c0_i32_0 = arith.constant 0 : i32
    %c0_i32_1 = arith.constant 0 : i32
    return %c0_i32, %c0_i32_0 : i32, i32
  }
  func.func @transform_7(%arg0: i32, %arg1: i32) -> (i32, i32, i32) {
    %c0_i32 = arith.constant 0 : i32
    %c0_i32_0 = arith.constant 0 : i32
    return %arg0, %arg1, %c0_i32 : i32, i32, i32
  }
}

module attributes {stable_mosaic.version = 11 : i64} {
  func.func @kernel(%arg0: i32, %arg1: i32, %arg2: memref<1x160x288xf32, #tpu.memory_space<vmem>>, %arg3: memref<1x160x288xf32, #tpu.memory_space<vmem>>, %arg4: memref<1x160x288xf32, #tpu.memory_space<vmem>>, %arg5: memref<1x160x288xf32, #tpu.memory_space<vmem>>, %arg6: memref<288x64xf32, #tpu.memory_space<vmem>>, %arg7: memref<1x64xf32, #tpu.memory_space<vmem>>, %arg8: memref<1x64xf32, #tpu.memory_space<vmem>>, %arg9: memref<1x160x64xbf16, #tpu.memory_space<vmem>>) attributes {dimension_semantics = [#tpu.dimension_semantics<parallel>, #tpu.dimension_semantics<parallel>], iteration_bounds = array<i64: 2, 2>, scalar_prefetch = 0 : i64, scratch_operands = 0 : i64, tpu.core_type = #tpu.core_type<tc>, window_params = [{transform_indices = @transform_0, window_bounds = array<i64: 1, 160, 288>}, {transform_indices = @transform_1, window_bounds = array<i64: 1, 160, 288>}, {transform_indices = @transform_2, window_bounds = array<i64: 1, 160, 288>}, {transform_indices = @transform_3, window_bounds = array<i64: 1, 160, 288>}, {pipeline_mode = #tpu.pipeline_mode<synchronous>, transform_indices = @transform_4, window_bounds = array<i64: 288, 64>}, {pipeline_mode = #tpu.pipeline_mode<synchronous>, transform_indices = @transform_5, window_bounds = array<i64: 1, 64>}, {pipeline_mode = #tpu.pipeline_mode<synchronous>, transform_indices = @transform_6, window_bounds = array<i64: 1, 64>}, {transform_indices = @transform_7, window_bounds = array<i64: 1, 160, 64>}]} {
    %c0 = arith.constant 0 : index
    %c0_0 = arith.constant 0 : index
    %0 = vector.load %arg6[%c0, %c0_0] : memref<288x64xf32, #tpu.memory_space<vmem>>, vector<288x64xf32>
    %c0_1 = arith.constant 0 : index
    %c0_2 = arith.constant 0 : index
    %1 = vector.load %arg7[%c0_1, %c0_2] : memref<1x64xf32, #tpu.memory_space<vmem>>, vector<1x64xf32>
    %2 = vector.shape_cast %1 : vector<1x64xf32> to vector<1x64xf32>
    %3 = vector.broadcast %2 : vector<1x64xf32> to vector<160x64xf32>
    %c0_3 = arith.constant 0 : index
    %c0_4 = arith.constant 0 : index
    %4 = vector.load %arg8[%c0_3, %c0_4] : memref<1x64xf32, #tpu.memory_space<vmem>>, vector<1x64xf32>
    %5 = vector.shape_cast %4 : vector<1x64xf32> to vector<1x64xf32>
    %6 = vector.broadcast %5 : vector<1x64xf32> to vector<160x64xf32>
    %c0_5 = arith.constant 0 : index
    %c0_6 = arith.constant 0 : index
    %c0_7 = arith.constant 0 : index
    %7 = vector.load %arg2[%c0_5, %c0_6, %c0_7] : memref<1x160x288xf32, #tpu.memory_space<vmem>>, vector<1x160x288xf32>
    %8 = vector.shape_cast %7 : vector<1x160x288xf32> to vector<160x288xf32>
    %cst = arith.constant dense<0.000000e+00> : vector<160x64xf32>
    %9 = tpu.matmul %8, %0, %cst {dimension_numbers = #tpu.dot_dimension_numbers<[1], [0], [0], [1], [0, 0, 1, 1], [], []>} : vector<160x288xf32>, vector<288x64xf32>, vector<160x64xf32> -> vector<160x64xf32>
    %10 = arith.mulf %9, %3 : vector<160x64xf32>
    %11 = arith.addf %10, %6 : vector<160x64xf32>
    %cst_8 = arith.constant 0.000000e+00 : f32
    %12 = vector.broadcast %cst_8 : f32 to vector<160x64xf32>
    %13 = arith.maximumf %11, %12 : vector<160x64xf32>
    %c0_9 = arith.constant 0 : index
    %c0_10 = arith.constant 0 : index
    %c0_11 = arith.constant 0 : index
    %14 = vector.load %arg3[%c0_9, %c0_10, %c0_11] : memref<1x160x288xf32, #tpu.memory_space<vmem>>, vector<1x160x288xf32>
    %15 = vector.shape_cast %14 : vector<1x160x288xf32> to vector<160x288xf32>
    %cst_12 = arith.constant dense<0.000000e+00> : vector<160x64xf32>
    %16 = tpu.matmul %15, %0, %cst_12 {dimension_numbers = #tpu.dot_dimension_numbers<[1], [0], [0], [1], [0, 0, 1, 1], [], []>} : vector<160x288xf32>, vector<288x64xf32>, vector<160x64xf32> -> vector<160x64xf32>
    %17 = arith.mulf %16, %3 : vector<160x64xf32>
    %18 = arith.addf %17, %6 : vector<160x64xf32>
    %cst_13 = arith.constant 0.000000e+00 : f32
    %19 = vector.broadcast %cst_13 : f32 to vector<160x64xf32>
    %20 = arith.maximumf %18, %19 : vector<160x64xf32>
    %21 = arith.maximumf %13, %20 : vector<160x64xf32>
    %c0_14 = arith.constant 0 : index
    %c0_15 = arith.constant 0 : index
    %c0_16 = arith.constant 0 : index
    %22 = vector.load %arg4[%c0_14, %c0_15, %c0_16] : memref<1x160x288xf32, #tpu.memory_space<vmem>>, vector<1x160x288xf32>
    %23 = vector.shape_cast %22 : vector<1x160x288xf32> to vector<160x288xf32>
    %cst_17 = arith.constant dense<0.000000e+00> : vector<160x64xf32>
    %24 = tpu.matmul %23, %0, %cst_17 {dimension_numbers = #tpu.dot_dimension_numbers<[1], [0], [0], [1], [0, 0, 1, 1], [], []>} : vector<160x288xf32>, vector<288x64xf32>, vector<160x64xf32> -> vector<160x64xf32>
    %25 = arith.mulf %24, %3 : vector<160x64xf32>
    %26 = arith.addf %25, %6 : vector<160x64xf32>
    %cst_18 = arith.constant 0.000000e+00 : f32
    %27 = vector.broadcast %cst_18 : f32 to vector<160x64xf32>
    %28 = arith.maximumf %26, %27 : vector<160x64xf32>
    %c0_19 = arith.constant 0 : index
    %c0_20 = arith.constant 0 : index
    %c0_21 = arith.constant 0 : index
    %29 = vector.load %arg5[%c0_19, %c0_20, %c0_21] : memref<1x160x288xf32, #tpu.memory_space<vmem>>, vector<1x160x288xf32>
    %30 = vector.shape_cast %29 : vector<1x160x288xf32> to vector<160x288xf32>
    %cst_22 = arith.constant dense<0.000000e+00> : vector<160x64xf32>
    %31 = tpu.matmul %30, %0, %cst_22 {dimension_numbers = #tpu.dot_dimension_numbers<[1], [0], [0], [1], [0, 0, 1, 1], [], []>} : vector<160x288xf32>, vector<288x64xf32>, vector<160x64xf32> -> vector<160x64xf32>
    %32 = arith.mulf %31, %3 : vector<160x64xf32>
    %33 = arith.addf %32, %6 : vector<160x64xf32>
    %cst_23 = arith.constant 0.000000e+00 : f32
    %34 = vector.broadcast %cst_23 : f32 to vector<160x64xf32>
    %35 = arith.maximumf %33, %34 : vector<160x64xf32>
    %36 = arith.maximumf %28, %35 : vector<160x64xf32>
    %37 = arith.maximumf %21, %36 : vector<160x64xf32>
    %38 = arith.truncf %37 : vector<160x64xf32> to vector<160x64xbf16>
    %c0_24 = arith.constant 0 : index
    %c0_25 = arith.constant 0 : index
    %c0_26 = arith.constant 0 : index
    %39 = vector.load %arg9[%c0_24, %c0_25, %c0_26] : memref<1x160x64xbf16, #tpu.memory_space<vmem>>, vector<1x160x64xbf16>
    %40 = vector.shape_cast %39 : vector<1x160x64xbf16> to vector<160x64xbf16>
    %41 = vector.shape_cast %38 : vector<160x64xbf16> to vector<1x160x64xbf16>
    tpu.vector_store %arg9[%c0_24, %c0_25, %c0_26], %41 {strides = array<i32>} : memref<1x160x64xbf16, #tpu.memory_space<vmem>>, vector<1x160x64xbf16>,
    return
  }
  func.func @transform_0(%arg0: i32, %arg1: i32) -> (i32, i32, i32) {
    %c0_i32 = arith.constant 0 : i32
    %c0_i32_0 = arith.constant 0 : i32
    return %arg0, %arg1, %c0_i32 : i32, i32, i32
  }
  func.func @transform_1(%arg0: i32, %arg1: i32) -> (i32, i32, i32) {
    %c0_i32 = arith.constant 0 : i32
    %c0_i32_0 = arith.constant 0 : i32
    return %arg0, %arg1, %c0_i32 : i32, i32, i32
  }
  func.func @transform_2(%arg0: i32, %arg1: i32) -> (i32, i32, i32) {
    %c0_i32 = arith.constant 0 : i32
    %c0_i32_0 = arith.constant 0 : i32
    return %arg0, %arg1, %c0_i32 : i32, i32, i32
  }
  func.func @transform_3(%arg0: i32, %arg1: i32) -> (i32, i32, i32) {
    %c0_i32 = arith.constant 0 : i32
    %c0_i32_0 = arith.constant 0 : i32
    return %arg0, %arg1, %c0_i32 : i32, i32, i32
  }
  func.func @transform_4(%arg0: i32, %arg1: i32) -> (i32, i32) {
    %c0_i32 = arith.constant 0 : i32
    %c0_i32_0 = arith.constant 0 : i32
    %c0_i32_1 = arith.constant 0 : i32
    return %c0_i32, %c0_i32_0 : i32, i32
  }
  func.func @transform_5(%arg0: i32, %arg1: i32) -> (i32, i32) {
    %c0_i32 = arith.constant 0 : i32
    %c0_i32_0 = arith.constant 0 : i32
    %c0_i32_1 = arith.constant 0 : i32
    return %c0_i32, %c0_i32_0 : i32, i32
  }
  func.func @transform_6(%arg0: i32, %arg1: i32) -> (i32, i32) {
    %c0_i32 = arith.constant 0 : i32
    %c0_i32_0 = arith.constant 0 : i32
    %c0_i32_1 = arith.constant 0 : i32
    return %c0_i32, %c0_i32_0 : i32, i32
  }
  func.func @transform_7(%arg0: i32, %arg1: i32) -> (i32, i32, i32) {
    %c0_i32 = arith.constant 0 : i32
    %c0_i32_0 = arith.constant 0 : i32
    return %arg0, %arg1, %c0_i32 : i32, i32, i32
  }
}

module attributes {stable_mosaic.version = 11 : i64} {
  func.func @mlp_kernel(%arg0: i32, %arg1: memref<2x4096xbf16, #tpu.memory_space<vmem>>, %arg2: memref<4096x128xbf16, #tpu.memory_space<vmem>>, %arg3: memref<1x128xf32, #tpu.memory_space<vmem>>, %arg4: memref<128x10xf32, #tpu.memory_space<vmem>>, %arg5: memref<1x10xf32, #tpu.memory_space<vmem>>, %arg6: memref<2x10xf32, #tpu.memory_space<vmem>>, %arg7: memref<2x128xf32, #tpu.memory_space<vmem>>) attributes {dimension_semantics = [#tpu.dimension_semantics<arbitrary>], iteration_bounds = array<i64: 5>, scalar_prefetch = 0 : i64, scratch_operands = 1 : i64, tpu.core_type = #tpu.core_type<tc>, window_params = [{transform_indices = @transform_0, window_bounds = array<i64: 2, 4096>}, {transform_indices = @transform_1, window_bounds = array<i64: 4096, 128>}, {pipeline_mode = #tpu.pipeline_mode<synchronous>, transform_indices = @transform_2, window_bounds = array<i64: 1, 128>}, {pipeline_mode = #tpu.pipeline_mode<synchronous>, transform_indices = @transform_3, window_bounds = array<i64: 128, 10>}, {pipeline_mode = #tpu.pipeline_mode<synchronous>, transform_indices = @transform_4, window_bounds = array<i64: 1, 10>}, {pipeline_mode = #tpu.pipeline_mode<synchronous>, transform_indices = @transform_5, window_bounds = array<i64: 2, 10>}]} {
    %c0_i32 = arith.constant 0 : i32
    %0 = arith.cmpi eq, %arg0, %c0_i32 : i32
    %1 = arith.extui %0 : i1 to i32
    %c0_i32_0 = arith.constant 0 : i32
    %2 = arith.cmpi ne, %1, %c0_i32_0 : i32
    scf.if %2 {
      %cst_9 = arith.constant 0.000000e+00 : f32
      %12 = vector.broadcast %cst_9 : f32 to vector<2x128xf32>
      %c0_10 = arith.constant 0 : index
      %c0_11 = arith.constant 0 : index
      %13 = vector.load %arg7[%c0_10, %c0_11] : memref<2x128xf32, #tpu.memory_space<vmem>>, vector<2x128xf32>
      tpu.vector_store %arg7[%c0_10, %c0_11], %12 {strides = array<i32>} : memref<2x128xf32, #tpu.memory_space<vmem>>, vector<2x128xf32>,
    } else {
    }
    %c0 = arith.constant 0 : index
    %c0_1 = arith.constant 0 : index
    %3 = vector.load %arg7[%c0, %c0_1] : memref<2x128xf32, #tpu.memory_space<vmem>>, vector<2x128xf32>
    %c0_2 = arith.constant 0 : index
    %c0_3 = arith.constant 0 : index
    %4 = vector.load %arg1[%c0_2, %c0_3] : memref<2x4096xbf16, #tpu.memory_space<vmem>>, vector<2x4096xbf16>
    %c0_4 = arith.constant 0 : index
    %c0_5 = arith.constant 0 : index
    %5 = vector.load %arg2[%c0_4, %c0_5] : memref<4096x128xbf16, #tpu.memory_space<vmem>>, vector<4096x128xbf16>
    %cst = arith.constant dense<0.000000e+00> : vector<2x128xf32>
    %6 = tpu.matmul %4, %5, %cst {dimension_numbers = #tpu.dot_dimension_numbers<[1], [0], [0], [1], [0, 0, 1, 1], [], []>} : vector<2x4096xbf16>, vector<4096x128xbf16>, vector<2x128xf32> -> vector<2x128xf32>
    %7 = arith.addf %3, %6 : vector<2x128xf32>
    %c0_6 = arith.constant 0 : index
    %c0_7 = arith.constant 0 : index
    %8 = vector.load %arg7[%c0_6, %c0_7] : memref<2x128xf32, #tpu.memory_space<vmem>>, vector<2x128xf32>
    tpu.vector_store %arg7[%c0_6, %c0_7], %7 {strides = array<i32>} : memref<2x128xf32, #tpu.memory_space<vmem>>, vector<2x128xf32>,
    %c4_i32 = arith.constant 4 : i32
    %9 = arith.cmpi eq, %arg0, %c4_i32 : i32
    %10 = arith.extui %9 : i1 to i32
    %c0_i32_8 = arith.constant 0 : i32
    %11 = arith.cmpi ne, %10, %c0_i32_8 : i32
    scf.if %11 {
      %c0_9 = arith.constant 0 : index
      %c0_10 = arith.constant 0 : index
      %12 = vector.load %arg7[%c0_9, %c0_10] : memref<2x128xf32, #tpu.memory_space<vmem>>, vector<2x128xf32>
      %c0_11 = arith.constant 0 : index
      %c0_12 = arith.constant 0 : index
      %13 = vector.load %arg3[%c0_11, %c0_12] : memref<1x128xf32, #tpu.memory_space<vmem>>, vector<1x128xf32>
      %14 = vector.broadcast %13 : vector<1x128xf32> to vector<2x128xf32>
      %15 = arith.addf %12, %14 : vector<2x128xf32>
      %cst_13 = arith.constant 0.000000e+00 : f32
      %16 = vector.broadcast %cst_13 : f32 to vector<2x128xf32>
      %17 = arith.maximumf %15, %16 : vector<2x128xf32>
      %c0_14 = arith.constant 0 : index
      %c0_15 = arith.constant 0 : index
      %18 = vector.load %arg4[%c0_14, %c0_15] : memref<128x10xf32, #tpu.memory_space<vmem>>, vector<128x10xf32>
      %cst_16 = arith.constant dense<0.000000e+00> : vector<2x10xf32>
      %19 = tpu.matmul %17, %18, %cst_16 {dimension_numbers = #tpu.dot_dimension_numbers<[1], [0], [0], [1], [0, 0, 1, 1], [], []>} : vector<2x128xf32>, vector<128x10xf32>, vector<2x10xf32> -> vector<2x10xf32>
      %c0_17 = arith.constant 0 : index
      %c0_18 = arith.constant 0 : index
      %20 = vector.load %arg5[%c0_17, %c0_18] : memref<1x10xf32, #tpu.memory_space<vmem>>, vector<1x10xf32>
      %21 = vector.broadcast %20 : vector<1x10xf32> to vector<2x10xf32>
      %22 = arith.addf %19, %21 : vector<2x10xf32>
      %c0_19 = arith.constant 0 : index
      %c0_20 = arith.constant 0 : index
      %23 = vector.load %arg6[%c0_19, %c0_20] : memref<2x10xf32, #tpu.memory_space<vmem>>, vector<2x10xf32>
      tpu.vector_store %arg6[%c0_19, %c0_20], %22 {strides = array<i32>} : memref<2x10xf32, #tpu.memory_space<vmem>>, vector<2x10xf32>,
    } else {
    }
    return
  }
  func.func @transform_0(%arg0: i32) -> (i32, i32) {
    %c0_i32 = arith.constant 0 : i32
    %c0_i32_0 = arith.constant 0 : i32
    return %c0_i32, %arg0 : i32, i32
  }
  func.func @transform_1(%arg0: i32) -> (i32, i32) {
    %c0_i32 = arith.constant 0 : i32
    %c0_i32_0 = arith.constant 0 : i32
    return %arg0, %c0_i32 : i32, i32
  }
  func.func @transform_2(%arg0: i32) -> (i32, i32) {
    %c0_i32 = arith.constant 0 : i32
    %c0_i32_0 = arith.constant 0 : i32
    %c0_i32_1 = arith.constant 0 : i32
    return %c0_i32, %c0_i32_0 : i32, i32
  }
  func.func @transform_3(%arg0: i32) -> (i32, i32) {
    %c0_i32 = arith.constant 0 : i32
    %c0_i32_0 = arith.constant 0 : i32
    %c0_i32_1 = arith.constant 0 : i32
    return %c0_i32, %c0_i32_0 : i32, i32
  }
  func.func @transform_4(%arg0: i32) -> (i32, i32) {
    %c0_i32 = arith.constant 0 : i32
    %c0_i32_0 = arith.constant 0 : i32
    %c0_i32_1 = arith.constant 0 : i32
    return %c0_i32, %c0_i32_0 : i32, i32
  }
  func.func @transform_5(%arg0: i32) -> (i32, i32) {
    %c0_i32 = arith.constant 0 : i32
    %c0_i32_0 = arith.constant 0 : i32
    %c0_i32_1 = arith.constant 0 : i32
    return %c0_i32, %c0_i32_0 : i32, i32
  }
}

</mosaic_0001>

<llo_original>
// kernel: music_cnn_forward.3
$region0: #{music_cnn_forward.3}
  #allocation0 [shape = 'u32[]', space=smem, size = 0x4, offset = 0x4, fixed_abs, tag = 'smem constant byte address 0x4 - core index']
  #allocation1 [shape = 'u32[144,128]{1,0:T(1,128)}', space=vmem, size = 0x12000, scoped, tag = 'internal scratch']
  %s0 = inlined_call_operand.vmem [shape: f32[2,1280,90], index: 0, kind: input, shape index: {}]
  %s1 = inlined_call_operand.vmem [shape: f32[2,1280,90], index: 1, kind: input, shape index: {}]
  %s2 = inlined_call_operand.vmem [shape: f32[2,1280,90], index: 2, kind: input, shape index: {}]
  %s3 = inlined_call_operand.vmem [shape: f32[2,1280,90], index: 3, kind: input, shape index: {}]
  %s4 = inlined_call_operand.vmem [shape: f32[90,32], index: 4, kind: input, shape index: {}]
  %s5 = inlined_call_operand.vmem [shape: f32[1,32], index: 5, kind: input, shape index: {}]
  %s6 = inlined_call_operand.vmem [shape: f32[1,32], index: 6, kind: input, shape index: {}]
  %s7 = inlined_call_operand.vmem [shape: f32[2,1280,32], index: 7, kind: output, shape index: {}]
  %s8 = sld [smem:[#allocation0]]
  $region61: #{music_cnn_forward.3} parent=0
    _
  %s10 = ssub.s32 1, %s8
  %s11 = scalar_select 0, %s10, %s8
  loop: start=0, step=1, limit=10
  $region2: #{music_cnn_forward.3} parent=0 // loop_pre_header
    _
  $region3: #{music_cnn_forward.3} parent=0 // loop_header
    %s13 = sphi 0, %s17
    %p14 = scmp.ge.s32.totalorder %s13, 10
    %s20 = sphi 0, %s32
    %s21 = sphi 0, %s28
    %s22 = sphi 0, %s20
    %s23 = sphi 0, %s21
    %s24 = sphi 0, %s22
    %s25 = sphi 0, %s23
    %s37 = sphi 0, %s39
    %s40 = sphi 0, %s37
    %s41 = sphi 0, %s40
    %s57 = sphi 0, %s41
    %s65 = sphi 0, %s67
    %s68 = sphi 0, %s65
    %s69 = sphi 0, %s68
    %s85 = sphi 0, %s69
    %s93 = sphi 0, %s95
    %s96 = sphi 0, %s93
    %s97 = sphi 0, %s96
    %s113 = sphi 0, %s97
    %s121 = sphi 0, %s123
    %s124 = sphi 0, %s121
    %s125 = sphi 0, %s124
    %s141 = sphi 0, %s125
    %s145 = sphi 0, %s145
    %s147 = sphi 0, %s145
    %s148 = sphi 0, %s147
    %s162 = sphi 0, %s148
    %s166 = sphi 0, %s166
    %s168 = sphi 0, %s166
    %s169 = sphi 0, %s168
    %s183 = sphi 0, %s169
    %s187 = sphi 0, %s187
    %s189 = sphi 0, %s187
    %s190 = sphi 0, %s189
    %s204 = sphi 0, %s190
    %s212 = sphi 0, %s214
    %s215 = sphi 0, %s212
    %s216 = sphi 0, %s215
    %s232 = sphi 0, %s216
  $region4: #{music_cnn_forward.3} parent=0 // loop_header_branch
    %16 = sbr.rel (%p14) target = $region8
  $region5: #{music_cnn_forward.3} parent=0 // loop_body
    %s18 = ssub.s32 %s13, 1
    %s19 = ssub.s32 %s13, 2
    %s26 = sadd.s32 1, %s21
    %p27 = scmp.ge.s32.totalorder %s26, 4
    %s28 = scalar_select %p27, 0, %s26
    %s29 = sadd.s32 1, %s20
    %s30 = scalar_select %p27, %s29, %s20
    %p31 = scmp.ge.s32.totalorder %s30, 2
    %s32 = scalar_select %p31, 0, %s30
    %s33 = ssub.s32 %s20, %s32
    %s34 = ssub.s32 %s21, %s28
    %s35 = sor.u32 %s33, %s34
    %p36 = scmp.eq.s32.totalorder %s35, 0
    %s38 = sadd.s32 %s37, 1
    %s39 = scalar_select %p36, %s37, %s38
    %p42 = pneg %p36
    %p43 = scmp.eq.s32.totalorder %s13, 7
    %p44 = por %p42, %p43
    %p45 = scmp.ne.s32.totalorder %s37, %s40
    %p46 = scmp.eq.s32.totalorder %s13, 0
    %p47 = por %p45, %p46
    %p48 = scmp.ne.s32.totalorder %s37, %s40
    %p49 = scmp.eq.s32.totalorder %s18, 7
    %p50 = por %p48, %p49
    %p51 = scmp.ne.s32.totalorder %s40, %s41
    %p52 = scmp.eq.s32.totalorder %s18, 0
    %p53 = por %p51, %p52
    %p54 = scmp.ne.s32.totalorder %s40, %s41
    %p55 = scmp.eq.s32.totalorder %s19, 7
    %p56 = por %p54, %p55
    %p58 = scmp.ne.s32.totalorder %s41, %s57
    %p59 = scmp.eq.s32.totalorder %s19, 0
    %p60 = por %p58, %p59
    %s61 = ssub.s32 %s20, %s32
    %s62 = ssub.s32 %s21, %s28
    %s63 = sor.u32 %s61, %s62
    %p64 = scmp.eq.s32.totalorder %s63, 0
    %s66 = sadd.s32 %s65, 1
    %s67 = scalar_select %p64, %s65, %s66
    %p70 = pneg %p64
    %p71 = scmp.eq.s32.totalorder %s13, 7
    %p72 = por %p70, %p71
    %p73 = scmp.ne.s32.totalorder %s65, %s68
    %p74 = scmp.eq.s32.totalorder %s13, 0
    %p75 = por %p73, %p74
    %p76 = scmp.ne.s32.totalorder %s65, %s68
    %p77 = scmp.eq.s32.totalorder %s18, 7
    %p78 = por %p76, %p77
    %p79 = scmp.ne.s32.totalorder %s68, %s69
    %p80 = scmp.eq.s32.totalorder %s18, 0
    %p81 = por %p79, %p80
    %p82 = scmp.ne.s32.totalorder %s68, %s69
    %p83 = scmp.eq.s32.totalorder %s19, 7
    %p84 = por %p82, %p83
    %p86 = scmp.ne.s32.totalorder %s69, %s85
    %p87 = scmp.eq.s32.totalorder %s19, 0
    %p88 = por %p86, %p87
    %s89 = ssub.s32 %s20, %s32
    %s90 = ssub.s32 %s21, %s28
    %s91 = sor.u32 %s89, %s90
    %p92 = scmp.eq.s32.totalorder %s91, 0
    %s94 = sadd.s32 %s93, 1
    %s95 = scalar_select %p92, %s93, %s94
    %p98 = pneg %p92
    %p99 = scmp.eq.s32.totalorder %s13, 7
    %p100 = por %p98, %p99
    %p101 = scmp.ne.s32.totalorder %s93, %s96
    %p102 = scmp.eq.s32.totalorder %s13, 0
    %p103 = por %p101, %p102
    %p104 = scmp.ne.s32.totalorder %s93, %s96
    %p105 = scmp.eq.s32.totalorder %s18, 7
    %p106 = por %p104, %p105
    %p107 = scmp.ne.s32.totalorder %s96, %s97
    %p108 = scmp.eq.s32.totalorder %s18, 0
    %p109 = por %p107, %p108
    %p110 = scmp.ne.s32.totalorder %s96, %s97
    %p111 = scmp.eq.s32.totalorder %s19, 7
    %p112 = por %p110, %p111
    %p114 = scmp.ne.s32.totalorder %s97, %s113
    %p115 = scmp.eq.s32.totalorder %s19, 0
    %p116 = por %p114, %p115
    %s117 = ssub.s32 %s20, %s32
    %s118 = ssub.s32 %s21, %s28
    %s119 = sor.u32 %s117, %s118
    %p120 = scmp.eq.s32.totalorder %s119, 0
    %s122 = sadd.s32 %s121, 1
    %s123 = scalar_select %p120, %s121, %s122
    %p126 = pneg %p120
    %p127 = scmp.eq.s32.totalorder %s13, 7
    %p128 = por %p126, %p127
    %p129 = scmp.ne.s32.totalorder %s121, %s124
    %p130 = scmp.eq.s32.totalorder %s13, 0
    %p131 = por %p129, %p130
    %p132 = scmp.ne.s32.totalorder %s121, %s124
    %p133 = scmp.eq.s32.totalorder %s18, 7
    %p134 = por %p132, %p133
    %p135 = scmp.ne.s32.totalorder %s124, %s125
    %p136 = scmp.eq.s32.totalorder %s18, 0
    %p137 = por %p135, %p136
    %p138 = scmp.ne.s32.totalorder %s124, %s125
    %p139 = scmp.eq.s32.totalorder %s19, 7
    %p140 = por %p138, %p139
    %p142 = scmp.ne.s32.totalorder %s125, %s141
    %p143 = scmp.eq.s32.totalorder %s19, 0
    %p144 = por %p142, %p143
    %s146 = sadd.s32 %s145, 1
    %p149 = scmp.eq.s32.totalorder %s13, 7
    %p150 = scmp.ne.s32.totalorder %s145, %s147
    %p151 = scmp.eq.s32.totalorder %s13, 0
    %p152 = por %p150, %p151
    %p153 = scmp.ne.s32.totalorder %s145, %s147
    %p154 = scmp.eq.s32.totalorder %s18, 7
    %p155 = por %p153, %p154
    %p156 = scmp.ne.s32.totalorder %s147, %s148
    %p157 = scmp.eq.s32.totalorder %s18, 0
    %p158 = por %p156, %p157
    %p159 = scmp.ne.s32.totalorder %s147, %s148
    %p160 = scmp.eq.s32.totalorder %s19, 7
    %p161 = por %p159, %p160
    %p163 = scmp.ne.s32.totalorder %s148, %s162
    %p164 = scmp.eq.s32.totalorder %s19, 0
    %p165 = por %p163, %p164
    %s167 = sadd.s32 %s166, 1
    %p170 = scmp.eq.s32.totalorder %s13, 7
    %p171 = scmp.ne.s32.totalorder %s166, %s168
    %p172 = scmp.eq.s32.totalorder %s13, 0
    %p173 = por %p171, %p172
    %p174 = scmp.ne.s32.totalorder %s166, %s168
    %p175 = scmp.eq.s32.totalorder %s18, 7
    %p176 = por %p174, %p175
    %p177 = scmp.ne.s32.totalorder %s168, %s169
    %p178 = scmp.eq.s32.totalorder %s18, 0
    %p179 = por %p177, %p178
    %p180 = scmp.ne.s32.totalorder %s168, %s169
    %p181 = scmp.eq.s32.totalorder %s19, 7
    %p182 = por %p180, %p181
    %p184 = scmp.ne.s32.totalorder %s169, %s183
    %p185 = scmp.eq.s32.totalorder %s19, 0
    %p186 = por %p184, %p185
    %s188 = sadd.s32 %s187, 1
    %p191 = scmp.eq.s32.totalorder %s13, 7
    %p192 = scmp.ne.s32.totalorder %s187, %s189
    %p193 = scmp.eq.s32.totalorder %s13, 0
    %p194 = por %p192, %p193
    %p195 = scmp.ne.s32.totalorder %s187, %s189
    %p196 = scmp.eq.s32.totalorder %s18, 7
    %p197 = por %p195, %p196
    %p198 = scmp.ne.s32.totalorder %s189, %s190
    %p199 = scmp.eq.s32.totalorder %s18, 0
    %p200 = por %p198, %p199
    %p201 = scmp.ne.s32.totalorder %s189, %s190
    %p202 = scmp.eq.s32.totalorder %s19, 7
    %p203 = por %p201, %p202
    %p205 = scmp.ne.s32.totalorder %s190, %s204
    %p206 = scmp.eq.s32.totalorder %s19, 0
    %p207 = por %p205, %p206
    %s208 = ssub.s32 %s20, %s32
    %s209 = ssub.s32 %s21, %s28
    %s210 = sor.u32 %s208, %s209
    %p211 = scmp.eq.s32.totalorder %s210, 0
    %s213 = sadd.s32 %s212, 1
    %s214 = scalar_select %p211, %s212, %s213
    %p217 = pneg %p211
    %p218 = scmp.eq.s32.totalorder %s13, 7
    %p219 = por %p217, %p218
    %p220 = scmp.ne.s32.totalorder %s212, %s215
    %p221 = scmp.eq.s32.totalorder %s13, 0
    %p222 = por %p220, %p221
    %p223 = scmp.ne.s32.totalorder %s212, %s215
    %p224 = scmp.eq.s32.totalorder %s18, 7
    %p225 = por %p223, %p224
    %p226 = scmp.ne.s32.totalorder %s215, %s216
    %p227 = scmp.eq.s32.totalorder %s18, 0
    %p228 = por %p226, %p227
    %p229 = scmp.ne.s32.totalorder %s215, %s216
    %p230 = scmp.eq.s32.totalorder %s19, 7
    %p231 = por %p229, %p230
    %p233 = scmp.ne.s32.totalorder %s216, %s232
    %p234 = scmp.eq.s32.totalorder %s19, 0
    %p235 = por %p233, %p234
    %p236 = scmp.le.s32.totalorder 1, %s13
    %p237 = scmp.lt.s32.totalorder %s13, 9
    %p238 = pnand %p236, %p237
    %p239 = pneg %p238
    // Predicated region
    $region9: #{music_cnn_forward.3} parent=5 // pred_check
      _
    $region10: #{music_cnn_forward.3} parent=5 // pred_check_branch
      %241 = sbr.rel (%p238) target = $region12
    $region11: #{music_cnn_forward.3} parent=5 // pred_region
      %s242 = ssub.s32 %s13, 1
      // Predicated region
      $region13: #{music_cnn_forward.3} parent=11 // pred_check
        %p243 = pneg %p158
      $region14: #{music_cnn_forward.3} parent=11 // pred_check_branch
        %245 = sbr.rel (%p243) target = $region16
      $region15: #{music_cnn_forward.3} parent=11 // pred_region
        _
      $region16: #{music_cnn_forward.3} parent=11 // pred_fallthru
        _
      // Predicated region
      $region17: #{music_cnn_forward.3} parent=11 // pred_check
        %p246 = pneg %p179
      $region18: #{music_cnn_forward.3} parent=11 // pred_check_branch
        %248 = sbr.rel (%p246) target = $region20
      $region19: #{music_cnn_forward.3} parent=11 // pred_region
        _
      $region20: #{music_cnn_forward.3} parent=11 // pred_fallthru
        _
      // Predicated region
      $region21: #{music_cnn_forward.3} parent=11 // pred_check
        %p249 = pneg %p200
      $region22: #{music_cnn_forward.3} parent=11 // pred_check_branch
        %251 = sbr.rel (%p249) target = $region24
      $region23: #{music_cnn_forward.3} parent=11 // pred_region
        _
      $region24: #{music_cnn_forward.3} parent=11 // pred_fallthru
        _
    $region12: #{music_cnn_forward.3} parent=5 // pred_fallthru
      _
    %p252 = scmp.lt.s32.totalorder %s13, 8
    // Predicated region
    $region25: #{music_cnn_forward.3} parent=5 // pred_check
      %p253 = pneg %p252
    $region26: #{music_cnn_forward.3} parent=5 // pred_check_branch
      %255 = sbr.rel (%p253) target = $region28
    $region27: #{music_cnn_forward.3} parent=5 // pred_region
      // Predicated region
      $region29: #{music_cnn_forward.3} parent=27 // pred_check
        %p256 = pneg %p47
      $region30: #{music_cnn_forward.3} parent=27 // pred_check_branch
        %258 = sbr.rel (%p256) target = $region32
      $region31: #{music_cnn_forward.3} parent=27 // pred_region
        %s259 = smul.u32 40, %s21
        %p260 = scmp.lt.s32.totalorder %s20, 1
        %s261 = scalar_select %p260, %s20, 1
        %p262 = scmp.lt.s32.totalorder %s259, 159
        %s263 = scalar_select %p262, %s259, 159
        %s264 = smul.addr %s261, 160
        %s265 = sadd.s32 %s263, %s264
        %s266 = smul.addr %s265, 8
        %s267 = scalar_lea.vmem %s0, %s266
        %s268 = smul.u32 40, %s21
      $region32: #{music_cnn_forward.3} parent=27 // pred_fallthru
        _
      // Predicated region
      $region33: #{music_cnn_forward.3} parent=27 // pred_check
        %p269 = pneg %p75
      $region34: #{music_cnn_forward.3} parent=27 // pred_check_branch
        %271 = sbr.rel (%p269) target = $region36
      $region35: #{music_cnn_forward.3} parent=27 // pred_region
        %s272 = smul.u32 40, %s21
        %p273 = scmp.lt.s32.totalorder %s20, 1
        %s274 = scalar_select %p273, %s20, 1
        %p275 = scmp.lt.s32.totalorder %s272, 159
        %s276 = scalar_select %p275, %s272, 159
        %s277 = smul.addr %s274, 160
        %s278 = sadd.s32 %s276, %s277
        %s279 = smul.addr %s278, 8
        %s280 = scalar_lea.vmem %s1, %s279
        %s281 = smul.u32 40, %s21
      $region36: #{music_cnn_forward.3} parent=27 // pred_fallthru
        _
      // Predicated region
      $region37: #{music_cnn_forward.3} parent=27 // pred_check
        %p282 = pneg %p103
      $region38: #{music_cnn_forward.3} parent=27 // pred_check_branch
        %284 = sbr.rel (%p282) target = $region40
      $region39: #{music_cnn_forward.3} parent=27 // pred_region
        %s285 = smul.u32 40, %s21
        %p286 = scmp.lt.s32.totalorder %s20, 1
        %s287 = scalar_select %p286, %s20, 1
        %p288 = scmp.lt.s32.totalorder %s285, 159
        %s289 = scalar_select %p288, %s285, 159
        %s290 = smul.addr %s287, 160
        %s291 = sadd.s32 %s289, %s290
        %s292 = smul.addr %s291, 8
        %s293 = scalar_lea.vmem %s2, %s292
        %s294 = smul.u32 40, %s21
      $region40: #{music_cnn_forward.3} parent=27 // pred_fallthru
        _
      // Predicated region
      $region41: #{music_cnn_forward.3} parent=27 // pred_check
        %p295 = pneg %p131
      $region42: #{music_cnn_forward.3} parent=27 // pred_check_branch
        %297 = sbr.rel (%p295) target = $region44
      $region43: #{music_cnn_forward.3} parent=27 // pred_region
        %s298 = smul.u32 40, %s21
        %p299 = scmp.lt.s32.totalorder %s20, 1
        %s300 = scalar_select %p299, %s20, 1
        %p301 = scmp.lt.s32.totalorder %s298, 159
        %s302 = scalar_select %p301, %s298, 159
        %s303 = smul.addr %s300, 160
        %s304 = sadd.s32 %s302, %s303
        %s305 = smul.addr %s304, 8
        %s306 = scalar_lea.vmem %s3, %s305
        %s307 = smul.u32 40, %s21
      $region44: #{music_cnn_forward.3} parent=27 // pred_fallthru
        _
    $region28: #{music_cnn_forward.3} parent=5 // pred_fallthru
      _
    %p308 = scmp.le.s32.totalorder 1, %s13
    %p309 = scmp.lt.s32.totalorder %s13, 9
    %p310 = pnand %p308, %p309
    %p311 = pneg %p310
    // Predicated region
    $region45: #{music_cnn_forward.3} parent=5 // pred_check
      _
    $region46: #{music_cnn_forward.3} parent=5 // pred_check_branch
      %313 = sbr.rel (%p310) target = $region48
    $region47: #{music_cnn_forward.3} parent=5 // pred_region
      %s314 = ssub.s32 %s13, 1
      %s315 = smul.u32 40, %s23
      %p316 = scmp.lt.s32.totalorder %s22, 1
      %s317 = scalar_select %p316, %s22, 1
      %p318 = scmp.lt.s32.totalorder %s315, 159
      %s319 = scalar_select %p318, %s315, 159
      %s320 = smul.addr %s317, 160
      %s321 = sadd.s32 %s319, %s320
      %s322 = smul.addr %s321, 8
      %s323 = scalar_lea.vmem %s0, %s322
      %p324 = pneg %p53
      %p325 = pneg %p50
      %s326 = smul.u32 40, %s23
      %p327 = scmp.lt.s32.totalorder %s22, 1
      %s328 = scalar_select %p327, %s22, 1
      %p329 = scmp.lt.s32.totalorder %s326, 159
      %s330 = scalar_select %p329, %s326, 159
      %s331 = smul.addr %s328, 160
      %s332 = sadd.s32 %s330, %s331
      %s333 = smul.addr %s332, 8
      %s334 = scalar_lea.vmem %s1, %s333
      %p335 = pneg %p81
      %p336 = pneg %p78
      %s337 = smul.u32 40, %s23
      %p338 = scmp.lt.s32.totalorder %s22, 1
      %s339 = scalar_select %p338, %s22, 1
      %p340 = scmp.lt.s32.totalorder %s337, 159
      %s341 = scalar_select %p340, %s337, 159
      %s342 = smul.addr %s339, 160
      %s343 = sadd.s32 %s341, %s342
      %s344 = smul.addr %s343, 8
      %s345 = scalar_lea.vmem %s2, %s344
      %p346 = pneg %p109
      %p347 = pneg %p106
      %s348 = smul.u32 40, %s23
      %p349 = scmp.lt.s32.totalorder %s22, 1
      %s350 = scalar_select %p349, %s22, 1
      %p351 = scmp.lt.s32.totalorder %s348, 159
      %s352 = scalar_select %p351, %s348, 159
      %s353 = smul.addr %s350, 160
      %s354 = sadd.s32 %s352, %s353
      %s355 = smul.addr %s354, 8
      %s356 = scalar_lea.vmem %s3, %s355
      %p357 = pneg %p137
      %p358 = pneg %p134
      %p359 = pneg %p158
      %p360 = pneg %p155
      %p361 = pneg %p179
      %p362 = pneg %p176
      %p363 = pneg %p200
      %p364 = pneg %p197
      %p365 = pneg %p228
      %p366 = pneg %p225
      %s367 = smul.u32 40, %s23
      %p368 = scmp.lt.s32.totalorder %s22, 1
      %s369 = scalar_select %p368, %s22, 1
      %p370 = scmp.lt.s32.totalorder %s367, 159
      %s371 = scalar_select %p370, %s367, 159
      %s372 = smul.addr %s369, 160
      %s373 = sadd.s32 %s371, %s372
      %s374 = smul.addr %s373, 8
      %s375 = scalar_lea.vmem %s7, %s374
      %s376 = smul.u32 40, %s23
      %p377 = scmp.lt.s32.totalorder %s22, 1
      %s378 = scalar_select %p377, %s22, 1
      %p379 = scmp.lt.s32.totalorder %s376, 159
      %s380 = scalar_select %p379, %s376, 159
      %s381 = smul.addr %s378, 160
      %s382 = sadd.s32 %s380, %s381
      %s383 = smul.addr %s382, 8
      %s384 = scalar_lea.vmem %s0, %s383
      %s385 = smul.u32 40, %s23
      %s386 = smul.u32 40, %s23
      %p387 = scmp.lt.s32.totalorder %s22, 1
      %s388 = scalar_select %p387, %s22, 1
      %p389 = scmp.lt.s32.totalorder %s386, 159
      %s390 = scalar_select %p389, %s386, 159
      %s391 = smul.addr %s388, 160
      %s392 = sadd.s32 %s390, %s391
      %s393 = smul.addr %s392, 8
      %s394 = scalar_lea.vmem %s1, %s393
      %s395 = smul.u32 40, %s23
      %s396 = smul.u32 40, %s23
      %p397 = scmp.lt.s32.totalorder %s22, 1
      %s398 = scalar_select %p397, %s22, 1
      %p399 = scmp.lt.s32.totalorder %s396, 159
      %s400 = scalar_select %p399, %s396, 159
      %s401 = smul.addr %s398, 160
      %s402 = sadd.s32 %s400, %s401
      %s403 = smul.addr %s402, 8
      %s404 = scalar_lea.vmem %s2, %s403
      %s405 = smul.u32 40, %s23
      %s406 = smul.u32 40, %s23
      %p407 = scmp.lt.s32.totalorder %s22, 1
      %s408 = scalar_select %p407, %s22, 1
      %p409 = scmp.lt.s32.totalorder %s406, 159
      %s410 = scalar_select %p409, %s406, 159
      %s411 = smul.addr %s408, 160
      %s412 = sadd.s32 %s410, %s411
      %s413 = smul.addr %s412, 8
      %s414 = scalar_lea.vmem %s3, %s413
      %s415 = smul.u32 40, %s23
      %s416 = smul.u32 40, %s23
      %p417 = scmp.lt.s32.totalorder %s22, 1
      %s418 = scalar_select %p417, %s22, 1
      %p419 = scmp.lt.s32.totalorder %s416, 159
      %s420 = scalar_select %p419, %s416, 159
      %s421 = smul.addr %s418, 160
      %s422 = sadd.s32 %s420, %s421
      %s423 = smul.addr %s422, 8
      %s424 = scalar_lea.vmem %s7, %s423
      %s425 = smul.u32 40, %s23
      %v426 = vld [vmem:[%s4] sm:$0xff]
      %v427 = vld [vmem:[%s4 + $0x8] sm:$0xff]
      %v428 = vld [vmem:[%s4 + $0x10] sm:$0xff]
      %v429 = vld [vmem:[%s4 + $0x18] sm:$0xff]
      %v430 = vld [vmem:[%s4 + $0x20] sm:$0xff]
      %v431 = vld [vmem:[%s4 + $0x28] sm:$0xff]
      %v432 = vld [vmem:[%s4 + $0x30] sm:$0xff]
      %v433 = vld [vmem:[%s4 + $0x38] sm:$0xff]
      %v434 = vld [vmem:[%s4 + $0x40] sm:$0xff]
      %v435 = vld [vmem:[%s4 + $0x48] sm:$0xff]
      %v436 = vld [vmem:[%s4 + $0x50] sm:$0xff]
      %v437 = vld [vmem:[%s4 + $0x58] sm:$0x3]
      %v438 = vld [vmem:[%s5] sm:$0x1]
      %v440 = vlaneseq
      %v441 = vshrl.u32 %v440, 7
      %v442 = vsub.s32 0, %v441
      %v443 = vrot.slane %v438, %v442
      %v445 = vld [vmem:[%s6] sm:$0x1]
      %v447 = vlaneseq
      %v448 = vshrl.u32 %v447, 7
      %v449 = vsub.s32 0, %v448
      %v450 = vrot.slane %v445, %v449
      %v452 = vld [vmem:[%s384] sm:$0xff]
      %v453 = vld [vmem:[%s384 + $0x8] sm:$0xff]
      %v454 = vld [vmem:[%s384 + $0x10] sm:$0xff]
      %v455 = vld [vmem:[%s384 + $0x18] sm:$0xff]
      %v456 = vld [vmem:[%s384 + $0x20] sm:$0xff]
      %v457 = vld [vmem:[%s384 + $0x28] sm:$0xff]
      %v458 = vld [vmem:[%s384 + $0x30] sm:$0xff]
      %v459 = vld [vmem:[%s384 + $0x38] sm:$0xff]
      %v460 = vld [vmem:[%s384 + $0x40] sm:$0xff]
      %v461 = vld [vmem:[%s384 + $0x48] sm:$0xff]
      %v462 = vld [vmem:[%s384 + $0x50] sm:$0xff]
      %v463 = vld [vmem:[%s384 + $0x58] sm:$0xff]
      %v464 = vld [vmem:[%s384 + $0x60] sm:$0xff]
      %v465 = vld [vmem:[%s384 + $0x68] sm:$0xff]
      %v466 = vld [vmem:[%s384 + $0x70] sm:$0xff]
      %v467 = vld [vmem:[%s384 + $0x78] sm:$0xff]
      %v468 = vld [vmem:[%s384 + $0x80] sm:$0xff]
      %v469 = vld [vmem:[%s384 + $0x88] sm:$0xff]
      %v470 = vld [vmem:[%s384 + $0x90] sm:$0xff]
      %v471 = vld [vmem:[%s384 + $0x98] sm:$0xff]
      %v472 = vld [vmem:[%s384 + $0xa0] sm:$0xff]
      %v473 = vld [vmem:[%s384 + $0xa8] sm:$0xff]
      %v474 = vld [vmem:[%s384 + $0xb0] sm:$0xff]
      %v475 = vld [vmem:[%s384 + $0xb8] sm:$0xff]
      %v476 = vld [vmem:[%s384 + $0xc0] sm:$0xff]
      %v477 = vld [vmem:[%s384 + $0xc8] sm:$0xff]
      %v478 = vld [vmem:[%s384 + $0xd0] sm:$0xff]
      %v479 = vld [vmem:[%s384 + $0xd8] sm:$0xff]
      %v480 = vld [vmem:[%s384 + $0xe0] sm:$0xff]
      %v481 = vld [vmem:[%s384 + $0xe8] sm:$0xff]
      %v482 = vld [vmem:[%s384 + $0xf0] sm:$0xff]
      %v483 = vld [vmem:[%s384 + $0xf8] sm:$0xff]
      %v484 = vld [vmem:[%s384 + $0x100] sm:$0xff]
      %v485 = vld [vmem:[%s384 + $0x108] sm:$0xff]
      %v486 = vld [vmem:[%s384 + $0x110] sm:$0xff]
      %v487 = vld [vmem:[%s384 + $0x118] sm:$0xff]
      %v488 = vld [vmem:[%s384 + $0x120] sm:$0xff]
      %v489 = vld [vmem:[%s384 + $0x128] sm:$0xff]
      %v490 = vld [vmem:[%s384 + $0x130] sm:$0xff]
      %v491 = vld [vmem:[%s384 + $0x138] sm:$0xff]
      %vm492 = vcmask 736256
      %v494 = vsel %vm492, %v452, 0
      %v497 = vsel %vm492, %v453, 0
      %v500 = vsel %vm492, %v454, 0
      %v503 = vsel %vm492, %v455, 0
      %v506 = vsel %vm492, %v456, 0
      %v509 = vsel %vm492, %v457, 0
      %v512 = vsel %vm492, %v458, 0
      %v515 = vsel %vm492, %v459, 0
      %v518 = vsel %vm492, %v460, 0
      %v521 = vsel %vm492, %v461, 0
      %v524 = vsel %vm492, %v462, 0
      %v527 = vsel %vm492, %v463, 0
      %v530 = vsel %vm492, %v464, 0
      %v533 = vsel %vm492, %v465, 0
      %v536 = vsel %vm492, %v466, 0
      %v539 = vsel %vm492, %v467, 0
      %v542 = vsel %vm492, %v468, 0
      %v545 = vsel %vm492, %v469, 0
      %v548 = vsel %vm492, %v470, 0
      %v551 = vsel %vm492, %v471, 0
      %v554 = vsel %vm492, %v472, 0
      %v557 = vsel %vm492, %v473, 0
      %v560 = vsel %vm492, %v474, 0
      %v563 = vsel %vm492, %v475, 0
      %v566 = vsel %vm492, %v476, 0
      %v569 = vsel %vm492, %v477, 0
      %v572 = vsel %vm492, %v478, 0
      %v575 = vsel %vm492, %v479, 0
      %v578 = vsel %vm492, %v480, 0
      %v581 = vsel %vm492, %v481, 0
      %v584 = vsel %vm492, %v482, 0
      %v587 = vsel %vm492, %v483, 0
      %v590 = vsel %vm492, %v484, 0
      %v593 = vsel %vm492, %v485, 0
      %v596 = vsel %vm492, %v486, 0
      %v599 = vsel %vm492, %v487, 0
      %v602 = vsel %vm492, %v488, 0
      %v605 = vsel %vm492, %v489, 0
      %v608 = vsel %vm492, %v490, 0
      %v611 = vsel %vm492, %v491, 0
      %vm613 = vcmask 1041408
      %v615 = vsel %vm613, %v437, 0
      %617 = vmatprep.subr.mxu0 0.0
      %618 = vmatpush1.msra.mxu0 %v426
      %619 = vmatprep.subr.mxu0 0.0
      %620 = vmatpush1.msra.mxu0 %v427
      %621 = vmatprep.subr.mxu0 0.0
      %622 = vmatpush1.msra.mxu0 %v428
      %623 = vmatprep.subr.mxu0 0.0
      %624 = vmatpush1.msra.mxu0 %v429
      %625 = vmatprep.subr.mxu0 0.0
      %626 = vmatpush1.msra.mxu0 %v430
      %627 = vmatprep.subr.mxu0 0.0
      %628 = vmatpush1.msra.mxu0 %v431
      %629 = vmatprep.subr.mxu0 0.0
      %630 = vmatpush1.msra.mxu0 %v432
      %631 = vmatprep.subr.mxu0 0.0
      %632 = vmatpush1.msra.mxu0 %v433
      %633 = vmatprep.subr.mxu0 0.0
      %634 = vmatpush1.msra.mxu0 %v434
      %635 = vmatprep.subr.mxu0 0.0
      %636 = vmatpush1.msra.mxu0 %v435
      %637 = vmatprep.subr.mxu0 0.0
      %638 = vmatpush1.msra.mxu0 %v436
      %639 = vmatprep.subr.mxu0 0.0
      %640 = vmatpush1.msra.mxu0 %v615
      %641 = vmatprep.subr.mxu0 0.0
      %642 = vmatpush1.msra.mxu0 0.0
      %643 = vmatprep.subr.mxu0 0.0
      %644 = vmatpush1.msra.mxu0 0.0
      %645 = vmatprep.subr.mxu0 0.0
      %646 = vmatpush1.msra.mxu0 0.0
      %647 = vmatprep.subr.mxu0 0.0
      %648 = vmatpush1.msra.mxu0 0.0
      %649 = vmatprep.subr.mxu0 0.0
      %650 = vmatpush1.msra.mxu0 0.0
      %651 = vmatprep.subr.mxu0 0.0
      %652 = vmatpush1.msra.mxu0 0.0
      %653 = vmatprep.subr.mxu0 0.0
      %654 = vmatpush1.msra.mxu0 0.0
      %655 = vmatprep.subr.mxu0 0.0
      %656 = vmatpush1.msra.mxu0 0.0
      %657 = vmatprep.subr.mxu0 0.0
      %658 = vmatpush1.msra.mxu0 0.0
      %659 = vmatprep.subr.mxu0 0.0
      %660 = vmatpush1.msra.mxu0 0.0
      %661 = vmatprep.subr.mxu0 0.0
      %662 = vmatpush1.msra.mxu0 0.0
      %663 = vmatprep.subr.mxu0 0.0
      %664 = vmatpush1.msra.mxu0 0.0
      %665 = vmatprep.subr.mxu0 0.0
      %666 = vmatpush1.msra.mxu0 0.0
      %667 = vmatprep.subr.mxu0 0.0
      %668 = vmatpush1.msra.mxu0 0.0
      %669 = vmatprep.subr.mxu0 0.0
      %670 = vmatpush1.msra.mxu0 0.0
      %671 = vmatprep.subr.mxu0 0.0
      %672 = vmatpush1.msra.mxu0 0.0
      %673 = vmatprep.subr.mxu0 0.0
      %674 = vmatpush1.msra.mxu0 0.0
      %675 = vmatprep.subr.mxu0 0.0
      %676 = vmatpush1.msra.mxu0 0.0
      %677 = vmatprep.subr.mxu0 0.0
      %678 = vmatpush1.msra.mxu0 0.0
      %679 = vmatprep.subr.mxu0 0.0
      %680 = vmatpush1.msra.mxu0 0.0
      %681 = vmatprep.mubr.f32.mxu0 0.0
      %682 = vmatmul.mubr.f32.gmra.mrb[0].mxu0 %v494
      %v683 = vpop.f32.mrb[0].mxu0
      %v684 = vadd.f32 0.0, %v683
      %v685 = vpop.f32.mrb[0].mxu0
      %686 = vmatprep.mubr.f32.mxu0 0.0
      %687 = vmatmul.mubr.f32.gmra.mrb[0].mxu0 %v497
      %v688 = vpop.f32.mrb[0].mxu0
      %v689 = vadd.f32 0.0, %v688
      %v690 = vpop.f32.mrb[0].mxu0
      %691 = vmatprep.mubr.f32.mxu0 0.0
      %692 = vmatmul.mubr.f32.gmra.mrb[0].mxu0 %v500
      %v693 = vpop.f32.mrb[0].mxu0
      %v694 = vadd.f32 0.0, %v693
      %v695 = vpop.f32.mrb[0].mxu0
      %696 = vmatprep.mubr.f32.mxu0 0.0
      %697 = vmatmul.mubr.f32.gmra.mrb[0].mxu0 %v503
      %v698 = vpop.f32.mrb[0].mxu0
      %v699 = vadd.f32 0.0, %v698
      %v700 = vpop.f32.mrb[0].mxu0
      %701 = vmatprep.mubr.f32.mxu0 0.0
      %702 = vmatmul.mubr.f32.gmra.mrb[0].mxu0 %v506
      %v703 = vpop.f32.mrb[0].mxu0
      %v704 = vadd.f32 0.0, %v703
      %v705 = vpop.f32.mrb[0].mxu0
      %706 = vmatprep.mubr.f32.mxu0 0.0
      %707 = vmatmul.mubr.f32.gmra.mrb[0].mxu0 %v509
      %v708 = vpop.f32.mrb[0].mxu0
      %v709 = vadd.f32 0.0, %v708
      %v710 = vpop.f32.mrb[0].mxu0
      %711 = vmatprep.mubr.f32.mxu0 0.0
      %712 = vmatmul.mubr.f32.gmra.mrb[0].mxu0 %v512
      %v713 = vpop.f32.mrb[0].mxu0
      %v714 = vadd.f32 0.0, %v713
      %v715 = vpop.f32.mrb[0].mxu0
      %716 = vmatprep.mubr.f32.mxu0 0.0
      %717 = vmatmul.mubr.f32.gmra.mrb[0].mxu0 %v515
      %v718 = vpop.f32.mrb[0].mxu0
      %v719 = vadd.f32 0.0, %v718
      %v720 = vpop.f32.mrb[0].mxu0
      %721 = vmatprep.mubr.f32.mxu0 0.0
      %722 = vmatmul.mubr.f32.gmra.mrb[0].mxu0 %v518
      %v723 = vpop.f32.mrb[0].mxu0
      %v724 = vadd.f32 0.0, %v723
      %v725 = vpop.f32.mrb[0].mxu0
      %726 = vmatprep.mubr.f32.mxu0 0.0
      %727 = vmatmul.mubr.f32.gmra.mrb[0].mxu0 %v521
      %v728 = vpop.f32.mrb[0].mxu0
      %v729 = vadd.f32 0.0, %v728
      %v730 = vpop.f32.mrb[0].mxu0
      %731 = vmatprep.mubr.f32.mxu0 0.0
      %732 = vmatmul.mubr.f32.gmra.mrb[0].mxu0 %v524
      %v733 = vpop.f32.mrb[0].mxu0
      %v734 = vadd.f32 0.0, %v733
      %v735 = vpop.f32.mrb[0].mxu0
      %736 = vmatprep.mubr.f32.mxu0 0.0
      %737 = vmatmul.mubr.f32.gmra.mrb[0].mxu0 %v527
      %v738 = vpop.f32.mrb[0].mxu0
      %v739 = vadd.f32 0.0, %v738
      %v740 = vpop.f32.mrb[0].mxu0
      %741 = vmatprep.mubr.f32.mxu0 0.0
      %742 = vmatmul.mubr.f32.gmra.mrb[0].mxu0 %v530
      %v743 = vpop.f32.mrb[0].mxu0
      %v744 = vadd.f32 0.0, %v743
      %v745 = vpop.f32.mrb[0].mxu0
      %746 = vmatprep.mubr.f32.mxu0 0.0
      %747 = vmatmul.mubr.f32.gmra.mrb[0].mxu0 %v533
      %v748 = vpop.f32.mrb[0].mxu0
      %v749 = vadd.f32 0.0, %v748
      %v750 = vpop.f32.mrb[0].mxu0
      %751 = vmatprep.mubr.f32.mxu0 0.0
      %752 = vmatmul.mubr.f32.gmra.mrb[0].mxu0 %v536
      %v753 = vpop.f32.mrb[0].mxu0
      %v754 = vadd.f32 0.0, %v753
      %v755 = vpop.f32.mrb[0].mxu0
      %756 = vmatprep.mubr.f32.mxu0 0.0
      %757 = vmatmul.mubr.f32.gmra.mrb[0].mxu0 %v539
      %v758 = vpop.f32.mrb[0].mxu0
      %v759 = vadd.f32 0.0, %v758
      %v760 = vpop.f32.mrb[0].mxu0
      %761 = vmatprep.mubr.f32.mxu0 0.0
      %762 = vmatmul.mubr.f32.gmra.mrb[0].mxu0 %v542
      %v763 = vpop.f32.mrb[0].mxu0
      %v764 = vadd.f32 0.0, %v763
      %v765 = vpop.f32.mrb[0].mxu0
      %766 = vmatprep.mubr.f32.mxu0 0.0
      %767 = vmatmul.mubr.f32.gmra.mrb[0].mxu0 %v545
      %v768 = vpop.f32.mrb[0].mxu0
      %v769 = vadd.f32 0.0, %v768
      %v770 = vpop.f32.mrb[0].mxu0
      %771 = vmatprep.mubr.f32.mxu0 0.0
      %772 = vmatmul.mubr.f32.gmra.mrb[0].mxu0 %v548
      %v773 = vpop.f32.mrb[0].mxu0
      %v774 = vadd.f32 0.0, %v773
      %v775 = vpop.f32.mrb[0].mxu0
      %776 = vmatprep.mubr.f32.mxu0 0.0
      %777 = vmatmul.mubr.f32.gmra.mrb[0].mxu0 %v551
      %v778 = vpop.f32.mrb[0].mxu0
      %v779 = vadd.f32 0.0, %v778
      %v780 = vpop.f32.mrb[0].mxu0
      %781 = vmatprep.mubr.f32.mxu0 0.0
      %782 = vmatmul.mubr.f32.gmra.mrb[0].mxu0 %v554
      %v783 = vpop.f32.mrb[0].mxu0
      %v784 = vadd.f32 0.0, %v783
      %v785 = vpop.f32.mrb[0].mxu0
      %786 = vmatprep.mubr.f32.mxu0 0.0
      %787 = vmatmul.mubr.f32.gmra.mrb[0].mxu0 %v557
      %v788 = vpop.f32.mrb[0].mxu0
      %v789 = vadd.f32 0.0, %v788
      %v790 = vpop.f32.mrb[0].mxu0
      %791 = vmatprep.mubr.f32.mxu0 0.0
      %792 = vmatmul.mubr.f32.gmra.mrb[0].mxu0 %v560
      %v793 = vpop.f32.mrb[0].mxu0
      %v794 = vadd.f32 0.0, %v793
      %v795 = vpop.f32.mrb[0].mxu0
      %796 = vmatprep.mubr.f32.mxu0 0.0
      %797 = vmatmul.mubr.f32.gmra.mrb[0].mxu0 %v563
      %v798 = vpop.f32.mrb[0].mxu0
      %v799 = vadd.f32 0.0, %v798
      %v800 = vpop.f32.mrb[0].mxu0
      %801 = vmatprep.mubr.f32.mxu0 0.0
      %802 = vmatmul.mubr.f32.gmra.mrb[0].mxu0 %v566
      %v803 = vpop.f32.mrb[0].mxu0
      %v804 = vadd.f32 0.0, %v803
      %v805 = vpop.f32.mrb[0].mxu0
      %806 = vmatprep.mubr.f32.mxu0 0.0
      %807 = vmatmul.mubr.f32.gmra.mrb[0].mxu0 %v569
      %v808 = vpop.f32.mrb[0].mxu0
      %v809 = vadd.f32 0.0, %v808
      %v810 = vpop.f32.mrb[0].mxu0
      %811 = vmatprep.mubr.f32.mxu0 0.0
      %812 = vmatmul.mubr.f32.gmra.mrb[0].mxu0 %v572
      %v813 = vpop.f32.mrb[0].mxu0
      %v814 = vadd.f32 0.0, %v813
      %v815 = vpop.f32.mrb[0].mxu0
      %816 = vmatprep.mubr.f32.mxu0 0.0
      %817 = vmatmul.mubr.f32.gmra.mrb[0].mxu0 %v575
      %v818 = vpop.f32.mrb[0].mxu0
      %v819 = vadd.f32 0.0, %v818
      %v820 = vpop.f32.mrb[0].mxu0
      %821 = vmatprep.mubr.f32.mxu0 0.0
      %822 = vmatmul.mubr.f32.gmra.mrb[0].mxu0 %v578
      %v823 = vpop.f32.mrb[0].mxu0
      %v824 = vadd.f32 0.0, %v823
      %v825 = vpop.f32.mrb[0].mxu0
      %826 = vmatprep.mubr.f32.mxu0 0.0
      %827 = vmatmul.mubr.f32.gmra.mrb[0].mxu0 %v581
      %v828 = vpop.f32.mrb[0].mxu0
      %v829 = vadd.f32 0.0, %v828
      %v830 = vpop.f32.mrb[0].mxu0
      %831 = vmatprep.mubr.f32.mxu0 0.0
      %832 = vmatmul.mubr.f32.gmra.mrb[0].mxu0 %v584
      %v833 = vpop.f32.mrb[0].mxu0
      %v834 = vadd.f32 0.0, %v833
      %v835 = vpop.f32.mrb[0].mxu0
      %836 = vmatprep.mubr.f32.mxu0 0.0
      %837 = vmatmul.mubr.f32.gmra.mrb[0].mxu0 %v587
      %v838 = vpop.f32.mrb[0].mxu0
      %v839 = vadd.f32 0.0, %v838
      %v840 = vpop.f32.mrb[0].mxu0
      %841 = vmatprep.mubr.f32.mxu0 0.0
      %842 = vmatmul.mubr.f32.gmra.mrb[0].mxu0 %v590
      %v843 = vpop.f32.mrb[0].mxu0
      %v844 = vadd.f32 0.0, %v843
      %v845 = vpop.f32.mrb[0].mxu0
      %846 = vmatprep.mubr.f32.mxu0 0.0
      %847 = vmatmul.mubr.f32.gmra.mrb[0].mxu0 %v593
      %v848 = vpop.f32.mrb[0].mxu0
      %v849 = vadd.f32 0.0, %v848
      %v850 = vpop.f32.mrb[0].mxu0
      %851 = vmatprep.mubr.f32.mxu0 0.0
      %852 = vmatmul.mubr.f32.gmra.mrb[0].mxu0 %v596
      %v853 = vpop.f32.mrb[0].mxu0
      %v854 = vadd.f32 0.0, %v853
      %v855 = vpop.f32.mrb[0].mxu0
      %856 = vmatprep.mubr.f32.mxu0 0.0
      %857 = vmatmul.mubr.f32.gmra.mrb[0].mxu0 %v599
      %v858 = vpop.f32.mrb[0].mxu0
      %v859 = vadd.f32 0.0, %v858
      %v860 = vpop.f32.mrb[0].mxu0
      %861 = vmatprep.mubr.f32.mxu0 0.0
      %862 = vmatmul.mubr.f32.gmra.mrb[0].mxu0 %v602
      %v863 = vpop.f32.mrb[0].mxu0
      %v864 = vadd.f32 0.0, %v863
      %v865 = vpop.f32.mrb[0].mxu0
      %866 = vmatprep.mubr.f32.mxu0 0.0
      %867 = vmatmul.mubr.f32.gmra.mrb[0].mxu0 %v605
      %v868 = vpop.f32.mrb[0].mxu0
      %v869 = vadd.f32 0.0, %v868
      %v870 = vpop.f32.mrb[0].mxu0
      %871 = vmatprep.mubr.f32.mxu0 0.0
      %872 = vmatmul.mubr.f32.gmra.mrb[0].mxu0 %v608
      %v873 = vpop.f32.mrb[0].mxu0
      %v874 = vadd.f32 0.0, %v873
      %v875 = vpop.f32.mrb[0].mxu0
      %876 = vmatprep.mubr.f32.mxu0 0.0
      %877 = vmatmul.mubr.f32.gmra.mrb[0].mxu0 %v611
      %v878 = vpop.f32.mrb[0].mxu0
      %v879 = vadd.f32 0.0, %v878
      %v880 = vpop.f32.mrb[0].mxu0
      %881 = vdwg.mxu0
      %v882 = vmul.f32 %v684, %v443
      %v883 = vmul.f32 %v689, %v443
      %v884 = vmul.f32 %v694, %v443
      %v885 = vmul.f32 %v699, %v443
      %v886 = vmul.f32 %v704, %v443
      %v887 = vmul.f32 %v709, %v443
      %v888 = vmul.f32 %v714, %v443
      %v889 = vmul.f32 %v719, %v443
      %v890 = vmul.f32 %v724, %v443
      %v891 = vmul.f32 %v729, %v443
      %v892 = vmul.f32 %v734, %v443
      %v893 = vmul.f32 %v739, %v443
      %v894 = vmul.f32 %v744, %v443
      %v895 = vmul.f32 %v749, %v443
      %v896 = vmul.f32 %v754, %v443
      %v897 = vmul.f32 %v759, %v443
      %v898 = vmul.f32 %v764, %v443
      %v899 = vmul.f32 %v769, %v443
      %v900 = vmul.f32 %v774, %v443
      %v901 = vmul.f32 %v779, %v443
      %v902 = vmul.f32 %v784, %v443
      %v903 = vmul.f32 %v789, %v443
      %v904 = vmul.f32 %v794, %v443
      %v905 = vmul.f32 %v799, %v443
      %v906 = vmul.f32 %v804, %v443
      %v907 = vmul.f32 %v809, %v443
      %v908 = vmul.f32 %v814, %v443
      %v909 = vmul.f32 %v819, %v443
      %v910 = vmul.f32 %v824, %v443
      %v911 = vmul.f32 %v829, %v443
      %v912 = vmul.f32 %v834, %v443
      %v913 = vmul.f32 %v839, %v443
      %v914 = vmul.f32 %v844, %v443
      %v915 = vmul.f32 %v849, %v443
      %v916 = vmul.f32 %v854, %v443
      %v917 = vmul.f32 %v859, %v443
      %v918 = vmul.f32 %v864, %v443
      %v919 = vmul.f32 %v869, %v443
      %v920 = vmul.f32 %v874, %v443
      %v921 = vmul.f32 %v879, %v443
      %v922 = vadd.f32 %v882, %v450
      %v923 = vadd.f32 %v883, %v450
      %v924 = vadd.f32 %v884, %v450
      %v925 = vadd.f32 %v885, %v450
      %v926 = vadd.f32 %v886, %v450
      %v927 = vadd.f32 %v887, %v450
      %v928 = vadd.f32 %v888, %v450
      %v929 = vadd.f32 %v889, %v450
      %v930 = vadd.f32 %v890, %v450
      %v931 = vadd.f32 %v891, %v450
      %v932 = vadd.f32 %v892, %v450
      %v933 = vadd.f32 %v893, %v450
      %v934 = vadd.f32 %v894, %v450
      %v935 = vadd.f32 %v895, %v450
      %v936 = vadd.f32 %v896, %v450
      %v937 = vadd.f32 %v897, %v450
      %v938 = vadd.f32 %v898, %v450
      %v939 = vadd.f32 %v899, %v450
      %v940 = vadd.f32 %v900, %v450
      %v941 = vadd.f32 %v901, %v450
      %v942 = vadd.f32 %v902, %v450
      %v943 = vadd.f32 %v903, %v450
      %v944 = vadd.f32 %v904, %v450
      %v945 = vadd.f32 %v905, %v450
      %v946 = vadd.f32 %v906, %v450
      %v947 = vadd.f32 %v907, %v450
      %v948 = vadd.f32 %v908, %v450
      %v949 = vadd.f32 %v909, %v450
      %v950 = vadd.f32 %v910, %v450
      %v951 = vadd.f32 %v911, %v450
      %v952 = vadd.f32 %v912, %v450
      %v953 = vadd.f32 %v913, %v450
      %v954 = vadd.f32 %v914, %v450
      %v955 = vadd.f32 %v915, %v450
      %v956 = vadd.f32 %v916, %v450
      %v957 = vadd.f32 %v917, %v450
      %v958 = vadd.f32 %v918, %v450
      %v959 = vadd.f32 %v919, %v450
      %v960 = vadd.f32 %v920, %v450
      %v961 = vadd.f32 %v921, %v450
      %v962 = vmax.f32 %v922, 0.0
      %v963 = vmax.f32 %v923, 0.0
      %v964 = vmax.f32 %v924, 0.0
      %v965 = vmax.f32 %v925, 0.0
      %v966 = vmax.f32 %v926, 0.0
      %v967 = vmax.f32 %v927, 0.0
      %v968 = vmax.f32 %v928, 0.0
      %v969 = vmax.f32 %v929, 0.0
      %v970 = vmax.f32 %v930, 0.0
      %v971 = vmax.f32 %v931, 0.0
      %v972 = vmax.f32 %v932, 0.0
      %v973 = vmax.f32 %v933, 0.0
      %v974 = vmax.f32 %v934, 0.0
      %v975 = vmax.f32 %v935, 0.0
      %v976 = vmax.f32 %v936, 0.0
      %v977 = vmax.f32 %v937, 0.0
      %v978 = vmax.f32 %v938, 0.0
      %v979 = vmax.f32 %v939, 0.0
      %v980 = vmax.f32 %v940, 0.0
      %v981 = vmax.f32 %v941, 0.0
      %v982 = vmax.f32 %v942, 0.0
      %v983 = vmax.f32 %v943, 0.0
      %v984 = vmax.f32 %v944, 0.0
      %v985 = vmax.f32 %v945, 0.0
      %v986 = vmax.f32 %v946, 0.0
      %v987 = vmax.f32 %v947, 0.0
      %v988 = vmax.f32 %v948, 0.0
      %v989 = vmax.f32 %v949, 0.0
      %v990 = vmax.f32 %v950, 0.0
      %v991 = vmax.f32 %v951, 0.0
      %v992 = vmax.f32 %v952, 0.0
      %v993 = vmax.f32 %v953, 0.0
      %v994 = vmax.f32 %v954, 0.0
      %v995 = vmax.f32 %v955, 0.0
      %v996 = vmax.f32 %v956, 0.0
      %v997 = vmax.f32 %v957, 0.0
      %v998 = vmax.f32 %v958, 0.0
      %v999 = vmax.f32 %v959, 0.0
      %v1000 = vmax.f32 %v960, 0.0
      %v1001 = vmax.f32 %v961, 0.0
      %v1002 = vld [vmem:[%s394] sm:$0xff]
      %v1003 = vld [vmem:[%s394 + $0x8] sm:$0xff]
      %v1004 = vld [vmem:[%s394 + $0x10] sm:$0xff]
      %v1005 = vld [vmem:[%s394 + $0x18] sm:$0xff]
      %v1006 = vld [vmem:[%s394 + $0x20] sm:$0xff]
      %v1007 = vld [vmem:[%s394 + $0x28] sm:$0xff]
      %v1008 = vld [vmem:[%s394 + $0x30] sm:$0xff]
      %v1009 = vld [vmem:[%s394 + $0x38] sm:$0xff]
      %v1010 = vld [vmem:[%s394 + $0x40] sm:$0xff]
      %v1011 = vld [vmem:[%s394 + $0x48] sm:$0xff]
      %v1012 = vld [vmem:[%s394 + $0x50] sm:$0xff]
      %v1013 = vld [vmem:[%s394 + $0x58] sm:$0xff]
      %v1014 = vld [vmem:[%s394 + $0x60] sm:$0xff]
      %v1015 = vld [vmem:[%s394 + $0x68] sm:$0xff]
      %v1016 = vld [vmem:[%s394 + $0x70] sm:$0xff]
      %v1017 = vld [vmem:[%s394 + $0x78] sm:$0xff]
      %v1018 = vld [vmem:[%s394 + $0x80] sm:$0xff]
      %v1019 = vld [vmem:[%s394 + $0x88] sm:$0xff]
      %v1020 = vld [vmem:[%s394 + $0x90] sm:$0xff]
      %v1021 = vld [vmem:[%s394 + $0x98] sm:$0xff]
      %v1022 = vld [vmem:[%s394 + $0xa0] sm:$0xff]
      %v1023 = vld [vmem:[%s394 + $0xa8] sm:$0xff]
      %v1024 = vld [vmem:[%s394 + $0xb0] sm:$0xff]
      %v1025 = vld [vmem:[%s394 + $0xb8] sm:$0xff]
      %v1026 = vld [vmem:[%s394 + $0xc0] sm:$0xff]
      %v1027 = vld [vmem:[%s394 + $0xc8] sm:$0xff]
      %v1028 = vld [vmem:[%s394 + $0xd0] sm:$0xff]
      %v1029 = vld [vmem:[%s394 + $0xd8] sm:$0xff]
      %v1030 = vld [vmem:[%s394 + $0xe0] sm:$0xff]
      %v1031 = vld [vmem:[%s394 + $0xe8] sm:$0xff]
      %v1032 = vld [vmem:[%s394 + $0xf0] sm:$0xff]
      %v1033 = vld [vmem:[%s394 + $0xf8] sm:$0xff]
      %v1034 = vld [vmem:[%s394 + $0x100] sm:$0xff]
      %v1035 = vld [vmem:[%s394 + $0x108] sm:$0xff]
      %v1036 = vld [vmem:[%s394 + $0x110] sm:$0xff]
      %v1037 = vld [vmem:[%s394 + $0x118] sm:$0xff]
      %v1038 = vld [vmem:[%s394 + $0x120] sm:$0xff]
      %v1039 = vld [vmem:[%s394 + $0x128] sm:$0xff]
      %v1040 = vld [vmem:[%s394 + $0x130] sm:$0xff]
      %v1041 = vld [vmem:[%s394 + $0x138] sm:$0xff]
      %v1043 = vsel %vm492, %v1002, 0
      %v1046 = vsel %vm492, %v1003, 0
      %v1049 = vsel %vm492, %v1004, 0
      %v1052 = vsel %vm492, %v1005, 0
      %v1055 = vsel %vm492, %v1006, 0
      %v1058 = vsel %vm492, %v1007, 0
      %v1061 = vsel %vm492, %v1008, 0
      %v1064 = vsel %vm492, %v1009, 0
      %v1067 = vsel %vm492, %v1010, 0
      %v1070 = vsel %vm492, %v1011, 0
      %v1073 = vsel %vm492, %v1012, 0
      %v1076 = vsel %vm492, %v1013, 0
      %v1079 = vsel %vm492, %v1014, 0
      %v1082 = vsel %vm492, %v1015, 0
      %v1085 = vsel %vm492, %v1016, 0
      %v1088 = vsel %vm492, %v1017, 0
      %v1091 = vsel %vm492, %v1018, 0
      %v1094 = vsel %vm492, %v1019, 0
      %v1097 = vsel %vm492, %v1020, 0
      %v1100 = vsel %vm492, %v1021, 0
      %v1103 = vsel %vm492, %v1022, 0
      %v1106 = vsel %vm492, %v1023, 0
      %v1109 = vsel %vm492, %v1024, 0
      %v1112 = vsel %vm492, %v1025, 0
      %v1115 = vsel %vm492, %v1026, 0
      %v1118 = vsel %vm492, %v1027, 0
      %v1121 = vsel %vm492, %v1028, 0
      %v1124 = vsel %vm492, %v1029, 0
      %v1127 = vsel %vm492, %v1030, 0
      %v1130 = vsel %vm492, %v1031, 0
      %v1133 = vsel %vm492, %v1032, 0
      %v1136 = vsel %vm492, %v1033, 0
      %v1139 = vsel %vm492, %v1034, 0
      %v1142 = vsel %vm492, %v1035, 0
      %v1145 = vsel %vm492, %v1036, 0
      %v1148 = vsel %vm492, %v1037, 0
      %v1151 = vsel %vm492, %v1038, 0
      %v1154 = vsel %vm492, %v1039, 0
      %v1157 = vsel %vm492, %v1040, 0
      %v1160 = vsel %vm492, %v1041, 0
      %1162 = vmatprep.subr.mxu0 0.0
      %1163 = vmatpush1.msra.mxu0 %v426
      %1164 = vmatprep.subr.mxu0 0.0
      %1165 = vmatpush1.msra.mxu0 %v427
      %1166 = vmatprep.subr.mxu0 0.0
      %1167 = vmatpush1.msra.mxu0 %v428
      %1168 = vmatprep.subr.mxu0 0.0
      %1169 = vmatpush1.msra.mxu0 %v429
      %1170 = vmatprep.subr.mxu0 0.0
      %1171 = vmatpush1.msra.mxu0 %v430
      %1172 = vmatprep.subr.mxu0 0.0
      %1173 = vmatpush1.msra.mxu0 %v431
      %1174 = vmatprep.subr.mxu0 0.0
      %1175 = vmatpush1.msra.mxu0 %v432
      %1176 = vmatprep.subr.mxu0 0.0
      %1177 = vmatpush1.msra.mxu0 %v433
      %1178 = vmatprep.subr.mxu0 0.0
      %1179 = vmatpush1.msra.mxu0 %v434
      %1180 = vmatprep.subr.mxu0 0.0
      %1181 = vmatpush1.msra.mxu0 %v435
      %1182 = vmatprep.subr.mxu0 0.0
      %1183 = vmatpush1.msra.mxu0 %v436
      %1184 = vmatprep.subr.mxu0 0.0
      %1185 = vmatpush1.msra.mxu0 %v615
      %1186 = vmatprep.subr.mxu0 0.0
      %1187 = vmatpush1.msra.mxu0 0.0
      %1188 = vmatprep.subr.mxu0 0.0
      %1189 = vmatpush1.msra.mxu0 0.0
      %1190 = vmatprep.subr.mxu0 0.0
      %1191 = vmatpush1.msra.mxu0 0.0
      %1192 = vmatprep.subr.mxu0 0.0
      %1193 = vmatpush1.msra.mxu0 0.0
      %1194 = vmatprep.subr.mxu0 0.0
      %1195 = vmatpush1.msra.mxu0 0.0
      %1196 = vmatprep.subr.mxu0 0.0
      %1197 = vmatpush1.msra.mxu0 0.0
      %1198 = vmatprep.subr.mxu0 0.0
      %1199 = vmatpush1.msra.mxu0 0.0
      %1200 = vmatprep.subr.mxu0 0.0
      %1201 = vmatpush1.msra.mxu0 0.0
      %1202 = vmatprep.subr.mxu0 0.0
      %1203 = vmatpush1.msra.mxu0 0.0
      %1204 = vmatprep.subr.mxu0 0.0
      %1205 = vmatpush1.msra.mxu0 0.0
      %1206 = vmatprep.subr.mxu0 0.0
      %1207 = vmatpush1.msra.mxu0 0.0
      %1208 = vmatprep.subr.mxu0 0.0
      %1209 = vmatpush1.msra.mxu0 0.0
      %1210 = vmatprep.subr.mxu0 0.0
      %1211 = vmatpush1.msra.mxu0 0.0
      %1212 = vmatprep.subr.mxu0 0.0
      %1213 = vmatpush1.msra.mxu0 0.0
      %1214 = vmatprep.subr.mxu0 0.0
      %1215 = vmatpush1.msra.mxu0 0.0
      %1216 = vmatprep.subr.mxu0 0.0
      %1217 = vmatpush1.msra.mxu0 0.0
      %1218 = vmatprep.subr.mxu0 0.0
      %1219 = vmatpush1.msra.mxu0 0.0
      %1220 = vmatprep.subr.mxu0 0.0
      %1221 = vmatpush1.msra.mxu0 0.0
      %1222 = vmatprep.subr.mxu0 0.0
      %1223 = vmatpush1.msra.mxu0 0.0
      %1224 = vmatprep.subr.mxu0 0.0
      %1225 = vmatpush1.msra.mxu0 0.0
      %1226 = vmatprep.mubr.f32.mxu0 0.0
      %1227 = vmatmul.mubr.f32.gmra.mrb[0].mxu0 %v1043
      %v1228 = vpop.f32.mrb[0].mxu0
      %v1229 = vadd.f32 0.0, %v1228
      %v1230 = vpop.f32.mrb[0].mxu0
      %1231 = vmatprep.mubr.f32.mxu0 0.0
      %1232 = vmatmul.mubr.f32.gmra.mrb[0].mxu0 %v1046
      %v1233 = vpop.f32.mrb[0].mxu0
      %v1234 = vadd.f32 0.0, %v1233
      %v1235 = vpop.f32.mrb[0].mxu0
      %1236 = vmatprep.mubr.f32.mxu0 0.0
      %1237 = vmatmul.mubr.f32.gmra.mrb[0].mxu0 %v1049
      %v1238 = vpop.f32.mrb[0].mxu0
      %v1239 = vadd.f32 0.0, %v1238
      %v1240 = vpop.f32.mrb[0].mxu0
      %1241 = vmatprep.mubr.f32.mxu0 0.0
      %1242 = vmatmul.mubr.f32.gmra.mrb[0].mxu0 %v1052
      %v1243 = vpop.f32.mrb[0].mxu0
      %v1244 = vadd.f32 0.0, %v1243
      %v1245 = vpop.f32.mrb[0].mxu0
      %1246 = vmatprep.mubr.f32.mxu0 0.0
      %1247 = vmatmul.mubr.f32.gmra.mrb[0].mxu0 %v1055
      %v1248 = vpop.f32.mrb[0].mxu0
      %v1249 = vadd.f32 0.0, %v1248
      %v1250 = vpop.f32.mrb[0].mxu0
      %1251 = vmatprep.mubr.f32.mxu0 0.0
      %1252 = vmatmul.mubr.f32.gmra.mrb[0].mxu0 %v1058
      %v1253 = vpop.f32.mrb[0].mxu0
      %v1254 = vadd.f32 0.0, %v1253
      %v1255 = vpop.f32.mrb[0].mxu0
      %1256 = vmatprep.mubr.f32.mxu0 0.0
      %1257 = vmatmul.mubr.f32.gmra.mrb[0].mxu0 %v1061
      %v1258 = vpop.f32.mrb[0].mxu0
      %v1259 = vadd.f32 0.0, %v1258
      %v1260 = vpop.f32.mrb[0].mxu0
      %1261 = vmatprep.mubr.f32.mxu0 0.0
      %1262 = vmatmul.mubr.f32.gmra.mrb[0].mxu0 %v1064
      %v1263 = vpop.f32.mrb[0].mxu0
      %v1264 = vadd.f32 0.0, %v1263
      %v1265 = vpop.f32.mrb[0].mxu0
      %1266 = vmatprep.mubr.f32.mxu0 0.0
      %1267 = vmatmul.mubr.f32.gmra.mrb[0].mxu0 %v1067
      %v1268 = vpop.f32.mrb[0].mxu0
      %v1269 = vadd.f32 0.0, %v1268
      %v1270 = vpop.f32.mrb[0].mxu0
      %1271 = vmatprep.mubr.f32.mxu0 0.0
      %1272 = vmatmul.mubr.f32.gmra.mrb[0].mxu0 %v1070
      %v1273 = vpop.f32.mrb[0].mxu0
      %v1274 = vadd.f32 0.0, %v1273
      %v1275 = vpop.f32.mrb[0].mxu0
      %1276 = vmatprep.mubr.f32.mxu0 0.0
      %1277 = vmatmul.mubr.f32.gmra.mrb[0].mxu0 %v1073
      %v1278 = vpop.f32.mrb[0].mxu0
      %v1279 = vadd.f32 0.0, %v1278
      %v1280 = vpop.f32.mrb[0].mxu0
      %1281 = vmatprep.mubr.f32.mxu0 0.0
      %1282 = vmatmul.mubr.f32.gmra.mrb[0].mxu0 %v1076
      %v1283 = vpop.f32.mrb[0].mxu0
      %v1284 = vadd.f32 0.0, %v1283
      %v1285 = vpop.f32.mrb[0].mxu0
      %1286 = vmatprep.mubr.f32.mxu0 0.0
      %1287 = vmatmul.mubr.f32.gmra.mrb[0].mxu0 %v1079
      %v1288 = vpop.f32.mrb[0].mxu0
      %v1289 = vadd.f32 0.0, %v1288
      %v1290 = vpop.f32.mrb[0].mxu0
      %1291 = vmatprep.mubr.f32.mxu0 0.0
      %1292 = vmatmul.mubr.f32.gmra.mrb[0].mxu0 %v1082
      %v1293 = vpop.f32.mrb[0].mxu0
      %v1294 = vadd.f32 0.0, %v1293
      %v1295 = vpop.f32.mrb[0].mxu0
      %1296 = vmatprep.mubr.f32.mxu0 0.0
      %1297 = vmatmul.mubr.f32.gmra.mrb[0].mxu0 %v1085
      %v1298 = vpop.f32.mrb[0].mxu0
      %v1299 = vadd.f32 0.0, %v1298
      %v1300 = vpop.f32.mrb[0].mxu0
      %1301 = vmatprep.mubr.f32.mxu0 0.0
      %1302 = vmatmul.mubr.f32.gmra.mrb[0].mxu0 %v1088
      %v1303 = vpop.f32.mrb[0].mxu0
      %v1304 = vadd.f32 0.0, %v1303
      %v1305 = vpop.f32.mrb[0].mxu0
      %1306 = vmatprep.mubr.f32.mxu0 0.0
      %1307 = vmatmul.mubr.f32.gmra.mrb[0].mxu0 %v1091
      %v1308 = vpop.f32.mrb[0].mxu0
      %v1309 = vadd.f32 0.0, %v1308
      %v1310 = vpop.f32.mrb[0].mxu0
      %1311 = vmatprep.mubr.f32.mxu0 0.0
      %1312 = vmatmul.mubr.f32.gmra.mrb[0].mxu0 %v1094
      %v1313 = vpop.f32.mrb[0].mxu0
      %v1314 = vadd.f32 0.0, %v1313
      %v1315 = vpop.f32.mrb[0].mxu0
      %1316 = vmatprep.mubr.f32.mxu0 0.0
      %1317 = vmatmul.mubr.f32.gmra.mrb[0].mxu0 %v1097
      %v1318 = vpop.f32.mrb[0].mxu0
      %v1319 = vadd.f32 0.0, %v1318
      %v1320 = vpop.f32.mrb[0].mxu0
      %1321 = vmatprep.mubr.f32.mxu0 0.0
      %1322 = vmatmul.mubr.f32.gmra.mrb[0].mxu0 %v1100
      %v1323 = vpop.f32.mrb[0].mxu0
      %v1324 = vadd.f32 0.0, %v1323
      %v1325 = vpop.f32.mrb[0].mxu0
      %1326 = vmatprep.mubr.f32.mxu0 0.0
      %1327 = vmatmul.mubr.f32.gmra.mrb[0].mxu0 %v1103
      %v1328 = vpop.f32.mrb[0].mxu0
      %v1329 = vadd.f32 0.0, %v1328
      %v1330 = vpop.f32.mrb[0].mxu0
      %1331 = vmatprep.mubr.f32.mxu0 0.0
      %1332 = vmatmul.mubr.f32.gmra.mrb[0].mxu0 %v1106
      %v1333 = vpop.f32.mrb[0].mxu0
      %v1334 = vadd.f32 0.0, %v1333
      %v1335 = vpop.f32.mrb[0].mxu0
      %1336 = vmatprep.mubr.f32.mxu0 0.0
      %1337 = vmatmul.mubr.f32.gmra.mrb[0].mxu0 %v1109
      %v1338 = vpop.f32.mrb[0].mxu0
      %v1339 = vadd.f32 0.0, %v1338
      %v1340 = vpop.f32.mrb[0].mxu0
      %1341 = vmatprep.mubr.f32.mxu0 0.0
      %1342 = vmatmul.mubr.f32.gmra.mrb[0].mxu0 %v1112
      %v1343 = vpop.f32.mrb[0].mxu0
      %v1344 = vadd.f32 0.0, %v1343
      %v1345 = vpop.f32.mrb[0].mxu0
      %1346 = vmatprep.mubr.f32.mxu0 0.0
      %1347 = vmatmul.mubr.f32.gmra.mrb[0].mxu0 %v1115
      %v1348 = vpop.f32.mrb[0].mxu0
      %v1349 = vadd.f32 0.0, %v1348
      %v1350 = vpop.f32.mrb[0].mxu0
      %1351 = vmatprep.mubr.f32.mxu0 0.0
      %1352 = vmatmul.mubr.f32.gmra.mrb[0].mxu0 %v1118
      %v1353 = vpop.f32.mrb[0].mxu0
      %v1354 = vadd.f32 0.0, %v1353
      %v1355 = vpop.f32.mrb[0].mxu0
      %1356 = vmatprep.mubr.f32.mxu0 0.0
      %1357 = vmatmul.mubr.f32.gmra.mrb[0].mxu0 %v1121
      %v1358 = vpop.f32.mrb[0].mxu0
      %v1359 = vadd.f32 0.0, %v1358
      %v1360 = vpop.f32.mrb[0].mxu0
      %1361 = vmatprep.mubr.f32.mxu0 0.0
      %1362 = vmatmul.mubr.f32.gmra.mrb[0].mxu0 %v1124
      %v1363 = vpop.f32.mrb[0].mxu0
      %v1364 = vadd.f32 0.0, %v1363
      %v1365 = vpop.f32.mrb[0].mxu0
      %1366 = vmatprep.mubr.f32.mxu0 0.0
      %1367 = vmatmul.mubr.f32.gmra.mrb[0].mxu0 %v1127
      %v1368 = vpop.f32.mrb[0].mxu0
      %v1369 = vadd.f32 0.0, %v1368
      %v1370 = vpop.f32.mrb[0].mxu0
      %1371 = vmatprep.mubr.f32.mxu0 0.0
      %1372 = vmatmul.mubr.f32.gmra.mrb[0].mxu0 %v1130
      %v1373 = vpop.f32.mrb[0].mxu0
      %v1374 = vadd.f32 0.0, %v1373
      %v1375 = vpop.f32.mrb[0].mxu0
      %1376 = vmatprep.mubr.f32.mxu0 0.0
      %1377 = vmatmul.mubr.f32.gmra.mrb[0].mxu0 %v1133
      %v1378 = vpop.f32.mrb[0].mxu0
      %v1379 = vadd.f32 0.0, %v1378
      %v1380 = vpop.f32.mrb[0].mxu0
      %1381 = vmatprep.mubr.f32.mxu0 0.0
      %1382 = vmatmul.mubr.f32.gmra.mrb[0].mxu0 %v1136
      %v1383 = vpop.f32.mrb[0].mxu0
      %v1384 = vadd.f32 0.0, %v1383
      %v1385 = vpop.f32.mrb[0].mxu0
      %1386 = vmatprep.mubr.f32.mxu0 0.0
      %1387 = vmatmul.mubr.f32.gmra.mrb[0].mxu0 %v1139
      %v1388 = vpop.f32.mrb[0].mxu0
      %v1389 = vadd.f32 0.0, %v1388
      %v1390 = vpop.f32.mrb[0].mxu0
      %1391 = vmatprep.mubr.f32.mxu0 0.0
      %1392 = vmatmul.mubr.f32.gmra.mrb[0].mxu0 %v1142
      %v1393 = vpop.f32.mrb[0].mxu0
      %v1394 = vadd.f32 0.0, %v1393
      %v1395 = vpop.f32.mrb[0].mxu0
      %1396 = vmatprep.mubr.f32.mxu0 0.0
      %1397 = vmatmul.mubr.f32.gmra.mrb[0].mxu0 %v1145
      %v1398 = vpop.f32.mrb[0].mxu0
      %v1399 = vadd.f32 0.0, %v1398
      %v1400 = vpop.f32.mrb[0].mxu0
      %1401 = vmatprep.mubr.f32.mxu0 0.0
      %1402 = vmatmul.mubr.f32.gmra.mrb[0].mxu0 %v1148
      %v1403 = vpop.f32.mrb[0].mxu0
      %v1404 = vadd.f32 0.0, %v1403
      %v1405 = vpop.f32.mrb[0].mxu0
      %1406 = vmatprep.mubr.f32.mxu0 0.0
      %1407 = vmatmul.mubr.f32.gmra.mrb[0].mxu0 %v1151
      %v1408 = vpop.f32.mrb[0].mxu0
      %v1409 = vadd.f32 0.0, %v1408
      %v1410 = vpop.f32.mrb[0].mxu0
      %1411 = vmatprep.mubr.f32.mxu0 0.0
      %1412 = vmatmul.mubr.f32.gmra.mrb[0].mxu0 %v1154
      %v1413 = vpop.f32.mrb[0].mxu0
      %v1414 = vadd.f32 0.0, %v1413
      %v1415 = vpop.f32.mrb[0].mxu0
      %1416 = vmatprep.mubr.f32.mxu0 0.0
      %1417 = vmatmul.mubr.f32.gmra.mrb[0].mxu0 %v1157
      %v1418 = vpop.f32.mrb[0].mxu0
      %v1419 = vadd.f32 0.0, %v1418
      %v1420 = vpop.f32.mrb[0].mxu0
      %1421 = vmatprep.mubr.f32.mxu0 0.0
      %1422 = vmatmul.mubr.f32.gmra.mrb[0].mxu0 %v1160
      %v1423 = vpop.f32.mrb[0].mxu0
      %v1424 = vadd.f32 0.0, %v1423
      %v1425 = vpop.f32.mrb[0].mxu0
      %1426 = vdwg.mxu0
      %v1427 = vmul.f32 %v1229, %v443
      %v1428 = vmul.f32 %v1234, %v443
      %v1429 = vmul.f32 %v1239, %v443
      %v1430 = vmul.f32 %v1244, %v443
      %v1431 = vmul.f32 %v1249, %v443
      %v1432 = vmul.f32 %v1254, %v443
      %v1433 = vmul.f32 %v1259, %v443
      %v1434 = vmul.f32 %v1264, %v443
      %v1435 = vmul.f32 %v1269, %v443
      %v1436 = vmul.f32 %v1274, %v443
      %v1437 = vmul.f32 %v1279, %v443
      %v1438 = vmul.f32 %v1284, %v443
      %v1439 = vmul.f32 %v1289, %v443
      %v1440 = vmul.f32 %v1294, %v443
      %v1441 = vmul.f32 %v1299, %v443
      %v1442 = vmul.f32 %v1304, %v443
      %v1443 = vmul.f32 %v1309, %v443
      %v1444 = vmul.f32 %v1314, %v443
      %v1445 = vmul.f32 %v1319, %v443
      %v1446 = vmul.f32 %v1324, %v443
      %v1447 = vmul.f32 %v1329, %v443
      %v1448 = vmul.f32 %v1334, %v443
      %v1449 = vmul.f32 %v1339, %v443
      %v1450 = vmul.f32 %v1344, %v443
      %v1451 = vmul.f32 %v1349, %v443
      %v1452 = vmul.f32 %v1354, %v443
      %v1453 = vmul.f32 %v1359, %v443
      %v1454 = vmul.f32 %v1364, %v443
      %v1455 = vmul.f32 %v1369, %v443
      %v1456 = vmul.f32 %v1374, %v443
      %v1457 = vmul.f32 %v1379, %v443
      %v1458 = vmul.f32 %v1384, %v443
      %v1459 = vmul.f32 %v1389, %v443
      %v1460 = vmul.f32 %v1394, %v443
      %v1461 = vmul.f32 %v1399, %v443
      %v1462 = vmul.f32 %v1404, %v443
      %v1463 = vmul.f32 %v1409, %v443
      %v1464 = vmul.f32 %v1414, %v443
      %v1465 = vmul.f32 %v1419, %v443
      %v1466 = vmul.f32 %v1424, %v443
      %v1467 = vadd.f32 %v1427, %v450
      %v1468 = vadd.f32 %v1428, %v450
      %v1469 = vadd.f32 %v1429, %v450
      %v1470 = vadd.f32 %v1430, %v450
      %v1471 = vadd.f32 %v1431, %v450
      %v1472 = vadd.f32 %v1432, %v450
      %v1473 = vadd.f32 %v1433, %v450
      %v1474 = vadd.f32 %v1434, %v450
      %v1475 = vadd.f32 %v1435, %v450
      %v1476 = vadd.f32 %v1436, %v450
      %v1477 = vadd.f32 %v1437, %v450
      %v1478 = vadd.f32 %v1438, %v450
      %v1479 = vadd.f32 %v1439, %v450
      %v1480 = vadd.f32 %v1440, %v450
      %v1481 = vadd.f32 %v1441, %v450
      %v1482 = vadd.f32 %v1442, %v450
      %v1483 = vadd.f32 %v1443, %v450
      %v1484 = vadd.f32 %v1444, %v450
      %v1485 = vadd.f32 %v1445, %v450
      %v1486 = vadd.f32 %v1446, %v450
      %v1487 = vadd.f32 %v1447, %v450
      %v1488 = vadd.f32 %v1448, %v450
      %v1489 = vadd.f32 %v1449, %v450
      %v1490 = vadd.f32 %v1450, %v450
      %v1491 = vadd.f32 %v1451, %v450
      %v1492 = vadd.f32 %v1452, %v450
      %v1493 = vadd.f32 %v1453, %v450
      %v1494 = vadd.f32 %v1454, %v450
      %v1495 = vadd.f32 %v1455, %v450
      %v1496 = vadd.f32 %v1456, %v450
      %v1497 = vadd.f32 %v1457, %v450
      %v1498 = vadd.f32 %v1458, %v450
      %v1499 = vadd.f32 %v1459, %v450
      %v1500 = vadd.f32 %v1460, %v450
      %v1501 = vadd.f32 %v1461, %v450
      %v1502 = vadd.f32 %v1462, %v450
      %v1503 = vadd.f32 %v1463, %v450
      %v1504 = vadd.f32 %v1464, %v450
      %v1505 = vadd.f32 %v1465, %v450
      %v1506 = vadd.f32 %v1466, %v450
      %v1507 = vmax.f32 %v1467, 0.0
      %v1508 = vmax.f32 %v1468, 0.0
      %v1509 = vmax.f32 %v1469, 0.0
      %v1510 = vmax.f32 %v1470, 0.0
      %v1511 = vmax.f32 %v1471, 0.0
      %v1512 = vmax.f32 %v1472, 0.0
      %v1513 = vmax.f32 %v1473, 0.0
      %v1514 = vmax.f32 %v1474, 0.0
      %v1515 = vmax.f32 %v1475, 0.0
      %v1516 = vmax.f32 %v1476, 0.0
      %v1517 = vmax.f32 %v1477, 0.0
      %v1518 = vmax.f32 %v1478, 0.0
      %v1519 = vmax.f32 %v1479, 0.0
      %v1520 = vmax.f32 %v1480, 0.0
      %v1521 = vmax.f32 %v1481, 0.0
      %v1522 = vmax.f32 %v1482, 0.0
      %v1523 = vmax.f32 %v1483, 0.0
      %v1524 = vmax.f32 %v1484, 0.0
      %v1525 = vmax.f32 %v1485, 0.0
      %v1526 = vmax.f32 %v1486, 0.0
      %v1527 = vmax.f32 %v1487, 0.0
      %v1528 = vmax.f32 %v1488, 0.0
      %v1529 = vmax.f32 %v1489, 0.0
      %v1530 = vmax.f32 %v1490, 0.0
      %v1531 = vmax.f32 %v1491, 0.0
      %v1532 = vmax.f32 %v1492, 0.0
      %v1533 = vmax.f32 %v1493, 0.0
      %v1534 = vmax.f32 %v1494, 0.0
      %v1535 = vmax.f32 %v1495, 0.0
      %v1536 = vmax.f32 %v1496, 0.0
      %v1537 = vmax.f32 %v1497, 0.0
      %v1538 = vmax.f32 %v1498, 0.0
      %v1539 = vmax.f32 %v1499, 0.0
      %v1540 = vmax.f32 %v1500, 0.0
      %v1541 = vmax.f32 %v1501, 0.0
      %v1542 = vmax.f32 %v1502, 0.0
      %v1543 = vmax.f32 %v1503, 0.0
      %v1544 = vmax.f32 %v1504, 0.0
      %v1545 = vmax.f32 %v1505, 0.0
      %v1546 = vmax.f32 %v1506, 0.0
      %v1547 = vmax.f32 %v962, %v1507
      %v1548 = vmax.f32 %v963, %v1508
      %v1549 = vmax.f32 %v964, %v1509
      %v1550 = vmax.f32 %v965, %v1510
      %v1551 = vmax.f32 %v966, %v1511
      %v1552 = vmax.f32 %v967, %v1512
      %v1553 = vmax.f32 %v968, %v1513
      %v1554 = vmax.f32 %v969, %v1514
      %v1555 = vmax.f32 %v970, %v1515
      %v1556 = vmax.f32 %v971, %v1516
      %v1557 = vmax.f32 %v972, %v1517
      %v1558 = vmax.f32 %v973, %v1518
      %v1559 = vmax.f32 %v974, %v1519
      %v1560 = vmax.f32 %v975, %v1520
      %v1561 = vmax.f32 %v976, %v1521
      %v1562 = vmax.f32 %v977, %v1522
      %v1563 = vmax.f32 %v978, %v1523
      %v1564 = vmax.f32 %v979, %v1524
      %v1565 = vmax.f32 %v980, %v1525
      %v1566 = vmax.f32 %v981, %v1526
      %v1567 = vmax.f32 %v982, %v1527
      %v1568 = vmax.f32 %v983, %v1528
      %v1569 = vmax.f32 %v984, %v1529
      %v1570 = vmax.f32 %v985, %v1530
      %v1571 = vmax.f32 %v986, %v1531
      %v1572 = vmax.f32 %v987, %v1532
      %v1573 = vmax.f32 %v988, %v1533
      %v1574 = vmax.f32 %v989, %v1534
      %v1575 = vmax.f32 %v990, %v1535
      %v1576 = vmax.f32 %v991, %v1536
      %v1577 = vmax.f32 %v992, %v1537
      %v1578 = vmax.f32 %v993, %v1538
      %v1579 = vmax.f32 %v994, %v1539
      %v1580 = vmax.f32 %v995, %v1540
      %v1581 = vmax.f32 %v996, %v1541
      %v1582 = vmax.f32 %v997, %v1542
      %v1583 = vmax.f32 %v998, %v1543
      %v1584 = vmax.f32 %v999, %v1544
      %v1585 = vmax.f32 %v1000, %v1545
      %v1586 = vmax.f32 %v1001, %v1546
      %v1587 = vld [vmem:[%s404] sm:$0xff]
      %v1588 = vld [vmem:[%s404 + $0x8] sm:$0xff]
      %v1589 = vld [vmem:[%s404 + $0x10] sm:$0xff]
      %v1590 = vld [vmem:[%s404 + $0x18] sm:$0xff]
      %v1591 = vld [vmem:[%s404 + $0x20] sm:$0xff]
      %v1592 = vld [vmem:[%s404 + $0x28] sm:$0xff]
      %v1593 = vld [vmem:[%s404 + $0x30] sm:$0xff]
      %v1594 = vld [vmem:[%s404 + $0x38] sm:$0xff]
      %v1595 = vld [vmem:[%s404 + $0x40] sm:$0xff]
      %v1596 = vld [vmem:[%s404 + $0x48] sm:$0xff]
      %v1597 = vld [vmem:[%s404 + $0x50] sm:$0xff]
      %v1598 = vld [vmem:[%s404 + $0x58] sm:$0xff]
      %v1599 = vld [vmem:[%s404 + $0x60] sm:$0xff]
      %v1600 = vld [vmem:[%s404 + $0x68] sm:$0xff]
      %v1601 = vld [vmem:[%s404 + $0x70] sm:$0xff]
      %v1602 = vld [vmem:[%s404 + $0x78] sm:$0xff]
      %v1603 = vld [vmem:[%s404 + $0x80] sm:$0xff]
      %v1604 = vld [vmem:[%s404 + $0x88] sm:$0xff]
      %v1605 = vld [vmem:[%s404 + $0x90] sm:$0xff]
      %v1606 = vld [vmem:[%s404 + $0x98] sm:$0xff]
      %v1607 = vld [vmem:[%s404 + $0xa0] sm:$0xff]
      %v1608 = vld [vmem:[%s404 + $0xa8] sm:$0xff]
      %v1609 = vld [vmem:[%s404 + $0xb0] sm:$0xff]
      %v1610 = vld [vmem:[%s404 + $0xb8] sm:$0xff]
      %v1611 = vld [vmem:[%s404 + $0xc0] sm:$0xff]
      %v1612 = vld [vmem:[%s404 + $0xc8] sm:$0xff]
      %v1613 = vld [vmem:[%s404 + $0xd0] sm:$0xff]
      %v1614 = vld [vmem:[%s404 + $0xd8] sm:$0xff]
      %v1615 = vld [vmem:[%s404 + $0xe0] sm:$0xff]
      %v1616 = vld [vmem:[%s404 + $0xe8] sm:$0xff]
      %v1617 = vld [vmem:[%s404 + $0xf0] sm:$0xff]
      %v1618 = vld [vmem:[%s404 + $0xf8] sm:$0xff]
      %v1619 = vld [vmem:[%s404 + $0x100] sm:$0xff]
      %v1620 = vld [vmem:[%s404 + $0x108] sm:$0xff]
      %v1621 = vld [vmem:[%s404 + $0x110] sm:$0xff]
      %v1622 = vld [vmem:[%s404 + $0x118] sm:$0xff]
      %v1623 = vld [vmem:[%s404 + $0x120] sm:$0xff]
      %v1624 = vld [vmem:[%s404 + $0x128] sm:$0xff]
      %v1625 = vld [vmem:[%s404 + $0x130] sm:$0xff]
      %v1626 = vld [vmem:[%s404 + $0x138] sm:$0xff]
      %v1628 = vsel %vm492, %v1587, 0
      %v1631 = vsel %vm492, %v1588, 0
      %v1634 = vsel %vm492, %v1589, 0
      %v1637 = vsel %vm492, %v1590, 0
      %v1640 = vsel %vm492, %v1591, 0
      %v1643 = vsel %vm492, %v1592, 0
      %v1646 = vsel %vm492, %v1593, 0
      %v1649 = vsel %vm492, %v1594, 0
      %v1652 = vsel %vm492, %v1595, 0
      %v1655 = vsel %vm492, %v1596, 0
      %v1658 = vsel %vm492, %v1597, 0
      %v1661 = vsel %vm492, %v1598, 0
      %v1664 = vsel %vm492, %v1599, 0
      %v1667 = vsel %vm492, %v1600, 0
      %v1670 = vsel %vm492, %v1601, 0
      %v1673 = vsel %vm492, %v1602, 0
      %v1676 = vsel %vm492, %v1603, 0
      %v1679 = vsel %vm492, %v1604, 0
      %v1682 = vsel %vm492, %v1605, 0
      %v1685 = vsel %vm492, %v1606, 0
      %v1688 = vsel %vm492, %v1607, 0
      %v1691 = vsel %vm492, %v1608, 0
      %v1694 = vsel %vm492, %v1609, 0
      %v1697 = vsel %vm492, %v1610, 0
      %v1700 = vsel %vm492, %v1611, 0
      %v1703 = vsel %vm492, %v1612, 0
      %v1706 = vsel %vm492, %v1613, 0
      %v1709 = vsel %vm492, %v1614, 0
      %v1712 = vsel %vm492, %v1615, 0
      %v1715 = vsel %vm492, %v1616, 0
      %v1718 = vsel %vm492, %v1617, 0
      %v1721 = vsel %vm492, %v1618, 0
      %v1724 = vsel %vm492, %v1619, 0
      %v1727 = vsel %vm492, %v1620, 0
      %v1730 = vsel %vm492, %v1621, 0
      %v1733 = vsel %vm492, %v1622, 0
      %v1736 = vsel %vm492, %v1623, 0
      %v1739 = vsel %vm492, %v1624, 0
      %v1742 = vsel %vm492, %v1625, 0
      %v1745 = vsel %vm492, %v1626, 0
      %1747 = vmatprep.subr.mxu0 0.0
      %1748 = vmatpush1.msra.mxu0 %v426
      %1749 = vmatprep.subr.mxu0 0.0
      %1750 = vmatpush1.msra.mxu0 %v427
      %1751 = vmatprep.subr.mxu0 0.0
      %1752 = vmatpush1.msra.mxu0 %v428
      %1753 = vmatprep.subr.mxu0 0.0
      %1754 = vmatpush1.msra.mxu0 %v429
      %1755 = vmatprep.subr.mxu0 0.0
      %1756 = vmatpush1.msra.mxu0 %v430
      %1757 = vmatprep.subr.mxu0 0.0
      %1758 = vmatpush1.msra.mxu0 %v431
      %1759 = vmatprep.subr.mxu0 0.0
      %1760 = vmatpush1.msra.mxu0 %v432
      %1761 = vmatprep.subr.mxu0 0.0
      %1762 = vmatpush1.msra.mxu0 %v433
      %1763 = vmatprep.subr.mxu0 0.0
      %1764 = vmatpush1.msra.mxu0 %v434
      %1765 = vmatprep.subr.mxu0 0.0
      %1766 = vmatpush1.msra.mxu0 %v435
      %1767 = vmatprep.subr.mxu0 0.0
      %1768 = vmatpush1.msra.mxu0 %v436
      %1769 = vmatprep.subr.mxu0 0.0
      %1770 = vmatpush1.msra.mxu0 %v615
      %1771 = vmatprep.subr.mxu0 0.0
      %1772 = vmatpush1.msra.mxu0 0.0
      %1773 = vmatprep.subr.mxu0 0.0
      %1774 = vmatpush1.msra.mxu0 0.0
      %1775 = vmatprep.subr.mxu0 0.0
      %1776 = vmatpush1.msra.mxu0 0.0
      %1777 = vmatprep.subr.mxu0 0.0
      %1778 = vmatpush1.msra.mxu0 0.0
      %1779 = vmatprep.subr.mxu0 0.0
      %1780 = vmatpush1.msra.mxu0 0.0
      %1781 = vmatprep.subr.mxu0 0.0
      %1782 = vmatpush1.msra.mxu0 0.0
      %1783 = vmatprep.subr.mxu0 0.0
      %1784 = vmatpush1.msra.mxu0 0.0
      %1785 = vmatprep.subr.mxu0 0.0
      %1786 = vmatpush1.msra.mxu0 0.0
      %1787 = vmatprep.subr.mxu0 0.0
      %1788 = vmatpush1.msra.mxu0 0.0
      %1789 = vmatprep.subr.mxu0 0.0
      %1790 = vmatpush1.msra.mxu0 0.0
      %1791 = vmatprep.subr.mxu0 0.0
      %1792 = vmatpush1.msra.mxu0 0.0
      %1793 = vmatprep.subr.mxu0 0.0
      %1794 = vmatpush1.msra.mxu0 0.0
      %1795 = vmatprep.subr.mxu0 0.0
      %1796 = vmatpush1.msra.mxu0 0.0
      %1797 = vmatprep.subr.mxu0 0.0
      %1798 = vmatpush1.msra.mxu0 0.0
      %1799 = vmatprep.subr.mxu0 0.0
      %1800 = vmatpush1.msra.mxu0 0.0
      %1801 = vmatprep.subr.mxu0 0.0
      %1802 = vmatpush1.msra.mxu0 0.0
      %1803 = vmatprep.subr.mxu0 0.0
      %1804 = vmatpush1.msra.mxu0 0.0
      %1805 = vmatprep.subr.mxu0 0.0
      %1806 = vmatpush1.msra.mxu0 0.0
      %1807 = vmatprep.subr.mxu0 0.0
      %1808 = vmatpush1.msra.mxu0 0.0
      %1809 = vmatprep.subr.mxu0 0.0
      %1810 = vmatpush1.msra.mxu0 0.0
      %1811 = vmatprep.mubr.f32.mxu0 0.0
      %1812 = vmatmul.mubr.f32.gmra.mrb[0].mxu0 %v1628
      %v1813 = vpop.f32.mrb[0].mxu0
      %v1814 = vadd.f32 0.0, %v1813
      %v1815 = vpop.f32.mrb[0].mxu0
      %1816 = vmatprep.mubr.f32.mxu0 0.0
      %1817 = vmatmul.mubr.f32.gmra.mrb[0].mxu0 %v1631
      %v1818 = vpop.f32.mrb[0].mxu0
      %v1819 = vadd.f32 0.0, %v1818
      %v1820 = vpop.f32.mrb[0].mxu0
      %1821 = vmatprep.mubr.f32.mxu0 0.0
      %1822 = vmatmul.mubr.f32.gmra.mrb[0].mxu0 %v1634
      %v1823 = vpop.f32.mrb[0].mxu0
      %v1824 = vadd.f32 0.0, %v1823
      %v1825 = vpop.f32.mrb[0].mxu0
      %1826 = vmatprep.mubr.f32.mxu0 0.0
      %1827 = vmatmul.mubr.f32.gmra.mrb[0].mxu0 %v1637
      %v1828 = vpop.f32.mrb[0].mxu0
      %v1829 = vadd.f32 0.0, %v1828
      %v1830 = vpop.f32.mrb[0].mxu0
      %1831 = vmatprep.mubr.f32.mxu0 0.0
      %1832 = vmatmul.mubr.f32.gmra.mrb[0].mxu0 %v1640
      %v1833 = vpop.f32.mrb[0].mxu0
      %v1834 = vadd.f32 0.0, %v1833
      %v1835 = vpop.f32.mrb[0].mxu0
      %1836 = vmatprep.mubr.f32.mxu0 0.0
      %1837 = vmatmul.mubr.f32.gmra.mrb[0].mxu0 %v1643
      %v1838 = vpop.f32.mrb[0].mxu0
      %v1839 = vadd.f32 0.0, %v1838
      %v1840 = vpop.f32.mrb[0].mxu0
      %1841 = vmatprep.mubr.f32.mxu0 0.0
      %1842 = vmatmul.mubr.f32.gmra.mrb[0].mxu0 %v1646
      %v1843 = vpop.f32.mrb[0].mxu0
      %v1844 = vadd.f32 0.0, %v1843
      %v1845 = vpop.f32.mrb[0].mxu0
      %1846 = vmatprep.mubr.f32.mxu0 0.0
      %1847 = vmatmul.mubr.f32.gmra.mrb[0].mxu0 %v1649
      %v1848 = vpop.f32.mrb[0].mxu0
      %v1849 = vadd.f32 0.0, %v1848
      %v1850 = vpop.f32.mrb[0].mxu0
      %1851 = vmatprep.mubr.f32.mxu0 0.0
      %1852 = vmatmul.mubr.f32.gmra.mrb[0].mxu0 %v1652
      %v1853 = vpop.f32.mrb[0].mxu0
      %v1854 = vadd.f32 0.0, %v1853
      %v1855 = vpop.f32.mrb[0].mxu0
      %1856 = vmatprep.mubr.f32.mxu0 0.0
      %1857 = vmatmul.mubr.f32.gmra.mrb[0].mxu0 %v1655
      %v1858 = vpop.f32.mrb[0].mxu0
      %v1859 = vadd.f32 0.0, %v1858
      %v1860 = vpop.f32.mrb[0].mxu0
      %1861 = vmatprep.mubr.f32.mxu0 0.0
      %1862 = vmatmul.mubr.f32.gmra.mrb[0].mxu0 %v1658
      %v1863 = vpop.f32.mrb[0].mxu0
      %v1864 = vadd.f32 0.0, %v1863
      %v1865 = vpop.f32.mrb[0].mxu0
      %1866 = vmatprep.mubr.f32.mxu0 0.0
      %1867 = vmatmul.mubr.f32.gmra.mrb[0].mxu0 %v1661
      %v1868 = vpop.f32.mrb[0].mxu0
      %v1869 = vadd.f32 0.0, %v1868
      %v1870 = vpop.f32.mrb[0].mxu0
      %1871 = vmatprep.mubr.f32.mxu0 0.0
      %1872 = vmatmul.mubr.f32.gmra.mrb[0].mxu0 %v1664
      %v1873 = vpop.f32.mrb[0].mxu0
      %v1874 = vadd.f32 0.0, %v1873
      %v1875 = vpop.f32.mrb[0].mxu0
      %1876 = vmatprep.mubr.f32.mxu0 0.0
      %1877 = vmatmul.mubr.f32.gmra.mrb[0].mxu0 %v1667
      %v1878 = vpop.f32.mrb[0].mxu0
      %v1879 = vadd.f32 0.0, %v1878
      %v1880 = vpop.f32.mrb[0].mxu0
      %1881 = vmatprep.mubr.f32.mxu0 0.0
      %1882 = vmatmul.mubr.f32.gmra.mrb[0].mxu0 %v1670
      %v1883 = vpop.f32.mrb[0].mxu0
      %v1884 = vadd.f32 0.0, %v1883
      %v1885 = vpop.f32.mrb[0].mxu0
      %1886 = vmatprep.mubr.f32.mxu0 0.0
      %1887 = vmatmul.mubr.f32.gmra.mrb[0].mxu0 %v1673
      %v1888 = vpop.f32.mrb[0].mxu0
      %v1889 = vadd.f32 0.0, %v1888
      %v1890 = vpop.f32.mrb[0].mxu0
      %1891 = vmatprep.mubr.f32.mxu0 0.0
      %1892 = vmatmul.mubr.f32.gmra.mrb[0].mxu0 %v1676
      %v1893 = vpop.f32.mrb[0].mxu0
      %v1894 = vadd.f32 0.0, %v1893
      %v1895 = vpop.f32.mrb[0].mxu0
      %1896 = vmatprep.mubr.f32.mxu0 0.0
      %1897 = vmatmul.mubr.f32.gmra.mrb[0].mxu0 %v1679
      %v1898 = vpop.f32.mrb[0].mxu0
      %v1899 = vadd.f32 0.0, %v1898
      %v1900 = vpop.f32.mrb[0].mxu0
      %1901 = vmatprep.mubr.f32.mxu0 0.0
      %1902 = vmatmul.mubr.f32.gmra.mrb[0].mxu0 %v1682
      %v1903 = vpop.f32.mrb[0].mxu0
      %v1904 = vadd.f32 0.0, %v1903
      %v1905 = vpop.f32.mrb[0].mxu0
      %1906 = vmatprep.mubr.f32.mxu0 0.0
      %1907 = vmatmul.mubr.f32.gmra.mrb[0].mxu0 %v1685
      %v1908 = vpop.f32.mrb[0].mxu0
      %v1909 = vadd.f32 0.0, %v1908
      %v1910 = vpop.f32.mrb[0].mxu0
      %1911 = vmatprep.mubr.f32.mxu0 0.0
      %1912 = vmatmul.mubr.f32.gmra.mrb[0].mxu0 %v1688
      %v1913 = vpop.f32.mrb[0].mxu0
      %v1914 = vadd.f32 0.0, %v1913
      %v1915 = vpop.f32.mrb[0].mxu0
      %1916 = vmatprep.mubr.f32.mxu0 0.0
      %1917 = vmatmul.mubr.f32.gmra.mrb[0].mxu0 %v1691
      %v1918 = vpop.f32.mrb[0].mxu0
      %v1919 = vadd.f32 0.0, %v1918
      %v1920 = vpop.f32.mrb[0].mxu0
      %1921 = vmatprep.mubr.f32.mxu0 0.0
      %1922 = vmatmul.mubr.f32.gmra.mrb[0].mxu0 %v1694
      %v1923 = vpop.f32.mrb[0].mxu0
      %v1924 = vadd.f32 0.0, %v1923
      %v1925 = vpop.f32.mrb[0].mxu0
      %1926 = vmatprep.mubr.f32.mxu0 0.0
      %1927 = vmatmul.mubr.f32.gmra.mrb[0].mxu0 %v1697
      %v1928 = vpop.f32.mrb[0].mxu0
      %v1929 = vadd.f32 0.0, %v1928
      %v1930 = vpop.f32.mrb[0].mxu0
      %1931 = vmatprep.mubr.f32.mxu0 0.0
      %1932 = vmatmul.mubr.f32.gmra.mrb[0].mxu0 %v1700
      %v1933 = vpop.f32.mrb[0].mxu0
      %v1934 = vadd.f32 0.0, %v1933
      %v1935 = vpop.f32.mrb[0].mxu0
      %1936 = vmatprep.mubr.f32.mxu0 0.0
      %1937 = vmatmul.mubr.f32.gmra.mrb[0].mxu0 %v1703
      %v1938 = vpop.f32.mrb[0].mxu0
      %v1939 = vadd.f32 0.0, %v1938
      %v1940 = vpop.f32.mrb[0].mxu0
      %1941 = vmatprep.mubr.f32.mxu0 0.0
      %1942 = vmatmul.mubr.f32.gmra.mrb[0].mxu0 %v1706
      %v1943 = vpop.f32.mrb[0].mxu0
      %v1944 = vadd.f32 0.0, %v1943
      %v1945 = vpop.f32.mrb[0].mxu0
      %1946 = vmatprep.mubr.f32.mxu0 0.0
      %1947 = vmatmul.mubr.f32.gmra.mrb[0].mxu0 %v1709
      %v1948 = vpop.f32.mrb[0].mxu0
      %v1949 = vadd.f32 0.0, %v1948
      %v1950 = vpop.f32.mrb[0].mxu0
      %1951 = vmatprep.mubr.f32.mxu0 0.0
      %1952 = vmatmul.mubr.f32.gmra.mrb[0].mxu0 %v1712
      %v1953 = vpop.f32.mrb[0].mxu0
      %v1954 = vadd.f32 0.0, %v1953
      %v1955 = vpop.f32.mrb[0].mxu0
      %1956 = vmatprep.mubr.f32.mxu0 0.0
      %1957 = vmatmul.mubr.f32.gmra.mrb[0].mxu0 %v1715
      %v1958 = vpop.f32.mrb[0].mxu0
      %v1959 = vadd.f32 0.0, %v1958
      %v1960 = vpop.f32.mrb[0].mxu0
      %1961 = vmatprep.mubr.f32.mxu0 0.0
      %1962 = vmatmul.mubr.f32.gmra.mrb[0].mxu0 %v1718
      %v1963 = vpop.f32.mrb[0].mxu0
      %v1964 = vadd.f32 0.0, %v1963
      %v1965 = vpop.f32.mrb[0].mxu0
      %1966 = vmatprep.mubr.f32.mxu0 0.0
      %1967 = vmatmul.mubr.f32.gmra.mrb[0].mxu0 %v1721
      %v1968 = vpop.f32.mrb[0].mxu0
      %v1969 = vadd.f32 0.0, %v1968
      %v1970 = vpop.f32.mrb[0].mxu0
      %1971 = vmatprep.mubr.f32.mxu0 0.0
      %1972 = vmatmul.mubr.f32.gmra.mrb[0].mxu0 %v1724
      %v1973 = vpop.f32.mrb[0].mxu0
      %v1974 = vadd.f32 0.0, %v1973
      %v1975 = vpop.f32.mrb[0].mxu0
      %1976 = vmatprep.mubr.f32.mxu0 0.0
      %1977 = vmatmul.mubr.f32.gmra.mrb[0].mxu0 %v1727
      %v1978 = vpop.f32.mrb[0].mxu0
      %v1979 = vadd.f32 0.0, %v1978
      %v1980 = vpop.f32.mrb[0].mxu0
      %1981 = vmatprep.mubr.f32.mxu0 0.0
      %1982 = vmatmul.mubr.f32.gmra.mrb[0].mxu0 %v1730
      %v1983 = vpop.f32.mrb[0].mxu0
      %v1984 = vadd.f32 0.0, %v1983
      %v1985 = vpop.f32.mrb[0].mxu0
      %1986 = vmatprep.mubr.f32.mxu0 0.0
      %1987 = vmatmul.mubr.f32.gmra.mrb[0].mxu0 %v1733
      %v1988 = vpop.f32.mrb[0].mxu0
      %v1989 = vadd.f32 0.0, %v1988
      %v1990 = vpop.f32.mrb[0].mxu0
      %1991 = vmatprep.mubr.f32.mxu0 0.0
      %1992 = vmatmul.mubr.f32.gmra.mrb[0].mxu0 %v1736
      %v1993 = vpop.f32.mrb[0].mxu0
      %v1994 = vadd.f32 0.0, %v1993
      %v1995 = vpop.f32.mrb[0].mxu0
      %1996 = vmatprep.mubr.f32.mxu0 0.0
      %1997 = vmatmul.mubr.f32.gmra.mrb[0].mxu0 %v1739
      %v1998 = vpop.f32.mrb[0].mxu0
      %v1999 = vadd.f32 0.0, %v1998
      %v2000 = vpop.f32.mrb[0].mxu0
      %2001 = vmatprep.mubr.f32.mxu0 0.0
      %2002 = vmatmul.mubr.f32.gmra.mrb[0].mxu0 %v1742
      %v2003 = vpop.f32.mrb[0].mxu0
      %v2004 = vadd.f32 0.0, %v2003
      %v2005 = vpop.f32.mrb[0].mxu0
      %2006 = vmatprep.mubr.f32.mxu0 0.0
      %2007 = vmatmul.mubr.f32.gmra.mrb[0].mxu0 %v1745
      %v2008 = vpop.f32.mrb[0].mxu0
      %v2009 = vadd.f32 0.0, %v2008
      %v2010 = vpop.f32.mrb[0].mxu0
      %2011 = vdwg.mxu0
      %v2012 = vmul.f32 %v1814, %v443
      %v2013 = vmul.f32 %v1819, %v443
      %v2014 = vmul.f32 %v1824, %v443
      %v2015 = vmul.f32 %v1829, %v443
      %v2016 = vmul.f32 %v1834, %v443
      %v2017 = vmul.f32 %v1839, %v443
      %v2018 = vmul.f32 %v1844, %v443
      %v2019 = vmul.f32 %v1849, %v443
      %v2020 = vmul.f32 %v1854, %v443
      %v2021 = vmul.f32 %v1859, %v443
      %v2022 = vmul.f32 %v1864, %v443
      %v2023 = vmul.f32 %v1869, %v443
      %v2024 = vmul.f32 %v1874, %v443
      %v2025 = vmul.f32 %v1879, %v443
      %v2026 = vmul.f32 %v1884, %v443
      %v2027 = vmul.f32 %v1889, %v443
      %v2028 = vmul.f32 %v1894, %v443
      %v2029 = vmul.f32 %v1899, %v443
      %v2030 = vmul.f32 %v1904, %v443
      %v2031 = vmul.f32 %v1909, %v443
      %v2032 = vmul.f32 %v1914, %v443
      %v2033 = vmul.f32 %v1919, %v443
      %v2034 = vmul.f32 %v1924, %v443
      %v2035 = vmul.f32 %v1929, %v443
      %v2036 = vmul.f32 %v1934, %v443
      %v2037 = vmul.f32 %v1939, %v443
      %v2038 = vmul.f32 %v1944, %v443
      %v2039 = vmul.f32 %v1949, %v443
      %v2040 = vmul.f32 %v1954, %v443
      %v2041 = vmul.f32 %v1959, %v443
      %v2042 = vmul.f32 %v1964, %v443
      %v2043 = vmul.f32 %v1969, %v443
      %v2044 = vmul.f32 %v1974, %v443
      %v2045 = vmul.f32 %v1979, %v443
      %v2046 = vmul.f32 %v1984, %v443
      %v2047 = vmul.f32 %v1989, %v443
      %v2048 = vmul.f32 %v1994, %v443
      %v2049 = vmul.f32 %v1999, %v443
      %v2050 = vmul.f32 %v2004, %v443
      %v2051 = vmul.f32 %v2009, %v443
      %v2052 = vadd.f32 %v2012, %v450
      %v2053 = vadd.f32 %v2013, %v450
      %v2054 = vadd.f32 %v2014, %v450
      %v2055 = vadd.f32 %v2015, %v450
      %v2056 = vadd.f32 %v2016, %v450
      %v2057 = vadd.f32 %v2017, %v450
      %v2058 = vadd.f32 %v2018, %v450
      %v2059 = vadd.f32 %v2019, %v450
      %v2060 = vadd.f32 %v2020, %v450
      %v2061 = vadd.f32 %v2021, %v450
      %v2062 = vadd.f32 %v2022, %v450
      %v2063 = vadd.f32 %v2023, %v450
      %v2064 = vadd.f32 %v2024, %v450
      %v2065 = vadd.f32 %v2025, %v450
      %v2066 = vadd.f32 %v2026, %v450
      %v2067 = vadd.f32 %v2027, %v450
      %v2068 = vadd.f32 %v2028, %v450
      %v2069 = vadd.f32 %v2029, %v450
      %v2070 = vadd.f32 %v2030, %v450
      %v2071 = vadd.f32 %v2031, %v450
      %v2072 = vadd.f32 %v2032, %v450
      %v2073 = vadd.f32 %v2033, %v450
      %v2074 = vadd.f32 %v2034, %v450
      %v2075 = vadd.f32 %v2035, %v450
      %v2076 = vadd.f32 %v2036, %v450
      %v2077 = vadd.f32 %v2037, %v450
      %v2078 = vadd.f32 %v2038, %v450
      %v2079 = vadd.f32 %v2039, %v450
      %v2080 = vadd.f32 %v2040, %v450
      %v2081 = vadd.f32 %v2041, %v450
      %v2082 = vadd.f32 %v2042, %v450
      %v2083 = vadd.f32 %v2043, %v450
      %v2084 = vadd.f32 %v2044, %v450
      %v2085 = vadd.f32 %v2045, %v450
      %v2086 = vadd.f32 %v2046, %v450
      %v2087 = vadd.f32 %v2047, %v450
      %v2088 = vadd.f32 %v2048, %v450
      %v2089 = vadd.f32 %v2049, %v450
      %v2090 = vadd.f32 %v2050, %v450
      %v2091 = vadd.f32 %v2051, %v450
      %v2092 = vmax.f32 %v2052, 0.0
      %v2093 = vmax.f32 %v2053, 0.0
      %v2094 = vmax.f32 %v2054, 0.0
      %v2095 = vmax.f32 %v2055, 0.0
      %v2096 = vmax.f32 %v2056, 0.0
      %v2097 = vmax.f32 %v2057, 0.0
      %v2098 = vmax.f32 %v2058, 0.0
      %v2099 = vmax.f32 %v2059, 0.0
      %v2100 = vmax.f32 %v2060, 0.0
      %v2101 = vmax.f32 %v2061, 0.0
      %v2102 = vmax.f32 %v2062, 0.0
      %v2103 = vmax.f32 %v2063, 0.0
      %v2104 = vmax.f32 %v2064, 0.0
      %v2105 = vmax.f32 %v2065, 0.0
      %v2106 = vmax.f32 %v2066, 0.0
      %v2107 = vmax.f32 %v2067, 0.0
      %v2108 = vmax.f32 %v2068, 0.0
      %v2109 = vmax.f32 %v2069, 0.0
      %v2110 = vmax.f32 %v2070, 0.0
      %v2111 = vmax.f32 %v2071, 0.0
      %v2112 = vmax.f32 %v2072, 0.0
      %v2113 = vmax.f32 %v2073, 0.0
      %v2114 = vmax.f32 %v2074, 0.0
      %v2115 = vmax.f32 %v2075, 0.0
      %v2116 = vmax.f32 %v2076, 0.0
      %v2117 = vmax.f32 %v2077, 0.0
      %v2118 = vmax.f32 %v2078, 0.0
      %v2119 = vmax.f32 %v2079, 0.0
      %v2120 = vmax.f32 %v2080, 0.0
      %v2121 = vmax.f32 %v2081, 0.0
      %v2122 = vmax.f32 %v2082, 0.0
      %v2123 = vmax.f32 %v2083, 0.0
      %v2124 = vmax.f32 %v2084, 0.0
      %v2125 = vmax.f32 %v2085, 0.0
      %v2126 = vmax.f32 %v2086, 0.0
      %v2127 = vmax.f32 %v2087, 0.0
      %v2128 = vmax.f32 %v2088, 0.0
      %v2129 = vmax.f32 %v2089, 0.0
      %v2130 = vmax.f32 %v2090, 0.0
      %v2131 = vmax.f32 %v2091, 0.0
      %v2132 = vld [vmem:[%s414] sm:$0xff]
      %v2133 = vld [vmem:[%s414 + $0x8] sm:$0xff]
      %v2134 = vld [vmem:[%s414 + $0x10] sm:$0xff]
      %v2135 = vld [vmem:[%s414 + $0x18] sm:$0xff]
      %v2136 = vld [vmem:[%s414 + $0x20] sm:$0xff]
      %v2137 = vld [vmem:[%s414 + $0x28] sm:$0xff]
      %v2138 = vld [vmem:[%s414 + $0x30] sm:$0xff]
      %v2139 = vld [vmem:[%s414 + $0x38] sm:$0xff]
      %v2140 = vld [vmem:[%s414 + $0x40] sm:$0xff]
      %v2141 = vld [vmem:[%s414 + $0x48] sm:$0xff]
      %v2142 = vld [vmem:[%s414 + $0x50] sm:$0xff]
      %v2143 = vld [vmem:[%s414 + $0x58] sm:$0xff]
      %v2144 = vld [vmem:[%s414 + $0x60] sm:$0xff]
      %v2145 = vld [vmem:[%s414 + $0x68] sm:$0xff]
      %v2146 = vld [vmem:[%s414 + $0x70] sm:$0xff]
      %v2147 = vld [vmem:[%s414 + $0x78] sm:$0xff]
      %v2148 = vld [vmem:[%s414 + $0x80] sm:$0xff]
      %v2149 = vld [vmem:[%s414 + $0x88] sm:$0xff]
      %v2150 = vld [vmem:[%s414 + $0x90] sm:$0xff]
      %v2151 = vld [vmem:[%s414 + $0x98] sm:$0xff]
      %v2152 = vld [vmem:[%s414 + $0xa0] sm:$0xff]
      %v2153 = vld [vmem:[%s414 + $0xa8] sm:$0xff]
      %v2154 = vld [vmem:[%s414 + $0xb0] sm:$0xff]
      %v2155 = vld [vmem:[%s414 + $0xb8] sm:$0xff]
      %v2156 = vld [vmem:[%s414 + $0xc0] sm:$0xff]
      %v2157 = vld [vmem:[%s414 + $0xc8] sm:$0xff]
      %v2158 = vld [vmem:[%s414 + $0xd0] sm:$0xff]
      %v2159 = vld [vmem:[%s414 + $0xd8] sm:$0xff]
      %v2160 = vld [vmem:[%s414 + $0xe0] sm:$0xff]
      %v2161 = vld [vmem:[%s414 + $0xe8] sm:$0xff]
      %v2162 = vld [vmem:[%s414 + $0xf0] sm:$0xff]
      %v2163 = vld [vmem:[%s414 + $0xf8] sm:$0xff]
      %v2164 = vld [vmem:[%s414 + $0x100] sm:$0xff]
      %v2165 = vld [vmem:[%s414 + $0x108] sm:$0xff]
      %v2166 = vld [vmem:[%s414 + $0x110] sm:$0xff]
      %v2167 = vld [vmem:[%s414 + $0x118] sm:$0xff]
      %v2168 = vld [vmem:[%s414 + $0x120] sm:$0xff]
      %v2169 = vld [vmem:[%s414 + $0x128] sm:$0xff]
      %v2170 = vld [vmem:[%s414 + $0x130] sm:$0xff]
      %v2171 = vld [vmem:[%s414 + $0x138] sm:$0xff]
      %v2173 = vsel %vm492, %v2132, 0
      %v2176 = vsel %vm492, %v2133, 0
      %v2179 = vsel %vm492, %v2134, 0
      %v2182 = vsel %vm492, %v2135, 0
      %v2185 = vsel %vm492, %v2136, 0
      %v2188 = vsel %vm492, %v2137, 0
      %v2191 = vsel %vm492, %v2138, 0
      %v2194 = vsel %vm492, %v2139, 0
      %v2197 = vsel %vm492, %v2140, 0
      %v2200 = vsel %vm492, %v2141, 0
      %v2203 = vsel %vm492, %v2142, 0
      %v2206 = vsel %vm492, %v2143, 0
      %v2209 = vsel %vm492, %v2144, 0
      %v2212 = vsel %vm492, %v2145, 0
      %v2215 = vsel %vm492, %v2146, 0
      %v2218 = vsel %vm492, %v2147, 0
      %v2221 = vsel %vm492, %v2148, 0
      %v2224 = vsel %vm492, %v2149, 0
      %v2227 = vsel %vm492, %v2150, 0
      %v2230 = vsel %vm492, %v2151, 0
      %v2233 = vsel %vm492, %v2152, 0
      %v2236 = vsel %vm492, %v2153, 0
      %v2239 = vsel %vm492, %v2154, 0
      %v2242 = vsel %vm492, %v2155, 0
      %v2245 = vsel %vm492, %v2156, 0
      %v2248 = vsel %vm492, %v2157, 0
      %v2251 = vsel %vm492, %v2158, 0
      %v2254 = vsel %vm492, %v2159, 0
      %v2257 = vsel %vm492, %v2160, 0
      %v2260 = vsel %vm492, %v2161, 0
      %v2263 = vsel %vm492, %v2162, 0
      %v2266 = vsel %vm492, %v2163, 0
      %v2269 = vsel %vm492, %v2164, 0
      %v2272 = vsel %vm492, %v2165, 0
      %v2275 = vsel %vm492, %v2166, 0
      %v2278 = vsel %vm492, %v2167, 0
      %v2281 = vsel %vm492, %v2168, 0
      %v2284 = vsel %vm492, %v2169, 0
      %v2287 = vsel %vm492, %v2170, 0
      %v2290 = vsel %vm492, %v2171, 0
      %2292 = vmatprep.subr.mxu0 0.0
      %2293 = vmatpush1.msra.mxu0 %v426
      %2294 = vmatprep.subr.mxu0 0.0
      %2295 = vmatpush1.msra.mxu0 %v427
      %2296 = vmatprep.subr.mxu0 0.0
      %2297 = vmatpush1.msra.mxu0 %v428
      %2298 = vmatprep.subr.mxu0 0.0
      %2299 = vmatpush1.msra.mxu0 %v429
      %2300 = vmatprep.subr.mxu0 0.0
      %2301 = vmatpush1.msra.mxu0 %v430
      %2302 = vmatprep.subr.mxu0 0.0
      %2303 = vmatpush1.msra.mxu0 %v431
      %2304 = vmatprep.subr.mxu0 0.0
      %2305 = vmatpush1.msra.mxu0 %v432
      %2306 = vmatprep.subr.mxu0 0.0
      %2307 = vmatpush1.msra.mxu0 %v433
      %2308 = vmatprep.subr.mxu0 0.0
      %2309 = vmatpush1.msra.mxu0 %v434
      %2310 = vmatprep.subr.mxu0 0.0
      %2311 = vmatpush1.msra.mxu0 %v435
      %2312 = vmatprep.subr.mxu0 0.0
      %2313 = vmatpush1.msra.mxu0 %v436
      %2314 = vmatprep.subr.mxu0 0.0
      %2315 = vmatpush1.msra.mxu0 %v615
      %2316 = vmatprep.subr.mxu0 0.0
      %2317 = vmatpush1.msra.mxu0 0.0
      %2318 = vmatprep.subr.mxu0 0.0
      %2319 = vmatpush1.msra.mxu0 0.0
      %2320 = vmatprep.subr.mxu0 0.0
      %2321 = vmatpush1.msra.mxu0 0.0
      %2322 = vmatprep.subr.mxu0 0.0
      %2323 = vmatpush1.msra.mxu0 0.0
      %2324 = vmatprep.subr.mxu0 0.0
      %2325 = vmatpush1.msra.mxu0 0.0
      %2326 = vmatprep.subr.mxu0 0.0
      %2327 = vmatpush1.msra.mxu0 0.0
      %2328 = vmatprep.subr.mxu0 0.0
      %2329 = vmatpush1.msra.mxu0 0.0
      %2330 = vmatprep.subr.mxu0 0.0
      %2331 = vmatpush1.msra.mxu0 0.0
      %2332 = vmatprep.subr.mxu0 0.0
      %2333 = vmatpush1.msra.mxu0 0.0
      %2334 = vmatprep.subr.mxu0 0.0
      %2335 = vmatpush1.msra.mxu0 0.0
      %2336 = vmatprep.subr.mxu0 0.0
      %2337 = vmatpush1.msra.mxu0 0.0
      %2338 = vmatprep.subr.mxu0 0.0
      %2339 = vmatpush1.msra.mxu0 0.0
      %2340 = vmatprep.subr.mxu0 0.0
      %2341 = vmatpush1.msra.mxu0 0.0
      %2342 = vmatprep.subr.mxu0 0.0
      %2343 = vmatpush1.msra.mxu0 0.0
      %2344 = vmatprep.subr.mxu0 0.0
      %2345 = vmatpush1.msra.mxu0 0.0
      %2346 = vmatprep.subr.mxu0 0.0
      %2347 = vmatpush1.msra.mxu0 0.0
      %2348 = vmatprep.subr.mxu0 0.0
      %2349 = vmatpush1.msra.mxu0 0.0
      %2350 = vmatprep.subr.mxu0 0.0
      %2351 = vmatpush1.msra.mxu0 0.0
      %2352 = vmatprep.subr.mxu0 0.0
      %2353 = vmatpush1.msra.mxu0 0.0
      %2354 = vmatprep.subr.mxu0 0.0
      %2355 = vmatpush1.msra.mxu0 0.0
      %2356 = vmatprep.mubr.f32.mxu0 0.0
      %2357 = vmatmul.mubr.f32.gmra.mrb[0].mxu0 %v2173
      %v2358 = vpop.f32.mrb[0].mxu0
      %v2359 = vadd.f32 0.0, %v2358
      %v2360 = vpop.f32.mrb[0].mxu0
      %2361 = vmatprep.mubr.f32.mxu0 0.0
      %2362 = vmatmul.mubr.f32.gmra.mrb[0].mxu0 %v2176
      %v2363 = vpop.f32.mrb[0].mxu0
      %v2364 = vadd.f32 0.0, %v2363
      %v2365 = vpop.f32.mrb[0].mxu0
      %2366 = vmatprep.mubr.f32.mxu0 0.0
      %2367 = vmatmul.mubr.f32.gmra.mrb[0].mxu0 %v2179
      %v2368 = vpop.f32.mrb[0].mxu0
      %v2369 = vadd.f32 0.0, %v2368
      %v2370 = vpop.f32.mrb[0].mxu0
      %2371 = vmatprep.mubr.f32.mxu0 0.0
      %2372 = vmatmul.mubr.f32.gmra.mrb[0].mxu0 %v2182
      %v2373 = vpop.f32.mrb[0].mxu0
      %v2374 = vadd.f32 0.0, %v2373
      %v2375 = vpop.f32.mrb[0].mxu0
      %2376 = vmatprep.mubr.f32.mxu0 0.0
      %2377 = vmatmul.mubr.f32.gmra.mrb[0].mxu0 %v2185
      %v2378 = vpop.f32.mrb[0].mxu0
      %v2379 = vadd.f32 0.0, %v2378
      %v2380 = vpop.f32.mrb[0].mxu0
      %2381 = vmatprep.mubr.f32.mxu0 0.0
      %2382 = vmatmul.mubr.f32.gmra.mrb[0].mxu0 %v2188
      %v2383 = vpop.f32.mrb[0].mxu0
      %v2384 = vadd.f32 0.0, %v2383
      %v2385 = vpop.f32.mrb[0].mxu0
      %2386 = vmatprep.mubr.f32.mxu0 0.0
      %2387 = vmatmul.mubr.f32.gmra.mrb[0].mxu0 %v2191
      %v2388 = vpop.f32.mrb[0].mxu0
      %v2389 = vadd.f32 0.0, %v2388
      %v2390 = vpop.f32.mrb[0].mxu0
      %2391 = vmatprep.mubr.f32.mxu0 0.0
      %2392 = vmatmul.mubr.f32.gmra.mrb[0].mxu0 %v2194
      %v2393 = vpop.f32.mrb[0].mxu0
      %v2394 = vadd.f32 0.0, %v2393
      %v2395 = vpop.f32.mrb[0].mxu0
      %2396 = vmatprep.mubr.f32.mxu0 0.0
      %2397 = vmatmul.mubr.f32.gmra.mrb[0].mxu0 %v2197
      %v2398 = vpop.f32.mrb[0].mxu0
      %v2399 = vadd.f32 0.0, %v2398
      %v2400 = vpop.f32.mrb[0].mxu0
      %2401 = vmatprep.mubr.f32.mxu0 0.0
      %2402 = vmatmul.mubr.f32.gmra.mrb[0].mxu0 %v2200
      %v2403 = vpop.f32.mrb[0].mxu0
      %v2404 = vadd.f32 0.0, %v2403
      %v2405 = vpop.f32.mrb[0].mxu0
      %2406 = vmatprep.mubr.f32.mxu0 0.0
      %2407 = vmatmul.mubr.f32.gmra.mrb[0].mxu0 %v2203
      %v2408 = vpop.f32.mrb[0].mxu0
      %v2409 = vadd.f32 0.0, %v2408
      %v2410 = vpop.f32.mrb[0].mxu0
      %2411 = vmatprep.mubr.f32.mxu0 0.0
      %2412 = vmatmul.mubr.f32.gmra.mrb[0].mxu0 %v2206
      %v2413 = vpop.f32.mrb[0].mxu0
      %v2414 = vadd.f32 0.0, %v2413
      %v2415 = vpop.f32.mrb[0].mxu0
      %2416 = vmatprep.mubr.f32.mxu0 0.0
      %2417 = vmatmul.mubr.f32.gmra.mrb[0].mxu0 %v2209
      %v2418 = vpop.f32.mrb[0].mxu0
      %v2419 = vadd.f32 0.0, %v2418
      %v2420 = vpop.f32.mrb[0].mxu0
      %2421 = vmatprep.mubr.f32.mxu0 0.0
      %2422 = vmatmul.mubr.f32.gmra.mrb[0].mxu0 %v2212
      %v2423 = vpop.f32.mrb[0].mxu0
      %v2424 = vadd.f32 0.0, %v2423
      %v2425 = vpop.f32.mrb[0].mxu0
      %2426 = vmatprep.mubr.f32.mxu0 0.0
      %2427 = vmatmul.mubr.f32.gmra.mrb[0].mxu0 %v2215
      %v2428 = vpop.f32.mrb[0].mxu0
      %v2429 = vadd.f32 0.0, %v2428
      %v2430 = vpop.f32.mrb[0].mxu0
      %2431 = vmatprep.mubr.f32.mxu0 0.0
      %2432 = vmatmul.mubr.f32.gmra.mrb[0].mxu0 %v2218
      %v2433 = vpop.f32.mrb[0].mxu0
      %v2434 = vadd.f32 0.0, %v2433
      %v2435 = vpop.f32.mrb[0].mxu0
      %2436 = vmatprep.mubr.f32.mxu0 0.0
      %2437 = vmatmul.mubr.f32.gmra.mrb[0].mxu0 %v2221
      %v2438 = vpop.f32.mrb[0].mxu0
      %v2439 = vadd.f32 0.0, %v2438
      %v2440 = vpop.f32.mrb[0].mxu0
      %2441 = vmatprep.mubr.f32.mxu0 0.0
      %2442 = vmatmul.mubr.f32.gmra.mrb[0].mxu0 %v2224
      %v2443 = vpop.f32.mrb[0].mxu0
      %v2444 = vadd.f32 0.0, %v2443
      %v2445 = vpop.f32.mrb[0].mxu0
      %2446 = vmatprep.mubr.f32.mxu0 0.0
      %2447 = vmatmul.mubr.f32.gmra.mrb[0].mxu0 %v2227
      %v2448 = vpop.f32.mrb[0].mxu0
      %v2449 = vadd.f32 0.0, %v2448
      %v2450 = vpop.f32.mrb[0].mxu0
      %2451 = vmatprep.mubr.f32.mxu0 0.0
      %2452 = vmatmul.mubr.f32.gmra.mrb[0].mxu0 %v2230
      %v2453 = vpop.f32.mrb[0].mxu0
      %v2454 = vadd.f32 0.0, %v2453
      %v2455 = vpop.f32.mrb[0].mxu0
      %2456 = vmatprep.mubr.f32.mxu0 0.0
      %2457 = vmatmul.mubr.f32.gmra.mrb[0].mxu0 %v2233
      %v2458 = vpop.f32.mrb[0].mxu0
      %v2459 = vadd.f32 0.0, %v2458
      %v2460 = vpop.f32.mrb[0].mxu0
      %2461 = vmatprep.mubr.f32.mxu0 0.0
      %2462 = vmatmul.mubr.f32.gmra.mrb[0].mxu0 %v2236
      %v2463 = vpop.f32.mrb[0].mxu0
      %v2464 = vadd.f32 0.0, %v2463
      %v2465 = vpop.f32.mrb[0].mxu0
      %2466 = vmatprep.mubr.f32.mxu0 0.0
      %2467 = vmatmul.mubr.f32.gmra.mrb[0].mxu0 %v2239
      %v2468 = vpop.f32.mrb[0].mxu0
      %v2469 = vadd.f32 0.0, %v2468
      %v2470 = vpop.f32.mrb[0].mxu0
      %2471 = vmatprep.mubr.f32.mxu0 0.0
      %2472 = vmatmul.mubr.f32.gmra.mrb[0].mxu0 %v2242
      %v2473 = vpop.f32.mrb[0].mxu0
      %v2474 = vadd.f32 0.0, %v2473
      %v2475 = vpop.f32.mrb[0].mxu0
      %2476 = vmatprep.mubr.f32.mxu0 0.0
      %2477 = vmatmul.mubr.f32.gmra.mrb[0].mxu0 %v2245
      %v2478 = vpop.f32.mrb[0].mxu0
      %v2479 = vadd.f32 0.0, %v2478
      %v2480 = vpop.f32.mrb[0].mxu0
      %2481 = vmatprep.mubr.f32.mxu0 0.0
      %2482 = vmatmul.mubr.f32.gmra.mrb[0].mxu0 %v2248
      %v2483 = vpop.f32.mrb[0].mxu0
      %v2484 = vadd.f32 0.0, %v2483
      %v2485 = vpop.f32.mrb[0].mxu0
      %2486 = vmatprep.mubr.f32.mxu0 0.0
      %2487 = vmatmul.mubr.f32.gmra.mrb[0].mxu0 %v2251
      %v2488 = vpop.f32.mrb[0].mxu0
      %v2489 = vadd.f32 0.0, %v2488
      %v2490 = vpop.f32.mrb[0].mxu0
      %2491 = vmatprep.mubr.f32.mxu0 0.0
      %2492 = vmatmul.mubr.f32.gmra.mrb[0].mxu0 %v2254
      %v2493 = vpop.f32.mrb[0].mxu0
      %v2494 = vadd.f32 0.0, %v2493
      %v2495 = vpop.f32.mrb[0].mxu0
      %2496 = vmatprep.mubr.f32.mxu0 0.0
      %2497 = vmatmul.mubr.f32.gmra.mrb[0].mxu0 %v2257
      %v2498 = vpop.f32.mrb[0].mxu0
      %v2499 = vadd.f32 0.0, %v2498
      %v2500 = vpop.f32.mrb[0].mxu0
      %2501 = vmatprep.mubr.f32.mxu0 0.0
      %2502 = vmatmul.mubr.f32.gmra.mrb[0].mxu0 %v2260
      %v2503 = vpop.f32.mrb[0].mxu0
      %v2504 = vadd.f32 0.0, %v2503
      %v2505 = vpop.f32.mrb[0].mxu0
      %2506 = vmatprep.mubr.f32.mxu0 0.0
      %2507 = vmatmul.mubr.f32.gmra.mrb[0].mxu0 %v2263
      %v2508 = vpop.f32.mrb[0].mxu0
      %v2509 = vadd.f32 0.0, %v2508
      %v2510 = vpop.f32.mrb[0].mxu0
      %2511 = vmatprep.mubr.f32.mxu0 0.0
      %2512 = vmatmul.mubr.f32.gmra.mrb[0].mxu0 %v2266
      %v2513 = vpop.f32.mrb[0].mxu0
      %v2514 = vadd.f32 0.0, %v2513
      %v2515 = vpop.f32.mrb[0].mxu0
      %2516 = vmatprep.mubr.f32.mxu0 0.0
      %2517 = vmatmul.mubr.f32.gmra.mrb[0].mxu0 %v2269
      %v2518 = vpop.f32.mrb[0].mxu0
      %v2519 = vadd.f32 0.0, %v2518
      %v2520 = vpop.f32.mrb[0].mxu0
      %2521 = vmatprep.mubr.f32.mxu0 0.0
      %2522 = vmatmul.mubr.f32.gmra.mrb[0].mxu0 %v2272
      %v2523 = vpop.f32.mrb[0].mxu0
      %v2524 = vadd.f32 0.0, %v2523
      %v2525 = vpop.f32.mrb[0].mxu0
      %2526 = vmatprep.mubr.f32.mxu0 0.0
      %2527 = vmatmul.mubr.f32.gmra.mrb[0].mxu0 %v2275
      %v2528 = vpop.f32.mrb[0].mxu0
      %v2529 = vadd.f32 0.0, %v2528
      %v2530 = vpop.f32.mrb[0].mxu0
      %2531 = vmatprep.mubr.f32.mxu0 0.0
      %2532 = vmatmul.mubr.f32.gmra.mrb[0].mxu0 %v2278
      %v2533 = vpop.f32.mrb[0].mxu0
      %v2534 = vadd.f32 0.0, %v2533
      %v2535 = vpop.f32.mrb[0].mxu0
      %2536 = vmatprep.mubr.f32.mxu0 0.0
      %2537 = vmatmul.mubr.f32.gmra.mrb[0].mxu0 %v2281
      %v2538 = vpop.f32.mrb[0].mxu0
      %v2539 = vadd.f32 0.0, %v2538
      %v2540 = vpop.f32.mrb[0].mxu0
      %2541 = vmatprep.mubr.f32.mxu0 0.0
      %2542 = vmatmul.mubr.f32.gmra.mrb[0].mxu0 %v2284
      %v2543 = vpop.f32.mrb[0].mxu0
      %v2544 = vadd.f32 0.0, %v2543
      %v2545 = vpop.f32.mrb[0].mxu0
      %2546 = vmatprep.mubr.f32.mxu0 0.0
      %2547 = vmatmul.mubr.f32.gmra.mrb[0].mxu0 %v2287
      %v2548 = vpop.f32.mrb[0].mxu0
      %v2549 = vadd.f32 0.0, %v2548
      %v2550 = vpop.f32.mrb[0].mxu0
      %2551 = vmatprep.mubr.f32.mxu0 0.0
      %2552 = vmatmul.mubr.f32.gmra.mrb[0].mxu0 %v2290
      %v2553 = vpop.f32.mrb[0].mxu0
      %v2554 = vadd.f32 0.0, %v2553
      %v2555 = vpop.f32.mrb[0].mxu0
      %2556 = vdwg.mxu0
      %v2557 = vmul.f32 %v2359, %v443
      %v2558 = vmul.f32 %v2364, %v443
      %v2559 = vmul.f32 %v2369, %v443
      %v2560 = vmul.f32 %v2374, %v443
      %v2561 = vmul.f32 %v2379, %v443
      %v2562 = vmul.f32 %v2384, %v443
      %v2563 = vmul.f32 %v2389, %v443
      %v2564 = vmul.f32 %v2394, %v443
      %v2565 = vmul.f32 %v2399, %v443
      %v2566 = vmul.f32 %v2404, %v443
      %v2567 = vmul.f32 %v2409, %v443
      %v2568 = vmul.f32 %v2414, %v443
      %v2569 = vmul.f32 %v2419, %v443
      %v2570 = vmul.f32 %v2424, %v443
      %v2571 = vmul.f32 %v2429, %v443
      %v2572 = vmul.f32 %v2434, %v443
      %v2573 = vmul.f32 %v2439, %v443
      %v2574 = vmul.f32 %v2444, %v443
      %v2575 = vmul.f32 %v2449, %v443
      %v2576 = vmul.f32 %v2454, %v443
      %v2577 = vmul.f32 %v2459, %v443
      %v2578 = vmul.f32 %v2464, %v443
      %v2579 = vmul.f32 %v2469, %v443
      %v2580 = vmul.f32 %v2474, %v443
      %v2581 = vmul.f32 %v2479, %v443
      %v2582 = vmul.f32 %v2484, %v443
      %v2583 = vmul.f32 %v2489, %v443
      %v2584 = vmul.f32 %v2494, %v443
      %v2585 = vmul.f32 %v2499, %v443
      %v2586 = vmul.f32 %v2504, %v443
      %v2587 = vmul.f32 %v2509, %v443
      %v2588 = vmul.f32 %v2514, %v443
      %v2589 = vmul.f32 %v2519, %v443
      %v2590 = vmul.f32 %v2524, %v443
      %v2591 = vmul.f32 %v2529, %v443
      %v2592 = vmul.f32 %v2534, %v443
      %v2593 = vmul.f32 %v2539, %v443
      %v2594 = vmul.f32 %v2544, %v443
      %v2595 = vmul.f32 %v2549, %v443
      %v2596 = vmul.f32 %v2554, %v443
      %v2597 = vadd.f32 %v2557, %v450
      %v2598 = vadd.f32 %v2558, %v450
      %v2599 = vadd.f32 %v2559, %v450
      %v2600 = vadd.f32 %v2560, %v450
      %v2601 = vadd.f32 %v2561, %v450
      %v2602 = vadd.f32 %v2562, %v450
      %v2603 = vadd.f32 %v2563, %v450
      %v2604 = vadd.f32 %v2564, %v450
      %v2605 = vadd.f32 %v2565, %v450
      %v2606 = vadd.f32 %v2566, %v450
      %v2607 = vadd.f32 %v2567, %v450
      %v2608 = vadd.f32 %v2568, %v450
      %v2609 = vadd.f32 %v2569, %v450
      %v2610 = vadd.f32 %v2570, %v450
      %v2611 = vadd.f32 %v2571, %v450
      %v2612 = vadd.f32 %v2572, %v450
      %v2613 = vadd.f32 %v2573, %v450
      %v2614 = vadd.f32 %v2574, %v450
      %v2615 = vadd.f32 %v2575, %v450
      %v2616 = vadd.f32 %v2576, %v450
      %v2617 = vadd.f32 %v2577, %v450
      %v2618 = vadd.f32 %v2578, %v450
      %v2619 = vadd.f32 %v2579, %v450
      %v2620 = vadd.f32 %v2580, %v450
      %v2621 = vadd.f32 %v2581, %v450
      %v2622 = vadd.f32 %v2582, %v450
      %v2623 = vadd.f32 %v2583, %v450
      %v2624 = vadd.f32 %v2584, %v450
      %v2625 = vadd.f32 %v2585, %v450
      %v2626 = vadd.f32 %v2586, %v450
      %v2627 = vadd.f32 %v2587, %v450
      %v2628 = vadd.f32 %v2588, %v450
      %v2629 = vadd.f32 %v2589, %v450
      %v2630 = vadd.f32 %v2590, %v450
      %v2631 = vadd.f32 %v2591, %v450
      %v2632 = vadd.f32 %v2592, %v450
      %v2633 = vadd.f32 %v2593, %v450
      %v2634 = vadd.f32 %v2594, %v450
      %v2635 = vadd.f32 %v2595, %v450
      %v2636 = vadd.f32 %v2596, %v450
      %v2637 = vmax.f32 %v2597, 0.0
      %v2638 = vmax.f32 %v2598, 0.0
      %v2639 = vmax.f32 %v2599, 0.0
      %v2640 = vmax.f32 %v2600, 0.0
      %v2641 = vmax.f32 %v2601, 0.0
      %v2642 = vmax.f32 %v2602, 0.0
      %v2643 = vmax.f32 %v2603, 0.0
      %v2644 = vmax.f32 %v2604, 0.0
      %v2645 = vmax.f32 %v2605, 0.0
      %v2646 = vmax.f32 %v2606, 0.0
      %v2647 = vmax.f32 %v2607, 0.0
      %v2648 = vmax.f32 %v2608, 0.0
      %v2649 = vmax.f32 %v2609, 0.0
      %v2650 = vmax.f32 %v2610, 0.0
      %v2651 = vmax.f32 %v2611, 0.0
      %v2652 = vmax.f32 %v2612, 0.0
      %v2653 = vmax.f32 %v2613, 0.0
      %v2654 = vmax.f32 %v2614, 0.0
      %v2655 = vmax.f32 %v2615, 0.0
      %v2656 = vmax.f32 %v2616, 0.0
      %v2657 = vmax.f32 %v2617, 0.0
      %v2658 = vmax.f32 %v2618, 0.0
      %v2659 = vmax.f32 %v2619, 0.0
      %v2660 = vmax.f32 %v2620, 0.0
      %v2661 = vmax.f32 %v2621, 0.0
      %v2662 = vmax.f32 %v2622, 0.0
      %v2663 = vmax.f32 %v2623, 0.0
      %v2664 = vmax.f32 %v2624, 0.0
      %v2665 = vmax.f32 %v2625, 0.0
      %v2666 = vmax.f32 %v2626, 0.0
      %v2667 = vmax.f32 %v2627, 0.0
      %v2668 = vmax.f32 %v2628, 0.0
      %v2669 = vmax.f32 %v2629, 0.0
      %v2670 = vmax.f32 %v2630, 0.0
      %v2671 = vmax.f32 %v2631, 0.0
      %v2672 = vmax.f32 %v2632, 0.0
      %v2673 = vmax.f32 %v2633, 0.0
      %v2674 = vmax.f32 %v2634, 0.0
      %v2675 = vmax.f32 %v2635, 0.0
      %v2676 = vmax.f32 %v2636, 0.0
      %v2677 = vmax.f32 %v2092, %v2637
      %v2678 = vmax.f32 %v2093, %v2638
      %v2679 = vmax.f32 %v2094, %v2639
      %v2680 = vmax.f32 %v2095, %v2640
      %v2681 = vmax.f32 %v2096, %v2641
      %v2682 = vmax.f32 %v2097, %v2642
      %v2683 = vmax.f32 %v2098, %v2643
      %v2684 = vmax.f32 %v2099, %v2644
      %v2685 = vmax.f32 %v2100, %v2645
      %v2686 = vmax.f32 %v2101, %v2646
      %v2687 = vmax.f32 %v2102, %v2647
      %v2688 = vmax.f32 %v2103, %v2648
      %v2689 = vmax.f32 %v2104, %v2649
      %v2690 = vmax.f32 %v2105, %v2650
      %v2691 = vmax.f32 %v2106, %v2651
      %v2692 = vmax.f32 %v2107, %v2652
      %v2693 = vmax.f32 %v2108, %v2653
      %v2694 = vmax.f32 %v2109, %v2654
      %v2695 = vmax.f32 %v2110, %v2655
      %v2696 = vmax.f32 %v2111, %v2656
      %v2697 = vmax.f32 %v2112, %v2657
      %v2698 = vmax.f32 %v2113, %v2658
      %v2699 = vmax.f32 %v2114, %v2659
      %v2700 = vmax.f32 %v2115, %v2660
      %v2701 = vmax.f32 %v2116, %v2661
      %v2702 = vmax.f32 %v2117, %v2662
      %v2703 = vmax.f32 %v2118, %v2663
      %v2704 = vmax.f32 %v2119, %v2664
      %v2705 = vmax.f32 %v2120, %v2665
      %v2706 = vmax.f32 %v2121, %v2666
      %v2707 = vmax.f32 %v2122, %v2667
      %v2708 = vmax.f32 %v2123, %v2668
      %v2709 = vmax.f32 %v2124, %v2669
      %v2710 = vmax.f32 %v2125, %v2670
      %v2711 = vmax.f32 %v2126, %v2671
      %v2712 = vmax.f32 %v2127, %v2672
      %v2713 = vmax.f32 %v2128, %v2673
      %v2714 = vmax.f32 %v2129, %v2674
      %v2715 = vmax.f32 %v2130, %v2675
      %v2716 = vmax.f32 %v2131, %v2676
      %v2717 = vmax.f32 %v1547, %v2677
      %v2718 = vmax.f32 %v1548, %v2678
      %v2719 = vmax.f32 %v1549, %v2679
      %v2720 = vmax.f32 %v1550, %v2680
      %v2721 = vmax.f32 %v1551, %v2681
      %v2722 = vmax.f32 %v1552, %v2682
      %v2723 = vmax.f32 %v1553, %v2683
      %v2724 = vmax.f32 %v1554, %v2684
      %v2725 = vmax.f32 %v1555, %v2685
      %v2726 = vmax.f32 %v1556, %v2686
      %v2727 = vmax.f32 %v1557, %v2687
      %v2728 = vmax.f32 %v1558, %v2688
      %v2729 = vmax.f32 %v1559, %v2689
      %v2730 = vmax.f32 %v1560, %v2690
      %v2731 = vmax.f32 %v1561, %v2691
      %v2732 = vmax.f32 %v1562, %v2692
      %v2733 = vmax.f32 %v1563, %v2693
      %v2734 = vmax.f32 %v1564, %v2694
      %v2735 = vmax.f32 %v1565, %v2695
      %v2736 = vmax.f32 %v1566, %v2696
      %v2737 = vmax.f32 %v1567, %v2697
      %v2738 = vmax.f32 %v1568, %v2698
      %v2739 = vmax.f32 %v1569, %v2699
      %v2740 = vmax.f32 %v1570, %v2700
      %v2741 = vmax.f32 %v1571, %v2701
      %v2742 = vmax.f32 %v1572, %v2702
      %v2743 = vmax.f32 %v1573, %v2703
      %v2744 = vmax.f32 %v1574, %v2704
      %v2745 = vmax.f32 %v1575, %v2705
      %v2746 = vmax.f32 %v1576, %v2706
      %v2747 = vmax.f32 %v1577, %v2707
      %v2748 = vmax.f32 %v1578, %v2708
      %v2749 = vmax.f32 %v1579, %v2709
      %v2750 = vmax.f32 %v1580, %v2710
      %v2751 = vmax.f32 %v1581, %v2711
      %v2752 = vmax.f32 %v1582, %v2712
      %v2753 = vmax.f32 %v1583, %v2713
      %v2754 = vmax.f32 %v1584, %v2714
      %v2755 = vmax.f32 %v1585, %v2715
      %v2756 = vmax.f32 %v1586, %v2716
      %vm2757 = vcmask 261120
      %2758 = vst.msk [vmem:[%s424] sm:$0xff] %vm2757, %v2717
      %2759 = vst.msk [vmem:[%s424 + $0x8] sm:$0xff] %vm2757, %v2718
      %2760 = vst.msk [vmem:[%s424 + $0x10] sm:$0xff] %vm2757, %v2719
      %2761 = vst.msk [vmem:[%s424 + $0x18] sm:$0xff] %vm2757, %v2720
      %2762 = vst.msk [vmem:[%s424 + $0x20] sm:$0xff] %vm2757, %v2721
      %2763 = vst.msk [vmem:[%s424 + $0x28] sm:$0xff] %vm2757, %v2722
      %2764 = vst.msk [vmem:[%s424 + $0x30] sm:$0xff] %vm2757, %v2723
      %2765 = vst.msk [vmem:[%s424 + $0x38] sm:$0xff] %vm2757, %v2724
      %2766 = vst.msk [vmem:[%s424 + $0x40] sm:$0xff] %vm2757, %v2725
      %2767 = vst.msk [vmem:[%s424 + $0x48] sm:$0xff] %vm2757, %v2726
      %2768 = vst.msk [vmem:[%s424 + $0x50] sm:$0xff] %vm2757, %v2727
      %2769 = vst.msk [vmem:[%s424 + $0x58] sm:$0xff] %vm2757, %v2728
      %2770 = vst.msk [vmem:[%s424 + $0x60] sm:$0xff] %vm2757, %v2729
      %2771 = vst.msk [vmem:[%s424 + $0x68] sm:$0xff] %vm2757, %v2730
      %2772 = vst.msk [vmem:[%s424 + $0x70] sm:$0xff] %vm2757, %v2731
      %2773 = vst.msk [vmem:[%s424 + $0x78] sm:$0xff] %vm2757, %v2732
      %2774 = vst.msk [vmem:[%s424 + $0x80] sm:$0xff] %vm2757, %v2733
      %2775 = vst.msk [vmem:[%s424 + $0x88] sm:$0xff] %vm2757, %v2734
      %2776 = vst.msk [vmem:[%s424 + $0x90] sm:$0xff] %vm2757, %v2735
      %2777 = vst.msk [vmem:[%s424 + $0x98] sm:$0xff] %vm2757, %v2736
      %2778 = vst.msk [vmem:[%s424 + $0xa0] sm:$0xff] %vm2757, %v2737
      %2779 = vst.msk [vmem:[%s424 + $0xa8] sm:$0xff] %vm2757, %v2738
      %2780 = vst.msk [vmem:[%s424 + $0xb0] sm:$0xff] %vm2757, %v2739
      %2781 = vst.msk [vmem:[%s424 + $0xb8] sm:$0xff] %vm2757, %v2740
      %2782 = vst.msk [vmem:[%s424 + $0xc0] sm:$0xff] %vm2757, %v2741
      %2783 = vst.msk [vmem:[%s424 + $0xc8] sm:$0xff] %vm2757, %v2742
      %2784 = vst.msk [vmem:[%s424 + $0xd0] sm:$0xff] %vm2757, %v2743
      %2785 = vst.msk [vmem:[%s424 + $0xd8] sm:$0xff] %vm2757, %v2744
      %2786 = vst.msk [vmem:[%s424 + $0xe0] sm:$0xff] %vm2757, %v2745
      %2787 = vst.msk [vmem:[%s424 + $0xe8] sm:$0xff] %vm2757, %v2746
      %2788 = vst.msk [vmem:[%s424 + $0xf0] sm:$0xff] %vm2757, %v2747
      %2789 = vst.msk [vmem:[%s424 + $0xf8] sm:$0xff] %vm2757, %v2748
      %2790 = vst.msk [vmem:[%s424 + $0x100] sm:$0xff] %vm2757, %v2749
      %2791 = vst.msk [vmem:[%s424 + $0x108] sm:$0xff] %vm2757, %v2750
      %2792 = vst.msk [vmem:[%s424 + $0x110] sm:$0xff] %vm2757, %v2751
      %2793 = vst.msk [vmem:[%s424 + $0x118] sm:$0xff] %vm2757, %v2752
      %2794 = vst.msk [vmem:[%s424 + $0x120] sm:$0xff] %vm2757, %v2753
      %2795 = vst.msk [vmem:[%s424 + $0x128] sm:$0xff] %vm2757, %v2754
      %2796 = vst.msk [vmem:[%s424 + $0x130] sm:$0xff] %vm2757, %v2755
      %2797 = vst.msk [vmem:[%s424 + $0x138] sm:$0xff] %vm2757, %v2756
      %s2798 = smul.u32 40, %s23
      %p2799 = scmp.lt.s32.totalorder %s22, 1
      %s2800 = scalar_select %p2799, %s22, 1
      %p2801 = scmp.lt.s32.totalorder %s2798, 159
      %s2802 = scalar_select %p2801, %s2798, 159
      %s2803 = smul.addr %s2800, 160
      %s2804 = sadd.s32 %s2802, %s2803
      %s2805 = smul.addr %s2804, 8
      %s2806 = scalar_lea.vmem %s7, %s2805
      // Predicated region
      $region49: #{music_cnn_forward.3} parent=47 // pred_check
        %p2807 = pneg %p225
      $region50: #{music_cnn_forward.3} parent=47 // pred_check_branch
        %2809 = sbr.rel (%p2807) target = $region52
      $region51: #{music_cnn_forward.3} parent=47 // pred_region
        %s2810 = smul.u32 40, %s23
      $region52: #{music_cnn_forward.3} parent=47 // pred_fallthru
        _
    $region48: #{music_cnn_forward.3} parent=5 // pred_fallthru
      _
    %p2811 = scmp.le.s32.totalorder 2, %s13
    // Predicated region
    $region53: #{music_cnn_forward.3} parent=5 // pred_check
      %p2812 = pneg %p2811
    $region54: #{music_cnn_forward.3} parent=5 // pred_check_branch
      %2814 = sbr.rel (%p2812) target = $region56
    $region55: #{music_cnn_forward.3} parent=5 // pred_region
      %s2815 = ssub.s32 %s13, 2
      // Predicated region
      $region57: #{music_cnn_forward.3} parent=55 // pred_check
        %p2816 = pneg %p231
      $region58: #{music_cnn_forward.3} parent=55 // pred_check_branch
        %2818 = sbr.rel (%p2816) target = $region60
      $region59: #{music_cnn_forward.3} parent=55 // pred_region
        %s2819 = smul.u32 40, %s25
        %p2820 = scmp.lt.s32.totalorder %s24, 1
        %s2821 = scalar_select %p2820, %s24, 1
        %p2822 = scmp.lt.s32.totalorder %s2819, 159
        %s2823 = scalar_select %p2822, %s2819, 159
        %s2824 = smul.addr %s2821, 160
        %s2825 = sadd.s32 %s2823, %s2824
        %s2826 = smul.addr %s2825, 8
        %s2827 = scalar_lea.vmem %s7, %s2826
      $region60: #{music_cnn_forward.3} parent=55 // pred_fallthru
        _
    $region56: #{music_cnn_forward.3} parent=5 // pred_fallthru
      _
  $region6: #{music_cnn_forward.3} parent=0 // loop_footer
    %s17 = sadd.s32 1, %s13
  $region7: #{music_cnn_forward.3} parent=0 // loop_footer_branch
    %12 = sbr.rel target = $region3
  $region8: #{music_cnn_forward.3} parent=0 // loop_exit
    _

// kernel: music_cnn_forward.4
$region0: #{music_cnn_forward.4}
  #allocation0 [shape = 'u32[]', space=smem, size = 0x4, offset = 0x4, fixed_abs, tag = 'smem constant byte address 0x4 - core index']
  #allocation1 [shape = 'u32[144,128]{1,0:T(1,128)}', space=vmem, size = 0x12000, scoped, tag = 'internal scratch']
  %s0 = inlined_call_operand.vmem [shape: f32[2,320,288], index: 0, kind: input, shape index: {}]
  %s1 = inlined_call_operand.vmem [shape: f32[2,320,288], index: 1, kind: input, shape index: {}]
  %s2 = inlined_call_operand.vmem [shape: f32[2,320,288], index: 2, kind: input, shape index: {}]
  %s3 = inlined_call_operand.vmem [shape: f32[2,320,288], index: 3, kind: input, shape index: {}]
  %s4 = inlined_call_operand.vmem [shape: f32[288,64], index: 4, kind: input, shape index: {}]
  %s5 = inlined_call_operand.vmem [shape: f32[1,64], index: 5, kind: input, shape index: {}]
  %s6 = inlined_call_operand.vmem [shape: f32[1,64], index: 6, kind: input, shape index: {}]
  %s7 = inlined_call_operand.vmem [shape: bf16[2,320,64], index: 7, kind: output, shape index: {}]
  %s8 = sld [smem:[#allocation0]]
  $region61: #{music_cnn_forward.4} parent=0
    _
  %s10 = ssub.s32 1, %s8
  %s11 = scalar_select 0, %s10, %s8
  loop: start=0, step=1, limit=6
  $region2: #{music_cnn_forward.4} parent=0 // loop_pre_header
    _
  $region3: #{music_cnn_forward.4} parent=0 // loop_header
    %s13 = sphi 0, %s17
    %p14 = scmp.ge.s32.totalorder %s13, 6
    %s20 = sphi 0, %s32
    %s21 = sphi 0, %s28
    %s22 = sphi 0, %s20
    %s23 = sphi 0, %s21
    %s24 = sphi 0, %s22
    %s25 = sphi 0, %s23
    %s37 = sphi 0, %s39
    %s40 = sphi 0, %s37
    %s41 = sphi 0, %s40
    %s57 = sphi 0, %s41
    %s65 = sphi 0, %s67
    %s68 = sphi 0, %s65
    %s69 = sphi 0, %s68
    %s85 = sphi 0, %s69
    %s93 = sphi 0, %s95
    %s96 = sphi 0, %s93
    %s97 = sphi 0, %s96
    %s113 = sphi 0, %s97
    %s121 = sphi 0, %s123
    %s124 = sphi 0, %s121
    %s125 = sphi 0, %s124
    %s141 = sphi 0, %s125
    %s145 = sphi 0, %s145
    %s147 = sphi 0, %s145
    %s148 = sphi 0, %s147
    %s162 = sphi 0, %s148
    %s166 = sphi 0, %s166
    %s168 = sphi 0, %s166
    %s169 = sphi 0, %s168
    %s183 = sphi 0, %s169
    %s187 = sphi 0, %s187
    %s189 = sphi 0, %s187
    %s190 = sphi 0, %s189
    %s204 = sphi 0, %s190
    %s212 = sphi 0, %s214
    %s215 = sphi 0, %s212
    %s216 = sphi 0, %s215
    %s232 = sphi 0, %s216
  $region4: #{music_cnn_forward.4} parent=0 // loop_header_branch
    %16 = sbr.rel (%p14) target = $region8
  $region5: #{music_cnn_forward.4} parent=0 // loop_body
    %s18 = ssub.s32 %s13, 1
    %s19 = ssub.s32 %s13, 2
    %s26 = sadd.s32 1, %s21
    %p27 = scmp.ge.s32.totalorder %s26, 2
    %s28 = scalar_select %p27, 0, %s26
    %s29 = sadd.s32 1, %s20
    %s30 = scalar_select %p27, %s29, %s20
    %p31 = scmp.ge.s32.totalorder %s30, 2
    %s32 = scalar_select %p31, 0, %s30
    %s33 = ssub.s32 %s20, %s32
    %s34 = ssub.s32 %s21, %s28
    %s35 = sor.u32 %s33, %s34
    %p36 = scmp.eq.s32.totalorder %s35, 0
    %s38 = sadd.s32 %s37, 1
    %s39 = scalar_select %p36, %s37, %s38
    %p42 = pneg %p36
    %p43 = scmp.eq.s32.totalorder %s13, 3
    %p44 = por %p42, %p43
    %p45 = scmp.ne.s32.totalorder %s37, %s40
    %p46 = scmp.eq.s32.totalorder %s13, 0
    %p47 = por %p45, %p46
    %p48 = scmp.ne.s32.totalorder %s37, %s40
    %p49 = scmp.eq.s32.totalorder %s18, 3
    %p50 = por %p48, %p49
    %p51 = scmp.ne.s32.totalorder %s40, %s41
    %p52 = scmp.eq.s32.totalorder %s18, 0
    %p53 = por %p51, %p52
    %p54 = scmp.ne.s32.totalorder %s40, %s41
    %p55 = scmp.eq.s32.totalorder %s19, 3
    %p56 = por %p54, %p55
    %p58 = scmp.ne.s32.totalorder %s41, %s57
    %p59 = scmp.eq.s32.totalorder %s19, 0
    %p60 = por %p58, %p59
    %s61 = ssub.s32 %s20, %s32
    %s62 = ssub.s32 %s21, %s28
    %s63 = sor.u32 %s61, %s62
    %p64 = scmp.eq.s32.totalorder %s63, 0
    %s66 = sadd.s32 %s65, 1
    %s67 = scalar_select %p64, %s65, %s66
    %p70 = pneg %p64
    %p71 = scmp.eq.s32.totalorder %s13, 3
    %p72 = por %p70, %p71
    %p73 = scmp.ne.s32.totalorder %s65, %s68
    %p74 = scmp.eq.s32.totalorder %s13, 0
    %p75 = por %p73, %p74
    %p76 = scmp.ne.s32.totalorder %s65, %s68
    %p77 = scmp.eq.s32.totalorder %s18, 3
    %p78 = por %p76, %p77
    %p79 = scmp.ne.s32.totalorder %s68, %s69
    %p80 = scmp.eq.s32.totalorder %s18, 0
    %p81 = por %p79, %p80
    %p82 = scmp.ne.s32.totalorder %s68, %s69
    %p83 = scmp.eq.s32.totalorder %s19, 3
    %p84 = por %p82, %p83
    %p86 = scmp.ne.s32.totalorder %s69, %s85
    %p87 = scmp.eq.s32.totalorder %s19, 0
    %p88 = por %p86, %p87
    %s89 = ssub.s32 %s20, %s32
    %s90 = ssub.s32 %s21, %s28
    %s91 = sor.u32 %s89, %s90
    %p92 = scmp.eq.s32.totalorder %s91, 0
    %s94 = sadd.s32 %s93, 1
    %s95 = scalar_select %p92, %s93, %s94
    %p98 = pneg %p92
    %p99 = scmp.eq.s32.totalorder %s13, 3
    %p100 = por %p98, %p99
    %p101 = scmp.ne.s32.totalorder %s93, %s96
    %p102 = scmp.eq.s32.totalorder %s13, 0
    %p103 = por %p101, %p102
    %p104 = scmp.ne.s32.totalorder %s93, %s96
    %p105 = scmp.eq.s32.totalorder %s18, 3
    %p106 = por %p104, %p105
    %p107 = scmp.ne.s32.totalorder %s96, %s97
    %p108 = scmp.eq.s32.totalorder %s18, 0
    %p109 = por %p107, %p108
    %p110 = scmp.ne.s32.totalorder %s96, %s97
    %p111 = scmp.eq.s32.totalorder %s19, 3
    %p112 = por %p110, %p111
    %p114 = scmp.ne.s32.totalorder %s97, %s113
    %p115 = scmp.eq.s32.totalorder %s19, 0
    %p116 = por %p114, %p115
    %s117 = ssub.s32 %s20, %s32
    %s118 = ssub.s32 %s21, %s28
    %s119 = sor.u32 %s117, %s118
    %p120 = scmp.eq.s32.totalorder %s119, 0
    %s122 = sadd.s32 %s121, 1
    %s123 = scalar_select %p120, %s121, %s122
    %p126 = pneg %p120
    %p127 = scmp.eq.s32.totalorder %s13, 3
    %p128 = por %p126, %p127
    %p129 = scmp.ne.s32.totalorder %s121, %s124
    %p130 = scmp.eq.s32.totalorder %s13, 0
    %p131 = por %p129, %p130
    %p132 = scmp.ne.s32.totalorder %s121, %s124
    %p133 = scmp.eq.s32.totalorder %s18, 3
    %p134 = por %p132, %p133
    %p135 = scmp.ne.s32.totalorder %s124, %s125
    %p136 = scmp.eq.s32.totalorder %s18, 0
    %p137 = por %p135, %p136
    %p138 = scmp.ne.s32.totalorder %s124, %s125
    %p139 = scmp.eq.s32.totalorder %s19, 3
    %p140 = por %p138, %p139
    %p142 = scmp.ne.s32.totalorder %s125, %s141
    %p143 = scmp.eq.s32.totalorder %s19, 0
    %p144 = por %p142, %p143
    %s146 = sadd.s32 %s145, 1
    %p149 = scmp.eq.s32.totalorder %s13, 3
    %p150 = scmp.ne.s32.totalorder %s145, %s147
    %p151 = scmp.eq.s32.totalorder %s13, 0
    %p152 = por %p150, %p151
    %p153 = scmp.ne.s32.totalorder %s145, %s147
    %p154 = scmp.eq.s32.totalorder %s18, 3
    %p155 = por %p153, %p154
    %p156 = scmp.ne.s32.totalorder %s147, %s148
    %p157 = scmp.eq.s32.totalorder %s18, 0
    %p158 = por %p156, %p157
    %p159 = scmp.ne.s32.totalorder %s147, %s148
    %p160 = scmp.eq.s32.totalorder %s19, 3
    %p161 = por %p159, %p160
    %p163 = scmp.ne.s32.totalorder %s148, %s162
    %p164 = scmp.eq.s32.totalorder %s19, 0
    %p165 = por %p163, %p164
    %s167 = sadd.s32 %s166, 1
    %p170 = scmp.eq.s32.totalorder %s13, 3
    %p171 = scmp.ne.s32.totalorder %s166, %s168
    %p172 = scmp.eq.s32.totalorder %s13, 0
    %p173 = por %p171, %p172
    %p174 = scmp.ne.s32.totalorder %s166, %s168
    %p175 = scmp.eq.s32.totalorder %s18, 3
    %p176 = por %p174, %p175
    %p177 = scmp.ne.s32.totalorder %s168, %s169
    %p178 = scmp.eq.s32.totalorder %s18, 0
    %p179 = por %p177, %p178
    %p180 = scmp.ne.s32.totalorder %s168, %s169
    %p181 = scmp.eq.s32.totalorder %s19, 3
    %p182 = por %p180, %p181
    %p184 = scmp.ne.s32.totalorder %s169, %s183
    %p185 = scmp.eq.s32.totalorder %s19, 0
    %p186 = por %p184, %p185
    %s188 = sadd.s32 %s187, 1
    %p191 = scmp.eq.s32.totalorder %s13, 3
    %p192 = scmp.ne.s32.totalorder %s187, %s189
    %p193 = scmp.eq.s32.totalorder %s13, 0
    %p194 = por %p192, %p193
    %p195 = scmp.ne.s32.totalorder %s187, %s189
    %p196 = scmp.eq.s32.totalorder %s18, 3
    %p197 = por %p195, %p196
    %p198 = scmp.ne.s32.totalorder %s189, %s190
    %p199 = scmp.eq.s32.totalorder %s18, 0
    %p200 = por %p198, %p199
    %p201 = scmp.ne.s32.totalorder %s189, %s190
    %p202 = scmp.eq.s32.totalorder %s19, 3
    %p203 = por %p201, %p202
    %p205 = scmp.ne.s32.totalorder %s190, %s204
    %p206 = scmp.eq.s32.totalorder %s19, 0
    %p207 = por %p205, %p206
    %s208 = ssub.s32 %s20, %s32
    %s209 = ssub.s32 %s21, %s28
    %s210 = sor.u32 %s208, %s209
    %p211 = scmp.eq.s32.totalorder %s210, 0
    %s213 = sadd.s32 %s212, 1
    %s214 = scalar_select %p211, %s212, %s213
    %p217 = pneg %p211
    %p218 = scmp.eq.s32.totalorder %s13, 3
    %p219 = por %p217, %p218
    %p220 = scmp.ne.s32.totalorder %s212, %s215
    %p221 = scmp.eq.s32.totalorder %s13, 0
    %p222 = por %p220, %p221
    %p223 = scmp.ne.s32.totalorder %s212, %s215
    %p224 = scmp.eq.s32.totalorder %s18, 3
    %p225 = por %p223, %p224
    %p226 = scmp.ne.s32.totalorder %s215, %s216
    %p227 = scmp.eq.s32.totalorder %s18, 0
    %p228 = por %p226, %p227
    %p229 = scmp.ne.s32.totalorder %s215, %s216
    %p230 = scmp.eq.s32.totalorder %s19, 3
    %p231 = por %p229, %p230
    %p233 = scmp.ne.s32.totalorder %s216, %s232
    %p234 = scmp.eq.s32.totalorder %s19, 0
    %p235 = por %p233, %p234
    %p236 = scmp.le.s32.totalorder 1, %s13
    %p237 = scmp.lt.s32.totalorder %s13, 5
    %p238 = pnand %p236, %p237
    %p239 = pneg %p238
    // Predicated region
    $region9: #{music_cnn_forward.4} parent=5 // pred_check
      _
    $region10: #{music_cnn_forward.4} parent=5 // pred_check_branch
      %241 = sbr.rel (%p238) target = $region12
    $region11: #{music_cnn_forward.4} parent=5 // pred_region
      %s242 = ssub.s32 %s13, 1
      // Predicated region
      $region13: #{music_cnn_forward.4} parent=11 // pred_check
        %p243 = pneg %p158
      $region14: #{music_cnn_forward.4} parent=11 // pred_check_branch
        %245 = sbr.rel (%p243) target = $region16
      $region15: #{music_cnn_forward.4} parent=11 // pred_region
        _
      $region16: #{music_cnn_forward.4} parent=11 // pred_fallthru
        _
      // Predicated region
      $region17: #{music_cnn_forward.4} parent=11 // pred_check
        %p246 = pneg %p179
      $region18: #{music_cnn_forward.4} parent=11 // pred_check_branch
        %248 = sbr.rel (%p246) target = $region20
      $region19: #{music_cnn_forward.4} parent=11 // pred_region
        _
      $region20: #{music_cnn_forward.4} parent=11 // pred_fallthru
        _
      // Predicated region
      $region21: #{music_cnn_forward.4} parent=11 // pred_check
        %p249 = pneg %p200
      $region22: #{music_cnn_forward.4} parent=11 // pred_check_branch
        %251 = sbr.rel (%p249) target = $region24
      $region23: #{music_cnn_forward.4} parent=11 // pred_region
        _
      $region24: #{music_cnn_forward.4} parent=11 // pred_fallthru
        _
    $region12: #{music_cnn_forward.4} parent=5 // pred_fallthru
      _
    %p252 = scmp.lt.s32.totalorder %s13, 4
    // Predicated region
    $region25: #{music_cnn_forward.4} parent=5 // pred_check
      %p253 = pneg %p252
    $region26: #{music_cnn_forward.4} parent=5 // pred_check_branch
      %255 = sbr.rel (%p253) target = $region28
    $region27: #{music_cnn_forward.4} parent=5 // pred_region
      // Predicated region
      $region29: #{music_cnn_forward.4} parent=27 // pred_check
        %p256 = pneg %p47
      $region30: #{music_cnn_forward.4} parent=27 // pred_check_branch
        %258 = sbr.rel (%p256) target = $region32
      $region31: #{music_cnn_forward.4} parent=27 // pred_region
        %s259 = smul.u32 20, %s21
        %p260 = scmp.lt.s32.totalorder %s20, 1
        %s261 = scalar_select %p260, %s20, 1
        %p262 = scmp.lt.s32.totalorder %s259, 39
        %s263 = scalar_select %p262, %s259, 39
        %s264 = smul.addr %s263, 3
        %s265 = smul.addr %s261, 120
        %s266 = sadd.s32 %s264, %s265
        %s267 = smul.addr %s266, 8
        %s268 = scalar_lea.vmem %s0, %s267
        %s269 = smul.u32 20, %s21
      $region32: #{music_cnn_forward.4} parent=27 // pred_fallthru
        _
      // Predicated region
      $region33: #{music_cnn_forward.4} parent=27 // pred_check
        %p270 = pneg %p75
      $region34: #{music_cnn_forward.4} parent=27 // pred_check_branch
        %272 = sbr.rel (%p270) target = $region36
      $region35: #{music_cnn_forward.4} parent=27 // pred_region
        %s273 = smul.u32 20, %s21
        %p274 = scmp.lt.s32.totalorder %s20, 1
        %s275 = scalar_select %p274, %s20, 1
        %p276 = scmp.lt.s32.totalorder %s273, 39
        %s277 = scalar_select %p276, %s273, 39
        %s278 = smul.addr %s277, 3
        %s279 = smul.addr %s275, 120
        %s280 = sadd.s32 %s278, %s279
        %s281 = smul.addr %s280, 8
        %s282 = scalar_lea.vmem %s1, %s281
        %s283 = smul.u32 20, %s21
      $region36: #{music_cnn_forward.4} parent=27 // pred_fallthru
        _
      // Predicated region
      $region37: #{music_cnn_forward.4} parent=27 // pred_check
        %p284 = pneg %p103
      $region38: #{music_cnn_forward.4} parent=27 // pred_check_branch
        %286 = sbr.rel (%p284) target = $region40
      $region39: #{music_cnn_forward.4} parent=27 // pred_region
        %s287 = smul.u32 20, %s21
        %p288 = scmp.lt.s32.totalorder %s20, 1
        %s289 = scalar_select %p288, %s20, 1
        %p290 = scmp.lt.s32.totalorder %s287, 39
        %s291 = scalar_select %p290, %s287, 39
        %s292 = smul.addr %s291, 3
        %s293 = smul.addr %s289, 120
        %s294 = sadd.s32 %s292, %s293
        %s295 = smul.addr %s294, 8
        %s296 = scalar_lea.vmem %s2, %s295
        %s297 = smul.u32 20, %s21
      $region40: #{music_cnn_forward.4} parent=27 // pred_fallthru
        _
      // Predicated region
      $region41: #{music_cnn_forward.4} parent=27 // pred_check
        %p298 = pneg %p131
      $region42: #{music_cnn_forward.4} parent=27 // pred_check_branch
        %300 = sbr.rel (%p298) target = $region44
      $region43: #{music_cnn_forward.4} parent=27 // pred_region
        %s301 = smul.u32 20, %s21
        %p302 = scmp.lt.s32.totalorder %s20, 1
        %s303 = scalar_select %p302, %s20, 1
        %p304 = scmp.lt.s32.totalorder %s301, 39
        %s305 = scalar_select %p304, %s301, 39
        %s306 = smul.addr %s305, 3
        %s307 = smul.addr %s303, 120
        %s308 = sadd.s32 %s306, %s307
        %s309 = smul.addr %s308, 8
        %s310 = scalar_lea.vmem %s3, %s309
        %s311 = smul.u32 20, %s21
      $region44: #{music_cnn_forward.4} parent=27 // pred_fallthru
        _
    $region28: #{music_cnn_forward.4} parent=5 // pred_fallthru
      _
    %p312 = scmp.le.s32.totalorder 1, %s13
    %p313 = scmp.lt.s32.totalorder %s13, 5
    %p314 = pnand %p312, %p313
    %p315 = pneg %p314
    // Predicated region
    $region45: #{music_cnn_forward.4} parent=5 // pred_check
      _
    $region46: #{music_cnn_forward.4} parent=5 // pred_check_branch
      %317 = sbr.rel (%p314) target = $region48
    $region47: #{music_cnn_forward.4} parent=5 // pred_region
      %s318 = ssub.s32 %s13, 1
      %s319 = smul.u32 20, %s23
      %p320 = scmp.lt.s32.totalorder %s22, 1
      %s321 = scalar_select %p320, %s22, 1
      %p322 = scmp.lt.s32.totalorder %s319, 39
      %s323 = scalar_select %p322, %s319, 39
      %s324 = smul.addr %s323, 3
      %s325 = smul.addr %s321, 120
      %s326 = sadd.s32 %s324, %s325
      %s327 = smul.addr %s326, 8
      %s328 = scalar_lea.vmem %s0, %s327
      %p329 = pneg %p53
      %p330 = pneg %p50
      %s331 = smul.u32 20, %s23
      %p332 = scmp.lt.s32.totalorder %s22, 1
      %s333 = scalar_select %p332, %s22, 1
      %p334 = scmp.lt.s32.totalorder %s331, 39
      %s335 = scalar_select %p334, %s331, 39
      %s336 = smul.addr %s335, 3
      %s337 = smul.addr %s333, 120
      %s338 = sadd.s32 %s336, %s337
      %s339 = smul.addr %s338, 8
      %s340 = scalar_lea.vmem %s1, %s339
      %p341 = pneg %p81
      %p342 = pneg %p78
      %s343 = smul.u32 20, %s23
      %p344 = scmp.lt.s32.totalorder %s22, 1
      %s345 = scalar_select %p344, %s22, 1
      %p346 = scmp.lt.s32.totalorder %s343, 39
      %s347 = scalar_select %p346, %s343, 39
      %s348 = smul.addr %s347, 3
      %s349 = smul.addr %s345, 120
      %s350 = sadd.s32 %s348, %s349
      %s351 = smul.addr %s350, 8
      %s352 = scalar_lea.vmem %s2, %s351
      %p353 = pneg %p109
      %p354 = pneg %p106
      %s355 = smul.u32 20, %s23
      %p356 = scmp.lt.s32.totalorder %s22, 1
      %s357 = scalar_select %p356, %s22, 1
      %p358 = scmp.lt.s32.totalorder %s355, 39
      %s359 = scalar_select %p358, %s355, 39
      %s360 = smul.addr %s359, 3
      %s361 = smul.addr %s357, 120
      %s362 = sadd.s32 %s360, %s361
      %s363 = smul.addr %s362, 8
      %s364 = scalar_lea.vmem %s3, %s363
      %p365 = pneg %p137
      %p366 = pneg %p134
      %p367 = pneg %p158
      %p368 = pneg %p155
      %p369 = pneg %p179
      %p370 = pneg %p176
      %p371 = pneg %p200
      %p372 = pneg %p197
      %p373 = pneg %p228
      %p374 = pneg %p225
      %s375 = smul.u32 20, %s23
      %p376 = scmp.lt.s32.totalorder %s22, 1
      %s377 = scalar_select %p376, %s22, 1
      %p378 = scmp.lt.s32.totalorder %s375, 39
      %s379 = scalar_select %p378, %s375, 39
      %s380 = smul.addr %s377, 40
      %s381 = sadd.s32 %s379, %s380
      %s382 = smul.addr %s381, 4
      %s383 = scalar_lea.vmem %s7, %s382
      %s384 = smul.u32 20, %s23
      %p385 = scmp.lt.s32.totalorder %s22, 1
      %s386 = scalar_select %p385, %s22, 1
      %p387 = scmp.lt.s32.totalorder %s384, 39
      %s388 = scalar_select %p387, %s384, 39
      %s389 = smul.addr %s388, 3
      %s390 = smul.addr %s386, 120
      %s391 = sadd.s32 %s389, %s390
      %s392 = smul.addr %s391, 8
      %s393 = scalar_lea.vmem %s0, %s392
      %s394 = smul.u32 20, %s23
      %s395 = smul.u32 20, %s23
      %p396 = scmp.lt.s32.totalorder %s22, 1
      %s397 = scalar_select %p396, %s22, 1
      %p398 = scmp.lt.s32.totalorder %s395, 39
      %s399 = scalar_select %p398, %s395, 39
      %s400 = smul.addr %s399, 3
      %s401 = smul.addr %s397, 120
      %s402 = sadd.s32 %s400, %s401
      %s403 = smul.addr %s402, 8
      %s404 = scalar_lea.vmem %s1, %s403
      %s405 = smul.u32 20, %s23
      %s406 = smul.u32 20, %s23
      %p407 = scmp.lt.s32.totalorder %s22, 1
      %s408 = scalar_select %p407, %s22, 1
      %p409 = scmp.lt.s32.totalorder %s406, 39
      %s410 = scalar_select %p409, %s406, 39
      %s411 = smul.addr %s410, 3
      %s412 = smul.addr %s408, 120
      %s413 = sadd.s32 %s411, %s412
      %s414 = smul.addr %s413, 8
      %s415 = scalar_lea.vmem %s2, %s414
      %s416 = smul.u32 20, %s23
      %s417 = smul.u32 20, %s23
      %p418 = scmp.lt.s32.totalorder %s22, 1
      %s419 = scalar_select %p418, %s22, 1
      %p420 = scmp.lt.s32.totalorder %s417, 39
      %s421 = scalar_select %p420, %s417, 39
      %s422 = smul.addr %s421, 3
      %s423 = smul.addr %s419, 120
      %s424 = sadd.s32 %s422, %s423
      %s425 = smul.addr %s424, 8
      %s426 = scalar_lea.vmem %s3, %s425
      %s427 = smul.u32 20, %s23
      %s428 = smul.u32 20, %s23
      %p429 = scmp.lt.s32.totalorder %s22, 1
      %s430 = scalar_select %p429, %s22, 1
      %p431 = scmp.lt.s32.totalorder %s428, 39
      %s432 = scalar_select %p431, %s428, 39
      %s433 = smul.addr %s430, 40
      %s434 = sadd.s32 %s432, %s433
      %s435 = smul.addr %s434, 4
      %s436 = scalar_lea.vmem %s7, %s435
      %s437 = smul.u32 20, %s23
      %v438 = vld [vmem:[%s4] sm:$0xff]
      %v439 = vld [vmem:[%s4 + $0x8] sm:$0xff]
      %v440 = vld [vmem:[%s4 + $0x10] sm:$0xff]
      %v441 = vld [vmem:[%s4 + $0x18] sm:$0xff]
      %v442 = vld [vmem:[%s4 + $0x20] sm:$0xff]
      %v443 = vld [vmem:[%s4 + $0x28] sm:$0xff]
      %v444 = vld [vmem:[%s4 + $0x30] sm:$0xff]
      %v445 = vld [vmem:[%s4 + $0x38] sm:$0xff]
      %v446 = vld [vmem:[%s4 + $0x40] sm:$0xff]
      %v447 = vld [vmem:[%s4 + $0x48] sm:$0xff]
      %v448 = vld [vmem:[%s4 + $0x50] sm:$0xff]
      %v449 = vld [vmem:[%s4 + $0x58] sm:$0xff]
      %v450 = vld [vmem:[%s4 + $0x60] sm:$0xff]
      %v451 = vld [vmem:[%s4 + $0x68] sm:$0xff]
      %v452 = vld [vmem:[%s4 + $0x70] sm:$0xff]
      %v453 = vld [vmem:[%s4 + $0x78] sm:$0xff]
      %v454 = vld [vmem:[%s4 + $0x80] sm:$0xff]
      %v455 = vld [vmem:[%s4 + $0x88] sm:$0xff]
      %v456 = vld [vmem:[%s4 + $0x90] sm:$0xff]
      %v457 = vld [vmem:[%s4 + $0x98] sm:$0xff]
      %v458 = vld [vmem:[%s4 + $0xa0] sm:$0xff]
      %v459 = vld [vmem:[%s4 + $0xa8] sm:$0xff]
      %v460 = vld [vmem:[%s4 + $0xb0] sm:$0xff]
      %v461 = vld [vmem:[%s4 + $0xb8] sm:$0xff]
      %v462 = vld [vmem:[%s4 + $0xc0] sm:$0xff]
      %v463 = vld [vmem:[%s4 + $0xc8] sm:$0xff]
      %v464 = vld [vmem:[%s4 + $0xd0] sm:$0xff]
      %v465 = vld [vmem:[%s4 + $0xd8] sm:$0xff]
      %v466 = vld [vmem:[%s4 + $0xe0] sm:$0xff]
      %v467 = vld [vmem:[%s4 + $0xe8] sm:$0xff]
      %v468 = vld [vmem:[%s4 + $0xf0] sm:$0xff]
      %v469 = vld [vmem:[%s4 + $0xf8] sm:$0xff]
      %v470 = vld [vmem:[%s4 + $0x100] sm:$0xff]
      %v471 = vld [vmem:[%s4 + $0x108] sm:$0xff]
      %v472 = vld [vmem:[%s4 + $0x110] sm:$0xff]
      %v473 = vld [vmem:[%s4 + $0x118] sm:$0xff]
      %v474 = vld [vmem:[%s5] sm:$0x1]
      %v476 = vlaneseq
      %v477 = vshrl.u32 %v476, 7
      %v478 = vsub.s32 0, %v477
      %v479 = vrot.slane %v474, %v478
      %v481 = vld [vmem:[%s6] sm:$0x1]
      %v483 = vlaneseq
      %v484 = vshrl.u32 %v483, 7
      %v485 = vsub.s32 0, %v484
      %v486 = vrot.slane %v481, %v485
      %v488 = vld [vmem:[%s393] sm:$0xff]
      %v489 = vld [vmem:[%s393 + $0x8] sm:$0xff]
      %v490 = vld [vmem:[%s393 + $0x10] sm:$0xff]
      %v491 = vld [vmem:[%s393 + $0x18] sm:$0xff]
      %v492 = vld [vmem:[%s393 + $0x20] sm:$0xff]
      %v493 = vld [vmem:[%s393 + $0x28] sm:$0xff]
      %v494 = vld [vmem:[%s393 + $0x30] sm:$0xff]
      %v495 = vld [vmem:[%s393 + $0x38] sm:$0xff]
      %v496 = vld [vmem:[%s393 + $0x40] sm:$0xff]
      %v497 = vld [vmem:[%s393 + $0x48] sm:$0xff]
      %v498 = vld [vmem:[%s393 + $0x50] sm:$0xff]
      %v499 = vld [vmem:[%s393 + $0x58] sm:$0xff]
      %v500 = vld [vmem:[%s393 + $0x60] sm:$0xff]
      %v501 = vld [vmem:[%s393 + $0x68] sm:$0xff]
      %v502 = vld [vmem:[%s393 + $0x70] sm:$0xff]
      %v503 = vld [vmem:[%s393 + $0x78] sm:$0xff]
      %v504 = vld [vmem:[%s393 + $0x80] sm:$0xff]
      %v505 = vld [vmem:[%s393 + $0x88] sm:$0xff]
      %v506 = vld [vmem:[%s393 + $0x90] sm:$0xff]
      %v507 = vld [vmem:[%s393 + $0x98] sm:$0xff]
      %v508 = vld [vmem:[%s393 + $0xa0] sm:$0xff]
      %v509 = vld [vmem:[%s393 + $0xa8] sm:$0xff]
      %v510 = vld [vmem:[%s393 + $0xb0] sm:$0xff]
      %v511 = vld [vmem:[%s393 + $0xb8] sm:$0xff]
      %v512 = vld [vmem:[%s393 + $0xc0] sm:$0xff]
      %v513 = vld [vmem:[%s393 + $0xc8] sm:$0xff]
      %v514 = vld [vmem:[%s393 + $0xd0] sm:$0xff]
      %v515 = vld [vmem:[%s393 + $0xd8] sm:$0xff]
      %v516 = vld [vmem:[%s393 + $0xe0] sm:$0xff]
      %v517 = vld [vmem:[%s393 + $0xe8] sm:$0xff]
      %v518 = vld [vmem:[%s393 + $0xf0] sm:$0xff]
      %v519 = vld [vmem:[%s393 + $0xf8] sm:$0xff]
      %v520 = vld [vmem:[%s393 + $0x100] sm:$0xff]
      %v521 = vld [vmem:[%s393 + $0x108] sm:$0xff]
      %v522 = vld [vmem:[%s393 + $0x110] sm:$0xff]
      %v523 = vld [vmem:[%s393 + $0x118] sm:$0xff]
      %v524 = vld [vmem:[%s393 + $0x120] sm:$0xff]
      %v525 = vld [vmem:[%s393 + $0x128] sm:$0xff]
      %v526 = vld [vmem:[%s393 + $0x130] sm:$0xff]
      %v527 = vld [vmem:[%s393 + $0x138] sm:$0xff]
      %v528 = vld [vmem:[%s393 + $0x140] sm:$0xff]
      %v529 = vld [vmem:[%s393 + $0x148] sm:$0xff]
      %v530 = vld [vmem:[%s393 + $0x150] sm:$0xff]
      %v531 = vld [vmem:[%s393 + $0x158] sm:$0xff]
      %v532 = vld [vmem:[%s393 + $0x160] sm:$0xff]
      %v533 = vld [vmem:[%s393 + $0x168] sm:$0xff]
      %v534 = vld [vmem:[%s393 + $0x170] sm:$0xff]
      %v535 = vld [vmem:[%s393 + $0x178] sm:$0xff]
      %v536 = vld [vmem:[%s393 + $0x180] sm:$0xff]
      %v537 = vld [vmem:[%s393 + $0x188] sm:$0xff]
      %v538 = vld [vmem:[%s393 + $0x190] sm:$0xff]
      %v539 = vld [vmem:[%s393 + $0x198] sm:$0xff]
      %v540 = vld [vmem:[%s393 + $0x1a0] sm:$0xff]
      %v541 = vld [vmem:[%s393 + $0x1a8] sm:$0xff]
      %v542 = vld [vmem:[%s393 + $0x1b0] sm:$0xff]
      %v543 = vld [vmem:[%s393 + $0x1b8] sm:$0xff]
      %v544 = vld [vmem:[%s393 + $0x1c0] sm:$0xff]
      %v545 = vld [vmem:[%s393 + $0x1c8] sm:$0xff]
      %v546 = vld [vmem:[%s393 + $0x1d0] sm:$0xff]
      %v547 = vld [vmem:[%s393 + $0x1d8] sm:$0xff]
      %vm548 = vcmask 261120
      %v550 = vsel %vm548, %v490, 0
      %v553 = vsel %vm548, %v493, 0
      %v556 = vsel %vm548, %v496, 0
      %v559 = vsel %vm548, %v499, 0
      %v562 = vsel %vm548, %v502, 0
      %v565 = vsel %vm548, %v505, 0
      %v568 = vsel %vm548, %v508, 0
      %v571 = vsel %vm548, %v511, 0
      %v574 = vsel %vm548, %v514, 0
      %v577 = vsel %vm548, %v517, 0
      %v580 = vsel %vm548, %v520, 0
      %v583 = vsel %vm548, %v523, 0
      %v586 = vsel %vm548, %v526, 0
      %v589 = vsel %vm548, %v529, 0
      %v592 = vsel %vm548, %v532, 0
      %v595 = vsel %vm548, %v535, 0
      %v598 = vsel %vm548, %v538, 0
      %v601 = vsel %vm548, %v541, 0
      %v604 = vsel %vm548, %v544, 0
      %v607 = vsel %vm548, %v547, 0
      %609 = vmatprep.subr.mxu0 0.0
      %610 = vmatpush1.msra.mxu0 %v438
      %611 = vmatprep.subr.mxu0 0.0
      %612 = vmatpush1.msra.mxu0 %v439
      %613 = vmatprep.subr.mxu0 0.0
      %614 = vmatpush1.msra.mxu0 %v440
      %615 = vmatprep.subr.mxu0 0.0
      %616 = vmatpush1.msra.mxu0 %v441
      %617 = vmatprep.subr.mxu0 0.0
      %618 = vmatpush1.msra.mxu0 %v442
      %619 = vmatprep.subr.mxu0 0.0
      %620 = vmatpush1.msra.mxu0 %v443
      %621 = vmatprep.subr.mxu0 0.0
      %622 = vmatpush1.msra.mxu0 %v444
      %623 = vmatprep.subr.mxu0 0.0
      %624 = vmatpush1.msra.mxu0 %v445
      %625 = vmatprep.subr.mxu0 0.0
      %626 = vmatpush1.msra.mxu0 %v446
      %627 = vmatprep.subr.mxu0 0.0
      %628 = vmatpush1.msra.mxu0 %v447
      %629 = vmatprep.subr.mxu0 0.0
      %630 = vmatpush1.msra.mxu0 %v448
      %631 = vmatprep.subr.mxu0 0.0
      %632 = vmatpush1.msra.mxu0 %v449
      %633 = vmatprep.subr.mxu0 0.0
      %634 = vmatpush1.msra.mxu0 %v450
      %635 = vmatprep.subr.mxu0 0.0
      %636 = vmatpush1.msra.mxu0 %v451
      %637 = vmatprep.subr.mxu0 0.0
      %638 = vmatpush1.msra.mxu0 %v452
      %639 = vmatprep.subr.mxu0 0.0
      %640 = vmatpush1.msra.mxu0 %v453
      %641 = vmatprep.subr.mxu0 0.0
      %642 = vmatpush1.msra.mxu0 %v454
      %643 = vmatprep.subr.mxu0 0.0
      %644 = vmatpush1.msra.mxu0 %v455
      %645 = vmatprep.subr.mxu0 0.0
      %646 = vmatpush1.msra.mxu0 %v456
      %647 = vmatprep.subr.mxu0 0.0
      %648 = vmatpush1.msra.mxu0 %v457
      %649 = vmatprep.subr.mxu0 0.0
      %650 = vmatpush1.msra.mxu0 %v458
      %651 = vmatprep.subr.mxu0 0.0
      %652 = vmatpush1.msra.mxu0 %v459
      %653 = vmatprep.subr.mxu0 0.0
      %654 = vmatpush1.msra.mxu0 %v460
      %655 = vmatprep.subr.mxu0 0.0
      %656 = vmatpush1.msra.mxu0 %v461
      %657 = vmatprep.subr.mxu0 0.0
      %658 = vmatpush1.msra.mxu0 %v462
      %659 = vmatprep.subr.mxu0 0.0
      %660 = vmatpush1.msra.mxu0 %v463
      %661 = vmatprep.subr.mxu0 0.0
      %662 = vmatpush1.msra.mxu0 %v464
      %663 = vmatprep.subr.mxu0 0.0
      %664 = vmatpush1.msra.mxu0 %v465
      %665 = vmatprep.subr.mxu0 0.0
      %666 = vmatpush1.msra.mxu0 %v466
      %667 = vmatprep.subr.mxu0 0.0
      %668 = vmatpush1.msra.mxu0 %v467
      %669 = vmatprep.subr.mxu0 0.0
      %670 = vmatpush1.msra.mxu0 %v468
      %671 = vmatprep.subr.mxu0 0.0
      %672 = vmatpush1.msra.mxu0 %v469
      %673 = vmatprep.mubr.f32.mxu0 %v489
      %674 = vmatmul.mubr.f32.gmra.mrb[0].mxu0 %v488
      %v675 = vpop.f32.mrb[0].mxu0
      %v676 = vadd.f32 0.0, %v675
      %v677 = vpop.f32.mrb[0].mxu0
      %678 = vmatprep.mubr.f32.mxu0 %v492
      %679 = vmatmul.mubr.f32.gmra.mrb[0].mxu0 %v491
      %v680 = vpop.f32.mrb[0].mxu0
      %v681 = vadd.f32 0.0, %v680
      %v682 = vpop.f32.mrb[0].mxu0
      %683 = vmatprep.mubr.f32.mxu0 %v495
      %684 = vmatmul.mubr.f32.gmra.mrb[0].mxu0 %v494
      %v685 = vpop.f32.mrb[0].mxu0
      %v686 = vadd.f32 0.0, %v685
      %v687 = vpop.f32.mrb[0].mxu0
      %688 = vmatprep.mubr.f32.mxu0 %v498
      %689 = vmatmul.mubr.f32.gmra.mrb[0].mxu0 %v497
      %v690 = vpop.f32.mrb[0].mxu0
      %v691 = vadd.f32 0.0, %v690
      %v692 = vpop.f32.mrb[0].mxu0
      %693 = vmatprep.mubr.f32.mxu0 %v501
      %694 = vmatmul.mubr.f32.gmra.mrb[0].mxu0 %v500
      %v695 = vpop.f32.mrb[0].mxu0
      %v696 = vadd.f32 0.0, %v695
      %v697 = vpop.f32.mrb[0].mxu0
      %698 = vmatprep.mubr.f32.mxu0 %v504
      %699 = vmatmul.mubr.f32.gmra.mrb[0].mxu0 %v503
      %v700 = vpop.f32.mrb[0].mxu0
      %v701 = vadd.f32 0.0, %v700
      %v702 = vpop.f32.mrb[0].mxu0
      %703 = vmatprep.mubr.f32.mxu0 %v507
      %704 = vmatmul.mubr.f32.gmra.mrb[0].mxu0 %v506
      %v705 = vpop.f32.mrb[0].mxu0
      %v706 = vadd.f32 0.0, %v705
      %v707 = vpop.f32.mrb[0].mxu0
      %708 = vmatprep.mubr.f32.mxu0 %v510
      %709 = vmatmul.mubr.f32.gmra.mrb[0].mxu0 %v509
      %v710 = vpop.f32.mrb[0].mxu0
      %v711 = vadd.f32 0.0, %v710
      %v712 = vpop.f32.mrb[0].mxu0
      %713 = vmatprep.mubr.f32.mxu0 %v513
      %714 = vmatmul.mubr.f32.gmra.mrb[0].mxu0 %v512
      %v715 = vpop.f32.mrb[0].mxu0
      %v716 = vadd.f32 0.0, %v715
      %v717 = vpop.f32.mrb[0].mxu0
      %718 = vmatprep.mubr.f32.mxu0 %v516
      %719 = vmatmul.mubr.f32.gmra.mrb[0].mxu0 %v515
      %v720 = vpop.f32.mrb[0].mxu0
      %v721 = vadd.f32 0.0, %v720
      %v722 = vpop.f32.mrb[0].mxu0
      %723 = vmatprep.mubr.f32.mxu0 %v519
      %724 = vmatmul.mubr.f32.gmra.mrb[0].mxu0 %v518
      %v725 = vpop.f32.mrb[0].mxu0
      %v726 = vadd.f32 0.0, %v725
      %v727 = vpop.f32.mrb[0].mxu0
      %728 = vmatprep.mubr.f32.mxu0 %v522
      %729 = vmatmul.mubr.f32.gmra.mrb[0].mxu0 %v521
      %v730 = vpop.f32.mrb[0].mxu0
      %v731 = vadd.f32 0.0, %v730
      %v732 = vpop.f32.mrb[0].mxu0
      %733 = vmatprep.mubr.f32.mxu0 %v525
      %734 = vmatmul.mubr.f32.gmra.mrb[0].mxu0 %v524
      %v735 = vpop.f32.mrb[0].mxu0
      %v736 = vadd.f32 0.0, %v735
      %v737 = vpop.f32.mrb[0].mxu0
      %738 = vmatprep.mubr.f32.mxu0 %v528
      %739 = vmatmul.mubr.f32.gmra.mrb[0].mxu0 %v527
      %v740 = vpop.f32.mrb[0].mxu0
      %v741 = vadd.f32 0.0, %v740
      %v742 = vpop.f32.mrb[0].mxu0
      %743 = vmatprep.mubr.f32.mxu0 %v531
      %744 = vmatmul.mubr.f32.gmra.mrb[0].mxu0 %v530
      %v745 = vpop.f32.mrb[0].mxu0
      %v746 = vadd.f32 0.0, %v745
      %v747 = vpop.f32.mrb[0].mxu0
      %748 = vmatprep.mubr.f32.mxu0 %v534
      %749 = vmatmul.mubr.f32.gmra.mrb[0].mxu0 %v533
      %v750 = vpop.f32.mrb[0].mxu0
      %v751 = vadd.f32 0.0, %v750
      %v752 = vpop.f32.mrb[0].mxu0
      %753 = vmatprep.mubr.f32.mxu0 %v537
      %754 = vmatmul.mubr.f32.gmra.mrb[0].mxu0 %v536
      %v755 = vpop.f32.mrb[0].mxu0
      %v756 = vadd.f32 0.0, %v755
      %v757 = vpop.f32.mrb[0].mxu0
      %758 = vmatprep.mubr.f32.mxu0 %v540
      %759 = vmatmul.mubr.f32.gmra.mrb[0].mxu0 %v539
      %v760 = vpop.f32.mrb[0].mxu0
      %v761 = vadd.f32 0.0, %v760
      %v762 = vpop.f32.mrb[0].mxu0
      %763 = vmatprep.mubr.f32.mxu0 %v543
      %764 = vmatmul.mubr.f32.gmra.mrb[0].mxu0 %v542
      %v765 = vpop.f32.mrb[0].mxu0
      %v766 = vadd.f32 0.0, %v765
      %v767 = vpop.f32.mrb[0].mxu0
      %768 = vmatprep.mubr.f32.mxu0 %v546
      %769 = vmatmul.mubr.f32.gmra.mrb[0].mxu0 %v545
      %v770 = vpop.f32.mrb[0].mxu0
      %v771 = vadd.f32 0.0, %v770
      %v772 = vpop.f32.mrb[0].mxu0
      %773 = vdwg.mxu0
      %774 = vmatprep.subr.mxu0 0.0
      %775 = vmatpush1.msra.mxu0 %v470
      %776 = vmatprep.subr.mxu0 0.0
      %777 = vmatpush1.msra.mxu0 %v471
      %778 = vmatprep.subr.mxu0 0.0
      %779 = vmatpush1.msra.mxu0 %v472
      %780 = vmatprep.subr.mxu0 0.0
      %781 = vmatpush1.msra.mxu0 %v473
      %782 = vmatprep.subr.mxu0 0.0
      %783 = vmatpush1.msra.mxu0 0.0
      %784 = vmatprep.subr.mxu0 0.0
      %785 = vmatpush1.msra.mxu0 0.0
      %786 = vmatprep.subr.mxu0 0.0
      %787 = vmatpush1.msra.mxu0 0.0
      %788 = vmatprep.subr.mxu0 0.0
      %789 = vmatpush1.msra.mxu0 0.0
      %790 = vmatprep.subr.mxu0 0.0
      %791 = vmatpush1.msra.mxu0 0.0
      %792 = vmatprep.subr.mxu0 0.0
      %793 = vmatpush1.msra.mxu0 0.0
      %794 = vmatprep.subr.mxu0 0.0
      %795 = vmatpush1.msra.mxu0 0.0
      %796 = vmatprep.subr.mxu0 0.0
      %797 = vmatpush1.msra.mxu0 0.0
      %798 = vmatprep.subr.mxu0 0.0
      %799 = vmatpush1.msra.mxu0 0.0
      %800 = vmatprep.subr.mxu0 0.0
      %801 = vmatpush1.msra.mxu0 0.0
      %802 = vmatprep.subr.mxu0 0.0
      %803 = vmatpush1.msra.mxu0 0.0
      %804 = vmatprep.subr.mxu0 0.0
      %805 = vmatpush1.msra.mxu0 0.0
      %806 = vmatprep.subr.mxu0 0.0
      %807 = vmatpush1.msra.mxu0 0.0
      %808 = vmatprep.subr.mxu0 0.0
      %809 = vmatpush1.msra.mxu0 0.0
      %810 = vmatprep.subr.mxu0 0.0
      %811 = vmatpush1.msra.mxu0 0.0
      %812 = vmatprep.subr.mxu0 0.0
      %813 = vmatpush1.msra.mxu0 0.0
      %814 = vmatprep.subr.mxu0 0.0
      %815 = vmatpush1.msra.mxu0 0.0
      %816 = vmatprep.subr.mxu0 0.0
      %817 = vmatpush1.msra.mxu0 0.0
      %818 = vmatprep.subr.mxu0 0.0
      %819 = vmatpush1.msra.mxu0 0.0
      %820 = vmatprep.subr.mxu0 0.0
      %821 = vmatpush1.msra.mxu0 0.0
      %822 = vmatprep.subr.mxu0 0.0
      %823 = vmatpush1.msra.mxu0 0.0
      %824 = vmatprep.subr.mxu0 0.0
      %825 = vmatpush1.msra.mxu0 0.0
      %826 = vmatprep.subr.mxu0 0.0
      %827 = vmatpush1.msra.mxu0 0.0
      %828 = vmatprep.subr.mxu0 0.0
      %829 = vmatpush1.msra.mxu0 0.0
      %830 = vmatprep.subr.mxu0 0.0
      %831 = vmatpush1.msra.mxu0 0.0
      %832 = vmatprep.subr.mxu0 0.0
      %833 = vmatpush1.msra.mxu0 0.0
      %834 = vmatprep.subr.mxu0 0.0
      %835 = vmatpush1.msra.mxu0 0.0
      %836 = vmatprep.subr.mxu0 0.0
      %837 = vmatpush1.msra.mxu0 0.0
      %838 = vmatprep.mubr.f32.mxu0 0.0
      %839 = vmatmul.mubr.f32.gmra.mrb[0].mxu0 %v550
      %v840 = vpop.f32.mrb[0].mxu0
      %v841 = vadd.f32 %v676, %v840
      %v842 = vpop.f32.mrb[0].mxu0
      %843 = vmatprep.mubr.f32.mxu0 0.0
      %844 = vmatmul.mubr.f32.gmra.mrb[0].mxu0 %v553
      %v845 = vpop.f32.mrb[0].mxu0
      %v846 = vadd.f32 %v681, %v845
      %v847 = vpop.f32.mrb[0].mxu0
      %848 = vmatprep.mubr.f32.mxu0 0.0
      %849 = vmatmul.mubr.f32.gmra.mrb[0].mxu0 %v556
      %v850 = vpop.f32.mrb[0].mxu0
      %v851 = vadd.f32 %v686, %v850
      %v852 = vpop.f32.mrb[0].mxu0
      %853 = vmatprep.mubr.f32.mxu0 0.0
      %854 = vmatmul.mubr.f32.gmra.mrb[0].mxu0 %v559
      %v855 = vpop.f32.mrb[0].mxu0
      %v856 = vadd.f32 %v691, %v855
      %v857 = vpop.f32.mrb[0].mxu0
      %858 = vmatprep.mubr.f32.mxu0 0.0
      %859 = vmatmul.mubr.f32.gmra.mrb[0].mxu0 %v562
      %v860 = vpop.f32.mrb[0].mxu0
      %v861 = vadd.f32 %v696, %v860
      %v862 = vpop.f32.mrb[0].mxu0
      %863 = vmatprep.mubr.f32.mxu0 0.0
      %864 = vmatmul.mubr.f32.gmra.mrb[0].mxu0 %v565
      %v865 = vpop.f32.mrb[0].mxu0
      %v866 = vadd.f32 %v701, %v865
      %v867 = vpop.f32.mrb[0].mxu0
      %868 = vmatprep.mubr.f32.mxu0 0.0
      %869 = vmatmul.mubr.f32.gmra.mrb[0].mxu0 %v568
      %v870 = vpop.f32.mrb[0].mxu0
      %v871 = vadd.f32 %v706, %v870
      %v872 = vpop.f32.mrb[0].mxu0
      %873 = vmatprep.mubr.f32.mxu0 0.0
      %874 = vmatmul.mubr.f32.gmra.mrb[0].mxu0 %v571
      %v875 = vpop.f32.mrb[0].mxu0
      %v876 = vadd.f32 %v711, %v875
      %v877 = vpop.f32.mrb[0].mxu0
      %878 = vmatprep.mubr.f32.mxu0 0.0
      %879 = vmatmul.mubr.f32.gmra.mrb[0].mxu0 %v574
      %v880 = vpop.f32.mrb[0].mxu0
      %v881 = vadd.f32 %v716, %v880
      %v882 = vpop.f32.mrb[0].mxu0
      %883 = vmatprep.mubr.f32.mxu0 0.0
      %884 = vmatmul.mubr.f32.gmra.mrb[0].mxu0 %v577
      %v885 = vpop.f32.mrb[0].mxu0
      %v886 = vadd.f32 %v721, %v885
      %v887 = vpop.f32.mrb[0].mxu0
      %888 = vmatprep.mubr.f32.mxu0 0.0
      %889 = vmatmul.mubr.f32.gmra.mrb[0].mxu0 %v580
      %v890 = vpop.f32.mrb[0].mxu0
      %v891 = vadd.f32 %v726, %v890
      %v892 = vpop.f32.mrb[0].mxu0
      %893 = vmatprep.mubr.f32.mxu0 0.0
      %894 = vmatmul.mubr.f32.gmra.mrb[0].mxu0 %v583
      %v895 = vpop.f32.mrb[0].mxu0
      %v896 = vadd.f32 %v731, %v895
      %v897 = vpop.f32.mrb[0].mxu0
      %898 = vmatprep.mubr.f32.mxu0 0.0
      %899 = vmatmul.mubr.f32.gmra.mrb[0].mxu0 %v586
      %v900 = vpop.f32.mrb[0].mxu0
      %v901 = vadd.f32 %v736, %v900
      %v902 = vpop.f32.mrb[0].mxu0
      %903 = vmatprep.mubr.f32.mxu0 0.0
      %904 = vmatmul.mubr.f32.gmra.mrb[0].mxu0 %v589
      %v905 = vpop.f32.mrb[0].mxu0
      %v906 = vadd.f32 %v741, %v905
      %v907 = vpop.f32.mrb[0].mxu0
      %908 = vmatprep.mubr.f32.mxu0 0.0
      %909 = vmatmul.mubr.f32.gmra.mrb[0].mxu0 %v592
      %v910 = vpop.f32.mrb[0].mxu0
      %v911 = vadd.f32 %v746, %v910
      %v912 = vpop.f32.mrb[0].mxu0
      %913 = vmatprep.mubr.f32.mxu0 0.0
      %914 = vmatmul.mubr.f32.gmra.mrb[0].mxu0 %v595
      %v915 = vpop.f32.mrb[0].mxu0
      %v916 = vadd.f32 %v751, %v915
      %v917 = vpop.f32.mrb[0].mxu0
      %918 = vmatprep.mubr.f32.mxu0 0.0
      %919 = vmatmul.mubr.f32.gmra.mrb[0].mxu0 %v598
      %v920 = vpop.f32.mrb[0].mxu0
      %v921 = vadd.f32 %v756, %v920
      %v922 = vpop.f32.mrb[0].mxu0
      %923 = vmatprep.mubr.f32.mxu0 0.0
      %924 = vmatmul.mubr.f32.gmra.mrb[0].mxu0 %v601
      %v925 = vpop.f32.mrb[0].mxu0
      %v926 = vadd.f32 %v761, %v925
      %v927 = vpop.f32.mrb[0].mxu0
      %928 = vmatprep.mubr.f32.mxu0 0.0
      %929 = vmatmul.mubr.f32.gmra.mrb[0].mxu0 %v604
      %v930 = vpop.f32.mrb[0].mxu0
      %v931 = vadd.f32 %v766, %v930
      %v932 = vpop.f32.mrb[0].mxu0
      %933 = vmatprep.mubr.f32.mxu0 0.0
      %934 = vmatmul.mubr.f32.gmra.mrb[0].mxu0 %v607
      %v935 = vpop.f32.mrb[0].mxu0
      %v936 = vadd.f32 %v771, %v935
      %v937 = vpop.f32.mrb[0].mxu0
      %938 = vdwg.mxu0
      %v939 = vmul.f32 %v841, %v479
      %v940 = vmul.f32 %v846, %v479
      %v941 = vmul.f32 %v851, %v479
      %v942 = vmul.f32 %v856, %v479
      %v943 = vmul.f32 %v861, %v479
      %v944 = vmul.f32 %v866, %v479
      %v945 = vmul.f32 %v871, %v479
      %v946 = vmul.f32 %v876, %v479
      %v947 = vmul.f32 %v881, %v479
      %v948 = vmul.f32 %v886, %v479
      %v949 = vmul.f32 %v891, %v479
      %v950 = vmul.f32 %v896, %v479
      %v951 = vmul.f32 %v901, %v479
      %v952 = vmul.f32 %v906, %v479
      %v953 = vmul.f32 %v911, %v479
      %v954 = vmul.f32 %v916, %v479
      %v955 = vmul.f32 %v921, %v479
      %v956 = vmul.f32 %v926, %v479
      %v957 = vmul.f32 %v931, %v479
      %v958 = vmul.f32 %v936, %v479
      %v959 = vadd.f32 %v939, %v486
      %v960 = vadd.f32 %v940, %v486
      %v961 = vadd.f32 %v941, %v486
      %v962 = vadd.f32 %v942, %v486
      %v963 = vadd.f32 %v943, %v486
      %v964 = vadd.f32 %v944, %v486
      %v965 = vadd.f32 %v945, %v486
      %v966 = vadd.f32 %v946, %v486
      %v967 = vadd.f32 %v947, %v486
      %v968 = vadd.f32 %v948, %v486
      %v969 = vadd.f32 %v949, %v486
      %v970 = vadd.f32 %v950, %v486
      %v971 = vadd.f32 %v951, %v486
      %v972 = vadd.f32 %v952, %v486
      %v973 = vadd.f32 %v953, %v486
      %v974 = vadd.f32 %v954, %v486
      %v975 = vadd.f32 %v955, %v486
      %v976 = vadd.f32 %v956, %v486
      %v977 = vadd.f32 %v957, %v486
      %v978 = vadd.f32 %v958, %v486
      %v979 = vmax.f32 %v959, 0.0
      %v980 = vmax.f32 %v960, 0.0
      %v981 = vmax.f32 %v961, 0.0
      %v982 = vmax.f32 %v962, 0.0
      %v983 = vmax.f32 %v963, 0.0
      %v984 = vmax.f32 %v964, 0.0
      %v985 = vmax.f32 %v965, 0.0
      %v986 = vmax.f32 %v966, 0.0
      %v987 = vmax.f32 %v967, 0.0
      %v988 = vmax.f32 %v968, 0.0
      %v989 = vmax.f32 %v969, 0.0
      %v990 = vmax.f32 %v970, 0.0
      %v991 = vmax.f32 %v971, 0.0
      %v992 = vmax.f32 %v972, 0.0
      %v993 = vmax.f32 %v973, 0.0
      %v994 = vmax.f32 %v974, 0.0
      %v995 = vmax.f32 %v975, 0.0
      %v996 = vmax.f32 %v976, 0.0
      %v997 = vmax.f32 %v977, 0.0
      %v998 = vmax.f32 %v978, 0.0
      %v999 = vld [vmem:[%s404] sm:$0xff]
      %v1000 = vld [vmem:[%s404 + $0x8] sm:$0xff]
      %v1001 = vld [vmem:[%s404 + $0x10] sm:$0xff]
      %v1002 = vld [vmem:[%s404 + $0x18] sm:$0xff]
      %v1003 = vld [vmem:[%s404 + $0x20] sm:$0xff]
      %v1004 = vld [vmem:[%s404 + $0x28] sm:$0xff]
      %v1005 = vld [vmem:[%s404 + $0x30] sm:$0xff]
      %v1006 = vld [vmem:[%s404 + $0x38] sm:$0xff]
      %v1007 = vld [vmem:[%s404 + $0x40] sm:$0xff]
      %v1008 = vld [vmem:[%s404 + $0x48] sm:$0xff]
      %v1009 = vld [vmem:[%s404 + $0x50] sm:$0xff]
      %v1010 = vld [vmem:[%s404 + $0x58] sm:$0xff]
      %v1011 = vld [vmem:[%s404 + $0x60] sm:$0xff]
      %v1012 = vld [vmem:[%s404 + $0x68] sm:$0xff]
      %v1013 = vld [vmem:[%s404 + $0x70] sm:$0xff]
      %v1014 = vld [vmem:[%s404 + $0x78] sm:$0xff]
      %v1015 = vld [vmem:[%s404 + $0x80] sm:$0xff]
      %v1016 = vld [vmem:[%s404 + $0x88] sm:$0xff]
      %v1017 = vld [vmem:[%s404 + $0x90] sm:$0xff]
      %v1018 = vld [vmem:[%s404 + $0x98] sm:$0xff]
      %v1019 = vld [vmem:[%s404 + $0xa0] sm:$0xff]
      %v1020 = vld [vmem:[%s404 + $0xa8] sm:$0xff]
      %v1021 = vld [vmem:[%s404 + $0xb0] sm:$0xff]
      %v1022 = vld [vmem:[%s404 + $0xb8] sm:$0xff]
      %v1023 = vld [vmem:[%s404 + $0xc0] sm:$0xff]
      %v1024 = vld [vmem:[%s404 + $0xc8] sm:$0xff]
      %v1025 = vld [vmem:[%s404 + $0xd0] sm:$0xff]
      %v1026 = vld [vmem:[%s404 + $0xd8] sm:$0xff]
      %v1027 = vld [vmem:[%s404 + $0xe0] sm:$0xff]
      %v1028 = vld [vmem:[%s404 + $0xe8] sm:$0xff]
      %v1029 = vld [vmem:[%s404 + $0xf0] sm:$0xff]
      %v1030 = vld [vmem:[%s404 + $0xf8] sm:$0xff]
      %v1031 = vld [vmem:[%s404 + $0x100] sm:$0xff]
      %v1032 = vld [vmem:[%s404 + $0x108] sm:$0xff]
      %v1033 = vld [vmem:[%s404 + $0x110] sm:$0xff]
      %v1034 = vld [vmem:[%s404 + $0x118] sm:$0xff]
      %v1035 = vld [vmem:[%s404 + $0x120] sm:$0xff]
      %v1036 = vld [vmem:[%s404 + $0x128] sm:$0xff]
      %v1037 = vld [vmem:[%s404 + $0x130] sm:$0xff]
      %v1038 = vld [vmem:[%s404 + $0x138] sm:$0xff]
      %v1039 = vld [vmem:[%s404 + $0x140] sm:$0xff]
      %v1040 = vld [vmem:[%s404 + $0x148] sm:$0xff]
      %v1041 = vld [vmem:[%s404 + $0x150] sm:$0xff]
      %v1042 = vld [vmem:[%s404 + $0x158] sm:$0xff]
      %v1043 = vld [vmem:[%s404 + $0x160] sm:$0xff]
      %v1044 = vld [vmem:[%s404 + $0x168] sm:$0xff]
      %v1045 = vld [vmem:[%s404 + $0x170] sm:$0xff]
      %v1046 = vld [vmem:[%s404 + $0x178] sm:$0xff]
      %v1047 = vld [vmem:[%s404 + $0x180] sm:$0xff]
      %v1048 = vld [vmem:[%s404 + $0x188] sm:$0xff]
      %v1049 = vld [vmem:[%s404 + $0x190] sm:$0xff]
      %v1050 = vld [vmem:[%s404 + $0x198] sm:$0xff]
      %v1051 = vld [vmem:[%s404 + $0x1a0] sm:$0xff]
      %v1052 = vld [vmem:[%s404 + $0x1a8] sm:$0xff]
      %v1053 = vld [vmem:[%s404 + $0x1b0] sm:$0xff]
      %v1054 = vld [vmem:[%s404 + $0x1b8] sm:$0xff]
      %v1055 = vld [vmem:[%s404 + $0x1c0] sm:$0xff]
      %v1056 = vld [vmem:[%s404 + $0x1c8] sm:$0xff]
      %v1057 = vld [vmem:[%s404 + $0x1d0] sm:$0xff]
      %v1058 = vld [vmem:[%s404 + $0x1d8] sm:$0xff]
      %v1060 = vsel %vm548, %v1001, 0
      %v1063 = vsel %vm548, %v1004, 0
      %v1066 = vsel %vm548, %v1007, 0
      %v1069 = vsel %vm548, %v1010, 0
      %v1072 = vsel %vm548, %v1013, 0
      %v1075 = vsel %vm548, %v1016, 0
      %v1078 = vsel %vm548, %v1019, 0
      %v1081 = vsel %vm548, %v1022, 0
      %v1084 = vsel %vm548, %v1025, 0
      %v1087 = vsel %vm548, %v1028, 0
      %v1090 = vsel %vm548, %v1031, 0
      %v1093 = vsel %vm548, %v1034, 0
      %v1096 = vsel %vm548, %v1037, 0
      %v1099 = vsel %vm548, %v1040, 0
      %v1102 = vsel %vm548, %v1043, 0
      %v1105 = vsel %vm548, %v1046, 0
      %v1108 = vsel %vm548, %v1049, 0
      %v1111 = vsel %vm548, %v1052, 0
      %v1114 = vsel %vm548, %v1055, 0
      %v1117 = vsel %vm548, %v1058, 0
      %1119 = vmatprep.subr.mxu0 0.0
      %1120 = vmatpush1.msra.mxu0 %v438
      %1121 = vmatprep.subr.mxu0 0.0
      %1122 = vmatpush1.msra.mxu0 %v439
      %1123 = vmatprep.subr.mxu0 0.0
      %1124 = vmatpush1.msra.mxu0 %v440
      %1125 = vmatprep.subr.mxu0 0.0
      %1126 = vmatpush1.msra.mxu0 %v441
      %1127 = vmatprep.subr.mxu0 0.0
      %1128 = vmatpush1.msra.mxu0 %v442
      %1129 = vmatprep.subr.mxu0 0.0
      %1130 = vmatpush1.msra.mxu0 %v443
      %1131 = vmatprep.subr.mxu0 0.0
      %1132 = vmatpush1.msra.mxu0 %v444
      %1133 = vmatprep.subr.mxu0 0.0
      %1134 = vmatpush1.msra.mxu0 %v445
      %1135 = vmatprep.subr.mxu0 0.0
      %1136 = vmatpush1.msra.mxu0 %v446
      %1137 = vmatprep.subr.mxu0 0.0
      %1138 = vmatpush1.msra.mxu0 %v447
      %1139 = vmatprep.subr.mxu0 0.0
      %1140 = vmatpush1.msra.mxu0 %v448
      %1141 = vmatprep.subr.mxu0 0.0
      %1142 = vmatpush1.msra.mxu0 %v449
      %1143 = vmatprep.subr.mxu0 0.0
      %1144 = vmatpush1.msra.mxu0 %v450
      %1145 = vmatprep.subr.mxu0 0.0
      %1146 = vmatpush1.msra.mxu0 %v451
      %1147 = vmatprep.subr.mxu0 0.0
      %1148 = vmatpush1.msra.mxu0 %v452
      %1149 = vmatprep.subr.mxu0 0.0
      %1150 = vmatpush1.msra.mxu0 %v453
      %1151 = vmatprep.subr.mxu0 0.0
      %1152 = vmatpush1.msra.mxu0 %v454
      %1153 = vmatprep.subr.mxu0 0.0
      %1154 = vmatpush1.msra.mxu0 %v455
      %1155 = vmatprep.subr.mxu0 0.0
      %1156 = vmatpush1.msra.mxu0 %v456
      %1157 = vmatprep.subr.mxu0 0.0
      %1158 = vmatpush1.msra.mxu0 %v457
      %1159 = vmatprep.subr.mxu0 0.0
      %1160 = vmatpush1.msra.mxu0 %v458
      %1161 = vmatprep.subr.mxu0 0.0
      %1162 = vmatpush1.msra.mxu0 %v459
      %1163 = vmatprep.subr.mxu0 0.0
      %1164 = vmatpush1.msra.mxu0 %v460
      %1165 = vmatprep.subr.mxu0 0.0
      %1166 = vmatpush1.msra.mxu0 %v461
      %1167 = vmatprep.subr.mxu0 0.0
      %1168 = vmatpush1.msra.mxu0 %v462
      %1169 = vmatprep.subr.mxu0 0.0
      %1170 = vmatpush1.msra.mxu0 %v463
      %1171 = vmatprep.subr.mxu0 0.0
      %1172 = vmatpush1.msra.mxu0 %v464
      %1173 = vmatprep.subr.mxu0 0.0
      %1174 = vmatpush1.msra.mxu0 %v465
      %1175 = vmatprep.subr.mxu0 0.0
      %1176 = vmatpush1.msra.mxu0 %v466
      %1177 = vmatprep.subr.mxu0 0.0
      %1178 = vmatpush1.msra.mxu0 %v467
      %1179 = vmatprep.subr.mxu0 0.0
      %1180 = vmatpush1.msra.mxu0 %v468
      %1181 = vmatprep.subr.mxu0 0.0
      %1182 = vmatpush1.msra.mxu0 %v469
      %1183 = vmatprep.mubr.f32.mxu0 %v1000
      %1184 = vmatmul.mubr.f32.gmra.mrb[0].mxu0 %v999
      %v1185 = vpop.f32.mrb[0].mxu0
      %v1186 = vadd.f32 0.0, %v1185
      %v1187 = vpop.f32.mrb[0].mxu0
      %1188 = vmatprep.mubr.f32.mxu0 %v1003
      %1189 = vmatmul.mubr.f32.gmra.mrb[0].mxu0 %v1002
      %v1190 = vpop.f32.mrb[0].mxu0
      %v1191 = vadd.f32 0.0, %v1190
      %v1192 = vpop.f32.mrb[0].mxu0
      %1193 = vmatprep.mubr.f32.mxu0 %v1006
      %1194 = vmatmul.mubr.f32.gmra.mrb[0].mxu0 %v1005
      %v1195 = vpop.f32.mrb[0].mxu0
      %v1196 = vadd.f32 0.0, %v1195
      %v1197 = vpop.f32.mrb[0].mxu0
      %1198 = vmatprep.mubr.f32.mxu0 %v1009
      %1199 = vmatmul.mubr.f32.gmra.mrb[0].mxu0 %v1008
      %v1200 = vpop.f32.mrb[0].mxu0
      %v1201 = vadd.f32 0.0, %v1200
      %v1202 = vpop.f32.mrb[0].mxu0
      %1203 = vmatprep.mubr.f32.mxu0 %v1012
      %1204 = vmatmul.mubr.f32.gmra.mrb[0].mxu0 %v1011
      %v1205 = vpop.f32.mrb[0].mxu0
      %v1206 = vadd.f32 0.0, %v1205
      %v1207 = vpop.f32.mrb[0].mxu0
      %1208 = vmatprep.mubr.f32.mxu0 %v1015
      %1209 = vmatmul.mubr.f32.gmra.mrb[0].mxu0 %v1014
      %v1210 = vpop.f32.mrb[0].mxu0
      %v1211 = vadd.f32 0.0, %v1210
      %v1212 = vpop.f32.mrb[0].mxu0
      %1213 = vmatprep.mubr.f32.mxu0 %v1018
      %1214 = vmatmul.mubr.f32.gmra.mrb[0].mxu0 %v1017
      %v1215 = vpop.f32.mrb[0].mxu0
      %v1216 = vadd.f32 0.0, %v1215
      %v1217 = vpop.f32.mrb[0].mxu0
      %1218 = vmatprep.mubr.f32.mxu0 %v1021
      %1219 = vmatmul.mubr.f32.gmra.mrb[0].mxu0 %v1020
      %v1220 = vpop.f32.mrb[0].mxu0
      %v1221 = vadd.f32 0.0, %v1220
      %v1222 = vpop.f32.mrb[0].mxu0
      %1223 = vmatprep.mubr.f32.mxu0 %v1024
      %1224 = vmatmul.mubr.f32.gmra.mrb[0].mxu0 %v1023
      %v1225 = vpop.f32.mrb[0].mxu0
      %v1226 = vadd.f32 0.0, %v1225
      %v1227 = vpop.f32.mrb[0].mxu0
      %1228 = vmatprep.mubr.f32.mxu0 %v1027
      %1229 = vmatmul.mubr.f32.gmra.mrb[0].mxu0 %v1026
      %v1230 = vpop.f32.mrb[0].mxu0
      %v1231 = vadd.f32 0.0, %v1230
      %v1232 = vpop.f32.mrb[0].mxu0
      %1233 = vmatprep.mubr.f32.mxu0 %v1030
      %1234 = vmatmul.mubr.f32.gmra.mrb[0].mxu0 %v1029
      %v1235 = vpop.f32.mrb[0].mxu0
      %v1236 = vadd.f32 0.0, %v1235
      %v1237 = vpop.f32.mrb[0].mxu0
      %1238 = vmatprep.mubr.f32.mxu0 %v1033
      %1239 = vmatmul.mubr.f32.gmra.mrb[0].mxu0 %v1032
      %v1240 = vpop.f32.mrb[0].mxu0
      %v1241 = vadd.f32 0.0, %v1240
      %v1242 = vpop.f32.mrb[0].mxu0
      %1243 = vmatprep.mubr.f32.mxu0 %v1036
      %1244 = vmatmul.mubr.f32.gmra.mrb[0].mxu0 %v1035
      %v1245 = vpop.f32.mrb[0].mxu0
      %v1246 = vadd.f32 0.0, %v1245
      %v1247 = vpop.f32.mrb[0].mxu0
      %1248 = vmatprep.mubr.f32.mxu0 %v1039
      %1249 = vmatmul.mubr.f32.gmra.mrb[0].mxu0 %v1038
      %v1250 = vpop.f32.mrb[0].mxu0
      %v1251 = vadd.f32 0.0, %v1250
      %v1252 = vpop.f32.mrb[0].mxu0
      %1253 = vmatprep.mubr.f32.mxu0 %v1042
      %1254 = vmatmul.mubr.f32.gmra.mrb[0].mxu0 %v1041
      %v1255 = vpop.f32.mrb[0].mxu0
      %v1256 = vadd.f32 0.0, %v1255
      %v1257 = vpop.f32.mrb[0].mxu0
      %1258 = vmatprep.mubr.f32.mxu0 %v1045
      %1259 = vmatmul.mubr.f32.gmra.mrb[0].mxu0 %v1044
      %v1260 = vpop.f32.mrb[0].mxu0
      %v1261 = vadd.f32 0.0, %v1260
      %v1262 = vpop.f32.mrb[0].mxu0
      %1263 = vmatprep.mubr.f32.mxu0 %v1048
      %1264 = vmatmul.mubr.f32.gmra.mrb[0].mxu0 %v1047
      %v1265 = vpop.f32.mrb[0].mxu0
      %v1266 = vadd.f32 0.0, %v1265
      %v1267 = vpop.f32.mrb[0].mxu0
      %1268 = vmatprep.mubr.f32.mxu0 %v1051
      %1269 = vmatmul.mubr.f32.gmra.mrb[0].mxu0 %v1050
      %v1270 = vpop.f32.mrb[0].mxu0
      %v1271 = vadd.f32 0.0, %v1270
      %v1272 = vpop.f32.mrb[0].mxu0
      %1273 = vmatprep.mubr.f32.mxu0 %v1054
      %1274 = vmatmul.mubr.f32.gmra.mrb[0].mxu0 %v1053
      %v1275 = vpop.f32.mrb[0].mxu0
      %v1276 = vadd.f32 0.0, %v1275
      %v1277 = vpop.f32.mrb[0].mxu0
      %1278 = vmatprep.mubr.f32.mxu0 %v1057
      %1279 = vmatmul.mubr.f32.gmra.mrb[0].mxu0 %v1056
      %v1280 = vpop.f32.mrb[0].mxu0
      %v1281 = vadd.f32 0.0, %v1280
      %v1282 = vpop.f32.mrb[0].mxu0
      %1283 = vdwg.mxu0
      %1284 = vmatprep.subr.mxu0 0.0
      %1285 = vmatpush1.msra.mxu0 %v470
      %1286 = vmatprep.subr.mxu0 0.0
      %1287 = vmatpush1.msra.mxu0 %v471
      %1288 = vmatprep.subr.mxu0 0.0
      %1289 = vmatpush1.msra.mxu0 %v472
      %1290 = vmatprep.subr.mxu0 0.0
      %1291 = vmatpush1.msra.mxu0 %v473
      %1292 = vmatprep.subr.mxu0 0.0
      %1293 = vmatpush1.msra.mxu0 0.0
      %1294 = vmatprep.subr.mxu0 0.0
      %1295 = vmatpush1.msra.mxu0 0.0
      %1296 = vmatprep.subr.mxu0 0.0
      %1297 = vmatpush1.msra.mxu0 0.0
      %1298 = vmatprep.subr.mxu0 0.0
      %1299 = vmatpush1.msra.mxu0 0.0
      %1300 = vmatprep.subr.mxu0 0.0
      %1301 = vmatpush1.msra.mxu0 0.0
      %1302 = vmatprep.subr.mxu0 0.0
      %1303 = vmatpush1.msra.mxu0 0.0
      %1304 = vmatprep.subr.mxu0 0.0
      %1305 = vmatpush1.msra.mxu0 0.0
      %1306 = vmatprep.subr.mxu0 0.0
      %1307 = vmatpush1.msra.mxu0 0.0
      %1308 = vmatprep.subr.mxu0 0.0
      %1309 = vmatpush1.msra.mxu0 0.0
      %1310 = vmatprep.subr.mxu0 0.0
      %1311 = vmatpush1.msra.mxu0 0.0
      %1312 = vmatprep.subr.mxu0 0.0
      %1313 = vmatpush1.msra.mxu0 0.0
      %1314 = vmatprep.subr.mxu0 0.0
      %1315 = vmatpush1.msra.mxu0 0.0
      %1316 = vmatprep.subr.mxu0 0.0
      %1317 = vmatpush1.msra.mxu0 0.0
      %1318 = vmatprep.subr.mxu0 0.0
      %1319 = vmatpush1.msra.mxu0 0.0
      %1320 = vmatprep.subr.mxu0 0.0
      %1321 = vmatpush1.msra.mxu0 0.0
      %1322 = vmatprep.subr.mxu0 0.0
      %1323 = vmatpush1.msra.mxu0 0.0
      %1324 = vmatprep.subr.mxu0 0.0
      %1325 = vmatpush1.msra.mxu0 0.0
      %1326 = vmatprep.subr.mxu0 0.0
      %1327 = vmatpush1.msra.mxu0 0.0
      %1328 = vmatprep.subr.mxu0 0.0
      %1329 = vmatpush1.msra.mxu0 0.0
      %1330 = vmatprep.subr.mxu0 0.0
      %1331 = vmatpush1.msra.mxu0 0.0
      %1332 = vmatprep.subr.mxu0 0.0
      %1333 = vmatpush1.msra.mxu0 0.0
      %1334 = vmatprep.subr.mxu0 0.0
      %1335 = vmatpush1.msra.mxu0 0.0
      %1336 = vmatprep.subr.mxu0 0.0
      %1337 = vmatpush1.msra.mxu0 0.0
      %1338 = vmatprep.subr.mxu0 0.0
      %1339 = vmatpush1.msra.mxu0 0.0
      %1340 = vmatprep.subr.mxu0 0.0
      %1341 = vmatpush1.msra.mxu0 0.0
      %1342 = vmatprep.subr.mxu0 0.0
      %1343 = vmatpush1.msra.mxu0 0.0
      %1344 = vmatprep.subr.mxu0 0.0
      %1345 = vmatpush1.msra.mxu0 0.0
      %1346 = vmatprep.subr.mxu0 0.0
      %1347 = vmatpush1.msra.mxu0 0.0
      %1348 = vmatprep.mubr.f32.mxu0 0.0
      %1349 = vmatmul.mubr.f32.gmra.mrb[0].mxu0 %v1060
      %v1350 = vpop.f32.mrb[0].mxu0
      %v1351 = vadd.f32 %v1186, %v1350
      %v1352 = vpop.f32.mrb[0].mxu0
      %1353 = vmatprep.mubr.f32.mxu0 0.0
      %1354 = vmatmul.mubr.f32.gmra.mrb[0].mxu0 %v1063
      %v1355 = vpop.f32.mrb[0].mxu0
      %v1356 = vadd.f32 %v1191, %v1355
      %v1357 = vpop.f32.mrb[0].mxu0
      %1358 = vmatprep.mubr.f32.mxu0 0.0
      %1359 = vmatmul.mubr.f32.gmra.mrb[0].mxu0 %v1066
      %v1360 = vpop.f32.mrb[0].mxu0
      %v1361 = vadd.f32 %v1196, %v1360
      %v1362 = vpop.f32.mrb[0].mxu0
      %1363 = vmatprep.mubr.f32.mxu0 0.0
      %1364 = vmatmul.mubr.f32.gmra.mrb[0].mxu0 %v1069
      %v1365 = vpop.f32.mrb[0].mxu0
      %v1366 = vadd.f32 %v1201, %v1365
      %v1367 = vpop.f32.mrb[0].mxu0
      %1368 = vmatprep.mubr.f32.mxu0 0.0
      %1369 = vmatmul.mubr.f32.gmra.mrb[0].mxu0 %v1072
      %v1370 = vpop.f32.mrb[0].mxu0
      %v1371 = vadd.f32 %v1206, %v1370
      %v1372 = vpop.f32.mrb[0].mxu0
      %1373 = vmatprep.mubr.f32.mxu0 0.0
      %1374 = vmatmul.mubr.f32.gmra.mrb[0].mxu0 %v1075
      %v1375 = vpop.f32.mrb[0].mxu0
      %v1376 = vadd.f32 %v1211, %v1375
      %v1377 = vpop.f32.mrb[0].mxu0
      %1378 = vmatprep.mubr.f32.mxu0 0.0
      %1379 = vmatmul.mubr.f32.gmra.mrb[0].mxu0 %v1078
      %v1380 = vpop.f32.mrb[0].mxu0
      %v1381 = vadd.f32 %v1216, %v1380
      %v1382 = vpop.f32.mrb[0].mxu0
      %1383 = vmatprep.mubr.f32.mxu0 0.0
      %1384 = vmatmul.mubr.f32.gmra.mrb[0].mxu0 %v1081
      %v1385 = vpop.f32.mrb[0].mxu0
      %v1386 = vadd.f32 %v1221, %v1385
      %v1387 = vpop.f32.mrb[0].mxu0
      %1388 = vmatprep.mubr.f32.mxu0 0.0
      %1389 = vmatmul.mubr.f32.gmra.mrb[0].mxu0 %v1084
      %v1390 = vpop.f32.mrb[0].mxu0
      %v1391 = vadd.f32 %v1226, %v1390
      %v1392 = vpop.f32.mrb[0].mxu0
      %1393 = vmatprep.mubr.f32.mxu0 0.0
      %1394 = vmatmul.mubr.f32.gmra.mrb[0].mxu0 %v1087
      %v1395 = vpop.f32.mrb[0].mxu0
      %v1396 = vadd.f32 %v1231, %v1395
      %v1397 = vpop.f32.mrb[0].mxu0
      %1398 = vmatprep.mubr.f32.mxu0 0.0
      %1399 = vmatmul.mubr.f32.gmra.mrb[0].mxu0 %v1090
      %v1400 = vpop.f32.mrb[0].mxu0
      %v1401 = vadd.f32 %v1236, %v1400
      %v1402 = vpop.f32.mrb[0].mxu0
      %1403 = vmatprep.mubr.f32.mxu0 0.0
      %1404 = vmatmul.mubr.f32.gmra.mrb[0].mxu0 %v1093
      %v1405 = vpop.f32.mrb[0].mxu0
      %v1406 = vadd.f32 %v1241, %v1405
      %v1407 = vpop.f32.mrb[0].mxu0
      %1408 = vmatprep.mubr.f32.mxu0 0.0
      %1409 = vmatmul.mubr.f32.gmra.mrb[0].mxu0 %v1096
      %v1410 = vpop.f32.mrb[0].mxu0
      %v1411 = vadd.f32 %v1246, %v1410
      %v1412 = vpop.f32.mrb[0].mxu0
      %1413 = vmatprep.mubr.f32.mxu0 0.0
      %1414 = vmatmul.mubr.f32.gmra.mrb[0].mxu0 %v1099
      %v1415 = vpop.f32.mrb[0].mxu0
      %v1416 = vadd.f32 %v1251, %v1415
      %v1417 = vpop.f32.mrb[0].mxu0
      %1418 = vmatprep.mubr.f32.mxu0 0.0
      %1419 = vmatmul.mubr.f32.gmra.mrb[0].mxu0 %v1102
      %v1420 = vpop.f32.mrb[0].mxu0
      %v1421 = vadd.f32 %v1256, %v1420
      %v1422 = vpop.f32.mrb[0].mxu0
      %1423 = vmatprep.mubr.f32.mxu0 0.0
      %1424 = vmatmul.mubr.f32.gmra.mrb[0].mxu0 %v1105
      %v1425 = vpop.f32.mrb[0].mxu0
      %v1426 = vadd.f32 %v1261, %v1425
      %v1427 = vpop.f32.mrb[0].mxu0
      %1428 = vmatprep.mubr.f32.mxu0 0.0
      %1429 = vmatmul.mubr.f32.gmra.mrb[0].mxu0 %v1108
      %v1430 = vpop.f32.mrb[0].mxu0
      %v1431 = vadd.f32 %v1266, %v1430
      %v1432 = vpop.f32.mrb[0].mxu0
      %1433 = vmatprep.mubr.f32.mxu0 0.0
      %1434 = vmatmul.mubr.f32.gmra.mrb[0].mxu0 %v1111
      %v1435 = vpop.f32.mrb[0].mxu0
      %v1436 = vadd.f32 %v1271, %v1435
      %v1437 = vpop.f32.mrb[0].mxu0
      %1438 = vmatprep.mubr.f32.mxu0 0.0
      %1439 = vmatmul.mubr.f32.gmra.mrb[0].mxu0 %v1114
      %v1440 = vpop.f32.mrb[0].mxu0
      %v1441 = vadd.f32 %v1276, %v1440
      %v1442 = vpop.f32.mrb[0].mxu0
      %1443 = vmatprep.mubr.f32.mxu0 0.0
      %1444 = vmatmul.mubr.f32.gmra.mrb[0].mxu0 %v1117
      %v1445 = vpop.f32.mrb[0].mxu0
      %v1446 = vadd.f32 %v1281, %v1445
      %v1447 = vpop.f32.mrb[0].mxu0
      %1448 = vdwg.mxu0
      %v1449 = vmul.f32 %v1351, %v479
      %v1450 = vmul.f32 %v1356, %v479
      %v1451 = vmul.f32 %v1361, %v479
      %v1452 = vmul.f32 %v1366, %v479
      %v1453 = vmul.f32 %v1371, %v479
      %v1454 = vmul.f32 %v1376, %v479
      %v1455 = vmul.f32 %v1381, %v479
      %v1456 = vmul.f32 %v1386, %v479
      %v1457 = vmul.f32 %v1391, %v479
      %v1458 = vmul.f32 %v1396, %v479
      %v1459 = vmul.f32 %v1401, %v479
      %v1460 = vmul.f32 %v1406, %v479
      %v1461 = vmul.f32 %v1411, %v479
      %v1462 = vmul.f32 %v1416, %v479
      %v1463 = vmul.f32 %v1421, %v479
      %v1464 = vmul.f32 %v1426, %v479
      %v1465 = vmul.f32 %v1431, %v479
      %v1466 = vmul.f32 %v1436, %v479
      %v1467 = vmul.f32 %v1441, %v479
      %v1468 = vmul.f32 %v1446, %v479
      %v1469 = vadd.f32 %v1449, %v486
      %v1470 = vadd.f32 %v1450, %v486
      %v1471 = vadd.f32 %v1451, %v486
      %v1472 = vadd.f32 %v1452, %v486
      %v1473 = vadd.f32 %v1453, %v486
      %v1474 = vadd.f32 %v1454, %v486
      %v1475 = vadd.f32 %v1455, %v486
      %v1476 = vadd.f32 %v1456, %v486
      %v1477 = vadd.f32 %v1457, %v486
      %v1478 = vadd.f32 %v1458, %v486
      %v1479 = vadd.f32 %v1459, %v486
      %v1480 = vadd.f32 %v1460, %v486
      %v1481 = vadd.f32 %v1461, %v486
      %v1482 = vadd.f32 %v1462, %v486
      %v1483 = vadd.f32 %v1463, %v486
      %v1484 = vadd.f32 %v1464, %v486
      %v1485 = vadd.f32 %v1465, %v486
      %v1486 = vadd.f32 %v1466, %v486
      %v1487 = vadd.f32 %v1467, %v486
      %v1488 = vadd.f32 %v1468, %v486
      %v1489 = vmax.f32 %v1469, 0.0
      %v1490 = vmax.f32 %v1470, 0.0
      %v1491 = vmax.f32 %v1471, 0.0
      %v1492 = vmax.f32 %v1472, 0.0
      %v1493 = vmax.f32 %v1473, 0.0
      %v1494 = vmax.f32 %v1474, 0.0
      %v1495 = vmax.f32 %v1475, 0.0
      %v1496 = vmax.f32 %v1476, 0.0
      %v1497 = vmax.f32 %v1477, 0.0
      %v1498 = vmax.f32 %v1478, 0.0
      %v1499 = vmax.f32 %v1479, 0.0
      %v1500 = vmax.f32 %v1480, 0.0
      %v1501 = vmax.f32 %v1481, 0.0
      %v1502 = vmax.f32 %v1482, 0.0
      %v1503 = vmax.f32 %v1483, 0.0
      %v1504 = vmax.f32 %v1484, 0.0
      %v1505 = vmax.f32 %v1485, 0.0
      %v1506 = vmax.f32 %v1486, 0.0
      %v1507 = vmax.f32 %v1487, 0.0
      %v1508 = vmax.f32 %v1488, 0.0
      %v1509 = vmax.f32 %v979, %v1489
      %v1510 = vmax.f32 %v980, %v1490
      %v1511 = vmax.f32 %v981, %v1491
      %v1512 = vmax.f32 %v982, %v1492
      %v1513 = vmax.f32 %v983, %v1493
      %v1514 = vmax.f32 %v984, %v1494
      %v1515 = vmax.f32 %v985, %v1495
      %v1516 = vmax.f32 %v986, %v1496
      %v1517 = vmax.f32 %v987, %v1497
      %v1518 = vmax.f32 %v988, %v1498
      %v1519 = vmax.f32 %v989, %v1499
      %v1520 = vmax.f32 %v990, %v1500
      %v1521 = vmax.f32 %v991, %v1501
      %v1522 = vmax.f32 %v992, %v1502
      %v1523 = vmax.f32 %v993, %v1503
      %v1524 = vmax.f32 %v994, %v1504
      %v1525 = vmax.f32 %v995, %v1505
      %v1526 = vmax.f32 %v996, %v1506
      %v1527 = vmax.f32 %v997, %v1507
      %v1528 = vmax.f32 %v998, %v1508
      %v1529 = vld [vmem:[%s415] sm:$0xff]
      %v1530 = vld [vmem:[%s415 + $0x8] sm:$0xff]
      %v1531 = vld [vmem:[%s415 + $0x10] sm:$0xff]
      %v1532 = vld [vmem:[%s415 + $0x18] sm:$0xff]
      %v1533 = vld [vmem:[%s415 + $0x20] sm:$0xff]
      %v1534 = vld [vmem:[%s415 + $0x28] sm:$0xff]
      %v1535 = vld [vmem:[%s415 + $0x30] sm:$0xff]
      %v1536 = vld [vmem:[%s415 + $0x38] sm:$0xff]
      %v1537 = vld [vmem:[%s415 + $0x40] sm:$0xff]
      %v1538 = vld [vmem:[%s415 + $0x48] sm:$0xff]
      %v1539 = vld [vmem:[%s415 + $0x50] sm:$0xff]
      %v1540 = vld [vmem:[%s415 + $0x58] sm:$0xff]
      %v1541 = vld [vmem:[%s415 + $0x60] sm:$0xff]
      %v1542 = vld [vmem:[%s415 + $0x68] sm:$0xff]
      %v1543 = vld [vmem:[%s415 + $0x70] sm:$0xff]
      %v1544 = vld [vmem:[%s415 + $0x78] sm:$0xff]
      %v1545 = vld [vmem:[%s415 + $0x80] sm:$0xff]
      %v1546 = vld [vmem:[%s415 + $0x88] sm:$0xff]
      %v1547 = vld [vmem:[%s415 + $0x90] sm:$0xff]
      %v1548 = vld [vmem:[%s415 + $0x98] sm:$0xff]
      %v1549 = vld [vmem:[%s415 + $0xa0] sm:$0xff]
      %v1550 = vld [vmem:[%s415 + $0xa8] sm:$0xff]
      %v1551 = vld [vmem:[%s415 + $0xb0] sm:$0xff]
      %v1552 = vld [vmem:[%s415 + $0xb8] sm:$0xff]
      %v1553 = vld [vmem:[%s415 + $0xc0] sm:$0xff]
      %v1554 = vld [vmem:[%s415 + $0xc8] sm:$0xff]
      %v1555 = vld [vmem:[%s415 + $0xd0] sm:$0xff]
      %v1556 = vld [vmem:[%s415 + $0xd8] sm:$0xff]
      %v1557 = vld [vmem:[%s415 + $0xe0] sm:$0xff]
      %v1558 = vld [vmem:[%s415 + $0xe8] sm:$0xff]
      %v1559 = vld [vmem:[%s415 + $0xf0] sm:$0xff]
      %v1560 = vld [vmem:[%s415 + $0xf8] sm:$0xff]
      %v1561 = vld [vmem:[%s415 + $0x100] sm:$0xff]
      %v1562 = vld [vmem:[%s415 + $0x108] sm:$0xff]
      %v1563 = vld [vmem:[%s415 + $0x110] sm:$0xff]
      %v1564 = vld [vmem:[%s415 + $0x118] sm:$0xff]
      %v1565 = vld [vmem:[%s415 + $0x120] sm:$0xff]
      %v1566 = vld [vmem:[%s415 + $0x128] sm:$0xff]
      %v1567 = vld [vmem:[%s415 + $0x130] sm:$0xff]
      %v1568 = vld [vmem:[%s415 + $0x138] sm:$0xff]
      %v1569 = vld [vmem:[%s415 + $0x140] sm:$0xff]
      %v1570 = vld [vmem:[%s415 + $0x148] sm:$0xff]
      %v1571 = vld [vmem:[%s415 + $0x150] sm:$0xff]
      %v1572 = vld [vmem:[%s415 + $0x158] sm:$0xff]
      %v1573 = vld [vmem:[%s415 + $0x160] sm:$0xff]
      %v1574 = vld [vmem:[%s415 + $0x168] sm:$0xff]
      %v1575 = vld [vmem:[%s415 + $0x170] sm:$0xff]
      %v1576 = vld [vmem:[%s415 + $0x178] sm:$0xff]
      %v1577 = vld [vmem:[%s415 + $0x180] sm:$0xff]
      %v1578 = vld [vmem:[%s415 + $0x188] sm:$0xff]
      %v1579 = vld [vmem:[%s415 + $0x190] sm:$0xff]
      %v1580 = vld [vmem:[%s415 + $0x198] sm:$0xff]
      %v1581 = vld [vmem:[%s415 + $0x1a0] sm:$0xff]
      %v1582 = vld [vmem:[%s415 + $0x1a8] sm:$0xff]
      %v1583 = vld [vmem:[%s415 + $0x1b0] sm:$0xff]
      %v1584 = vld [vmem:[%s415 + $0x1b8] sm:$0xff]
      %v1585 = vld [vmem:[%s415 + $0x1c0] sm:$0xff]
      %v1586 = vld [vmem:[%s415 + $0x1c8] sm:$0xff]
      %v1587 = vld [vmem:[%s415 + $0x1d0] sm:$0xff]
      %v1588 = vld [vmem:[%s415 + $0x1d8] sm:$0xff]
      %v1590 = vsel %vm548, %v1531, 0
      %v1593 = vsel %vm548, %v1534, 0
      %v1596 = vsel %vm548, %v1537, 0
      %v1599 = vsel %vm548, %v1540, 0
      %v1602 = vsel %vm548, %v1543, 0
      %v1605 = vsel %vm548, %v1546, 0
      %v1608 = vsel %vm548, %v1549, 0
      %v1611 = vsel %vm548, %v1552, 0
      %v1614 = vsel %vm548, %v1555, 0
      %v1617 = vsel %vm548, %v1558, 0
      %v1620 = vsel %vm548, %v1561, 0
      %v1623 = vsel %vm548, %v1564, 0
      %v1626 = vsel %vm548, %v1567, 0
      %v1629 = vsel %vm548, %v1570, 0
      %v1632 = vsel %vm548, %v1573, 0
      %v1635 = vsel %vm548, %v1576, 0
      %v1638 = vsel %vm548, %v1579, 0
      %v1641 = vsel %vm548, %v1582, 0
      %v1644 = vsel %vm548, %v1585, 0
      %v1647 = vsel %vm548, %v1588, 0
      %1649 = vmatprep.subr.mxu0 0.0
      %1650 = vmatpush1.msra.mxu0 %v438
      %1651 = vmatprep.subr.mxu0 0.0
      %1652 = vmatpush1.msra.mxu0 %v439
      %1653 = vmatprep.subr.mxu0 0.0
      %1654 = vmatpush1.msra.mxu0 %v440
      %1655 = vmatprep.subr.mxu0 0.0
      %1656 = vmatpush1.msra.mxu0 %v441
      %1657 = vmatprep.subr.mxu0 0.0
      %1658 = vmatpush1.msra.mxu0 %v442
      %1659 = vmatprep.subr.mxu0 0.0
      %1660 = vmatpush1.msra.mxu0 %v443
      %1661 = vmatprep.subr.mxu0 0.0
      %1662 = vmatpush1.msra.mxu0 %v444
      %1663 = vmatprep.subr.mxu0 0.0
      %1664 = vmatpush1.msra.mxu0 %v445
      %1665 = vmatprep.subr.mxu0 0.0
      %1666 = vmatpush1.msra.mxu0 %v446
      %1667 = vmatprep.subr.mxu0 0.0
      %1668 = vmatpush1.msra.mxu0 %v447
      %1669 = vmatprep.subr.mxu0 0.0
      %1670 = vmatpush1.msra.mxu0 %v448
      %1671 = vmatprep.subr.mxu0 0.0
      %1672 = vmatpush1.msra.mxu0 %v449
      %1673 = vmatprep.subr.mxu0 0.0
      %1674 = vmatpush1.msra.mxu0 %v450
      %1675 = vmatprep.subr.mxu0 0.0
      %1676 = vmatpush1.msra.mxu0 %v451
      %1677 = vmatprep.subr.mxu0 0.0
      %1678 = vmatpush1.msra.mxu0 %v452
      %1679 = vmatprep.subr.mxu0 0.0
      %1680 = vmatpush1.msra.mxu0 %v453
      %1681 = vmatprep.subr.mxu0 0.0
      %1682 = vmatpush1.msra.mxu0 %v454
      %1683 = vmatprep.subr.mxu0 0.0
      %1684 = vmatpush1.msra.mxu0 %v455
      %1685 = vmatprep.subr.mxu0 0.0
      %1686 = vmatpush1.msra.mxu0 %v456
      %1687 = vmatprep.subr.mxu0 0.0
      %1688 = vmatpush1.msra.mxu0 %v457
      %1689 = vmatprep.subr.mxu0 0.0
      %1690 = vmatpush1.msra.mxu0 %v458
      %1691 = vmatprep.subr.mxu0 0.0
      %1692 = vmatpush1.msra.mxu0 %v459
      %1693 = vmatprep.subr.mxu0 0.0
      %1694 = vmatpush1.msra.mxu0 %v460
      %1695 = vmatprep.subr.mxu0 0.0
      %1696 = vmatpush1.msra.mxu0 %v461
      %1697 = vmatprep.subr.mxu0 0.0
      %1698 = vmatpush1.msra.mxu0 %v462
      %1699 = vmatprep.subr.mxu0 0.0
      %1700 = vmatpush1.msra.mxu0 %v463
      %1701 = vmatprep.subr.mxu0 0.0
      %1702 = vmatpush1.msra.mxu0 %v464
      %1703 = vmatprep.subr.mxu0 0.0
      %1704 = vmatpush1.msra.mxu0 %v465
      %1705 = vmatprep.subr.mxu0 0.0
      %1706 = vmatpush1.msra.mxu0 %v466
      %1707 = vmatprep.subr.mxu0 0.0
      %1708 = vmatpush1.msra.mxu0 %v467
      %1709 = vmatprep.subr.mxu0 0.0
      %1710 = vmatpush1.msra.mxu0 %v468
      %1711 = vmatprep.subr.mxu0 0.0
      %1712 = vmatpush1.msra.mxu0 %v469
      %1713 = vmatprep.mubr.f32.mxu0 %v1530
      %1714 = vmatmul.mubr.f32.gmra.mrb[0].mxu0 %v1529
      %v1715 = vpop.f32.mrb[0].mxu0
      %v1716 = vadd.f32 0.0, %v1715
      %v1717 = vpop.f32.mrb[0].mxu0
      %1718 = vmatprep.mubr.f32.mxu0 %v1533
      %1719 = vmatmul.mubr.f32.gmra.mrb[0].mxu0 %v1532
      %v1720 = vpop.f32.mrb[0].mxu0
      %v1721 = vadd.f32 0.0, %v1720
      %v1722 = vpop.f32.mrb[0].mxu0
      %1723 = vmatprep.mubr.f32.mxu0 %v1536
      %1724 = vmatmul.mubr.f32.gmra.mrb[0].mxu0 %v1535
      %v1725 = vpop.f32.mrb[0].mxu0
      %v1726 = vadd.f32 0.0, %v1725
      %v1727 = vpop.f32.mrb[0].mxu0
      %1728 = vmatprep.mubr.f32.mxu0 %v1539
      %1729 = vmatmul.mubr.f32.gmra.mrb[0].mxu0 %v1538
      %v1730 = vpop.f32.mrb[0].mxu0
      %v1731 = vadd.f32 0.0, %v1730
      %v1732 = vpop.f32.mrb[0].mxu0
      %1733 = vmatprep.mubr.f32.mxu0 %v1542
      %1734 = vmatmul.mubr.f32.gmra.mrb[0].mxu0 %v1541
      %v1735 = vpop.f32.mrb[0].mxu0
      %v1736 = vadd.f32 0.0, %v1735
      %v1737 = vpop.f32.mrb[0].mxu0
      %1738 = vmatprep.mubr.f32.mxu0 %v1545
      %1739 = vmatmul.mubr.f32.gmra.mrb[0].mxu0 %v1544
      %v1740 = vpop.f32.mrb[0].mxu0
      %v1741 = vadd.f32 0.0, %v1740
      %v1742 = vpop.f32.mrb[0].mxu0
      %1743 = vmatprep.mubr.f32.mxu0 %v1548
      %1744 = vmatmul.mubr.f32.gmra.mrb[0].mxu0 %v1547
      %v1745 = vpop.f32.mrb[0].mxu0
      %v1746 = vadd.f32 0.0, %v1745
      %v1747 = vpop.f32.mrb[0].mxu0
      %1748 = vmatprep.mubr.f32.mxu0 %v1551
      %1749 = vmatmul.mubr.f32.gmra.mrb[0].mxu0 %v1550
      %v1750 = vpop.f32.mrb[0].mxu0
      %v1751 = vadd.f32 0.0, %v1750
      %v1752 = vpop.f32.mrb[0].mxu0
      %1753 = vmatprep.mubr.f32.mxu0 %v1554
      %1754 = vmatmul.mubr.f32.gmra.mrb[0].mxu0 %v1553
      %v1755 = vpop.f32.mrb[0].mxu0
      %v1756 = vadd.f32 0.0, %v1755
      %v1757 = vpop.f32.mrb[0].mxu0
      %1758 = vmatprep.mubr.f32.mxu0 %v1557
      %1759 = vmatmul.mubr.f32.gmra.mrb[0].mxu0 %v1556
      %v1760 = vpop.f32.mrb[0].mxu0
      %v1761 = vadd.f32 0.0, %v1760
      %v1762 = vpop.f32.mrb[0].mxu0
      %1763 = vmatprep.mubr.f32.mxu0 %v1560
      %1764 = vmatmul.mubr.f32.gmra.mrb[0].mxu0 %v1559
      %v1765 = vpop.f32.mrb[0].mxu0
      %v1766 = vadd.f32 0.0, %v1765
      %v1767 = vpop.f32.mrb[0].mxu0
      %1768 = vmatprep.mubr.f32.mxu0 %v1563
      %1769 = vmatmul.mubr.f32.gmra.mrb[0].mxu0 %v1562
      %v1770 = vpop.f32.mrb[0].mxu0
      %v1771 = vadd.f32 0.0, %v1770
      %v1772 = vpop.f32.mrb[0].mxu0
      %1773 = vmatprep.mubr.f32.mxu0 %v1566
      %1774 = vmatmul.mubr.f32.gmra.mrb[0].mxu0 %v1565
      %v1775 = vpop.f32.mrb[0].mxu0
      %v1776 = vadd.f32 0.0, %v1775
      %v1777 = vpop.f32.mrb[0].mxu0
      %1778 = vmatprep.mubr.f32.mxu0 %v1569
      %1779 = vmatmul.mubr.f32.gmra.mrb[0].mxu0 %v1568
      %v1780 = vpop.f32.mrb[0].mxu0
      %v1781 = vadd.f32 0.0, %v1780
      %v1782 = vpop.f32.mrb[0].mxu0
      %1783 = vmatprep.mubr.f32.mxu0 %v1572
      %1784 = vmatmul.mubr.f32.gmra.mrb[0].mxu0 %v1571
      %v1785 = vpop.f32.mrb[0].mxu0
      %v1786 = vadd.f32 0.0, %v1785
      %v1787 = vpop.f32.mrb[0].mxu0
      %1788 = vmatprep.mubr.f32.mxu0 %v1575
      %1789 = vmatmul.mubr.f32.gmra.mrb[0].mxu0 %v1574
      %v1790 = vpop.f32.mrb[0].mxu0
      %v1791 = vadd.f32 0.0, %v1790
      %v1792 = vpop.f32.mrb[0].mxu0
      %1793 = vmatprep.mubr.f32.mxu0 %v1578
      %1794 = vmatmul.mubr.f32.gmra.mrb[0].mxu0 %v1577
      %v1795 = vpop.f32.mrb[0].mxu0
      %v1796 = vadd.f32 0.0, %v1795
      %v1797 = vpop.f32.mrb[0].mxu0
      %1798 = vmatprep.mubr.f32.mxu0 %v1581
      %1799 = vmatmul.mubr.f32.gmra.mrb[0].mxu0 %v1580
      %v1800 = vpop.f32.mrb[0].mxu0
      %v1801 = vadd.f32 0.0, %v1800
      %v1802 = vpop.f32.mrb[0].mxu0
      %1803 = vmatprep.mubr.f32.mxu0 %v1584
      %1804 = vmatmul.mubr.f32.gmra.mrb[0].mxu0 %v1583
      %v1805 = vpop.f32.mrb[0].mxu0
      %v1806 = vadd.f32 0.0, %v1805
      %v1807 = vpop.f32.mrb[0].mxu0
      %1808 = vmatprep.mubr.f32.mxu0 %v1587
      %1809 = vmatmul.mubr.f32.gmra.mrb[0].mxu0 %v1586
      %v1810 = vpop.f32.mrb[0].mxu0
      %v1811 = vadd.f32 0.0, %v1810
      %v1812 = vpop.f32.mrb[0].mxu0
      %1813 = vdwg.mxu0
      %1814 = vmatprep.subr.mxu0 0.0
      %1815 = vmatpush1.msra.mxu0 %v470
      %1816 = vmatprep.subr.mxu0 0.0
      %1817 = vmatpush1.msra.mxu0 %v471
      %1818 = vmatprep.subr.mxu0 0.0
      %1819 = vmatpush1.msra.mxu0 %v472
      %1820 = vmatprep.subr.mxu0 0.0
      %1821 = vmatpush1.msra.mxu0 %v473
      %1822 = vmatprep.subr.mxu0 0.0
      %1823 = vmatpush1.msra.mxu0 0.0
      %1824 = vmatprep.subr.mxu0 0.0
      %1825 = vmatpush1.msra.mxu0 0.0
      %1826 = vmatprep.subr.mxu0 0.0
      %1827 = vmatpush1.msra.mxu0 0.0
      %1828 = vmatprep.subr.mxu0 0.0
      %1829 = vmatpush1.msra.mxu0 0.0
      %1830 = vmatprep.subr.mxu0 0.0
      %1831 = vmatpush1.msra.mxu0 0.0
      %1832 = vmatprep.subr.mxu0 0.0
      %1833 = vmatpush1.msra.mxu0 0.0
      %1834 = vmatprep.subr.mxu0 0.0
      %1835 = vmatpush1.msra.mxu0 0.0
      %1836 = vmatprep.subr.mxu0 0.0
      %1837 = vmatpush1.msra.mxu0 0.0
      %1838 = vmatprep.subr.mxu0 0.0
      %1839 = vmatpush1.msra.mxu0 0.0
      %1840 = vmatprep.subr.mxu0 0.0
      %1841 = vmatpush1.msra.mxu0 0.0
      %1842 = vmatprep.subr.mxu0 0.0
      %1843 = vmatpush1.msra.mxu0 0.0
      %1844 = vmatprep.subr.mxu0 0.0
      %1845 = vmatpush1.msra.mxu0 0.0
      %1846 = vmatprep.subr.mxu0 0.0
      %1847 = vmatpush1.msra.mxu0 0.0
      %1848 = vmatprep.subr.mxu0 0.0
      %1849 = vmatpush1.msra.mxu0 0.0
      %1850 = vmatprep.subr.mxu0 0.0
      %1851 = vmatpush1.msra.mxu0 0.0
      %1852 = vmatprep.subr.mxu0 0.0
      %1853 = vmatpush1.msra.mxu0 0.0
      %1854 = vmatprep.subr.mxu0 0.0
      %1855 = vmatpush1.msra.mxu0 0.0
      %1856 = vmatprep.subr.mxu0 0.0
      %1857 = vmatpush1.msra.mxu0 0.0
      %1858 = vmatprep.subr.mxu0 0.0
      %1859 = vmatpush1.msra.mxu0 0.0
      %1860 = vmatprep.subr.mxu0 0.0
      %1861 = vmatpush1.msra.mxu0 0.0
      %1862 = vmatprep.subr.mxu0 0.0
      %1863 = vmatpush1.msra.mxu0 0.0
      %1864 = vmatprep.subr.mxu0 0.0
      %1865 = vmatpush1.msra.mxu0 0.0
      %1866 = vmatprep.subr.mxu0 0.0
      %1867 = vmatpush1.msra.mxu0 0.0
      %1868 = vmatprep.subr.mxu0 0.0
      %1869 = vmatpush1.msra.mxu0 0.0
      %1870 = vmatprep.subr.mxu0 0.0
      %1871 = vmatpush1.msra.mxu0 0.0
      %1872 = vmatprep.subr.mxu0 0.0
      %1873 = vmatpush1.msra.mxu0 0.0
      %1874 = vmatprep.subr.mxu0 0.0
      %1875 = vmatpush1.msra.mxu0 0.0
      %1876 = vmatprep.subr.mxu0 0.0
      %1877 = vmatpush1.msra.mxu0 0.0
      %1878 = vmatprep.mubr.f32.mxu0 0.0
      %1879 = vmatmul.mubr.f32.gmra.mrb[0].mxu0 %v1590
      %v1880 = vpop.f32.mrb[0].mxu0
      %v1881 = vadd.f32 %v1716, %v1880
      %v1882 = vpop.f32.mrb[0].mxu0
      %1883 = vmatprep.mubr.f32.mxu0 0.0
      %1884 = vmatmul.mubr.f32.gmra.mrb[0].mxu0 %v1593
      %v1885 = vpop.f32.mrb[0].mxu0
      %v1886 = vadd.f32 %v1721, %v1885
      %v1887 = vpop.f32.mrb[0].mxu0
      %1888 = vmatprep.mubr.f32.mxu0 0.0
      %1889 = vmatmul.mubr.f32.gmra.mrb[0].mxu0 %v1596
      %v1890 = vpop.f32.mrb[0].mxu0
      %v1891 = vadd.f32 %v1726, %v1890
      %v1892 = vpop.f32.mrb[0].mxu0
      %1893 = vmatprep.mubr.f32.mxu0 0.0
      %1894 = vmatmul.mubr.f32.gmra.mrb[0].mxu0 %v1599
      %v1895 = vpop.f32.mrb[0].mxu0
      %v1896 = vadd.f32 %v1731, %v1895
      %v1897 = vpop.f32.mrb[0].mxu0
      %1898 = vmatprep.mubr.f32.mxu0 0.0
      %1899 = vmatmul.mubr.f32.gmra.mrb[0].mxu0 %v1602
      %v1900 = vpop.f32.mrb[0].mxu0
      %v1901 = vadd.f32 %v1736, %v1900
      %v1902 = vpop.f32.mrb[0].mxu0
      %1903 = vmatprep.mubr.f32.mxu0 0.0
      %1904 = vmatmul.mubr.f32.gmra.mrb[0].mxu0 %v1605
      %v1905 = vpop.f32.mrb[0].mxu0
      %v1906 = vadd.f32 %v1741, %v1905
      %v1907 = vpop.f32.mrb[0].mxu0
      %1908 = vmatprep.mubr.f32.mxu0 0.0
      %1909 = vmatmul.mubr.f32.gmra.mrb[0].mxu0 %v1608
      %v1910 = vpop.f32.mrb[0].mxu0
      %v1911 = vadd.f32 %v1746, %v1910
      %v1912 = vpop.f32.mrb[0].mxu0
      %1913 = vmatprep.mubr.f32.mxu0 0.0
      %1914 = vmatmul.mubr.f32.gmra.mrb[0].mxu0 %v1611
      %v1915 = vpop.f32.mrb[0].mxu0
      %v1916 = vadd.f32 %v1751, %v1915
      %v1917 = vpop.f32.mrb[0].mxu0
      %1918 = vmatprep.mubr.f32.mxu0 0.0
      %1919 = vmatmul.mubr.f32.gmra.mrb[0].mxu0 %v1614
      %v1920 = vpop.f32.mrb[0].mxu0
      %v1921 = vadd.f32 %v1756, %v1920
      %v1922 = vpop.f32.mrb[0].mxu0
      %1923 = vmatprep.mubr.f32.mxu0 0.0
      %1924 = vmatmul.mubr.f32.gmra.mrb[0].mxu0 %v1617
      %v1925 = vpop.f32.mrb[0].mxu0
      %v1926 = vadd.f32 %v1761, %v1925
      %v1927 = vpop.f32.mrb[0].mxu0
      %1928 = vmatprep.mubr.f32.mxu0 0.0
      %1929 = vmatmul.mubr.f32.gmra.mrb[0].mxu0 %v1620
      %v1930 = vpop.f32.mrb[0].mxu0
      %v1931 = vadd.f32 %v1766, %v1930
      %v1932 = vpop.f32.mrb[0].mxu0
      %1933 = vmatprep.mubr.f32.mxu0 0.0
      %1934 = vmatmul.mubr.f32.gmra.mrb[0].mxu0 %v1623
      %v1935 = vpop.f32.mrb[0].mxu0
      %v1936 = vadd.f32 %v1771, %v1935
      %v1937 = vpop.f32.mrb[0].mxu0
      %1938 = vmatprep.mubr.f32.mxu0 0.0
      %1939 = vmatmul.mubr.f32.gmra.mrb[0].mxu0 %v1626
      %v1940 = vpop.f32.mrb[0].mxu0
      %v1941 = vadd.f32 %v1776, %v1940
      %v1942 = vpop.f32.mrb[0].mxu0
      %1943 = vmatprep.mubr.f32.mxu0 0.0
      %1944 = vmatmul.mubr.f32.gmra.mrb[0].mxu0 %v1629
      %v1945 = vpop.f32.mrb[0].mxu0
      %v1946 = vadd.f32 %v1781, %v1945
      %v1947 = vpop.f32.mrb[0].mxu0
      %1948 = vmatprep.mubr.f32.mxu0 0.0
      %1949 = vmatmul.mubr.f32.gmra.mrb[0].mxu0 %v1632
      %v1950 = vpop.f32.mrb[0].mxu0
      %v1951 = vadd.f32 %v1786, %v1950
      %v1952 = vpop.f32.mrb[0].mxu0
      %1953 = vmatprep.mubr.f32.mxu0 0.0
      %1954 = vmatmul.mubr.f32.gmra.mrb[0].mxu0 %v1635
      %v1955 = vpop.f32.mrb[0].mxu0
      %v1956 = vadd.f32 %v1791, %v1955
      %v1957 = vpop.f32.mrb[0].mxu0
      %1958 = vmatprep.mubr.f32.mxu0 0.0
      %1959 = vmatmul.mubr.f32.gmra.mrb[0].mxu0 %v1638
      %v1960 = vpop.f32.mrb[0].mxu0
      %v1961 = vadd.f32 %v1796, %v1960
      %v1962 = vpop.f32.mrb[0].mxu0
      %1963 = vmatprep.mubr.f32.mxu0 0.0
      %1964 = vmatmul.mubr.f32.gmra.mrb[0].mxu0 %v1641
      %v1965 = vpop.f32.mrb[0].mxu0
      %v1966 = vadd.f32 %v1801, %v1965
      %v1967 = vpop.f32.mrb[0].mxu0
      %1968 = vmatprep.mubr.f32.mxu0 0.0
      %1969 = vmatmul.mubr.f32.gmra.mrb[0].mxu0 %v1644
      %v1970 = vpop.f32.mrb[0].mxu0
      %v1971 = vadd.f32 %v1806, %v1970
      %v1972 = vpop.f32.mrb[0].mxu0
      %1973 = vmatprep.mubr.f32.mxu0 0.0
      %1974 = vmatmul.mubr.f32.gmra.mrb[0].mxu0 %v1647
      %v1975 = vpop.f32.mrb[0].mxu0
      %v1976 = vadd.f32 %v1811, %v1975
      %v1977 = vpop.f32.mrb[0].mxu0
      %1978 = vdwg.mxu0
      %v1979 = vmul.f32 %v1881, %v479
      %v1980 = vmul.f32 %v1886, %v479
      %v1981 = vmul.f32 %v1891, %v479
      %v1982 = vmul.f32 %v1896, %v479
      %v1983 = vmul.f32 %v1901, %v479
      %v1984 = vmul.f32 %v1906, %v479
      %v1985 = vmul.f32 %v1911, %v479
      %v1986 = vmul.f32 %v1916, %v479
      %v1987 = vmul.f32 %v1921, %v479
      %v1988 = vmul.f32 %v1926, %v479
      %v1989 = vmul.f32 %v1931, %v479
      %v1990 = vmul.f32 %v1936, %v479
      %v1991 = vmul.f32 %v1941, %v479
      %v1992 = vmul.f32 %v1946, %v479
      %v1993 = vmul.f32 %v1951, %v479
      %v1994 = vmul.f32 %v1956, %v479
      %v1995 = vmul.f32 %v1961, %v479
      %v1996 = vmul.f32 %v1966, %v479
      %v1997 = vmul.f32 %v1971, %v479
      %v1998 = vmul.f32 %v1976, %v479
      %v1999 = vadd.f32 %v1979, %v486
      %v2000 = vadd.f32 %v1980, %v486
      %v2001 = vadd.f32 %v1981, %v486
      %v2002 = vadd.f32 %v1982, %v486
      %v2003 = vadd.f32 %v1983, %v486
      %v2004 = vadd.f32 %v1984, %v486
      %v2005 = vadd.f32 %v1985, %v486
      %v2006 = vadd.f32 %v1986, %v486
      %v2007 = vadd.f32 %v1987, %v486
      %v2008 = vadd.f32 %v1988, %v486
      %v2009 = vadd.f32 %v1989, %v486
      %v2010 = vadd.f32 %v1990, %v486
      %v2011 = vadd.f32 %v1991, %v486
      %v2012 = vadd.f32 %v1992, %v486
      %v2013 = vadd.f32 %v1993, %v486
      %v2014 = vadd.f32 %v1994, %v486
      %v2015 = vadd.f32 %v1995, %v486
      %v2016 = vadd.f32 %v1996, %v486
      %v2017 = vadd.f32 %v1997, %v486
      %v2018 = vadd.f32 %v1998, %v486
      %v2019 = vmax.f32 %v1999, 0.0
      %v2020 = vmax.f32 %v2000, 0.0
      %v2021 = vmax.f32 %v2001, 0.0
      %v2022 = vmax.f32 %v2002, 0.0
      %v2023 = vmax.f32 %v2003, 0.0
      %v2024 = vmax.f32 %v2004, 0.0
      %v2025 = vmax.f32 %v2005, 0.0
      %v2026 = vmax.f32 %v2006, 0.0
      %v2027 = vmax.f32 %v2007, 0.0
      %v2028 = vmax.f32 %v2008, 0.0
      %v2029 = vmax.f32 %v2009, 0.0
      %v2030 = vmax.f32 %v2010, 0.0
      %v2031 = vmax.f32 %v2011, 0.0
      %v2032 = vmax.f32 %v2012, 0.0
      %v2033 = vmax.f32 %v2013, 0.0
      %v2034 = vmax.f32 %v2014, 0.0
      %v2035 = vmax.f32 %v2015, 0.0
      %v2036 = vmax.f32 %v2016, 0.0
      %v2037 = vmax.f32 %v2017, 0.0
      %v2038 = vmax.f32 %v2018, 0.0
      %v2039 = vld [vmem:[%s426] sm:$0xff]
      %v2040 = vld [vmem:[%s426 + $0x8] sm:$0xff]
      %v2041 = vld [vmem:[%s426 + $0x10] sm:$0xff]
      %v2042 = vld [vmem:[%s426 + $0x18] sm:$0xff]
      %v2043 = vld [vmem:[%s426 + $0x20] sm:$0xff]
      %v2044 = vld [vmem:[%s426 + $0x28] sm:$0xff]
      %v2045 = vld [vmem:[%s426 + $0x30] sm:$0xff]
      %v2046 = vld [vmem:[%s426 + $0x38] sm:$0xff]
      %v2047 = vld [vmem:[%s426 + $0x40] sm:$0xff]
      %v2048 = vld [vmem:[%s426 + $0x48] sm:$0xff]
      %v2049 = vld [vmem:[%s426 + $0x50] sm:$0xff]
      %v2050 = vld [vmem:[%s426 + $0x58] sm:$0xff]
      %v2051 = vld [vmem:[%s426 + $0x60] sm:$0xff]
      %v2052 = vld [vmem:[%s426 + $0x68] sm:$0xff]
      %v2053 = vld [vmem:[%s426 + $0x70] sm:$0xff]
      %v2054 = vld [vmem:[%s426 + $0x78] sm:$0xff]
      %v2055 = vld [vmem:[%s426 + $0x80] sm:$0xff]
      %v2056 = vld [vmem:[%s426 + $0x88] sm:$0xff]
      %v2057 = vld [vmem:[%s426 + $0x90] sm:$0xff]
      %v2058 = vld [vmem:[%s426 + $0x98] sm:$0xff]
      %v2059 = vld [vmem:[%s426 + $0xa0] sm:$0xff]
      %v2060 = vld [vmem:[%s426 + $0xa8] sm:$0xff]
      %v2061 = vld [vmem:[%s426 + $0xb0] sm:$0xff]
      %v2062 = vld [vmem:[%s426 + $0xb8] sm:$0xff]
      %v2063 = vld [vmem:[%s426 + $0xc0] sm:$0xff]
      %v2064 = vld [vmem:[%s426 + $0xc8] sm:$0xff]
      %v2065 = vld [vmem:[%s426 + $0xd0] sm:$0xff]
      %v2066 = vld [vmem:[%s426 + $0xd8] sm:$0xff]
      %v2067 = vld [vmem:[%s426 + $0xe0] sm:$0xff]
      %v2068 = vld [vmem:[%s426 + $0xe8] sm:$0xff]
      %v2069 = vld [vmem:[%s426 + $0xf0] sm:$0xff]
      %v2070 = vld [vmem:[%s426 + $0xf8] sm:$0xff]
      %v2071 = vld [vmem:[%s426 + $0x100] sm:$0xff]
      %v2072 = vld [vmem:[%s426 + $0x108] sm:$0xff]
      %v2073 = vld [vmem:[%s426 + $0x110] sm:$0xff]
      %v2074 = vld [vmem:[%s426 + $0x118] sm:$0xff]
      %v2075 = vld [vmem:[%s426 + $0x120] sm:$0xff]
      %v2076 = vld [vmem:[%s426 + $0x128] sm:$0xff]
      %v2077 = vld [vmem:[%s426 + $0x130] sm:$0xff]
      %v2078 = vld [vmem:[%s426 + $0x138] sm:$0xff]
      %v2079 = vld [vmem:[%s426 + $0x140] sm:$0xff]
      %v2080 = vld [vmem:[%s426 + $0x148] sm:$0xff]
      %v2081 = vld [vmem:[%s426 + $0x150] sm:$0xff]
      %v2082 = vld [vmem:[%s426 + $0x158] sm:$0xff]
      %v2083 = vld [vmem:[%s426 + $0x160] sm:$0xff]
      %v2084 = vld [vmem:[%s426 + $0x168] sm:$0xff]
      %v2085 = vld [vmem:[%s426 + $0x170] sm:$0xff]
      %v2086 = vld [vmem:[%s426 + $0x178] sm:$0xff]
      %v2087 = vld [vmem:[%s426 + $0x180] sm:$0xff]
      %v2088 = vld [vmem:[%s426 + $0x188] sm:$0xff]
      %v2089 = vld [vmem:[%s426 + $0x190] sm:$0xff]
      %v2090 = vld [vmem:[%s426 + $0x198] sm:$0xff]
      %v2091 = vld [vmem:[%s426 + $0x1a0] sm:$0xff]
      %v2092 = vld [vmem:[%s426 + $0x1a8] sm:$0xff]
      %v2093 = vld [vmem:[%s426 + $0x1b0] sm:$0xff]
      %v2094 = vld [vmem:[%s426 + $0x1b8] sm:$0xff]
      %v2095 = vld [vmem:[%s426 + $0x1c0] sm:$0xff]
      %v2096 = vld [vmem:[%s426 + $0x1c8] sm:$0xff]
      %v2097 = vld [vmem:[%s426 + $0x1d0] sm:$0xff]
      %v2098 = vld [vmem:[%s426 + $0x1d8] sm:$0xff]
      %v2100 = vsel %vm548, %v2041, 0
      %v2103 = vsel %vm548, %v2044, 0
      %v2106 = vsel %vm548, %v2047, 0
      %v2109 = vsel %vm548, %v2050, 0
      %v2112 = vsel %vm548, %v2053, 0
      %v2115 = vsel %vm548, %v2056, 0
      %v2118 = vsel %vm548, %v2059, 0
      %v2121 = vsel %vm548, %v2062, 0
      %v2124 = vsel %vm548, %v2065, 0
      %v2127 = vsel %vm548, %v2068, 0
      %v2130 = vsel %vm548, %v2071, 0
      %v2133 = vsel %vm548, %v2074, 0
      %v2136 = vsel %vm548, %v2077, 0
      %v2139 = vsel %vm548, %v2080, 0
      %v2142 = vsel %vm548, %v2083, 0
      %v2145 = vsel %vm548, %v2086, 0
      %v2148 = vsel %vm548, %v2089, 0
      %v2151 = vsel %vm548, %v2092, 0
      %v2154 = vsel %vm548, %v2095, 0
      %v2157 = vsel %vm548, %v2098, 0
      %2159 = vmatprep.subr.mxu0 0.0
      %2160 = vmatpush1.msra.mxu0 %v438
      %2161 = vmatprep.subr.mxu0 0.0
      %2162 = vmatpush1.msra.mxu0 %v439
      %2163 = vmatprep.subr.mxu0 0.0
      %2164 = vmatpush1.msra.mxu0 %v440
      %2165 = vmatprep.subr.mxu0 0.0
      %2166 = vmatpush1.msra.mxu0 %v441
      %2167 = vmatprep.subr.mxu0 0.0
      %2168 = vmatpush1.msra.mxu0 %v442
      %2169 = vmatprep.subr.mxu0 0.0
      %2170 = vmatpush1.msra.mxu0 %v443
      %2171 = vmatprep.subr.mxu0 0.0
      %2172 = vmatpush1.msra.mxu0 %v444
      %2173 = vmatprep.subr.mxu0 0.0
      %2174 = vmatpush1.msra.mxu0 %v445
      %2175 = vmatprep.subr.mxu0 0.0
      %2176 = vmatpush1.msra.mxu0 %v446
      %2177 = vmatprep.subr.mxu0 0.0
      %2178 = vmatpush1.msra.mxu0 %v447
      %2179 = vmatprep.subr.mxu0 0.0
      %2180 = vmatpush1.msra.mxu0 %v448
      %2181 = vmatprep.subr.mxu0 0.0
      %2182 = vmatpush1.msra.mxu0 %v449
      %2183 = vmatprep.subr.mxu0 0.0
      %2184 = vmatpush1.msra.mxu0 %v450
      %2185 = vmatprep.subr.mxu0 0.0
      %2186 = vmatpush1.msra.mxu0 %v451
      %2187 = vmatprep.subr.mxu0 0.0
      %2188 = vmatpush1.msra.mxu0 %v452
      %2189 = vmatprep.subr.mxu0 0.0
      %2190 = vmatpush1.msra.mxu0 %v453
      %2191 = vmatprep.subr.mxu0 0.0
      %2192 = vmatpush1.msra.mxu0 %v454
      %2193 = vmatprep.subr.mxu0 0.0
      %2194 = vmatpush1.msra.mxu0 %v455
      %2195 = vmatprep.subr.mxu0 0.0
      %2196 = vmatpush1.msra.mxu0 %v456
      %2197 = vmatprep.subr.mxu0 0.0
      %2198 = vmatpush1.msra.mxu0 %v457
      %2199 = vmatprep.subr.mxu0 0.0
      %2200 = vmatpush1.msra.mxu0 %v458
      %2201 = vmatprep.subr.mxu0 0.0
      %2202 = vmatpush1.msra.mxu0 %v459
      %2203 = vmatprep.subr.mxu0 0.0
      %2204 = vmatpush1.msra.mxu0 %v460
      %2205 = vmatprep.subr.mxu0 0.0
      %2206 = vmatpush1.msra.mxu0 %v461
      %2207 = vmatprep.subr.mxu0 0.0
      %2208 = vmatpush1.msra.mxu0 %v462
      %2209 = vmatprep.subr.mxu0 0.0
      %2210 = vmatpush1.msra.mxu0 %v463
      %2211 = vmatprep.subr.mxu0 0.0
      %2212 = vmatpush1.msra.mxu0 %v464
      %2213 = vmatprep.subr.mxu0 0.0
      %2214 = vmatpush1.msra.mxu0 %v465
      %2215 = vmatprep.subr.mxu0 0.0
      %2216 = vmatpush1.msra.mxu0 %v466
      %2217 = vmatprep.subr.mxu0 0.0
      %2218 = vmatpush1.msra.mxu0 %v467
      %2219 = vmatprep.subr.mxu0 0.0
      %2220 = vmatpush1.msra.mxu0 %v468
      %2221 = vmatprep.subr.mxu0 0.0
      %2222 = vmatpush1.msra.mxu0 %v469
      %2223 = vmatprep.mubr.f32.mxu0 %v2040
      %2224 = vmatmul.mubr.f32.gmra.mrb[0].mxu0 %v2039
      %v2225 = vpop.f32.mrb[0].mxu0
      %v2226 = vadd.f32 0.0, %v2225
      %v2227 = vpop.f32.mrb[0].mxu0
      %2228 = vmatprep.mubr.f32.mxu0 %v2043
      %2229 = vmatmul.mubr.f32.gmra.mrb[0].mxu0 %v2042
      %v2230 = vpop.f32.mrb[0].mxu0
      %v2231 = vadd.f32 0.0, %v2230
      %v2232 = vpop.f32.mrb[0].mxu0
      %2233 = vmatprep.mubr.f32.mxu0 %v2046
      %2234 = vmatmul.mubr.f32.gmra.mrb[0].mxu0 %v2045
      %v2235 = vpop.f32.mrb[0].mxu0
      %v2236 = vadd.f32 0.0, %v2235
      %v2237 = vpop.f32.mrb[0].mxu0
      %2238 = vmatprep.mubr.f32.mxu0 %v2049
      %2239 = vmatmul.mubr.f32.gmra.mrb[0].mxu0 %v2048
      %v2240 = vpop.f32.mrb[0].mxu0
      %v2241 = vadd.f32 0.0, %v2240
      %v2242 = vpop.f32.mrb[0].mxu0
      %2243 = vmatprep.mubr.f32.mxu0 %v2052
      %2244 = vmatmul.mubr.f32.gmra.mrb[0].mxu0 %v2051
      %v2245 = vpop.f32.mrb[0].mxu0
      %v2246 = vadd.f32 0.0, %v2245
      %v2247 = vpop.f32.mrb[0].mxu0
      %2248 = vmatprep.mubr.f32.mxu0 %v2055
      %2249 = vmatmul.mubr.f32.gmra.mrb[0].mxu0 %v2054
      %v2250 = vpop.f32.mrb[0].mxu0
      %v2251 = vadd.f32 0.0, %v2250
      %v2252 = vpop.f32.mrb[0].mxu0
      %2253 = vmatprep.mubr.f32.mxu0 %v2058
      %2254 = vmatmul.mubr.f32.gmra.mrb[0].mxu0 %v2057
      %v2255 = vpop.f32.mrb[0].mxu0
      %v2256 = vadd.f32 0.0, %v2255
      %v2257 = vpop.f32.mrb[0].mxu0
      %2258 = vmatprep.mubr.f32.mxu0 %v2061
      %2259 = vmatmul.mubr.f32.gmra.mrb[0].mxu0 %v2060
      %v2260 = vpop.f32.mrb[0].mxu0
      %v2261 = vadd.f32 0.0, %v2260
      %v2262 = vpop.f32.mrb[0].mxu0
      %2263 = vmatprep.mubr.f32.mxu0 %v2064
      %2264 = vmatmul.mubr.f32.gmra.mrb[0].mxu0 %v2063
      %v2265 = vpop.f32.mrb[0].mxu0
      %v2266 = vadd.f32 0.0, %v2265
      %v2267 = vpop.f32.mrb[0].mxu0
      %2268 = vmatprep.mubr.f32.mxu0 %v2067
      %2269 = vmatmul.mubr.f32.gmra.mrb[0].mxu0 %v2066
      %v2270 = vpop.f32.mrb[0].mxu0
      %v2271 = vadd.f32 0.0, %v2270
      %v2272 = vpop.f32.mrb[0].mxu0
      %2273 = vmatprep.mubr.f32.mxu0 %v2070
      %2274 = vmatmul.mubr.f32.gmra.mrb[0].mxu0 %v2069
      %v2275 = vpop.f32.mrb[0].mxu0
      %v2276 = vadd.f32 0.0, %v2275
      %v2277 = vpop.f32.mrb[0].mxu0
      %2278 = vmatprep.mubr.f32.mxu0 %v2073
      %2279 = vmatmul.mubr.f32.gmra.mrb[0].mxu0 %v2072
      %v2280 = vpop.f32.mrb[0].mxu0
      %v2281 = vadd.f32 0.0, %v2280
      %v2282 = vpop.f32.mrb[0].mxu0
      %2283 = vmatprep.mubr.f32.mxu0 %v2076
      %2284 = vmatmul.mubr.f32.gmra.mrb[0].mxu0 %v2075
      %v2285 = vpop.f32.mrb[0].mxu0
      %v2286 = vadd.f32 0.0, %v2285
      %v2287 = vpop.f32.mrb[0].mxu0
      %2288 = vmatprep.mubr.f32.mxu0 %v2079
      %2289 = vmatmul.mubr.f32.gmra.mrb[0].mxu0 %v2078
      %v2290 = vpop.f32.mrb[0].mxu0
      %v2291 = vadd.f32 0.0, %v2290
      %v2292 = vpop.f32.mrb[0].mxu0
      %2293 = vmatprep.mubr.f32.mxu0 %v2082
      %2294 = vmatmul.mubr.f32.gmra.mrb[0].mxu0 %v2081
      %v2295 = vpop.f32.mrb[0].mxu0
      %v2296 = vadd.f32 0.0, %v2295
      %v2297 = vpop.f32.mrb[0].mxu0
      %2298 = vmatprep.mubr.f32.mxu0 %v2085
      %2299 = vmatmul.mubr.f32.gmra.mrb[0].mxu0 %v2084
      %v2300 = vpop.f32.mrb[0].mxu0
      %v2301 = vadd.f32 0.0, %v2300
      %v2302 = vpop.f32.mrb[0].mxu0
      %2303 = vmatprep.mubr.f32.mxu0 %v2088
      %2304 = vmatmul.mubr.f32.gmra.mrb[0].mxu0 %v2087
      %v2305 = vpop.f32.mrb[0].mxu0
      %v2306 = vadd.f32 0.0, %v2305
      %v2307 = vpop.f32.mrb[0].mxu0
      %2308 = vmatprep.mubr.f32.mxu0 %v2091
      %2309 = vmatmul.mubr.f32.gmra.mrb[0].mxu0 %v2090
      %v2310 = vpop.f32.mrb[0].mxu0
      %v2311 = vadd.f32 0.0, %v2310
      %v2312 = vpop.f32.mrb[0].mxu0
      %2313 = vmatprep.mubr.f32.mxu0 %v2094
      %2314 = vmatmul.mubr.f32.gmra.mrb[0].mxu0 %v2093
      %v2315 = vpop.f32.mrb[0].mxu0
      %v2316 = vadd.f32 0.0, %v2315
      %v2317 = vpop.f32.mrb[0].mxu0
      %2318 = vmatprep.mubr.f32.mxu0 %v2097
      %2319 = vmatmul.mubr.f32.gmra.mrb[0].mxu0 %v2096
      %v2320 = vpop.f32.mrb[0].mxu0
      %v2321 = vadd.f32 0.0, %v2320
      %v2322 = vpop.f32.mrb[0].mxu0
      %2323 = vdwg.mxu0
      %2324 = vmatprep.subr.mxu0 0.0
      %2325 = vmatpush1.msra.mxu0 %v470
      %2326 = vmatprep.subr.mxu0 0.0
      %2327 = vmatpush1.msra.mxu0 %v471
      %2328 = vmatprep.subr.mxu0 0.0
      %2329 = vmatpush1.msra.mxu0 %v472
      %2330 = vmatprep.subr.mxu0 0.0
      %2331 = vmatpush1.msra.mxu0 %v473
      %2332 = vmatprep.subr.mxu0 0.0
      %2333 = vmatpush1.msra.mxu0 0.0
      %2334 = vmatprep.subr.mxu0 0.0
      %2335 = vmatpush1.msra.mxu0 0.0
      %2336 = vmatprep.subr.mxu0 0.0
      %2337 = vmatpush1.msra.mxu0 0.0
      %2338 = vmatprep.subr.mxu0 0.0
      %2339 = vmatpush1.msra.mxu0 0.0
      %2340 = vmatprep.subr.mxu0 0.0
      %2341 = vmatpush1.msra.mxu0 0.0
      %2342 = vmatprep.subr.mxu0 0.0
      %2343 = vmatpush1.msra.mxu0 0.0
      %2344 = vmatprep.subr.mxu0 0.0
      %2345 = vmatpush1.msra.mxu0 0.0
      %2346 = vmatprep.subr.mxu0 0.0
      %2347 = vmatpush1.msra.mxu0 0.0
      %2348 = vmatprep.subr.mxu0 0.0
      %2349 = vmatpush1.msra.mxu0 0.0
      %2350 = vmatprep.subr.mxu0 0.0
      %2351 = vmatpush1.msra.mxu0 0.0
      %2352 = vmatprep.subr.mxu0 0.0
      %2353 = vmatpush1.msra.mxu0 0.0
      %2354 = vmatprep.subr.mxu0 0.0
      %2355 = vmatpush1.msra.mxu0 0.0
      %2356 = vmatprep.subr.mxu0 0.0
      %2357 = vmatpush1.msra.mxu0 0.0
      %2358 = vmatprep.subr.mxu0 0.0
      %2359 = vmatpush1.msra.mxu0 0.0
      %2360 = vmatprep.subr.mxu0 0.0
      %2361 = vmatpush1.msra.mxu0 0.0
      %2362 = vmatprep.subr.mxu0 0.0
      %2363 = vmatpush1.msra.mxu0 0.0
      %2364 = vmatprep.subr.mxu0 0.0
      %2365 = vmatpush1.msra.mxu0 0.0
      %2366 = vmatprep.subr.mxu0 0.0
      %2367 = vmatpush1.msra.mxu0 0.0
      %2368 = vmatprep.subr.mxu0 0.0
      %2369 = vmatpush1.msra.mxu0 0.0
      %2370 = vmatprep.subr.mxu0 0.0
      %2371 = vmatpush1.msra.mxu0 0.0
      %2372 = vmatprep.subr.mxu0 0.0
      %2373 = vmatpush1.msra.mxu0 0.0
      %2374 = vmatprep.subr.mxu0 0.0
      %2375 = vmatpush1.msra.mxu0 0.0
      %2376 = vmatprep.subr.mxu0 0.0
      %2377 = vmatpush1.msra.mxu0 0.0
      %2378 = vmatprep.subr.mxu0 0.0
      %2379 = vmatpush1.msra.mxu0 0.0
      %2380 = vmatprep.subr.mxu0 0.0
      %2381 = vmatpush1.msra.mxu0 0.0
      %2382 = vmatprep.subr.mxu0 0.0
      %2383 = vmatpush1.msra.mxu0 0.0
      %2384 = vmatprep.subr.mxu0 0.0
      %2385 = vmatpush1.msra.mxu0 0.0
      %2386 = vmatprep.subr.mxu0 0.0
      %2387 = vmatpush1.msra.mxu0 0.0
      %2388 = vmatprep.mubr.f32.mxu0 0.0
      %2389 = vmatmul.mubr.f32.gmra.mrb[0].mxu0 %v2100
      %v2390 = vpop.f32.mrb[0].mxu0
      %v2391 = vadd.f32 %v2226, %v2390
      %v2392 = vpop.f32.mrb[0].mxu0
      %2393 = vmatprep.mubr.f32.mxu0 0.0
      %2394 = vmatmul.mubr.f32.gmra.mrb[0].mxu0 %v2103
      %v2395 = vpop.f32.mrb[0].mxu0
      %v2396 = vadd.f32 %v2231, %v2395
      %v2397 = vpop.f32.mrb[0].mxu0
      %2398 = vmatprep.mubr.f32.mxu0 0.0
      %2399 = vmatmul.mubr.f32.gmra.mrb[0].mxu0 %v2106
      %v2400 = vpop.f32.mrb[0].mxu0
      %v2401 = vadd.f32 %v2236, %v2400
      %v2402 = vpop.f32.mrb[0].mxu0
      %2403 = vmatprep.mubr.f32.mxu0 0.0
      %2404 = vmatmul.mubr.f32.gmra.mrb[0].mxu0 %v2109
      %v2405 = vpop.f32.mrb[0].mxu0
      %v2406 = vadd.f32 %v2241, %v2405
      %v2407 = vpop.f32.mrb[0].mxu0
      %2408 = vmatprep.mubr.f32.mxu0 0.0
      %2409 = vmatmul.mubr.f32.gmra.mrb[0].mxu0 %v2112
      %v2410 = vpop.f32.mrb[0].mxu0
      %v2411 = vadd.f32 %v2246, %v2410
      %v2412 = vpop.f32.mrb[0].mxu0
      %2413 = vmatprep.mubr.f32.mxu0 0.0
      %2414 = vmatmul.mubr.f32.gmra.mrb[0].mxu0 %v2115
      %v2415 = vpop.f32.mrb[0].mxu0
      %v2416 = vadd.f32 %v2251, %v2415
      %v2417 = vpop.f32.mrb[0].mxu0
      %2418 = vmatprep.mubr.f32.mxu0 0.0
      %2419 = vmatmul.mubr.f32.gmra.mrb[0].mxu0 %v2118
      %v2420 = vpop.f32.mrb[0].mxu0
      %v2421 = vadd.f32 %v2256, %v2420
      %v2422 = vpop.f32.mrb[0].mxu0
      %2423 = vmatprep.mubr.f32.mxu0 0.0
      %2424 = vmatmul.mubr.f32.gmra.mrb[0].mxu0 %v2121
      %v2425 = vpop.f32.mrb[0].mxu0
      %v2426 = vadd.f32 %v2261, %v2425
      %v2427 = vpop.f32.mrb[0].mxu0
      %2428 = vmatprep.mubr.f32.mxu0 0.0
      %2429 = vmatmul.mubr.f32.gmra.mrb[0].mxu0 %v2124
      %v2430 = vpop.f32.mrb[0].mxu0
      %v2431 = vadd.f32 %v2266, %v2430
      %v2432 = vpop.f32.mrb[0].mxu0
      %2433 = vmatprep.mubr.f32.mxu0 0.0
      %2434 = vmatmul.mubr.f32.gmra.mrb[0].mxu0 %v2127
      %v2435 = vpop.f32.mrb[0].mxu0
      %v2436 = vadd.f32 %v2271, %v2435
      %v2437 = vpop.f32.mrb[0].mxu0
      %2438 = vmatprep.mubr.f32.mxu0 0.0
      %2439 = vmatmul.mubr.f32.gmra.mrb[0].mxu0 %v2130
      %v2440 = vpop.f32.mrb[0].mxu0
      %v2441 = vadd.f32 %v2276, %v2440
      %v2442 = vpop.f32.mrb[0].mxu0
      %2443 = vmatprep.mubr.f32.mxu0 0.0
      %2444 = vmatmul.mubr.f32.gmra.mrb[0].mxu0 %v2133
      %v2445 = vpop.f32.mrb[0].mxu0
      %v2446 = vadd.f32 %v2281, %v2445
      %v2447 = vpop.f32.mrb[0].mxu0
      %2448 = vmatprep.mubr.f32.mxu0 0.0
      %2449 = vmatmul.mubr.f32.gmra.mrb[0].mxu0 %v2136
      %v2450 = vpop.f32.mrb[0].mxu0
      %v2451 = vadd.f32 %v2286, %v2450
      %v2452 = vpop.f32.mrb[0].mxu0
      %2453 = vmatprep.mubr.f32.mxu0 0.0
      %2454 = vmatmul.mubr.f32.gmra.mrb[0].mxu0 %v2139
      %v2455 = vpop.f32.mrb[0].mxu0
      %v2456 = vadd.f32 %v2291, %v2455
      %v2457 = vpop.f32.mrb[0].mxu0
      %2458 = vmatprep.mubr.f32.mxu0 0.0
      %2459 = vmatmul.mubr.f32.gmra.mrb[0].mxu0 %v2142
      %v2460 = vpop.f32.mrb[0].mxu0
      %v2461 = vadd.f32 %v2296, %v2460
      %v2462 = vpop.f32.mrb[0].mxu0
      %2463 = vmatprep.mubr.f32.mxu0 0.0
      %2464 = vmatmul.mubr.f32.gmra.mrb[0].mxu0 %v2145
      %v2465 = vpop.f32.mrb[0].mxu0
      %v2466 = vadd.f32 %v2301, %v2465
      %v2467 = vpop.f32.mrb[0].mxu0
      %2468 = vmatprep.mubr.f32.mxu0 0.0
      %2469 = vmatmul.mubr.f32.gmra.mrb[0].mxu0 %v2148
      %v2470 = vpop.f32.mrb[0].mxu0
      %v2471 = vadd.f32 %v2306, %v2470
      %v2472 = vpop.f32.mrb[0].mxu0
      %2473 = vmatprep.mubr.f32.mxu0 0.0
      %2474 = vmatmul.mubr.f32.gmra.mrb[0].mxu0 %v2151
      %v2475 = vpop.f32.mrb[0].mxu0
      %v2476 = vadd.f32 %v2311, %v2475
      %v2477 = vpop.f32.mrb[0].mxu0
      %2478 = vmatprep.mubr.f32.mxu0 0.0
      %2479 = vmatmul.mubr.f32.gmra.mrb[0].mxu0 %v2154
      %v2480 = vpop.f32.mrb[0].mxu0
      %v2481 = vadd.f32 %v2316, %v2480
      %v2482 = vpop.f32.mrb[0].mxu0
      %2483 = vmatprep.mubr.f32.mxu0 0.0
      %2484 = vmatmul.mubr.f32.gmra.mrb[0].mxu0 %v2157
      %v2485 = vpop.f32.mrb[0].mxu0
      %v2486 = vadd.f32 %v2321, %v2485
      %v2487 = vpop.f32.mrb[0].mxu0
      %2488 = vdwg.mxu0
      %v2489 = vmul.f32 %v2391, %v479
      %v2490 = vmul.f32 %v2396, %v479
      %v2491 = vmul.f32 %v2401, %v479
      %v2492 = vmul.f32 %v2406, %v479
      %v2493 = vmul.f32 %v2411, %v479
      %v2494 = vmul.f32 %v2416, %v479
      %v2495 = vmul.f32 %v2421, %v479
      %v2496 = vmul.f32 %v2426, %v479
      %v2497 = vmul.f32 %v2431, %v479
      %v2498 = vmul.f32 %v2436, %v479
      %v2499 = vmul.f32 %v2441, %v479
      %v2500 = vmul.f32 %v2446, %v479
      %v2501 = vmul.f32 %v2451, %v479
      %v2502 = vmul.f32 %v2456, %v479
      %v2503 = vmul.f32 %v2461, %v479
      %v2504 = vmul.f32 %v2466, %v479
      %v2505 = vmul.f32 %v2471, %v479
      %v2506 = vmul.f32 %v2476, %v479
      %v2507 = vmul.f32 %v2481, %v479
      %v2508 = vmul.f32 %v2486, %v479
      %v2509 = vadd.f32 %v2489, %v486
      %v2510 = vadd.f32 %v2490, %v486
      %v2511 = vadd.f32 %v2491, %v486
      %v2512 = vadd.f32 %v2492, %v486
      %v2513 = vadd.f32 %v2493, %v486
      %v2514 = vadd.f32 %v2494, %v486
      %v2515 = vadd.f32 %v2495, %v486
      %v2516 = vadd.f32 %v2496, %v486
      %v2517 = vadd.f32 %v2497, %v486
      %v2518 = vadd.f32 %v2498, %v486
      %v2519 = vadd.f32 %v2499, %v486
      %v2520 = vadd.f32 %v2500, %v486
      %v2521 = vadd.f32 %v2501, %v486
      %v2522 = vadd.f32 %v2502, %v486
      %v2523 = vadd.f32 %v2503, %v486
      %v2524 = vadd.f32 %v2504, %v486
      %v2525 = vadd.f32 %v2505, %v486
      %v2526 = vadd.f32 %v2506, %v486
      %v2527 = vadd.f32 %v2507, %v486
      %v2528 = vadd.f32 %v2508, %v486
      %v2529 = vmax.f32 %v2509, 0.0
      %v2530 = vmax.f32 %v2510, 0.0
      %v2531 = vmax.f32 %v2511, 0.0
      %v2532 = vmax.f32 %v2512, 0.0
      %v2533 = vmax.f32 %v2513, 0.0
      %v2534 = vmax.f32 %v2514, 0.0
      %v2535 = vmax.f32 %v2515, 0.0
      %v2536 = vmax.f32 %v2516, 0.0
      %v2537 = vmax.f32 %v2517, 0.0
      %v2538 = vmax.f32 %v2518, 0.0
      %v2539 = vmax.f32 %v2519, 0.0
      %v2540 = vmax.f32 %v2520, 0.0
      %v2541 = vmax.f32 %v2521, 0.0
      %v2542 = vmax.f32 %v2522, 0.0
      %v2543 = vmax.f32 %v2523, 0.0
      %v2544 = vmax.f32 %v2524, 0.0
      %v2545 = vmax.f32 %v2525, 0.0
      %v2546 = vmax.f32 %v2526, 0.0
      %v2547 = vmax.f32 %v2527, 0.0
      %v2548 = vmax.f32 %v2528, 0.0
      %v2549 = vmax.f32 %v2019, %v2529
      %v2550 = vmax.f32 %v2020, %v2530
      %v2551 = vmax.f32 %v2021, %v2531
      %v2552 = vmax.f32 %v2022, %v2532
      %v2553 = vmax.f32 %v2023, %v2533
      %v2554 = vmax.f32 %v2024, %v2534
      %v2555 = vmax.f32 %v2025, %v2535
      %v2556 = vmax.f32 %v2026, %v2536
      %v2557 = vmax.f32 %v2027, %v2537
      %v2558 = vmax.f32 %v2028, %v2538
      %v2559 = vmax.f32 %v2029, %v2539
      %v2560 = vmax.f32 %v2030, %v2540
      %v2561 = vmax.f32 %v2031, %v2541
      %v2562 = vmax.f32 %v2032, %v2542
      %v2563 = vmax.f32 %v2033, %v2543
      %v2564 = vmax.f32 %v2034, %v2544
      %v2565 = vmax.f32 %v2035, %v2545
      %v2566 = vmax.f32 %v2036, %v2546
      %v2567 = vmax.f32 %v2037, %v2547
      %v2568 = vmax.f32 %v2038, %v2548
      %v2569 = vmax.f32 %v1509, %v2549
      %v2570 = vmax.f32 %v1510, %v2550
      %v2571 = vmax.f32 %v1511, %v2551
      %v2572 = vmax.f32 %v1512, %v2552
      %v2573 = vmax.f32 %v1513, %v2553
      %v2574 = vmax.f32 %v1514, %v2554
      %v2575 = vmax.f32 %v1515, %v2555
      %v2576 = vmax.f32 %v1516, %v2556
      %v2577 = vmax.f32 %v1517, %v2557
      %v2578 = vmax.f32 %v1518, %v2558
      %v2579 = vmax.f32 %v1519, %v2559
      %v2580 = vmax.f32 %v1520, %v2560
      %v2581 = vmax.f32 %v1521, %v2561
      %v2582 = vmax.f32 %v1522, %v2562
      %v2583 = vmax.f32 %v1523, %v2563
      %v2584 = vmax.f32 %v1524, %v2564
      %v2585 = vmax.f32 %v1525, %v2565
      %v2586 = vmax.f32 %v1526, %v2566
      %v2587 = vmax.f32 %v1527, %v2567
      %v2588 = vmax.f32 %v1528, %v2568
      %v2589 = vpack.c.bf16 %v2570, %v2569
      %v2590 = vpack.c.bf16 %v2572, %v2571
      %v2591 = vpack.c.bf16 %v2574, %v2573
      %v2592 = vpack.c.bf16 %v2576, %v2575
      %v2593 = vpack.c.bf16 %v2578, %v2577
      %v2594 = vpack.c.bf16 %v2580, %v2579
      %v2595 = vpack.c.bf16 %v2582, %v2581
      %v2596 = vpack.c.bf16 %v2584, %v2583
      %v2597 = vpack.c.bf16 %v2586, %v2585
      %v2598 = vpack.c.bf16 %v2588, %v2587
      %v2609 = vunpack.c.l.b16 %v2589
      %v2610 = vunpack.c.h.b16 %v2589
      %v2611 = vunpack.c.l.b16 %v2590
      %v2612 = vunpack.c.h.b16 %v2590
      %v2613 = vunpack.c.l.b16 %v2591
      %v2614 = vunpack.c.h.b16 %v2591
      %v2615 = vunpack.c.l.b16 %v2592
      %v2616 = vunpack.c.h.b16 %v2592
      %v2617 = vunpack.c.l.b16 %v2593
      %v2618 = vunpack.c.h.b16 %v2593
      %v2619 = vunpack.c.l.b16 %v2594
      %v2620 = vunpack.c.h.b16 %v2594
      %v2621 = vunpack.c.l.b16 %v2595
      %v2622 = vunpack.c.h.b16 %v2595
      %v2623 = vunpack.c.l.b16 %v2596
      %v2624 = vunpack.c.h.b16 %v2596
      %v2625 = vunpack.c.l.b16 %v2597
      %v2626 = vunpack.c.h.b16 %v2597
      %v2627 = vunpack.c.l.b16 %v2598
      %v2628 = vunpack.c.h.b16 %v2598
      %v2629 = vpack.c.b16 %v2609, %v2609
      %v2630 = vpack.c.b16 %v2610, %v2610
      %v2631 = vpack.c.b16 %v2611, %v2611
      %v2632 = vpack.c.b16 %v2612, %v2612
      %v2633 = vpack.c.b16 %v2613, %v2613
      %v2634 = vpack.c.b16 %v2614, %v2614
      %v2635 = vpack.c.b16 %v2615, %v2615
      %v2636 = vpack.c.b16 %v2616, %v2616
      %v2637 = vpack.c.b16 %v2617, %v2617
      %v2638 = vpack.c.b16 %v2618, %v2618
      %v2639 = vpack.c.b16 %v2619, %v2619
      %v2640 = vpack.c.b16 %v2620, %v2620
      %v2641 = vpack.c.b16 %v2621, %v2621
      %v2642 = vpack.c.b16 %v2622, %v2622
      %v2643 = vpack.c.b16 %v2623, %v2623
      %v2644 = vpack.c.b16 %v2624, %v2624
      %v2645 = vpack.c.b16 %v2625, %v2625
      %v2646 = vpack.c.b16 %v2626, %v2626
      %v2647 = vpack.c.b16 %v2627, %v2627
      %v2648 = vpack.c.b16 %v2628, %v2628
      %vm2669 = vcmask 519168
      %2670 = vst.msk [vmem:[%s436] sm:$0xf] %vm2669, %v2629
      %2671 = vst.msk [vmem:[%s436 + $0x4] sm:$0xf] %vm2669, %v2630
      %2672 = vst.msk [vmem:[%s436 + $0x8] sm:$0xf] %vm2669, %v2631
      %2673 = vst.msk [vmem:[%s436 + $0xc] sm:$0xf] %vm2669, %v2632
      %2674 = vst.msk [vmem:[%s436 + $0x10] sm:$0xf] %vm2669, %v2633
      %2675 = vst.msk [vmem:[%s436 + $0x14] sm:$0xf] %vm2669, %v2634
      %2676 = vst.msk [vmem:[%s436 + $0x18] sm:$0xf] %vm2669, %v2635
      %2677 = vst.msk [vmem:[%s436 + $0x1c] sm:$0xf] %vm2669, %v2636
      %2678 = vst.msk [vmem:[%s436 + $0x20] sm:$0xf] %vm2669, %v2637
      %2679 = vst.msk [vmem:[%s436 + $0x24] sm:$0xf] %vm2669, %v2638
      %2680 = vst.msk [vmem:[%s436 + $0x28] sm:$0xf] %vm2669, %v2639
      %2681 = vst.msk [vmem:[%s436 + $0x2c] sm:$0xf] %vm2669, %v2640
      %2682 = vst.msk [vmem:[%s436 + $0x30] sm:$0xf] %vm2669, %v2641
      %2683 = vst.msk [vmem:[%s436 + $0x34] sm:$0xf] %vm2669, %v2642
      %2684 = vst.msk [vmem:[%s436 + $0x38] sm:$0xf] %vm2669, %v2643
      %2685 = vst.msk [vmem:[%s436 + $0x3c] sm:$0xf] %vm2669, %v2644
      %2686 = vst.msk [vmem:[%s436 + $0x40] sm:$0xf] %vm2669, %v2645
      %2687 = vst.msk [vmem:[%s436 + $0x44] sm:$0xf] %vm2669, %v2646
      %2688 = vst.msk [vmem:[%s436 + $0x48] sm:$0xf] %vm2669, %v2647
      %2689 = vst.msk [vmem:[%s436 + $0x4c] sm:$0xf] %vm2669, %v2648
      %s2690 = smul.u32 20, %s23
      %p2691 = scmp.lt.s32.totalorder %s22, 1
      %s2692 = scalar_select %p2691, %s22, 1
      %p2693 = scmp.lt.s32.totalorder %s2690, 39
      %s2694 = scalar_select %p2693, %s2690, 39
      %s2695 = smul.addr %s2692, 40
      %s2696 = sadd.s32 %s2694, %s2695
      %s2697 = smul.addr %s2696, 4
      %s2698 = scalar_lea.vmem %s7, %s2697
      // Predicated region
      $region49: #{music_cnn_forward.4} parent=47 // pred_check
        %p2699 = pneg %p225
      $region50: #{music_cnn_forward.4} parent=47 // pred_check_branch
        %2701 = sbr.rel (%p2699) target = $region52
      $region51: #{music_cnn_forward.4} parent=47 // pred_region
        %s2702 = smul.u32 20, %s23
      $region52: #{music_cnn_forward.4} parent=47 // pred_fallthru
        _
    $region48: #{music_cnn_forward.4} parent=5 // pred_fallthru
      _
    %p2703 = scmp.le.s32.totalorder 2, %s13
    // Predicated region
    $region53: #{music_cnn_forward.4} parent=5 // pred_check
      %p2704 = pneg %p2703
    $region54: #{music_cnn_forward.4} parent=5 // pred_check_branch
      %2706 = sbr.rel (%p2704) target = $region56
    $region55: #{music_cnn_forward.4} parent=5 // pred_region
      %s2707 = ssub.s32 %s13, 2
      // Predicated region
      $region57: #{music_cnn_forward.4} parent=55 // pred_check
        %p2708 = pneg %p231
      $region58: #{music_cnn_forward.4} parent=55 // pred_check_branch
        %2710 = sbr.rel (%p2708) target = $region60
      $region59: #{music_cnn_forward.4} parent=55 // pred_region
        %s2711 = smul.u32 20, %s25
        %p2712 = scmp.lt.s32.totalorder %s24, 1
        %s2713 = scalar_select %p2712, %s24, 1
        %p2714 = scmp.lt.s32.totalorder %s2711, 39
        %s2715 = scalar_select %p2714, %s2711, 39
        %s2716 = smul.addr %s2713, 40
        %s2717 = sadd.s32 %s2715, %s2716
        %s2718 = smul.addr %s2717, 4
        %s2719 = scalar_lea.vmem %s7, %s2718
      $region60: #{music_cnn_forward.4} parent=55 // pred_fallthru
        _
    $region56: #{music_cnn_forward.4} parent=5 // pred_fallthru
      _
  $region6: #{music_cnn_forward.4} parent=0 // loop_footer
    %s17 = sadd.s32 1, %s13
  $region7: #{music_cnn_forward.4} parent=0 // loop_footer_branch
    %12 = sbr.rel target = $region3
  $region8: #{music_cnn_forward.4} parent=0 // loop_exit
    _

// kernel: music_cnn_forward.5
$region0: #{music_cnn_forward.5}
  #allocation0 [shape = 'u32[]', space=smem, size = 0x4, offset = 0x4, fixed_abs, tag = 'smem constant byte address 0x4 - core index']
  #allocation1 [shape = 'u32[144,128]{1,0:T(1,128)}', space=vmem, size = 0x12000, scoped, tag = 'internal scratch']
  #allocation2 [shape = 'f32[2,128]{1,0:T(2,128)}', space=vmem, size = 0x400, scoped, tag = 'scratch operand']
  %s0 = inlined_call_operand.vmem [shape: bf16[2,20480], index: 0, kind: input, shape index: {}]
  %s1 = inlined_call_operand.vmem [shape: bf16[20480,128], index: 1, kind: input, shape index: {}]
  %s2 = inlined_call_operand.vmem [shape: f32[1,128], index: 2, kind: input, shape index: {}]
  %s3 = inlined_call_operand.vmem [shape: f32[128,10], index: 3, kind: input, shape index: {}]
  %s4 = inlined_call_operand.vmem [shape: f32[1,10], index: 4, kind: input, shape index: {}]
  %s5 = inlined_call_operand.hbm [shape: f32[2,10], index: 5, kind: output, shape index: {}]
  %s6 = sld [smem:[#allocation0]]
  $region61: #{music_cnn_forward.5} parent=0
    _
  %s8 = ssub.s32 1, %s6
  %s9 = scalar_select 0, %s8, %s6
  $region1: #{music_cnn_forward.5} parent=0
    #allocation3 [shape = 'u8[1024]{0}', space=vmem, size = 0x400, scoped, tag = 'output window, operand 0, single buffered']
    #allocation4 [shape = 's32[2]{0}', space=sflag, size = 0x8, scoped, tag = 'scoped memory for music_cnn_forward.5']
    %10 = vsyncpa [#allocation4], 0
    loop: start=0, step=1, limit=7
    $region2: #{music_cnn_forward.5} parent=1 // loop_pre_header
      _
    $region3: #{music_cnn_forward.5} parent=1 // loop_header
      %s12 = sphi 0, %s16
      %p13 = scmp.ge.s32.totalorder %s12, 7
      %s22 = sphi 0, %s24
      %s25 = sphi 0, %s22
      %s26 = sphi 0, %s25
      %s42 = sphi 0, %s26
      %s48 = sphi 0, %s50
      %s51 = sphi 0, %s48
      %s52 = sphi 0, %s51
      %s68 = sphi 0, %s52
      %s72 = sphi 0, %s72
      %s74 = sphi 0, %s72
      %s75 = sphi 0, %s74
      %s89 = sphi 0, %s75
      %s93 = sphi 0, %s93
      %s95 = sphi 0, %s93
      %s96 = sphi 0, %s95
      %s110 = sphi 0, %s96
      %s114 = sphi 0, %s114
      %s116 = sphi 0, %s114
      %s117 = sphi 0, %s116
      %s131 = sphi 0, %s117
      %s135 = sphi 0, %s135
      %s137 = sphi 0, %s135
      %s138 = sphi 0, %s137
      %s152 = sphi 0, %s138
    $region4: #{music_cnn_forward.5} parent=1 // loop_header_branch
      %15 = sbr.rel (%p13) target = $region8
    $region5: #{music_cnn_forward.5} parent=1 // loop_body
      %s17 = ssub.s32 %s12, 1
      %s18 = ssub.s32 %s12, 2
      %s19 = sadd.s32 %s12, 1
      %s20 = ssub.s32 %s12, %s19
      %p21 = scmp.eq.s32.totalorder %s20, 0
      %s23 = sadd.s32 %s22, 1
      %s24 = scalar_select %p21, %s22, %s23
      %p27 = pneg %p21
      %p28 = scmp.eq.s32.totalorder %s12, 4
      %p29 = por %p27, %p28
      %p30 = scmp.ne.s32.totalorder %s22, %s25
      %p31 = scmp.eq.s32.totalorder %s12, 0
      %p32 = por %p30, %p31
      %p33 = scmp.ne.s32.totalorder %s22, %s25
      %p34 = scmp.eq.s32.totalorder %s17, 4
      %p35 = por %p33, %p34
      %p36 = scmp.ne.s32.totalorder %s25, %s26
      %p37 = scmp.eq.s32.totalorder %s17, 0
      %p38 = por %p36, %p37
      %p39 = scmp.ne.s32.totalorder %s25, %s26
      %p40 = scmp.eq.s32.totalorder %s18, 4
      %p41 = por %p39, %p40
      %p43 = scmp.ne.s32.totalorder %s26, %s42
      %p44 = scmp.eq.s32.totalorder %s18, 0
      %p45 = por %p43, %p44
      %s46 = ssub.s32 %s12, %s19
      %p47 = scmp.eq.s32.totalorder %s46, 0
      %s49 = sadd.s32 %s48, 1
      %s50 = scalar_select %p47, %s48, %s49
      %p53 = pneg %p47
      %p54 = scmp.eq.s32.totalorder %s12, 4
      %p55 = por %p53, %p54
      %p56 = scmp.ne.s32.totalorder %s48, %s51
      %p57 = scmp.eq.s32.totalorder %s12, 0
      %p58 = por %p56, %p57
      %p59 = scmp.ne.s32.totalorder %s48, %s51
      %p60 = scmp.eq.s32.totalorder %s17, 4
      %p61 = por %p59, %p60
      %p62 = scmp.ne.s32.totalorder %s51, %s52
      %p63 = scmp.eq.s32.totalorder %s17, 0
      %p64 = por %p62, %p63
      %p65 = scmp.ne.s32.totalorder %s51, %s52
      %p66 = scmp.eq.s32.totalorder %s18, 4
      %p67 = por %p65, %p66
      %p69 = scmp.ne.s32.totalorder %s52, %s68
      %p70 = scmp.eq.s32.totalorder %s18, 0
      %p71 = por %p69, %p70
      %s73 = sadd.s32 %s72, 1
      %p76 = scmp.eq.s32.totalorder %s12, 4
      %p77 = scmp.ne.s32.totalorder %s72, %s74
      %p78 = scmp.eq.s32.totalorder %s12, 0
      %p79 = por %p77, %p78
      %p80 = scmp.ne.s32.totalorder %s72, %s74
      %p81 = scmp.eq.s32.totalorder %s17, 4
      %p82 = por %p80, %p81
      %p83 = scmp.ne.s32.totalorder %s74, %s75
      %p84 = scmp.eq.s32.totalorder %s17, 0
      %p85 = por %p83, %p84
      %p86 = scmp.ne.s32.totalorder %s74, %s75
      %p87 = scmp.eq.s32.totalorder %s18, 4
      %p88 = por %p86, %p87
      %p90 = scmp.ne.s32.totalorder %s75, %s89
      %p91 = scmp.eq.s32.totalorder %s18, 0
      %p92 = por %p90, %p91
      %s94 = sadd.s32 %s93, 1
      %p97 = scmp.eq.s32.totalorder %s12, 4
      %p98 = scmp.ne.s32.totalorder %s93, %s95
      %p99 = scmp.eq.s32.totalorder %s12, 0
      %p100 = por %p98, %p99
      %p101 = scmp.ne.s32.totalorder %s93, %s95
      %p102 = scmp.eq.s32.totalorder %s17, 4
      %p103 = por %p101, %p102
      %p104 = scmp.ne.s32.totalorder %s95, %s96
      %p105 = scmp.eq.s32.totalorder %s17, 0
      %p106 = por %p104, %p105
      %p107 = scmp.ne.s32.totalorder %s95, %s96
      %p108 = scmp.eq.s32.totalorder %s18, 4
      %p109 = por %p107, %p108
      %p111 = scmp.ne.s32.totalorder %s96, %s110
      %p112 = scmp.eq.s32.totalorder %s18, 0
      %p113 = por %p111, %p112
      %s115 = sadd.s32 %s114, 1
      %p118 = scmp.eq.s32.totalorder %s12, 4
      %p119 = scmp.ne.s32.totalorder %s114, %s116
      %p120 = scmp.eq.s32.totalorder %s12, 0
      %p121 = por %p119, %p120
      %p122 = scmp.ne.s32.totalorder %s114, %s116
      %p123 = scmp.eq.s32.totalorder %s17, 4
      %p124 = por %p122, %p123
      %p125 = scmp.ne.s32.totalorder %s116, %s117
      %p126 = scmp.eq.s32.totalorder %s17, 0
      %p127 = por %p125, %p126
      %p128 = scmp.ne.s32.totalorder %s116, %s117
      %p129 = scmp.eq.s32.totalorder %s18, 4
      %p130 = por %p128, %p129
      %p132 = scmp.ne.s32.totalorder %s117, %s131
      %p133 = scmp.eq.s32.totalorder %s18, 0
      %p134 = por %p132, %p133
      %s136 = sadd.s32 %s135, 1
      %p139 = scmp.eq.s32.totalorder %s12, 4
      %p140 = scmp.ne.s32.totalorder %s135, %s137
      %p141 = scmp.eq.s32.totalorder %s12, 0
      %p142 = por %p140, %p141
      %p143 = scmp.ne.s32.totalorder %s135, %s137
      %p144 = scmp.eq.s32.totalorder %s17, 4
      %p145 = por %p143, %p144
      %p146 = scmp.ne.s32.totalorder %s137, %s138
      %p147 = scmp.eq.s32.totalorder %s17, 0
      %p148 = por %p146, %p147
      %p149 = scmp.ne.s32.totalorder %s137, %s138
      %p150 = scmp.eq.s32.totalorder %s18, 4
      %p151 = por %p149, %p150
      %p153 = scmp.ne.s32.totalorder %s138, %s152
      %p154 = scmp.eq.s32.totalorder %s18, 0
      %p155 = por %p153, %p154
      %p156 = scmp.le.s32.totalorder 1, %s12
      %p157 = scmp.lt.s32.totalorder %s12, 6
      %p158 = pnand %p156, %p157
      %p159 = pneg %p158
      // Predicated region
      $region9: #{music_cnn_forward.5} parent=5 // pred_check
        _
      $region10: #{music_cnn_forward.5} parent=5 // pred_check_branch
        %161 = sbr.rel (%p158) target = $region12
      $region11: #{music_cnn_forward.5} parent=5 // pred_region
        %s162 = ssub.s32 %s12, 1
        // Predicated region
        $region13: #{music_cnn_forward.5} parent=11 // pred_check
          %p163 = pneg %p85
        $region14: #{music_cnn_forward.5} parent=11 // pred_check_branch
          %165 = sbr.rel (%p163) target = $region16
        $region15: #{music_cnn_forward.5} parent=11 // pred_region
          _
        $region16: #{music_cnn_forward.5} parent=11 // pred_fallthru
          _
        // Predicated region
        $region17: #{music_cnn_forward.5} parent=11 // pred_check
          %p166 = pneg %p106
        $region18: #{music_cnn_forward.5} parent=11 // pred_check_branch
          %168 = sbr.rel (%p166) target = $region20
        $region19: #{music_cnn_forward.5} parent=11 // pred_region
          _
        $region20: #{music_cnn_forward.5} parent=11 // pred_fallthru
          _
        // Predicated region
        $region21: #{music_cnn_forward.5} parent=11 // pred_check
          %p169 = pneg %p127
        $region22: #{music_cnn_forward.5} parent=11 // pred_check_branch
          %171 = sbr.rel (%p169) target = $region24
        $region23: #{music_cnn_forward.5} parent=11 // pred_region
          _
        $region24: #{music_cnn_forward.5} parent=11 // pred_fallthru
          _
      $region12: #{music_cnn_forward.5} parent=5 // pred_fallthru
        _
      %p172 = scmp.lt.s32.totalorder %s12, 5
      // Predicated region
      $region25: #{music_cnn_forward.5} parent=5 // pred_check
        %p173 = pneg %p172
      $region26: #{music_cnn_forward.5} parent=5 // pred_check_branch
        %175 = sbr.rel (%p173) target = $region28
      $region27: #{music_cnn_forward.5} parent=5 // pred_region
        // Predicated region
        $region29: #{music_cnn_forward.5} parent=27 // pred_check
          %p176 = pneg %p32
        $region30: #{music_cnn_forward.5} parent=27 // pred_check_branch
          %178 = sbr.rel (%p176) target = $region32
        $region31: #{music_cnn_forward.5} parent=27 // pred_region
          %s179 = smul.u32 32, %s12
          %p180 = scmp.lt.s32.totalorder %s179, 159
          %s181 = scalar_select %p180, %s179, 159
          %s182 = scalar_lea.vmem %s0, %s181
          %s183 = smul.u32 32, %s12
        $region32: #{music_cnn_forward.5} parent=27 // pred_fallthru
          _
        // Predicated region
        $region33: #{music_cnn_forward.5} parent=27 // pred_check
          %p184 = pneg %p58
        $region34: #{music_cnn_forward.5} parent=27 // pred_check_branch
          %186 = sbr.rel (%p184) target = $region36
        $region35: #{music_cnn_forward.5} parent=27 // pred_region
          %s187 = smul.u32 512, %s12
          %p188 = scmp.lt.s32.totalorder %s187, 2559
          %s189 = scalar_select %p188, %s187, 2559
          %s190 = smul.addr %s189, 4
          %s191 = scalar_lea.vmem %s1, %s190
          %s192 = smul.u32 512, %s12
        $region36: #{music_cnn_forward.5} parent=27 // pred_fallthru
          _
      $region28: #{music_cnn_forward.5} parent=5 // pred_fallthru
        _
      %p193 = scmp.le.s32.totalorder 1, %s12
      %p194 = scmp.lt.s32.totalorder %s12, 6
      %p195 = pnand %p193, %p194
      %p196 = pneg %p195
      // Predicated region
      $region37: #{music_cnn_forward.5} parent=5 // pred_check
        _
      $region38: #{music_cnn_forward.5} parent=5 // pred_check_branch
        %198 = sbr.rel (%p195) target = $region40
      $region39: #{music_cnn_forward.5} parent=5 // pred_region
        %s199 = ssub.s32 %s12, 1
        %s200 = smul.u32 32, %s17
        %p201 = scmp.lt.s32.totalorder %s200, 159
        %s202 = scalar_select %p201, %s200, 159
        %s203 = scalar_lea.vmem %s0, %s202
        %p204 = pneg %p38
        %p205 = pneg %p35
        %s206 = smul.u32 512, %s17
        %p207 = scmp.lt.s32.totalorder %s206, 2559
        %s208 = scalar_select %p207, %s206, 2559
        %s209 = smul.addr %s208, 4
        %s210 = scalar_lea.vmem %s1, %s209
        %p211 = pneg %p64
        %p212 = pneg %p61
        %p213 = pneg %p85
        %p214 = pneg %p82
        %p215 = pneg %p106
        %p216 = pneg %p103
        %p217 = pneg %p127
        %p218 = pneg %p124
        %p219 = pneg %p148
        %p220 = pneg %p145
        %s221 = smul.u32 32, %s17
        %p222 = scmp.lt.s32.totalorder %s221, 159
        %s223 = scalar_select %p222, %s221, 159
        %s224 = scalar_lea.vmem %s0, %s223
        %s225 = smul.u32 32, %s17
        %s226 = smul.u32 512, %s17
        %p227 = scmp.lt.s32.totalorder %s226, 2559
        %s228 = scalar_select %p227, %s226, 2559
        %s229 = smul.addr %s228, 4
        %s230 = scalar_lea.vmem %s1, %s229
        %s231 = smul.u32 512, %s17
        %p233 = scmp.eq.s32.totalorder %s17, 0
        // Predicated region
        $region41: #{music_cnn_forward.5} parent=39 // pred_check
          %p234 = pneg %p233
        $region42: #{music_cnn_forward.5} parent=39 // pred_check_branch
          %236 = sbr.rel (%p234) target = $region44
        $region43: #{music_cnn_forward.5} parent=39 // pred_region
          %237 = vst [vmem:[#allocation2] sm:$0x3] 0.0
        $region44: #{music_cnn_forward.5} parent=39 // pred_fallthru
          _
        %v238 = vld [vmem:[#allocation2] sm:$0x3]
        %v239 = vld [vmem:[%s224] sm:$0xff]
        %v240 = vld [vmem:[%s224 + $0x8] sm:$0xff]
        %v241 = vld [vmem:[%s224 + $0x10] sm:$0xff]
        %v242 = vld [vmem:[%s224 + $0x18] sm:$0xff]
        %v243 = vld [vmem:[%s230] sm:$0xf]
        %v244 = vld [vmem:[%s230 + $0x4] sm:$0xf]
        %v245 = vld [vmem:[%s230 + $0x8] sm:$0xf]
        %v246 = vld [vmem:[%s230 + $0xc] sm:$0xf]
        %v247 = vld [vmem:[%s230 + $0x10] sm:$0xf]
        %v248 = vld [vmem:[%s230 + $0x14] sm:$0xf]
        %v249 = vld [vmem:[%s230 + $0x18] sm:$0xf]
        %v250 = vld [vmem:[%s230 + $0x1c] sm:$0xf]
        %v251 = vld [vmem:[%s230 + $0x20] sm:$0xf]
        %v252 = vld [vmem:[%s230 + $0x24] sm:$0xf]
        %v253 = vld [vmem:[%s230 + $0x28] sm:$0xf]
        %v254 = vld [vmem:[%s230 + $0x2c] sm:$0xf]
        %v255 = vld [vmem:[%s230 + $0x30] sm:$0xf]
        %v256 = vld [vmem:[%s230 + $0x34] sm:$0xf]
        %v257 = vld [vmem:[%s230 + $0x38] sm:$0xf]
        %v258 = vld [vmem:[%s230 + $0x3c] sm:$0xf]
        %v259 = vld [vmem:[%s230 + $0x40] sm:$0xf]
        %v260 = vld [vmem:[%s230 + $0x44] sm:$0xf]
        %v261 = vld [vmem:[%s230 + $0x48] sm:$0xf]
        %v262 = vld [vmem:[%s230 + $0x4c] sm:$0xf]
        %v263 = vld [vmem:[%s230 + $0x50] sm:$0xf]
        %v264 = vld [vmem:[%s230 + $0x54] sm:$0xf]
        %v265 = vld [vmem:[%s230 + $0x58] sm:$0xf]
        %v266 = vld [vmem:[%s230 + $0x5c] sm:$0xf]
        %v267 = vld [vmem:[%s230 + $0x60] sm:$0xf]
        %v268 = vld [vmem:[%s230 + $0x64] sm:$0xf]
        %v269 = vld [vmem:[%s230 + $0x68] sm:$0xf]
        %v270 = vld [vmem:[%s230 + $0x6c] sm:$0xf]
        %v271 = vld [vmem:[%s230 + $0x70] sm:$0xf]
        %v272 = vld [vmem:[%s230 + $0x74] sm:$0xf]
        %v273 = vld [vmem:[%s230 + $0x78] sm:$0xf]
        %v274 = vld [vmem:[%s230 + $0x7c] sm:$0xf]
        %v275 = vld [vmem:[%s230 + $0x80] sm:$0xf]
        %v276 = vld [vmem:[%s230 + $0x84] sm:$0xf]
        %v277 = vld [vmem:[%s230 + $0x88] sm:$0xf]
        %v278 = vld [vmem:[%s230 + $0x8c] sm:$0xf]
        %v279 = vld [vmem:[%s230 + $0x90] sm:$0xf]
        %v280 = vld [vmem:[%s230 + $0x94] sm:$0xf]
        %v281 = vld [vmem:[%s230 + $0x98] sm:$0xf]
        %v282 = vld [vmem:[%s230 + $0x9c] sm:$0xf]
        %v283 = vld [vmem:[%s230 + $0xa0] sm:$0xf]
        %v284 = vld [vmem:[%s230 + $0xa4] sm:$0xf]
        %v285 = vld [vmem:[%s230 + $0xa8] sm:$0xf]
        %v286 = vld [vmem:[%s230 + $0xac] sm:$0xf]
        %v287 = vld [vmem:[%s230 + $0xb0] sm:$0xf]
        %v288 = vld [vmem:[%s230 + $0xb4] sm:$0xf]
        %v289 = vld [vmem:[%s230 + $0xb8] sm:$0xf]
        %v290 = vld [vmem:[%s230 + $0xbc] sm:$0xf]
        %v291 = vld [vmem:[%s230 + $0xc0] sm:$0xf]
        %v292 = vld [vmem:[%s230 + $0xc4] sm:$0xf]
        %v293 = vld [vmem:[%s230 + $0xc8] sm:$0xf]
        %v294 = vld [vmem:[%s230 + $0xcc] sm:$0xf]
        %v295 = vld [vmem:[%s230 + $0xd0] sm:$0xf]
        %v296 = vld [vmem:[%s230 + $0xd4] sm:$0xf]
        %v297 = vld [vmem:[%s230 + $0xd8] sm:$0xf]
        %v298 = vld [vmem:[%s230 + $0xdc] sm:$0xf]
        %v299 = vld [vmem:[%s230 + $0xe0] sm:$0xf]
        %v300 = vld [vmem:[%s230 + $0xe4] sm:$0xf]
        %v301 = vld [vmem:[%s230 + $0xe8] sm:$0xf]
        %v302 = vld [vmem:[%s230 + $0xec] sm:$0xf]
        %v303 = vld [vmem:[%s230 + $0xf0] sm:$0xf]
        %v304 = vld [vmem:[%s230 + $0xf4] sm:$0xf]
        %v305 = vld [vmem:[%s230 + $0xf8] sm:$0xf]
        %v306 = vld [vmem:[%s230 + $0xfc] sm:$0xf]
        %v307 = vld [vmem:[%s230 + $0x100] sm:$0xf]
        %v308 = vld [vmem:[%s230 + $0x104] sm:$0xf]
        %v309 = vld [vmem:[%s230 + $0x108] sm:$0xf]
        %v310 = vld [vmem:[%s230 + $0x10c] sm:$0xf]
        %v311 = vld [vmem:[%s230 + $0x110] sm:$0xf]
        %v312 = vld [vmem:[%s230 + $0x114] sm:$0xf]
        %v313 = vld [vmem:[%s230 + $0x118] sm:$0xf]
        %v314 = vld [vmem:[%s230 + $0x11c] sm:$0xf]
        %v315 = vld [vmem:[%s230 + $0x120] sm:$0xf]
        %v316 = vld [vmem:[%s230 + $0x124] sm:$0xf]
        %v317 = vld [vmem:[%s230 + $0x128] sm:$0xf]
        %v318 = vld [vmem:[%s230 + $0x12c] sm:$0xf]
        %v319 = vld [vmem:[%s230 + $0x130] sm:$0xf]
        %v320 = vld [vmem:[%s230 + $0x134] sm:$0xf]
        %v321 = vld [vmem:[%s230 + $0x138] sm:$0xf]
        %v322 = vld [vmem:[%s230 + $0x13c] sm:$0xf]
        %v323 = vld [vmem:[%s230 + $0x140] sm:$0xf]
        %v324 = vld [vmem:[%s230 + $0x144] sm:$0xf]
        %v325 = vld [vmem:[%s230 + $0x148] sm:$0xf]
        %v326 = vld [vmem:[%s230 + $0x14c] sm:$0xf]
        %v327 = vld [vmem:[%s230 + $0x150] sm:$0xf]
        %v328 = vld [vmem:[%s230 + $0x154] sm:$0xf]
        %v329 = vld [vmem:[%s230 + $0x158] sm:$0xf]
        %v330 = vld [vmem:[%s230 + $0x15c] sm:$0xf]
        %v331 = vld [vmem:[%s230 + $0x160] sm:$0xf]
        %v332 = vld [vmem:[%s230 + $0x164] sm:$0xf]
        %v333 = vld [vmem:[%s230 + $0x168] sm:$0xf]
        %v334 = vld [vmem:[%s230 + $0x16c] sm:$0xf]
        %v335 = vld [vmem:[%s230 + $0x170] sm:$0xf]
        %v336 = vld [vmem:[%s230 + $0x174] sm:$0xf]
        %v337 = vld [vmem:[%s230 + $0x178] sm:$0xf]
        %v338 = vld [vmem:[%s230 + $0x17c] sm:$0xf]
        %v339 = vld [vmem:[%s230 + $0x180] sm:$0xf]
        %v340 = vld [vmem:[%s230 + $0x184] sm:$0xf]
        %v341 = vld [vmem:[%s230 + $0x188] sm:$0xf]
        %v342 = vld [vmem:[%s230 + $0x18c] sm:$0xf]
        %v343 = vld [vmem:[%s230 + $0x190] sm:$0xf]
        %v344 = vld [vmem:[%s230 + $0x194] sm:$0xf]
        %v345 = vld [vmem:[%s230 + $0x198] sm:$0xf]
        %v346 = vld [vmem:[%s230 + $0x19c] sm:$0xf]
        %v347 = vld [vmem:[%s230 + $0x1a0] sm:$0xf]
        %v348 = vld [vmem:[%s230 + $0x1a4] sm:$0xf]
        %v349 = vld [vmem:[%s230 + $0x1a8] sm:$0xf]
        %v350 = vld [vmem:[%s230 + $0x1ac] sm:$0xf]
        %v351 = vld [vmem:[%s230 + $0x1b0] sm:$0xf]
        %v352 = vld [vmem:[%s230 + $0x1b4] sm:$0xf]
        %v353 = vld [vmem:[%s230 + $0x1b8] sm:$0xf]
        %v354 = vld [vmem:[%s230 + $0x1bc] sm:$0xf]
        %v355 = vld [vmem:[%s230 + $0x1c0] sm:$0xf]
        %v356 = vld [vmem:[%s230 + $0x1c4] sm:$0xf]
        %v357 = vld [vmem:[%s230 + $0x1c8] sm:$0xf]
        %v358 = vld [vmem:[%s230 + $0x1cc] sm:$0xf]
        %v359 = vld [vmem:[%s230 + $0x1d0] sm:$0xf]
        %v360 = vld [vmem:[%s230 + $0x1d4] sm:$0xf]
        %v361 = vld [vmem:[%s230 + $0x1d8] sm:$0xf]
        %v362 = vld [vmem:[%s230 + $0x1dc] sm:$0xf]
        %v363 = vld [vmem:[%s230 + $0x1e0] sm:$0xf]
        %v364 = vld [vmem:[%s230 + $0x1e4] sm:$0xf]
        %v365 = vld [vmem:[%s230 + $0x1e8] sm:$0xf]
        %v366 = vld [vmem:[%s230 + $0x1ec] sm:$0xf]
        %v367 = vld [vmem:[%s230 + $0x1f0] sm:$0xf]
        %v368 = vld [vmem:[%s230 + $0x1f4] sm:$0xf]
        %v369 = vld [vmem:[%s230 + $0x1f8] sm:$0xf]
        %v370 = vld [vmem:[%s230 + $0x1fc] sm:$0xf]
        %v371 = vld [vmem:[%s230 + $0x200] sm:$0xf]
        %v372 = vld [vmem:[%s230 + $0x204] sm:$0xf]
        %v373 = vld [vmem:[%s230 + $0x208] sm:$0xf]
        %v374 = vld [vmem:[%s230 + $0x20c] sm:$0xf]
        %v375 = vld [vmem:[%s230 + $0x210] sm:$0xf]
        %v376 = vld [vmem:[%s230 + $0x214] sm:$0xf]
        %v377 = vld [vmem:[%s230 + $0x218] sm:$0xf]
        %v378 = vld [vmem:[%s230 + $0x21c] sm:$0xf]
        %v379 = vld [vmem:[%s230 + $0x220] sm:$0xf]
        %v380 = vld [vmem:[%s230 + $0x224] sm:$0xf]
        %v381 = vld [vmem:[%s230 + $0x228] sm:$0xf]
        %v382 = vld [vmem:[%s230 + $0x22c] sm:$0xf]
        %v383 = vld [vmem:[%s230 + $0x230] sm:$0xf]
        %v384 = vld [vmem:[%s230 + $0x234] sm:$0xf]
        %v385 = vld [vmem:[%s230 + $0x238] sm:$0xf]
        %v386 = vld [vmem:[%s230 + $0x23c] sm:$0xf]
        %v387 = vld [vmem:[%s230 + $0x240] sm:$0xf]
        %v388 = vld [vmem:[%s230 + $0x244] sm:$0xf]
        %v389 = vld [vmem:[%s230 + $0x248] sm:$0xf]
        %v390 = vld [vmem:[%s230 + $0x24c] sm:$0xf]
        %v391 = vld [vmem:[%s230 + $0x250] sm:$0xf]
        %v392 = vld [vmem:[%s230 + $0x254] sm:$0xf]
        %v393 = vld [vmem:[%s230 + $0x258] sm:$0xf]
        %v394 = vld [vmem:[%s230 + $0x25c] sm:$0xf]
        %v395 = vld [vmem:[%s230 + $0x260] sm:$0xf]
        %v396 = vld [vmem:[%s230 + $0x264] sm:$0xf]
        %v397 = vld [vmem:[%s230 + $0x268] sm:$0xf]
        %v398 = vld [vmem:[%s230 + $0x26c] sm:$0xf]
        %v399 = vld [vmem:[%s230 + $0x270] sm:$0xf]
        %v400 = vld [vmem:[%s230 + $0x274] sm:$0xf]
        %v401 = vld [vmem:[%s230 + $0x278] sm:$0xf]
        %v402 = vld [vmem:[%s230 + $0x27c] sm:$0xf]
        %v403 = vld [vmem:[%s230 + $0x280] sm:$0xf]
        %v404 = vld [vmem:[%s230 + $0x284] sm:$0xf]
        %v405 = vld [vmem:[%s230 + $0x288] sm:$0xf]
        %v406 = vld [vmem:[%s230 + $0x28c] sm:$0xf]
        %v407 = vld [vmem:[%s230 + $0x290] sm:$0xf]
        %v408 = vld [vmem:[%s230 + $0x294] sm:$0xf]
        %v409 = vld [vmem:[%s230 + $0x298] sm:$0xf]
        %v410 = vld [vmem:[%s230 + $0x29c] sm:$0xf]
        %v411 = vld [vmem:[%s230 + $0x2a0] sm:$0xf]
        %v412 = vld [vmem:[%s230 + $0x2a4] sm:$0xf]
        %v413 = vld [vmem:[%s230 + $0x2a8] sm:$0xf]
        %v414 = vld [vmem:[%s230 + $0x2ac] sm:$0xf]
        %v415 = vld [vmem:[%s230 + $0x2b0] sm:$0xf]
        %v416 = vld [vmem:[%s230 + $0x2b4] sm:$0xf]
        %v417 = vld [vmem:[%s230 + $0x2b8] sm:$0xf]
        %v418 = vld [vmem:[%s230 + $0x2bc] sm:$0xf]
        %v419 = vld [vmem:[%s230 + $0x2c0] sm:$0xf]
        %v420 = vld [vmem:[%s230 + $0x2c4] sm:$0xf]
        %v421 = vld [vmem:[%s230 + $0x2c8] sm:$0xf]
        %v422 = vld [vmem:[%s230 + $0x2cc] sm:$0xf]
        %v423 = vld [vmem:[%s230 + $0x2d0] sm:$0xf]
        %v424 = vld [vmem:[%s230 + $0x2d4] sm:$0xf]
        %v425 = vld [vmem:[%s230 + $0x2d8] sm:$0xf]
        %v426 = vld [vmem:[%s230 + $0x2dc] sm:$0xf]
        %v427 = vld [vmem:[%s230 + $0x2e0] sm:$0xf]
        %v428 = vld [vmem:[%s230 + $0x2e4] sm:$0xf]
        %v429 = vld [vmem:[%s230 + $0x2e8] sm:$0xf]
        %v430 = vld [vmem:[%s230 + $0x2ec] sm:$0xf]
        %v431 = vld [vmem:[%s230 + $0x2f0] sm:$0xf]
        %v432 = vld [vmem:[%s230 + $0x2f4] sm:$0xf]
        %v433 = vld [vmem:[%s230 + $0x2f8] sm:$0xf]
        %v434 = vld [vmem:[%s230 + $0x2fc] sm:$0xf]
        %v435 = vld [vmem:[%s230 + $0x300] sm:$0xf]
        %v436 = vld [vmem:[%s230 + $0x304] sm:$0xf]
        %v437 = vld [vmem:[%s230 + $0x308] sm:$0xf]
        %v438 = vld [vmem:[%s230 + $0x30c] sm:$0xf]
        %v439 = vld [vmem:[%s230 + $0x310] sm:$0xf]
        %v440 = vld [vmem:[%s230 + $0x314] sm:$0xf]
        %v441 = vld [vmem:[%s230 + $0x318] sm:$0xf]
        %v442 = vld [vmem:[%s230 + $0x31c] sm:$0xf]
        %v443 = vld [vmem:[%s230 + $0x320] sm:$0xf]
        %v444 = vld [vmem:[%s230 + $0x324] sm:$0xf]
        %v445 = vld [vmem:[%s230 + $0x328] sm:$0xf]
        %v446 = vld [vmem:[%s230 + $0x32c] sm:$0xf]
        %v447 = vld [vmem:[%s230 + $0x330] sm:$0xf]
        %v448 = vld [vmem:[%s230 + $0x334] sm:$0xf]
        %v449 = vld [vmem:[%s230 + $0x338] sm:$0xf]
        %v450 = vld [vmem:[%s230 + $0x33c] sm:$0xf]
        %v451 = vld [vmem:[%s230 + $0x340] sm:$0xf]
        %v452 = vld [vmem:[%s230 + $0x344] sm:$0xf]
        %v453 = vld [vmem:[%s230 + $0x348] sm:$0xf]
        %v454 = vld [vmem:[%s230 + $0x34c] sm:$0xf]
        %v455 = vld [vmem:[%s230 + $0x350] sm:$0xf]
        %v456 = vld [vmem:[%s230 + $0x354] sm:$0xf]
        %v457 = vld [vmem:[%s230 + $0x358] sm:$0xf]
        %v458 = vld [vmem:[%s230 + $0x35c] sm:$0xf]
        %v459 = vld [vmem:[%s230 + $0x360] sm:$0xf]
        %v460 = vld [vmem:[%s230 + $0x364] sm:$0xf]
        %v461 = vld [vmem:[%s230 + $0x368] sm:$0xf]
        %v462 = vld [vmem:[%s230 + $0x36c] sm:$0xf]
        %v463 = vld [vmem:[%s230 + $0x370] sm:$0xf]
        %v464 = vld [vmem:[%s230 + $0x374] sm:$0xf]
        %v465 = vld [vmem:[%s230 + $0x378] sm:$0xf]
        %v466 = vld [vmem:[%s230 + $0x37c] sm:$0xf]
        %v467 = vld [vmem:[%s230 + $0x380] sm:$0xf]
        %v468 = vld [vmem:[%s230 + $0x384] sm:$0xf]
        %v469 = vld [vmem:[%s230 + $0x388] sm:$0xf]
        %v470 = vld [vmem:[%s230 + $0x38c] sm:$0xf]
        %v471 = vld [vmem:[%s230 + $0x390] sm:$0xf]
        %v472 = vld [vmem:[%s230 + $0x394] sm:$0xf]
        %v473 = vld [vmem:[%s230 + $0x398] sm:$0xf]
        %v474 = vld [vmem:[%s230 + $0x39c] sm:$0xf]
        %v475 = vld [vmem:[%s230 + $0x3a0] sm:$0xf]
        %v476 = vld [vmem:[%s230 + $0x3a4] sm:$0xf]
        %v477 = vld [vmem:[%s230 + $0x3a8] sm:$0xf]
        %v478 = vld [vmem:[%s230 + $0x3ac] sm:$0xf]
        %v479 = vld [vmem:[%s230 + $0x3b0] sm:$0xf]
        %v480 = vld [vmem:[%s230 + $0x3b4] sm:$0xf]
        %v481 = vld [vmem:[%s230 + $0x3b8] sm:$0xf]
        %v482 = vld [vmem:[%s230 + $0x3bc] sm:$0xf]
        %v483 = vld [vmem:[%s230 + $0x3c0] sm:$0xf]
        %v484 = vld [vmem:[%s230 + $0x3c4] sm:$0xf]
        %v485 = vld [vmem:[%s230 + $0x3c8] sm:$0xf]
        %v486 = vld [vmem:[%s230 + $0x3cc] sm:$0xf]
        %v487 = vld [vmem:[%s230 + $0x3d0] sm:$0xf]
        %v488 = vld [vmem:[%s230 + $0x3d4] sm:$0xf]
        %v489 = vld [vmem:[%s230 + $0x3d8] sm:$0xf]
        %v490 = vld [vmem:[%s230 + $0x3dc] sm:$0xf]
        %v491 = vld [vmem:[%s230 + $0x3e0] sm:$0xf]
        %v492 = vld [vmem:[%s230 + $0x3e4] sm:$0xf]
        %v493 = vld [vmem:[%s230 + $0x3e8] sm:$0xf]
        %v494 = vld [vmem:[%s230 + $0x3ec] sm:$0xf]
        %v495 = vld [vmem:[%s230 + $0x3f0] sm:$0xf]
        %v496 = vld [vmem:[%s230 + $0x3f4] sm:$0xf]
        %v497 = vld [vmem:[%s230 + $0x3f8] sm:$0xf]
        %v498 = vld [vmem:[%s230 + $0x3fc] sm:$0xf]
        %v499 = vld [vmem:[%s230 + $0x400] sm:$0xf]
        %v500 = vld [vmem:[%s230 + $0x404] sm:$0xf]
        %v501 = vld [vmem:[%s230 + $0x408] sm:$0xf]
        %v502 = vld [vmem:[%s230 + $0x40c] sm:$0xf]
        %v503 = vld [vmem:[%s230 + $0x410] sm:$0xf]
        %v504 = vld [vmem:[%s230 + $0x414] sm:$0xf]
        %v505 = vld [vmem:[%s230 + $0x418] sm:$0xf]
        %v506 = vld [vmem:[%s230 + $0x41c] sm:$0xf]
        %v507 = vld [vmem:[%s230 + $0x420] sm:$0xf]
        %v508 = vld [vmem:[%s230 + $0x424] sm:$0xf]
        %v509 = vld [vmem:[%s230 + $0x428] sm:$0xf]
        %v510 = vld [vmem:[%s230 + $0x42c] sm:$0xf]
        %v511 = vld [vmem:[%s230 + $0x430] sm:$0xf]
        %v512 = vld [vmem:[%s230 + $0x434] sm:$0xf]
        %v513 = vld [vmem:[%s230 + $0x438] sm:$0xf]
        %v514 = vld [vmem:[%s230 + $0x43c] sm:$0xf]
        %v515 = vld [vmem:[%s230 + $0x440] sm:$0xf]
        %v516 = vld [vmem:[%s230 + $0x444] sm:$0xf]
        %v517 = vld [vmem:[%s230 + $0x448] sm:$0xf]
        %v518 = vld [vmem:[%s230 + $0x44c] sm:$0xf]
        %v519 = vld [vmem:[%s230 + $0x450] sm:$0xf]
        %v520 = vld [vmem:[%s230 + $0x454] sm:$0xf]
        %v521 = vld [vmem:[%s230 + $0x458] sm:$0xf]
        %v522 = vld [vmem:[%s230 + $0x45c] sm:$0xf]
        %v523 = vld [vmem:[%s230 + $0x460] sm:$0xf]
        %v524 = vld [vmem:[%s230 + $0x464] sm:$0xf]
        %v525 = vld [vmem:[%s230 + $0x468] sm:$0xf]
        %v526 = vld [vmem:[%s230 + $0x46c] sm:$0xf]
        %v527 = vld [vmem:[%s230 + $0x470] sm:$0xf]
        %v528 = vld [vmem:[%s230 + $0x474] sm:$0xf]
        %v529 = vld [vmem:[%s230 + $0x478] sm:$0xf]
        %v530 = vld [vmem:[%s230 + $0x47c] sm:$0xf]
        %v531 = vld [vmem:[%s230 + $0x480] sm:$0xf]
        %v532 = vld [vmem:[%s230 + $0x484] sm:$0xf]
        %v533 = vld [vmem:[%s230 + $0x488] sm:$0xf]
        %v534 = vld [vmem:[%s230 + $0x48c] sm:$0xf]
        %v535 = vld [vmem:[%s230 + $0x490] sm:$0xf]
        %v536 = vld [vmem:[%s230 + $0x494] sm:$0xf]
        %v537 = vld [vmem:[%s230 + $0x498] sm:$0xf]
        %v538 = vld [vmem:[%s230 + $0x49c] sm:$0xf]
        %v539 = vld [vmem:[%s230 + $0x4a0] sm:$0xf]
        %v540 = vld [vmem:[%s230 + $0x4a4] sm:$0xf]
        %v541 = vld [vmem:[%s230 + $0x4a8] sm:$0xf]
        %v542 = vld [vmem:[%s230 + $0x4ac] sm:$0xf]
        %v543 = vld [vmem:[%s230 + $0x4b0] sm:$0xf]
        %v544 = vld [vmem:[%s230 + $0x4b4] sm:$0xf]
        %v545 = vld [vmem:[%s230 + $0x4b8] sm:$0xf]
        %v546 = vld [vmem:[%s230 + $0x4bc] sm:$0xf]
        %v547 = vld [vmem:[%s230 + $0x4c0] sm:$0xf]
        %v548 = vld [vmem:[%s230 + $0x4c4] sm:$0xf]
        %v549 = vld [vmem:[%s230 + $0x4c8] sm:$0xf]
        %v550 = vld [vmem:[%s230 + $0x4cc] sm:$0xf]
        %v551 = vld [vmem:[%s230 + $0x4d0] sm:$0xf]
        %v552 = vld [vmem:[%s230 + $0x4d4] sm:$0xf]
        %v553 = vld [vmem:[%s230 + $0x4d8] sm:$0xf]
        %v554 = vld [vmem:[%s230 + $0x4dc] sm:$0xf]
        %v555 = vld [vmem:[%s230 + $0x4e0] sm:$0xf]
        %v556 = vld [vmem:[%s230 + $0x4e4] sm:$0xf]
        %v557 = vld [vmem:[%s230 + $0x4e8] sm:$0xf]
        %v558 = vld [vmem:[%s230 + $0x4ec] sm:$0xf]
        %v559 = vld [vmem:[%s230 + $0x4f0] sm:$0xf]
        %v560 = vld [vmem:[%s230 + $0x4f4] sm:$0xf]
        %v561 = vld [vmem:[%s230 + $0x4f8] sm:$0xf]
        %v562 = vld [vmem:[%s230 + $0x4fc] sm:$0xf]
        %v563 = vld [vmem:[%s230 + $0x500] sm:$0xf]
        %v564 = vld [vmem:[%s230 + $0x504] sm:$0xf]
        %v565 = vld [vmem:[%s230 + $0x508] sm:$0xf]
        %v566 = vld [vmem:[%s230 + $0x50c] sm:$0xf]
        %v567 = vld [vmem:[%s230 + $0x510] sm:$0xf]
        %v568 = vld [vmem:[%s230 + $0x514] sm:$0xf]
        %v569 = vld [vmem:[%s230 + $0x518] sm:$0xf]
        %v570 = vld [vmem:[%s230 + $0x51c] sm:$0xf]
        %v571 = vld [vmem:[%s230 + $0x520] sm:$0xf]
        %v572 = vld [vmem:[%s230 + $0x524] sm:$0xf]
        %v573 = vld [vmem:[%s230 + $0x528] sm:$0xf]
        %v574 = vld [vmem:[%s230 + $0x52c] sm:$0xf]
        %v575 = vld [vmem:[%s230 + $0x530] sm:$0xf]
        %v576 = vld [vmem:[%s230 + $0x534] sm:$0xf]
        %v577 = vld [vmem:[%s230 + $0x538] sm:$0xf]
        %v578 = vld [vmem:[%s230 + $0x53c] sm:$0xf]
        %v579 = vld [vmem:[%s230 + $0x540] sm:$0xf]
        %v580 = vld [vmem:[%s230 + $0x544] sm:$0xf]
        %v581 = vld [vmem:[%s230 + $0x548] sm:$0xf]
        %v582 = vld [vmem:[%s230 + $0x54c] sm:$0xf]
        %v583 = vld [vmem:[%s230 + $0x550] sm:$0xf]
        %v584 = vld [vmem:[%s230 + $0x554] sm:$0xf]
        %v585 = vld [vmem:[%s230 + $0x558] sm:$0xf]
        %v586 = vld [vmem:[%s230 + $0x55c] sm:$0xf]
        %v587 = vld [vmem:[%s230 + $0x560] sm:$0xf]
        %v588 = vld [vmem:[%s230 + $0x564] sm:$0xf]
        %v589 = vld [vmem:[%s230 + $0x568] sm:$0xf]
        %v590 = vld [vmem:[%s230 + $0x56c] sm:$0xf]
        %v591 = vld [vmem:[%s230 + $0x570] sm:$0xf]
        %v592 = vld [vmem:[%s230 + $0x574] sm:$0xf]
        %v593 = vld [vmem:[%s230 + $0x578] sm:$0xf]
        %v594 = vld [vmem:[%s230 + $0x57c] sm:$0xf]
        %v595 = vld [vmem:[%s230 + $0x580] sm:$0xf]
        %v596 = vld [vmem:[%s230 + $0x584] sm:$0xf]
        %v597 = vld [vmem:[%s230 + $0x588] sm:$0xf]
        %v598 = vld [vmem:[%s230 + $0x58c] sm:$0xf]
        %v599 = vld [vmem:[%s230 + $0x590] sm:$0xf]
        %v600 = vld [vmem:[%s230 + $0x594] sm:$0xf]
        %v601 = vld [vmem:[%s230 + $0x598] sm:$0xf]
        %v602 = vld [vmem:[%s230 + $0x59c] sm:$0xf]
        %v603 = vld [vmem:[%s230 + $0x5a0] sm:$0xf]
        %v604 = vld [vmem:[%s230 + $0x5a4] sm:$0xf]
        %v605 = vld [vmem:[%s230 + $0x5a8] sm:$0xf]
        %v606 = vld [vmem:[%s230 + $0x5ac] sm:$0xf]
        %v607 = vld [vmem:[%s230 + $0x5b0] sm:$0xf]
        %v608 = vld [vmem:[%s230 + $0x5b4] sm:$0xf]
        %v609 = vld [vmem:[%s230 + $0x5b8] sm:$0xf]
        %v610 = vld [vmem:[%s230 + $0x5bc] sm:$0xf]
        %v611 = vld [vmem:[%s230 + $0x5c0] sm:$0xf]
        %v612 = vld [vmem:[%s230 + $0x5c4] sm:$0xf]
        %v613 = vld [vmem:[%s230 + $0x5c8] sm:$0xf]
        %v614 = vld [vmem:[%s230 + $0x5cc] sm:$0xf]
        %v615 = vld [vmem:[%s230 + $0x5d0] sm:$0xf]
        %v616 = vld [vmem:[%s230 + $0x5d4] sm:$0xf]
        %v617 = vld [vmem:[%s230 + $0x5d8] sm:$0xf]
        %v618 = vld [vmem:[%s230 + $0x5dc] sm:$0xf]
        %v619 = vld [vmem:[%s230 + $0x5e0] sm:$0xf]
        %v620 = vld [vmem:[%s230 + $0x5e4] sm:$0xf]
        %v621 = vld [vmem:[%s230 + $0x5e8] sm:$0xf]
        %v622 = vld [vmem:[%s230 + $0x5ec] sm:$0xf]
        %v623 = vld [vmem:[%s230 + $0x5f0] sm:$0xf]
        %v624 = vld [vmem:[%s230 + $0x5f4] sm:$0xf]
        %v625 = vld [vmem:[%s230 + $0x5f8] sm:$0xf]
        %v626 = vld [vmem:[%s230 + $0x5fc] sm:$0xf]
        %v627 = vld [vmem:[%s230 + $0x600] sm:$0xf]
        %v628 = vld [vmem:[%s230 + $0x604] sm:$0xf]
        %v629 = vld [vmem:[%s230 + $0x608] sm:$0xf]
        %v630 = vld [vmem:[%s230 + $0x60c] sm:$0xf]
        %v631 = vld [vmem:[%s230 + $0x610] sm:$0xf]
        %v632 = vld [vmem:[%s230 + $0x614] sm:$0xf]
        %v633 = vld [vmem:[%s230 + $0x618] sm:$0xf]
        %v634 = vld [vmem:[%s230 + $0x61c] sm:$0xf]
        %v635 = vld [vmem:[%s230 + $0x620] sm:$0xf]
        %v636 = vld [vmem:[%s230 + $0x624] sm:$0xf]
        %v637 = vld [vmem:[%s230 + $0x628] sm:$0xf]
        %v638 = vld [vmem:[%s230 + $0x62c] sm:$0xf]
        %v639 = vld [vmem:[%s230 + $0x630] sm:$0xf]
        %v640 = vld [vmem:[%s230 + $0x634] sm:$0xf]
        %v641 = vld [vmem:[%s230 + $0x638] sm:$0xf]
        %v642 = vld [vmem:[%s230 + $0x63c] sm:$0xf]
        %v643 = vld [vmem:[%s230 + $0x640] sm:$0xf]
        %v644 = vld [vmem:[%s230 + $0x644] sm:$0xf]
        %v645 = vld [vmem:[%s230 + $0x648] sm:$0xf]
        %v646 = vld [vmem:[%s230 + $0x64c] sm:$0xf]
        %v647 = vld [vmem:[%s230 + $0x650] sm:$0xf]
        %v648 = vld [vmem:[%s230 + $0x654] sm:$0xf]
        %v649 = vld [vmem:[%s230 + $0x658] sm:$0xf]
        %v650 = vld [vmem:[%s230 + $0x65c] sm:$0xf]
        %v651 = vld [vmem:[%s230 + $0x660] sm:$0xf]
        %v652 = vld [vmem:[%s230 + $0x664] sm:$0xf]
        %v653 = vld [vmem:[%s230 + $0x668] sm:$0xf]
        %v654 = vld [vmem:[%s230 + $0x66c] sm:$0xf]
        %v655 = vld [vmem:[%s230 + $0x670] sm:$0xf]
        %v656 = vld [vmem:[%s230 + $0x674] sm:$0xf]
        %v657 = vld [vmem:[%s230 + $0x678] sm:$0xf]
        %v658 = vld [vmem:[%s230 + $0x67c] sm:$0xf]
        %v659 = vld [vmem:[%s230 + $0x680] sm:$0xf]
        %v660 = vld [vmem:[%s230 + $0x684] sm:$0xf]
        %v661 = vld [vmem:[%s230 + $0x688] sm:$0xf]
        %v662 = vld [vmem:[%s230 + $0x68c] sm:$0xf]
        %v663 = vld [vmem:[%s230 + $0x690] sm:$0xf]
        %v664 = vld [vmem:[%s230 + $0x694] sm:$0xf]
        %v665 = vld [vmem:[%s230 + $0x698] sm:$0xf]
        %v666 = vld [vmem:[%s230 + $0x69c] sm:$0xf]
        %v667 = vld [vmem:[%s230 + $0x6a0] sm:$0xf]
        %v668 = vld [vmem:[%s230 + $0x6a4] sm:$0xf]
        %v669 = vld [vmem:[%s230 + $0x6a8] sm:$0xf]
        %v670 = vld [vmem:[%s230 + $0x6ac] sm:$0xf]
        %v671 = vld [vmem:[%s230 + $0x6b0] sm:$0xf]
        %v672 = vld [vmem:[%s230 + $0x6b4] sm:$0xf]
        %v673 = vld [vmem:[%s230 + $0x6b8] sm:$0xf]
        %v674 = vld [vmem:[%s230 + $0x6bc] sm:$0xf]
        %v675 = vld [vmem:[%s230 + $0x6c0] sm:$0xf]
        %v676 = vld [vmem:[%s230 + $0x6c4] sm:$0xf]
        %v677 = vld [vmem:[%s230 + $0x6c8] sm:$0xf]
        %v678 = vld [vmem:[%s230 + $0x6cc] sm:$0xf]
        %v679 = vld [vmem:[%s230 + $0x6d0] sm:$0xf]
        %v680 = vld [vmem:[%s230 + $0x6d4] sm:$0xf]
        %v681 = vld [vmem:[%s230 + $0x6d8] sm:$0xf]
        %v682 = vld [vmem:[%s230 + $0x6dc] sm:$0xf]
        %v683 = vld [vmem:[%s230 + $0x6e0] sm:$0xf]
        %v684 = vld [vmem:[%s230 + $0x6e4] sm:$0xf]
        %v685 = vld [vmem:[%s230 + $0x6e8] sm:$0xf]
        %v686 = vld [vmem:[%s230 + $0x6ec] sm:$0xf]
        %v687 = vld [vmem:[%s230 + $0x6f0] sm:$0xf]
        %v688 = vld [vmem:[%s230 + $0x6f4] sm:$0xf]
        %v689 = vld [vmem:[%s230 + $0x6f8] sm:$0xf]
        %v690 = vld [vmem:[%s230 + $0x6fc] sm:$0xf]
        %v691 = vld [vmem:[%s230 + $0x700] sm:$0xf]
        %v692 = vld [vmem:[%s230 + $0x704] sm:$0xf]
        %v693 = vld [vmem:[%s230 + $0x708] sm:$0xf]
        %v694 = vld [vmem:[%s230 + $0x70c] sm:$0xf]
        %v695 = vld [vmem:[%s230 + $0x710] sm:$0xf]
        %v696 = vld [vmem:[%s230 + $0x714] sm:$0xf]
        %v697 = vld [vmem:[%s230 + $0x718] sm:$0xf]
        %v698 = vld [vmem:[%s230 + $0x71c] sm:$0xf]
        %v699 = vld [vmem:[%s230 + $0x720] sm:$0xf]
        %v700 = vld [vmem:[%s230 + $0x724] sm:$0xf]
        %v701 = vld [vmem:[%s230 + $0x728] sm:$0xf]
        %v702 = vld [vmem:[%s230 + $0x72c] sm:$0xf]
        %v703 = vld [vmem:[%s230 + $0x730] sm:$0xf]
        %v704 = vld [vmem:[%s230 + $0x734] sm:$0xf]
        %v705 = vld [vmem:[%s230 + $0x738] sm:$0xf]
        %v706 = vld [vmem:[%s230 + $0x73c] sm:$0xf]
        %v707 = vld [vmem:[%s230 + $0x740] sm:$0xf]
        %v708 = vld [vmem:[%s230 + $0x744] sm:$0xf]
        %v709 = vld [vmem:[%s230 + $0x748] sm:$0xf]
        %v710 = vld [vmem:[%s230 + $0x74c] sm:$0xf]
        %v711 = vld [vmem:[%s230 + $0x750] sm:$0xf]
        %v712 = vld [vmem:[%s230 + $0x754] sm:$0xf]
        %v713 = vld [vmem:[%s230 + $0x758] sm:$0xf]
        %v714 = vld [vmem:[%s230 + $0x75c] sm:$0xf]
        %v715 = vld [vmem:[%s230 + $0x760] sm:$0xf]
        %v716 = vld [vmem:[%s230 + $0x764] sm:$0xf]
        %v717 = vld [vmem:[%s230 + $0x768] sm:$0xf]
        %v718 = vld [vmem:[%s230 + $0x76c] sm:$0xf]
        %v719 = vld [vmem:[%s230 + $0x770] sm:$0xf]
        %v720 = vld [vmem:[%s230 + $0x774] sm:$0xf]
        %v721 = vld [vmem:[%s230 + $0x778] sm:$0xf]
        %v722 = vld [vmem:[%s230 + $0x77c] sm:$0xf]
        %v723 = vld [vmem:[%s230 + $0x780] sm:$0xf]
        %v724 = vld [vmem:[%s230 + $0x784] sm:$0xf]
        %v725 = vld [vmem:[%s230 + $0x788] sm:$0xf]
        %v726 = vld [vmem:[%s230 + $0x78c] sm:$0xf]
        %v727 = vld [vmem:[%s230 + $0x790] sm:$0xf]
        %v728 = vld [vmem:[%s230 + $0x794] sm:$0xf]
        %v729 = vld [vmem:[%s230 + $0x798] sm:$0xf]
        %v730 = vld [vmem:[%s230 + $0x79c] sm:$0xf]
        %v731 = vld [vmem:[%s230 + $0x7a0] sm:$0xf]
        %v732 = vld [vmem:[%s230 + $0x7a4] sm:$0xf]
        %v733 = vld [vmem:[%s230 + $0x7a8] sm:$0xf]
        %v734 = vld [vmem:[%s230 + $0x7ac] sm:$0xf]
        %v735 = vld [vmem:[%s230 + $0x7b0] sm:$0xf]
        %v736 = vld [vmem:[%s230 + $0x7b4] sm:$0xf]
        %v737 = vld [vmem:[%s230 + $0x7b8] sm:$0xf]
        %v738 = vld [vmem:[%s230 + $0x7bc] sm:$0xf]
        %v739 = vld [vmem:[%s230 + $0x7c0] sm:$0xf]
        %v740 = vld [vmem:[%s230 + $0x7c4] sm:$0xf]
        %v741 = vld [vmem:[%s230 + $0x7c8] sm:$0xf]
        %v742 = vld [vmem:[%s230 + $0x7cc] sm:$0xf]
        %v743 = vld [vmem:[%s230 + $0x7d0] sm:$0xf]
        %v744 = vld [vmem:[%s230 + $0x7d4] sm:$0xf]
        %v745 = vld [vmem:[%s230 + $0x7d8] sm:$0xf]
        %v746 = vld [vmem:[%s230 + $0x7dc] sm:$0xf]
        %v747 = vld [vmem:[%s230 + $0x7e0] sm:$0xf]
        %v748 = vld [vmem:[%s230 + $0x7e4] sm:$0xf]
        %v749 = vld [vmem:[%s230 + $0x7e8] sm:$0xf]
        %v750 = vld [vmem:[%s230 + $0x7ec] sm:$0xf]
        %v751 = vld [vmem:[%s230 + $0x7f0] sm:$0xf]
        %v752 = vld [vmem:[%s230 + $0x7f4] sm:$0xf]
        %v753 = vld [vmem:[%s230 + $0x7f8] sm:$0xf]
        %v754 = vld [vmem:[%s230 + $0x7fc] sm:$0xf]
        %v759 = vcombine.high %v239, %v239
        %v761 = vunpack.c.l.s4 1966171168
        %v762 = vunpack.c.0.s8 %v761
        %v763 = vlaneseq
        %v764 = vshrl.u32 %v763, 7
        %v765 = vsub.s32 %v762, %v764
        %v766 = vrot.slane %v239, %v765
        %v768 = vunpack.c.l.s4 1966171168
        %v769 = vunpack.c.0.s8 %v768
        %v770 = vlaneseq
        %v771 = vshrl.u32 %v770, 7
        %v772 = vsub.s32 %v769, %v771
        %v773 = vrot.slane %v759, %v772
        %v774 = vcombine.high %v766, %v766
        %v775 = vcombine.high %v773, %v773
        %v777 = vunpack.c.l.s4 1966171168
        %v778 = vunpack.c.0.s8 %v777
        %v779 = vlaneseq
        %v780 = vshrl.u32 %v779, 7
        %v781 = vsub.s32 %v778, %v780
        %v782 = vrot.slane %v766, %v781
        %v784 = vunpack.c.l.s4 1966171168
        %v785 = vunpack.c.0.s8 %v784
        %v786 = vlaneseq
        %v787 = vshrl.u32 %v786, 7
        %v788 = vsub.s32 %v785, %v787
        %v789 = vrot.slane %v773, %v788
        %v791 = vunpack.c.l.s4 1966171168
        %v792 = vunpack.c.0.s8 %v791
        %v793 = vlaneseq
        %v794 = vshrl.u32 %v793, 7
        %v795 = vsub.s32 %v792, %v794
        %v796 = vrot.slane %v774, %v795
        %v798 = vunpack.c.l.s4 1966171168
        %v799 = vunpack.c.0.s8 %v798
        %v800 = vlaneseq
        %v801 = vshrl.u32 %v800, 7
        %v802 = vsub.s32 %v799, %v801
        %v803 = vrot.slane %v775, %v802
        %v804 = vcombine.high %v782, %v782
        %v805 = vcombine.high %v789, %v789
        %v806 = vcombine.high %v796, %v796
        %v807 = vcombine.high %v803, %v803
        %v808 = vcombine.high %v240, %v240
        %v810 = vunpack.c.l.s4 1966171168
        %v811 = vunpack.c.0.s8 %v810
        %v812 = vlaneseq
        %v813 = vshrl.u32 %v812, 7
        %v814 = vsub.s32 %v811, %v813
        %v815 = vrot.slane %v240, %v814
        %v817 = vunpack.c.l.s4 1966171168
        %v818 = vunpack.c.0.s8 %v817
        %v819 = vlaneseq
        %v820 = vshrl.u32 %v819, 7
        %v821 = vsub.s32 %v818, %v820
        %v822 = vrot.slane %v808, %v821
        %v823 = vcombine.high %v815, %v815
        %v824 = vcombine.high %v822, %v822
        %v826 = vunpack.c.l.s4 1966171168
        %v827 = vunpack.c.0.s8 %v826
        %v828 = vlaneseq
        %v829 = vshrl.u32 %v828, 7
        %v830 = vsub.s32 %v827, %v829
        %v831 = vrot.slane %v815, %v830
        %v833 = vunpack.c.l.s4 1966171168
        %v834 = vunpack.c.0.s8 %v833
        %v835 = vlaneseq
        %v836 = vshrl.u32 %v835, 7
        %v837 = vsub.s32 %v834, %v836
        %v838 = vrot.slane %v822, %v837
        %v840 = vunpack.c.l.s4 1966171168
        %v841 = vunpack.c.0.s8 %v840
        %v842 = vlaneseq
        %v843 = vshrl.u32 %v842, 7
        %v844 = vsub.s32 %v841, %v843
        %v845 = vrot.slane %v823, %v844
        %v847 = vunpack.c.l.s4 1966171168
        %v848 = vunpack.c.0.s8 %v847
        %v849 = vlaneseq
        %v850 = vshrl.u32 %v849, 7
        %v851 = vsub.s32 %v848, %v850
        %v852 = vrot.slane %v824, %v851
        %v853 = vcombine.high %v831, %v831
        %v854 = vcombine.high %v838, %v838
        %v855 = vcombine.high %v845, %v845
        %v856 = vcombine.high %v852, %v852
        %v857 = vcombine.high %v241, %v241
        %v859 = vunpack.c.l.s4 1966171168
        %v860 = vunpack.c.0.s8 %v859
        %v861 = vlaneseq
        %v862 = vshrl.u32 %v861, 7
        %v863 = vsub.s32 %v860, %v862
        %v864 = vrot.slane %v241, %v863
        %v866 = vunpack.c.l.s4 1966171168
        %v867 = vunpack.c.0.s8 %v866
        %v868 = vlaneseq
        %v869 = vshrl.u32 %v868, 7
        %v870 = vsub.s32 %v867, %v869
        %v871 = vrot.slane %v857, %v870
        %v872 = vcombine.high %v864, %v864
        %v873 = vcombine.high %v871, %v871
        %v875 = vunpack.c.l.s4 1966171168
        %v876 = vunpack.c.0.s8 %v875
        %v877 = vlaneseq
        %v878 = vshrl.u32 %v877, 7
        %v879 = vsub.s32 %v876, %v878
        %v880 = vrot.slane %v864, %v879
        %v882 = vunpack.c.l.s4 1966171168
        %v883 = vunpack.c.0.s8 %v882
        %v884 = vlaneseq
        %v885 = vshrl.u32 %v884, 7
        %v886 = vsub.s32 %v883, %v885
        %v887 = vrot.slane %v871, %v886
        %v889 = vunpack.c.l.s4 1966171168
        %v890 = vunpack.c.0.s8 %v889
        %v891 = vlaneseq
        %v892 = vshrl.u32 %v891, 7
        %v893 = vsub.s32 %v890, %v892
        %v894 = vrot.slane %v872, %v893
        %v896 = vunpack.c.l.s4 1966171168
        %v897 = vunpack.c.0.s8 %v896
        %v898 = vlaneseq
        %v899 = vshrl.u32 %v898, 7
        %v900 = vsub.s32 %v897, %v899
        %v901 = vrot.slane %v873, %v900
        %v902 = vcombine.high %v880, %v880
        %v903 = vcombine.high %v887, %v887
        %v904 = vcombine.high %v894, %v894
        %v905 = vcombine.high %v901, %v901
        %v906 = vcombine.high %v242, %v242
        %v908 = vunpack.c.l.s4 1966171168
        %v909 = vunpack.c.0.s8 %v908
        %v910 = vlaneseq
        %v911 = vshrl.u32 %v910, 7
        %v912 = vsub.s32 %v909, %v911
        %v913 = vrot.slane %v242, %v912
        %v915 = vunpack.c.l.s4 1966171168
        %v916 = vunpack.c.0.s8 %v915
        %v917 = vlaneseq
        %v918 = vshrl.u32 %v917, 7
        %v919 = vsub.s32 %v916, %v918
        %v920 = vrot.slane %v906, %v919
        %v921 = vcombine.high %v913, %v913
        %v922 = vcombine.high %v920, %v920
        %v924 = vunpack.c.l.s4 1966171168
        %v925 = vunpack.c.0.s8 %v924
        %v926 = vlaneseq
        %v927 = vshrl.u32 %v926, 7
        %v928 = vsub.s32 %v925, %v927
        %v929 = vrot.slane %v913, %v928
        %v931 = vunpack.c.l.s4 1966171168
        %v932 = vunpack.c.0.s8 %v931
        %v933 = vlaneseq
        %v934 = vshrl.u32 %v933, 7
        %v935 = vsub.s32 %v932, %v934
        %v936 = vrot.slane %v920, %v935
        %v938 = vunpack.c.l.s4 1966171168
        %v939 = vunpack.c.0.s8 %v938
        %v940 = vlaneseq
        %v941 = vshrl.u32 %v940, 7
        %v942 = vsub.s32 %v939, %v941
        %v943 = vrot.slane %v921, %v942
        %v945 = vunpack.c.l.s4 1966171168
        %v946 = vunpack.c.0.s8 %v945
        %v947 = vlaneseq
        %v948 = vshrl.u32 %v947, 7
        %v949 = vsub.s32 %v946, %v948
        %v950 = vrot.slane %v922, %v949
        %v951 = vcombine.high %v929, %v929
        %v952 = vcombine.high %v936, %v936
        %v953 = vcombine.high %v943, %v943
        %v954 = vcombine.high %v950, %v950
        %v1499 = vunpack.c.l.b16 %v243
        %v1500 = vunpack.c.l.b16 %v244
        %v1501 = vunpack.c.l.b16 %v245
        %v1502 = vunpack.c.l.b16 %v246
        %v1503 = vunpack.c.l.b16 %v247
        %v1504 = vunpack.c.l.b16 %v248
        %v1505 = vunpack.c.l.b16 %v249
        %v1506 = vunpack.c.l.b16 %v250
        %v1507 = vunpack.c.l.b16 %v251
        %v1508 = vunpack.c.l.b16 %v252
        %v1509 = vunpack.c.l.b16 %v253
        %v1510 = vunpack.c.l.b16 %v254
        %v1511 = vunpack.c.l.b16 %v255
        %v1512 = vunpack.c.l.b16 %v256
        %v1513 = vunpack.c.l.b16 %v257
        %v1514 = vunpack.c.l.b16 %v258
        %v1515 = vunpack.c.l.b16 %v259
        %v1516 = vunpack.c.l.b16 %v260
        %v1517 = vunpack.c.l.b16 %v261
        %v1518 = vunpack.c.l.b16 %v262
        %v1519 = vunpack.c.l.b16 %v263
        %v1520 = vunpack.c.l.b16 %v264
        %v1521 = vunpack.c.l.b16 %v265
        %v1522 = vunpack.c.l.b16 %v266
        %v1523 = vunpack.c.l.b16 %v267
        %v1524 = vunpack.c.l.b16 %v268
        %v1525 = vunpack.c.l.b16 %v269
        %v1526 = vunpack.c.l.b16 %v270
        %v1527 = vunpack.c.l.b16 %v271
        %v1528 = vunpack.c.l.b16 %v272
        %v1529 = vunpack.c.l.b16 %v273
        %v1530 = vunpack.c.l.b16 %v274
        %v1531 = vunpack.c.l.b16 %v275
        %v1532 = vunpack.c.l.b16 %v276
        %v1533 = vunpack.c.l.b16 %v277
        %v1534 = vunpack.c.l.b16 %v278
        %v1535 = vunpack.c.l.b16 %v279
        %v1536 = vunpack.c.l.b16 %v280
        %v1537 = vunpack.c.l.b16 %v281
        %v1538 = vunpack.c.l.b16 %v282
        %v1539 = vunpack.c.l.b16 %v283
        %v1540 = vunpack.c.l.b16 %v284
        %v1541 = vunpack.c.l.b16 %v285
        %v1542 = vunpack.c.l.b16 %v286
        %v1543 = vunpack.c.l.b16 %v287
        %v1544 = vunpack.c.l.b16 %v288
        %v1545 = vunpack.c.l.b16 %v289
        %v1546 = vunpack.c.l.b16 %v290
        %v1547 = vunpack.c.l.b16 %v291
        %v1548 = vunpack.c.l.b16 %v292
        %v1549 = vunpack.c.l.b16 %v293
        %v1550 = vunpack.c.l.b16 %v294
        %v1551 = vunpack.c.l.b16 %v295
        %v1552 = vunpack.c.l.b16 %v296
        %v1553 = vunpack.c.l.b16 %v297
        %v1554 = vunpack.c.l.b16 %v298
        %v1555 = vunpack.c.l.b16 %v299
        %v1556 = vunpack.c.l.b16 %v300
        %v1557 = vunpack.c.l.b16 %v301
        %v1558 = vunpack.c.l.b16 %v302
        %v1559 = vunpack.c.l.b16 %v303
        %v1560 = vunpack.c.l.b16 %v304
        %v1561 = vunpack.c.l.b16 %v305
        %v1562 = vunpack.c.l.b16 %v306
        %v1563 = vunpack.c.l.b16 %v307
        %v1564 = vunpack.c.l.b16 %v308
        %v1565 = vunpack.c.l.b16 %v309
        %v1566 = vunpack.c.l.b16 %v310
        %v1567 = vunpack.c.l.b16 %v311
        %v1568 = vunpack.c.l.b16 %v312
        %v1569 = vunpack.c.l.b16 %v313
        %v1570 = vunpack.c.l.b16 %v314
        %v1571 = vunpack.c.l.b16 %v315
        %v1572 = vunpack.c.l.b16 %v316
        %v1573 = vunpack.c.l.b16 %v317
        %v1574 = vunpack.c.l.b16 %v318
        %v1575 = vunpack.c.l.b16 %v319
        %v1576 = vunpack.c.l.b16 %v320
        %v1577 = vunpack.c.l.b16 %v321
        %v1578 = vunpack.c.l.b16 %v322
        %v1579 = vunpack.c.l.b16 %v323
        %v1580 = vunpack.c.l.b16 %v324
        %v1581 = vunpack.c.l.b16 %v325
        %v1582 = vunpack.c.l.b16 %v326
        %v1583 = vunpack.c.l.b16 %v327
        %v1584 = vunpack.c.l.b16 %v328
        %v1585 = vunpack.c.l.b16 %v329
        %v1586 = vunpack.c.l.b16 %v330
        %v1587 = vunpack.c.l.b16 %v331
        %v1588 = vunpack.c.l.b16 %v332
        %v1589 = vunpack.c.l.b16 %v333
        %v1590 = vunpack.c.l.b16 %v334
        %v1591 = vunpack.c.l.b16 %v335
        %v1592 = vunpack.c.l.b16 %v336
        %v1593 = vunpack.c.l.b16 %v337
        %v1594 = vunpack.c.l.b16 %v338
        %v1595 = vunpack.c.l.b16 %v339
        %v1596 = vunpack.c.l.b16 %v340
        %v1597 = vunpack.c.l.b16 %v341
        %v1598 = vunpack.c.l.b16 %v342
        %v1599 = vunpack.c.l.b16 %v343
        %v1600 = vunpack.c.l.b16 %v344
        %v1601 = vunpack.c.l.b16 %v345
        %v1602 = vunpack.c.l.b16 %v346
        %v1603 = vunpack.c.l.b16 %v347
        %v1604 = vunpack.c.l.b16 %v348
        %v1605 = vunpack.c.l.b16 %v349
        %v1606 = vunpack.c.l.b16 %v350
        %v1607 = vunpack.c.l.b16 %v351
        %v1608 = vunpack.c.l.b16 %v352
        %v1609 = vunpack.c.l.b16 %v353
        %v1610 = vunpack.c.l.b16 %v354
        %v1611 = vunpack.c.l.b16 %v355
        %v1612 = vunpack.c.l.b16 %v356
        %v1613 = vunpack.c.l.b16 %v357
        %v1614 = vunpack.c.l.b16 %v358
        %v1615 = vunpack.c.l.b16 %v359
        %v1616 = vunpack.c.l.b16 %v360
        %v1617 = vunpack.c.l.b16 %v361
        %v1618 = vunpack.c.l.b16 %v362
        %v1619 = vunpack.c.l.b16 %v363
        %v1620 = vunpack.c.l.b16 %v364
        %v1621 = vunpack.c.l.b16 %v365
        %v1622 = vunpack.c.l.b16 %v366
        %v1623 = vunpack.c.l.b16 %v367
        %v1624 = vunpack.c.l.b16 %v368
        %v1625 = vunpack.c.l.b16 %v369
        %v1626 = vunpack.c.l.b16 %v370
        %v1627 = vunpack.c.l.b16 %v371
        %v1628 = vunpack.c.l.b16 %v372
        %v1629 = vunpack.c.l.b16 %v373
        %v1630 = vunpack.c.l.b16 %v374
        %v1631 = vunpack.c.l.b16 %v375
        %v1632 = vunpack.c.l.b16 %v376
        %v1633 = vunpack.c.l.b16 %v377
        %v1634 = vunpack.c.l.b16 %v378
        %v1635 = vunpack.c.l.b16 %v379
        %v1636 = vunpack.c.l.b16 %v380
        %v1637 = vunpack.c.l.b16 %v381
        %v1638 = vunpack.c.l.b16 %v382
        %v1639 = vunpack.c.l.b16 %v383
        %v1640 = vunpack.c.l.b16 %v384
        %v1641 = vunpack.c.l.b16 %v385
        %v1642 = vunpack.c.l.b16 %v386
        %v1643 = vunpack.c.l.b16 %v387
        %v1644 = vunpack.c.l.b16 %v388
        %v1645 = vunpack.c.l.b16 %v389
        %v1646 = vunpack.c.l.b16 %v390
        %v1647 = vunpack.c.l.b16 %v391
        %v1648 = vunpack.c.l.b16 %v392
        %v1649 = vunpack.c.l.b16 %v393
        %v1650 = vunpack.c.l.b16 %v394
        %v1651 = vunpack.c.l.b16 %v395
        %v1652 = vunpack.c.l.b16 %v396
        %v1653 = vunpack.c.l.b16 %v397
        %v1654 = vunpack.c.l.b16 %v398
        %v1655 = vunpack.c.l.b16 %v399
        %v1656 = vunpack.c.l.b16 %v400
        %v1657 = vunpack.c.l.b16 %v401
        %v1658 = vunpack.c.l.b16 %v402
        %v1659 = vunpack.c.l.b16 %v403
        %v1660 = vunpack.c.l.b16 %v404
        %v1661 = vunpack.c.l.b16 %v405
        %v1662 = vunpack.c.l.b16 %v406
        %v1663 = vunpack.c.l.b16 %v407
        %v1664 = vunpack.c.l.b16 %v408
        %v1665 = vunpack.c.l.b16 %v409
        %v1666 = vunpack.c.l.b16 %v410
        %v1667 = vunpack.c.l.b16 %v411
        %v1668 = vunpack.c.l.b16 %v412
        %v1669 = vunpack.c.l.b16 %v413
        %v1670 = vunpack.c.l.b16 %v414
        %v1671 = vunpack.c.l.b16 %v415
        %v1672 = vunpack.c.l.b16 %v416
        %v1673 = vunpack.c.l.b16 %v417
        %v1674 = vunpack.c.l.b16 %v418
        %v1675 = vunpack.c.l.b16 %v419
        %v1676 = vunpack.c.l.b16 %v420
        %v1677 = vunpack.c.l.b16 %v421
        %v1678 = vunpack.c.l.b16 %v422
        %v1679 = vunpack.c.l.b16 %v423
        %v1680 = vunpack.c.l.b16 %v424
        %v1681 = vunpack.c.l.b16 %v425
        %v1682 = vunpack.c.l.b16 %v426
        %v1683 = vunpack.c.l.b16 %v427
        %v1684 = vunpack.c.l.b16 %v428
        %v1685 = vunpack.c.l.b16 %v429
        %v1686 = vunpack.c.l.b16 %v430
        %v1687 = vunpack.c.l.b16 %v431
        %v1688 = vunpack.c.l.b16 %v432
        %v1689 = vunpack.c.l.b16 %v433
        %v1690 = vunpack.c.l.b16 %v434
        %v1691 = vunpack.c.l.b16 %v435
        %v1692 = vunpack.c.l.b16 %v436
        %v1693 = vunpack.c.l.b16 %v437
        %v1694 = vunpack.c.l.b16 %v438
        %v1695 = vunpack.c.l.b16 %v439
        %v1696 = vunpack.c.l.b16 %v440
        %v1697 = vunpack.c.l.b16 %v441
        %v1698 = vunpack.c.l.b16 %v442
        %v1699 = vunpack.c.l.b16 %v443
        %v1700 = vunpack.c.l.b16 %v444
        %v1701 = vunpack.c.l.b16 %v445
        %v1702 = vunpack.c.l.b16 %v446
        %v1703 = vunpack.c.l.b16 %v447
        %v1704 = vunpack.c.l.b16 %v448
        %v1705 = vunpack.c.l.b16 %v449
        %v1706 = vunpack.c.l.b16 %v450
        %v1707 = vunpack.c.l.b16 %v451
        %v1708 = vunpack.c.l.b16 %v452
        %v1709 = vunpack.c.l.b16 %v453
        %v1710 = vunpack.c.l.b16 %v454
        %v1711 = vunpack.c.l.b16 %v455
        %v1712 = vunpack.c.l.b16 %v456
        %v1713 = vunpack.c.l.b16 %v457
        %v1714 = vunpack.c.l.b16 %v458
        %v1715 = vunpack.c.l.b16 %v459
        %v1716 = vunpack.c.l.b16 %v460
        %v1717 = vunpack.c.l.b16 %v461
        %v1718 = vunpack.c.l.b16 %v462
        %v1719 = vunpack.c.l.b16 %v463
        %v1720 = vunpack.c.l.b16 %v464
        %v1721 = vunpack.c.l.b16 %v465
        %v1722 = vunpack.c.l.b16 %v466
        %v1723 = vunpack.c.l.b16 %v467
        %v1724 = vunpack.c.l.b16 %v468
        %v1725 = vunpack.c.l.b16 %v469
        %v1726 = vunpack.c.l.b16 %v470
        %v1727 = vunpack.c.l.b16 %v471
        %v1728 = vunpack.c.l.b16 %v472
        %v1729 = vunpack.c.l.b16 %v473
        %v1730 = vunpack.c.l.b16 %v474
        %v1731 = vunpack.c.l.b16 %v475
        %v1732 = vunpack.c.l.b16 %v476
        %v1733 = vunpack.c.l.b16 %v477
        %v1734 = vunpack.c.l.b16 %v478
        %v1735 = vunpack.c.l.b16 %v479
        %v1736 = vunpack.c.l.b16 %v480
        %v1737 = vunpack.c.l.b16 %v481
        %v1738 = vunpack.c.l.b16 %v482
        %v1739 = vunpack.c.l.b16 %v483
        %v1740 = vunpack.c.l.b16 %v484
        %v1741 = vunpack.c.l.b16 %v485
        %v1742 = vunpack.c.l.b16 %v486
        %v1743 = vunpack.c.l.b16 %v487
        %v1744 = vunpack.c.l.b16 %v488
        %v1745 = vunpack.c.l.b16 %v489
        %v1746 = vunpack.c.l.b16 %v490
        %v1747 = vunpack.c.l.b16 %v491
        %v1748 = vunpack.c.l.b16 %v492
        %v1749 = vunpack.c.l.b16 %v493
        %v1750 = vunpack.c.l.b16 %v494
        %v1751 = vunpack.c.l.b16 %v495
        %v1752 = vunpack.c.l.b16 %v496
        %v1753 = vunpack.c.l.b16 %v497
        %v1754 = vunpack.c.l.b16 %v498
        %v1755 = vunpack.c.l.b16 %v499
        %v1756 = vunpack.c.l.b16 %v500
        %v1757 = vunpack.c.l.b16 %v501
        %v1758 = vunpack.c.l.b16 %v502
        %v1759 = vunpack.c.l.b16 %v503
        %v1760 = vunpack.c.l.b16 %v504
        %v1761 = vunpack.c.l.b16 %v505
        %v1762 = vunpack.c.l.b16 %v506
        %v1763 = vunpack.c.l.b16 %v507
        %v1764 = vunpack.c.l.b16 %v508
        %v1765 = vunpack.c.l.b16 %v509
        %v1766 = vunpack.c.l.b16 %v510
        %v1767 = vunpack.c.l.b16 %v511
        %v1768 = vunpack.c.l.b16 %v512
        %v1769 = vunpack.c.l.b16 %v513
        %v1770 = vunpack.c.l.b16 %v514
        %v1771 = vunpack.c.l.b16 %v515
        %v1772 = vunpack.c.l.b16 %v516
        %v1773 = vunpack.c.l.b16 %v517
        %v1774 = vunpack.c.l.b16 %v518
        %v1775 = vunpack.c.l.b16 %v519
        %v1776 = vunpack.c.l.b16 %v520
        %v1777 = vunpack.c.l.b16 %v521
        %v1778 = vunpack.c.l.b16 %v522
        %v1779 = vunpack.c.l.b16 %v523
        %v1780 = vunpack.c.l.b16 %v524
        %v1781 = vunpack.c.l.b16 %v525
        %v1782 = vunpack.c.l.b16 %v526
        %v1783 = vunpack.c.l.b16 %v527
        %v1784 = vunpack.c.l.b16 %v528
        %v1785 = vunpack.c.l.b16 %v529
        %v1786 = vunpack.c.l.b16 %v530
        %v1787 = vunpack.c.l.b16 %v531
        %v1788 = vunpack.c.l.b16 %v532
        %v1789 = vunpack.c.l.b16 %v533
        %v1790 = vunpack.c.l.b16 %v534
        %v1791 = vunpack.c.l.b16 %v535
        %v1792 = vunpack.c.l.b16 %v536
        %v1793 = vunpack.c.l.b16 %v537
        %v1794 = vunpack.c.l.b16 %v538
        %v1795 = vunpack.c.l.b16 %v539
        %v1796 = vunpack.c.l.b16 %v540
        %v1797 = vunpack.c.l.b16 %v541
        %v1798 = vunpack.c.l.b16 %v542
        %v1799 = vunpack.c.l.b16 %v543
        %v1800 = vunpack.c.l.b16 %v544
        %v1801 = vunpack.c.l.b16 %v545
        %v1802 = vunpack.c.l.b16 %v546
        %v1803 = vunpack.c.l.b16 %v547
        %v1804 = vunpack.c.l.b16 %v548
        %v1805 = vunpack.c.l.b16 %v549
        %v1806 = vunpack.c.l.b16 %v550
        %v1807 = vunpack.c.l.b16 %v551
        %v1808 = vunpack.c.l.b16 %v552
        %v1809 = vunpack.c.l.b16 %v553
        %v1810 = vunpack.c.l.b16 %v554
        %v1811 = vunpack.c.l.b16 %v555
        %v1812 = vunpack.c.l.b16 %v556
        %v1813 = vunpack.c.l.b16 %v557
        %v1814 = vunpack.c.l.b16 %v558
        %v1815 = vunpack.c.l.b16 %v559
        %v1816 = vunpack.c.l.b16 %v560
        %v1817 = vunpack.c.l.b16 %v561
        %v1818 = vunpack.c.l.b16 %v562
        %v1819 = vunpack.c.l.b16 %v563
        %v1820 = vunpack.c.l.b16 %v564
        %v1821 = vunpack.c.l.b16 %v565
        %v1822 = vunpack.c.l.b16 %v566
        %v1823 = vunpack.c.l.b16 %v567
        %v1824 = vunpack.c.l.b16 %v568
        %v1825 = vunpack.c.l.b16 %v569
        %v1826 = vunpack.c.l.b16 %v570
        %v1827 = vunpack.c.l.b16 %v571
        %v1828 = vunpack.c.l.b16 %v572
        %v1829 = vunpack.c.l.b16 %v573
        %v1830 = vunpack.c.l.b16 %v574
        %v1831 = vunpack.c.l.b16 %v575
        %v1832 = vunpack.c.l.b16 %v576
        %v1833 = vunpack.c.l.b16 %v577
        %v1834 = vunpack.c.l.b16 %v578
        %v1835 = vunpack.c.l.b16 %v579
        %v1836 = vunpack.c.l.b16 %v580
        %v1837 = vunpack.c.l.b16 %v581
        %v1838 = vunpack.c.l.b16 %v582
        %v1839 = vunpack.c.l.b16 %v583
        %v1840 = vunpack.c.l.b16 %v584
        %v1841 = vunpack.c.l.b16 %v585
        %v1842 = vunpack.c.l.b16 %v586
        %v1843 = vunpack.c.l.b16 %v587
        %v1844 = vunpack.c.l.b16 %v588
        %v1845 = vunpack.c.l.b16 %v589
        %v1846 = vunpack.c.l.b16 %v590
        %v1847 = vunpack.c.l.b16 %v591
        %v1848 = vunpack.c.l.b16 %v592
        %v1849 = vunpack.c.l.b16 %v593
        %v1850 = vunpack.c.l.b16 %v594
        %v1851 = vunpack.c.l.b16 %v595
        %v1852 = vunpack.c.l.b16 %v596
        %v1853 = vunpack.c.l.b16 %v597
        %v1854 = vunpack.c.l.b16 %v598
        %v1855 = vunpack.c.l.b16 %v599
        %v1856 = vunpack.c.l.b16 %v600
        %v1857 = vunpack.c.l.b16 %v601
        %v1858 = vunpack.c.l.b16 %v602
        %v1859 = vunpack.c.l.b16 %v603
        %v1860 = vunpack.c.l.b16 %v604
        %v1861 = vunpack.c.l.b16 %v605
        %v1862 = vunpack.c.l.b16 %v606
        %v1863 = vunpack.c.l.b16 %v607
        %v1864 = vunpack.c.l.b16 %v608
        %v1865 = vunpack.c.l.b16 %v609
        %v1866 = vunpack.c.l.b16 %v610
        %v1867 = vunpack.c.l.b16 %v611
        %v1868 = vunpack.c.l.b16 %v612
        %v1869 = vunpack.c.l.b16 %v613
        %v1870 = vunpack.c.l.b16 %v614
        %v1871 = vunpack.c.l.b16 %v615
        %v1872 = vunpack.c.l.b16 %v616
        %v1873 = vunpack.c.l.b16 %v617
        %v1874 = vunpack.c.l.b16 %v618
        %v1875 = vunpack.c.l.b16 %v619
        %v1876 = vunpack.c.l.b16 %v620
        %v1877 = vunpack.c.l.b16 %v621
        %v1878 = vunpack.c.l.b16 %v622
        %v1879 = vunpack.c.l.b16 %v623
        %v1880 = vunpack.c.l.b16 %v624
        %v1881 = vunpack.c.l.b16 %v625
        %v1882 = vunpack.c.l.b16 %v626
        %v1883 = vunpack.c.l.b16 %v627
        %v1884 = vunpack.c.l.b16 %v628
        %v1885 = vunpack.c.l.b16 %v629
        %v1886 = vunpack.c.l.b16 %v630
        %v1887 = vunpack.c.l.b16 %v631
        %v1888 = vunpack.c.l.b16 %v632
        %v1889 = vunpack.c.l.b16 %v633
        %v1890 = vunpack.c.l.b16 %v634
        %v1891 = vunpack.c.l.b16 %v635
        %v1892 = vunpack.c.l.b16 %v636
        %v1893 = vunpack.c.l.b16 %v637
        %v1894 = vunpack.c.l.b16 %v638
        %v1895 = vunpack.c.l.b16 %v639
        %v1896 = vunpack.c.l.b16 %v640
        %v1897 = vunpack.c.l.b16 %v641
        %v1898 = vunpack.c.l.b16 %v642
        %v1899 = vunpack.c.l.b16 %v643
        %v1900 = vunpack.c.l.b16 %v644
        %v1901 = vunpack.c.l.b16 %v645
        %v1902 = vunpack.c.l.b16 %v646
        %v1903 = vunpack.c.l.b16 %v647
        %v1904 = vunpack.c.l.b16 %v648
        %v1905 = vunpack.c.l.b16 %v649
        %v1906 = vunpack.c.l.b16 %v650
        %v1907 = vunpack.c.l.b16 %v651
        %v1908 = vunpack.c.l.b16 %v652
        %v1909 = vunpack.c.l.b16 %v653
        %v1910 = vunpack.c.l.b16 %v654
        %v1911 = vunpack.c.l.b16 %v655
        %v1912 = vunpack.c.l.b16 %v656
        %v1913 = vunpack.c.l.b16 %v657
        %v1914 = vunpack.c.l.b16 %v658
        %v1915 = vunpack.c.l.b16 %v659
        %v1916 = vunpack.c.l.b16 %v660
        %v1917 = vunpack.c.l.b16 %v661
        %v1918 = vunpack.c.l.b16 %v662
        %v1919 = vunpack.c.l.b16 %v663
        %v1920 = vunpack.c.l.b16 %v664
        %v1921 = vunpack.c.l.b16 %v665
        %v1922 = vunpack.c.l.b16 %v666
        %v1923 = vunpack.c.l.b16 %v667
        %v1924 = vunpack.c.l.b16 %v668
        %v1925 = vunpack.c.l.b16 %v669
        %v1926 = vunpack.c.l.b16 %v670
        %v1927 = vunpack.c.l.b16 %v671
        %v1928 = vunpack.c.l.b16 %v672
        %v1929 = vunpack.c.l.b16 %v673
        %v1930 = vunpack.c.l.b16 %v674
        %v1931 = vunpack.c.l.b16 %v675
        %v1932 = vunpack.c.l.b16 %v676
        %v1933 = vunpack.c.l.b16 %v677
        %v1934 = vunpack.c.l.b16 %v678
        %v1935 = vunpack.c.l.b16 %v679
        %v1936 = vunpack.c.l.b16 %v680
        %v1937 = vunpack.c.l.b16 %v681
        %v1938 = vunpack.c.l.b16 %v682
        %v1939 = vunpack.c.l.b16 %v683
        %v1940 = vunpack.c.l.b16 %v684
        %v1941 = vunpack.c.l.b16 %v685
        %v1942 = vunpack.c.l.b16 %v686
        %v1943 = vunpack.c.l.b16 %v687
        %v1944 = vunpack.c.l.b16 %v688
        %v1945 = vunpack.c.l.b16 %v689
        %v1946 = vunpack.c.l.b16 %v690
        %v1947 = vunpack.c.l.b16 %v691
        %v1948 = vunpack.c.l.b16 %v692
        %v1949 = vunpack.c.l.b16 %v693
        %v1950 = vunpack.c.l.b16 %v694
        %v1951 = vunpack.c.l.b16 %v695
        %v1952 = vunpack.c.l.b16 %v696
        %v1953 = vunpack.c.l.b16 %v697
        %v1954 = vunpack.c.l.b16 %v698
        %v1955 = vunpack.c.l.b16 %v699
        %v1956 = vunpack.c.l.b16 %v700
        %v1957 = vunpack.c.l.b16 %v701
        %v1958 = vunpack.c.l.b16 %v702
        %v1959 = vunpack.c.l.b16 %v703
        %v1960 = vunpack.c.l.b16 %v704
        %v1961 = vunpack.c.l.b16 %v705
        %v1962 = vunpack.c.l.b16 %v706
        %v1963 = vunpack.c.l.b16 %v707
        %v1964 = vunpack.c.l.b16 %v708
        %v1965 = vunpack.c.l.b16 %v709
        %v1966 = vunpack.c.l.b16 %v710
        %v1967 = vunpack.c.l.b16 %v711
        %v1968 = vunpack.c.l.b16 %v712
        %v1969 = vunpack.c.l.b16 %v713
        %v1970 = vunpack.c.l.b16 %v714
        %v1971 = vunpack.c.l.b16 %v715
        %v1972 = vunpack.c.l.b16 %v716
        %v1973 = vunpack.c.l.b16 %v717
        %v1974 = vunpack.c.l.b16 %v718
        %v1975 = vunpack.c.l.b16 %v719
        %v1976 = vunpack.c.l.b16 %v720
        %v1977 = vunpack.c.l.b16 %v721
        %v1978 = vunpack.c.l.b16 %v722
        %v1979 = vunpack.c.l.b16 %v723
        %v1980 = vunpack.c.l.b16 %v724
        %v1981 = vunpack.c.l.b16 %v725
        %v1982 = vunpack.c.l.b16 %v726
        %v1983 = vunpack.c.l.b16 %v727
        %v1984 = vunpack.c.l.b16 %v728
        %v1985 = vunpack.c.l.b16 %v729
        %v1986 = vunpack.c.l.b16 %v730
        %v1987 = vunpack.c.l.b16 %v731
        %v1988 = vunpack.c.l.b16 %v732
        %v1989 = vunpack.c.l.b16 %v733
        %v1990 = vunpack.c.l.b16 %v734
        %v1991 = vunpack.c.l.b16 %v735
        %v1992 = vunpack.c.l.b16 %v736
        %v1993 = vunpack.c.l.b16 %v737
        %v1994 = vunpack.c.l.b16 %v738
        %v1995 = vunpack.c.l.b16 %v739
        %v1996 = vunpack.c.l.b16 %v740
        %v1997 = vunpack.c.l.b16 %v741
        %v1998 = vunpack.c.l.b16 %v742
        %v1999 = vunpack.c.l.b16 %v743
        %v2000 = vunpack.c.l.b16 %v744
        %v2001 = vunpack.c.l.b16 %v745
        %v2002 = vunpack.c.l.b16 %v746
        %v2003 = vunpack.c.l.b16 %v747
        %v2004 = vunpack.c.l.b16 %v748
        %v2005 = vunpack.c.l.b16 %v749
        %v2006 = vunpack.c.l.b16 %v750
        %v2007 = vunpack.c.l.b16 %v751
        %v2008 = vunpack.c.l.b16 %v752
        %v2009 = vunpack.c.l.b16 %v753
        %v2010 = vunpack.c.l.b16 %v754
        %v2011 = vpack.c.b16 %v1500, %v1499
        %v2012 = vpack.c.b16 %v1502, %v1501
        %v2013 = vpack.c.b16 %v1504, %v1503
        %v2014 = vpack.c.b16 %v1506, %v1505
        %v2015 = vpack.c.b16 %v1508, %v1507
        %v2016 = vpack.c.b16 %v1510, %v1509
        %v2017 = vpack.c.b16 %v1512, %v1511
        %v2018 = vpack.c.b16 %v1514, %v1513
        %v2019 = vpack.c.b16 %v1516, %v1515
        %v2020 = vpack.c.b16 %v1518, %v1517
        %v2021 = vpack.c.b16 %v1520, %v1519
        %v2022 = vpack.c.b16 %v1522, %v1521
        %v2023 = vpack.c.b16 %v1524, %v1523
        %v2024 = vpack.c.b16 %v1526, %v1525
        %v2025 = vpack.c.b16 %v1528, %v1527
        %v2026 = vpack.c.b16 %v1530, %v1529
        %v2027 = vpack.c.b16 %v1532, %v1531
        %v2028 = vpack.c.b16 %v1534, %v1533
        %v2029 = vpack.c.b16 %v1536, %v1535
        %v2030 = vpack.c.b16 %v1538, %v1537
        %v2031 = vpack.c.b16 %v1540, %v1539
        %v2032 = vpack.c.b16 %v1542, %v1541
        %v2033 = vpack.c.b16 %v1544, %v1543
        %v2034 = vpack.c.b16 %v1546, %v1545
        %v2035 = vpack.c.b16 %v1548, %v1547
        %v2036 = vpack.c.b16 %v1550, %v1549
        %v2037 = vpack.c.b16 %v1552, %v1551
        %v2038 = vpack.c.b16 %v1554, %v1553
        %v2039 = vpack.c.b16 %v1556, %v1555
        %v2040 = vpack.c.b16 %v1558, %v1557
        %v2041 = vpack.c.b16 %v1560, %v1559
        %v2042 = vpack.c.b16 %v1562, %v1561
        %v2043 = vpack.c.b16 %v1564, %v1563
        %v2044 = vpack.c.b16 %v1566, %v1565
        %v2045 = vpack.c.b16 %v1568, %v1567
        %v2046 = vpack.c.b16 %v1570, %v1569
        %v2047 = vpack.c.b16 %v1572, %v1571
        %v2048 = vpack.c.b16 %v1574, %v1573
        %v2049 = vpack.c.b16 %v1576, %v1575
        %v2050 = vpack.c.b16 %v1578, %v1577
        %v2051 = vpack.c.b16 %v1580, %v1579
        %v2052 = vpack.c.b16 %v1582, %v1581
        %v2053 = vpack.c.b16 %v1584, %v1583
        %v2054 = vpack.c.b16 %v1586, %v1585
        %v2055 = vpack.c.b16 %v1588, %v1587
        %v2056 = vpack.c.b16 %v1590, %v1589
        %v2057 = vpack.c.b16 %v1592, %v1591
        %v2058 = vpack.c.b16 %v1594, %v1593
        %v2059 = vpack.c.b16 %v1596, %v1595
        %v2060 = vpack.c.b16 %v1598, %v1597
        %v2061 = vpack.c.b16 %v1600, %v1599
        %v2062 = vpack.c.b16 %v1602, %v1601
        %v2063 = vpack.c.b16 %v1604, %v1603
        %v2064 = vpack.c.b16 %v1606, %v1605
        %v2065 = vpack.c.b16 %v1608, %v1607
        %v2066 = vpack.c.b16 %v1610, %v1609
        %v2067 = vpack.c.b16 %v1612, %v1611
        %v2068 = vpack.c.b16 %v1614, %v1613
        %v2069 = vpack.c.b16 %v1616, %v1615
        %v2070 = vpack.c.b16 %v1618, %v1617
        %v2071 = vpack.c.b16 %v1620, %v1619
        %v2072 = vpack.c.b16 %v1622, %v1621
        %v2073 = vpack.c.b16 %v1624, %v1623
        %v2074 = vpack.c.b16 %v1626, %v1625
        %v2075 = vpack.c.b16 %v1628, %v1627
        %v2076 = vpack.c.b16 %v1630, %v1629
        %v2077 = vpack.c.b16 %v1632, %v1631
        %v2078 = vpack.c.b16 %v1634, %v1633
        %v2079 = vpack.c.b16 %v1636, %v1635
        %v2080 = vpack.c.b16 %v1638, %v1637
        %v2081 = vpack.c.b16 %v1640, %v1639
        %v2082 = vpack.c.b16 %v1642, %v1641
        %v2083 = vpack.c.b16 %v1644, %v1643
        %v2084 = vpack.c.b16 %v1646, %v1645
        %v2085 = vpack.c.b16 %v1648, %v1647
        %v2086 = vpack.c.b16 %v1650, %v1649
        %v2087 = vpack.c.b16 %v1652, %v1651
        %v2088 = vpack.c.b16 %v1654, %v1653
        %v2089 = vpack.c.b16 %v1656, %v1655
        %v2090 = vpack.c.b16 %v1658, %v1657
        %v2091 = vpack.c.b16 %v1660, %v1659
        %v2092 = vpack.c.b16 %v1662, %v1661
        %v2093 = vpack.c.b16 %v1664, %v1663
        %v2094 = vpack.c.b16 %v1666, %v1665
        %v2095 = vpack.c.b16 %v1668, %v1667
        %v2096 = vpack.c.b16 %v1670, %v1669
        %v2097 = vpack.c.b16 %v1672, %v1671
        %v2098 = vpack.c.b16 %v1674, %v1673
        %v2099 = vpack.c.b16 %v1676, %v1675
        %v2100 = vpack.c.b16 %v1678, %v1677
        %v2101 = vpack.c.b16 %v1680, %v1679
        %v2102 = vpack.c.b16 %v1682, %v1681
        %v2103 = vpack.c.b16 %v1684, %v1683
        %v2104 = vpack.c.b16 %v1686, %v1685
        %v2105 = vpack.c.b16 %v1688, %v1687
        %v2106 = vpack.c.b16 %v1690, %v1689
        %v2107 = vpack.c.b16 %v1692, %v1691
        %v2108 = vpack.c.b16 %v1694, %v1693
        %v2109 = vpack.c.b16 %v1696, %v1695
        %v2110 = vpack.c.b16 %v1698, %v1697
        %v2111 = vpack.c.b16 %v1700, %v1699
        %v2112 = vpack.c.b16 %v1702, %v1701
        %v2113 = vpack.c.b16 %v1704, %v1703
        %v2114 = vpack.c.b16 %v1706, %v1705
        %v2115 = vpack.c.b16 %v1708, %v1707
        %v2116 = vpack.c.b16 %v1710, %v1709
        %v2117 = vpack.c.b16 %v1712, %v1711
        %v2118 = vpack.c.b16 %v1714, %v1713
        %v2119 = vpack.c.b16 %v1716, %v1715
        %v2120 = vpack.c.b16 %v1718, %v1717
        %v2121 = vpack.c.b16 %v1720, %v1719
        %v2122 = vpack.c.b16 %v1722, %v1721
        %v2123 = vpack.c.b16 %v1724, %v1723
        %v2124 = vpack.c.b16 %v1726, %v1725
        %v2125 = vpack.c.b16 %v1728, %v1727
        %v2126 = vpack.c.b16 %v1730, %v1729
        %v2127 = vpack.c.b16 %v1732, %v1731
        %v2128 = vpack.c.b16 %v1734, %v1733
        %v2129 = vpack.c.b16 %v1736, %v1735
        %v2130 = vpack.c.b16 %v1738, %v1737
        %v2131 = vpack.c.b16 %v1740, %v1739
        %v2132 = vpack.c.b16 %v1742, %v1741
        %v2133 = vpack.c.b16 %v1744, %v1743
        %v2134 = vpack.c.b16 %v1746, %v1745
        %v2135 = vpack.c.b16 %v1748, %v1747
        %v2136 = vpack.c.b16 %v1750, %v1749
        %v2137 = vpack.c.b16 %v1752, %v1751
        %v2138 = vpack.c.b16 %v1754, %v1753
        %v2139 = vpack.c.b16 %v1756, %v1755
        %v2140 = vpack.c.b16 %v1758, %v1757
        %v2141 = vpack.c.b16 %v1760, %v1759
        %v2142 = vpack.c.b16 %v1762, %v1761
        %v2143 = vpack.c.b16 %v1764, %v1763
        %v2144 = vpack.c.b16 %v1766, %v1765
        %v2145 = vpack.c.b16 %v1768, %v1767
        %v2146 = vpack.c.b16 %v1770, %v1769
        %v2147 = vpack.c.b16 %v1772, %v1771
        %v2148 = vpack.c.b16 %v1774, %v1773
        %v2149 = vpack.c.b16 %v1776, %v1775
        %v2150 = vpack.c.b16 %v1778, %v1777
        %v2151 = vpack.c.b16 %v1780, %v1779
        %v2152 = vpack.c.b16 %v1782, %v1781
        %v2153 = vpack.c.b16 %v1784, %v1783
        %v2154 = vpack.c.b16 %v1786, %v1785
        %v2155 = vpack.c.b16 %v1788, %v1787
        %v2156 = vpack.c.b16 %v1790, %v1789
        %v2157 = vpack.c.b16 %v1792, %v1791
        %v2158 = vpack.c.b16 %v1794, %v1793
        %v2159 = vpack.c.b16 %v1796, %v1795
        %v2160 = vpack.c.b16 %v1798, %v1797
        %v2161 = vpack.c.b16 %v1800, %v1799
        %v2162 = vpack.c.b16 %v1802, %v1801
        %v2163 = vpack.c.b16 %v1804, %v1803
        %v2164 = vpack.c.b16 %v1806, %v1805
        %v2165 = vpack.c.b16 %v1808, %v1807
        %v2166 = vpack.c.b16 %v1810, %v1809
        %v2167 = vpack.c.b16 %v1812, %v1811
        %v2168 = vpack.c.b16 %v1814, %v1813
        %v2169 = vpack.c.b16 %v1816, %v1815
        %v2170 = vpack.c.b16 %v1818, %v1817
        %v2171 = vpack.c.b16 %v1820, %v1819
        %v2172 = vpack.c.b16 %v1822, %v1821
        %v2173 = vpack.c.b16 %v1824, %v1823
        %v2174 = vpack.c.b16 %v1826, %v1825
        %v2175 = vpack.c.b16 %v1828, %v1827
        %v2176 = vpack.c.b16 %v1830, %v1829
        %v2177 = vpack.c.b16 %v1832, %v1831
        %v2178 = vpack.c.b16 %v1834, %v1833
        %v2179 = vpack.c.b16 %v1836, %v1835
        %v2180 = vpack.c.b16 %v1838, %v1837
        %v2181 = vpack.c.b16 %v1840, %v1839
        %v2182 = vpack.c.b16 %v1842, %v1841
        %v2183 = vpack.c.b16 %v1844, %v1843
        %v2184 = vpack.c.b16 %v1846, %v1845
        %v2185 = vpack.c.b16 %v1848, %v1847
        %v2186 = vpack.c.b16 %v1850, %v1849
        %v2187 = vpack.c.b16 %v1852, %v1851
        %v2188 = vpack.c.b16 %v1854, %v1853
        %v2189 = vpack.c.b16 %v1856, %v1855
        %v2190 = vpack.c.b16 %v1858, %v1857
        %v2191 = vpack.c.b16 %v1860, %v1859
        %v2192 = vpack.c.b16 %v1862, %v1861
        %v2193 = vpack.c.b16 %v1864, %v1863
        %v2194 = vpack.c.b16 %v1866, %v1865
        %v2195 = vpack.c.b16 %v1868, %v1867
        %v2196 = vpack.c.b16 %v1870, %v1869
        %v2197 = vpack.c.b16 %v1872, %v1871
        %v2198 = vpack.c.b16 %v1874, %v1873
        %v2199 = vpack.c.b16 %v1876, %v1875
        %v2200 = vpack.c.b16 %v1878, %v1877
        %v2201 = vpack.c.b16 %v1880, %v1879
        %v2202 = vpack.c.b16 %v1882, %v1881
        %v2203 = vpack.c.b16 %v1884, %v1883
        %v2204 = vpack.c.b16 %v1886, %v1885
        %v2205 = vpack.c.b16 %v1888, %v1887
        %v2206 = vpack.c.b16 %v1890, %v1889
        %v2207 = vpack.c.b16 %v1892, %v1891
        %v2208 = vpack.c.b16 %v1894, %v1893
        %v2209 = vpack.c.b16 %v1896, %v1895
        %v2210 = vpack.c.b16 %v1898, %v1897
        %v2211 = vpack.c.b16 %v1900, %v1899
        %v2212 = vpack.c.b16 %v1902, %v1901
        %v2213 = vpack.c.b16 %v1904, %v1903
        %v2214 = vpack.c.b16 %v1906, %v1905
        %v2215 = vpack.c.b16 %v1908, %v1907
        %v2216 = vpack.c.b16 %v1910, %v1909
        %v2217 = vpack.c.b16 %v1912, %v1911
        %v2218 = vpack.c.b16 %v1914, %v1913
        %v2219 = vpack.c.b16 %v1916, %v1915
        %v2220 = vpack.c.b16 %v1918, %v1917
        %v2221 = vpack.c.b16 %v1920, %v1919
        %v2222 = vpack.c.b16 %v1922, %v1921
        %v2223 = vpack.c.b16 %v1924, %v1923
        %v2224 = vpack.c.b16 %v1926, %v1925
        %v2225 = vpack.c.b16 %v1928, %v1927
        %v2226 = vpack.c.b16 %v1930, %v1929
        %v2227 = vpack.c.b16 %v1932, %v1931
        %v2228 = vpack.c.b16 %v1934, %v1933
        %v2229 = vpack.c.b16 %v1936, %v1935
        %v2230 = vpack.c.b16 %v1938, %v1937
        %v2231 = vpack.c.b16 %v1940, %v1939
        %v2232 = vpack.c.b16 %v1942, %v1941
        %v2233 = vpack.c.b16 %v1944, %v1943
        %v2234 = vpack.c.b16 %v1946, %v1945
        %v2235 = vpack.c.b16 %v1948, %v1947
        %v2236 = vpack.c.b16 %v1950, %v1949
        %v2237 = vpack.c.b16 %v1952, %v1951
        %v2238 = vpack.c.b16 %v1954, %v1953
        %v2239 = vpack.c.b16 %v1956, %v1955
        %v2240 = vpack.c.b16 %v1958, %v1957
        %v2241 = vpack.c.b16 %v1960, %v1959
        %v2242 = vpack.c.b16 %v1962, %v1961
        %v2243 = vpack.c.b16 %v1964, %v1963
        %v2244 = vpack.c.b16 %v1966, %v1965
        %v2245 = vpack.c.b16 %v1968, %v1967
        %v2246 = vpack.c.b16 %v1970, %v1969
        %v2247 = vpack.c.b16 %v1972, %v1971
        %v2248 = vpack.c.b16 %v1974, %v1973
        %v2249 = vpack.c.b16 %v1976, %v1975
        %v2250 = vpack.c.b16 %v1978, %v1977
        %v2251 = vpack.c.b16 %v1980, %v1979
        %v2252 = vpack.c.b16 %v1982, %v1981
        %v2253 = vpack.c.b16 %v1984, %v1983
        %v2254 = vpack.c.b16 %v1986, %v1985
        %v2255 = vpack.c.b16 %v1988, %v1987
        %v2256 = vpack.c.b16 %v1990, %v1989
        %v2257 = vpack.c.b16 %v1992, %v1991
        %v2258 = vpack.c.b16 %v1994, %v1993
        %v2259 = vpack.c.b16 %v1996, %v1995
        %v2260 = vpack.c.b16 %v1998, %v1997
        %v2261 = vpack.c.b16 %v2000, %v1999
        %v2262 = vpack.c.b16 %v2002, %v2001
        %v2263 = vpack.c.b16 %v2004, %v2003
        %v2264 = vpack.c.b16 %v2006, %v2005
        %v2265 = vpack.c.b16 %v2008, %v2007
        %v2266 = vpack.c.b16 %v2010, %v2009
        %2523 = vmatprep.subr.bf16.mxu0 0
        %2524 = vmatpush1.bf16.msra.mxu0 %v2011
        %2525 = vmatprep.subr.bf16.mxu0 0
        %2526 = vmatpush1.bf16.msra.mxu0 %v2012
        %2527 = vmatprep.subr.bf16.mxu0 0
        %2528 = vmatpush1.bf16.msra.mxu0 %v2013
        %2529 = vmatprep.subr.bf16.mxu0 0
        %2530 = vmatpush1.bf16.msra.mxu0 %v2014
        %2531 = vmatprep.subr.bf16.mxu0 0
        %2532 = vmatpush1.bf16.msra.mxu0 %v2015
        %2533 = vmatprep.subr.bf16.mxu0 0
        %2534 = vmatpush1.bf16.msra.mxu0 %v2016
        %2535 = vmatprep.subr.bf16.mxu0 0
        %2536 = vmatpush1.bf16.msra.mxu0 %v2017
        %2537 = vmatprep.subr.bf16.mxu0 0
        %2538 = vmatpush1.bf16.msra.mxu0 %v2018
        %2539 = vmatprep.subr.bf16.mxu0 0
        %2540 = vmatpush1.bf16.msra.mxu0 %v2019
        %2541 = vmatprep.subr.bf16.mxu0 0
        %2542 = vmatpush1.bf16.msra.mxu0 %v2020
        %2543 = vmatprep.subr.bf16.mxu0 0
        %2544 = vmatpush1.bf16.msra.mxu0 %v2021
        %2545 = vmatprep.subr.bf16.mxu0 0
        %2546 = vmatpush1.bf16.msra.mxu0 %v2022
        %2547 = vmatprep.subr.bf16.mxu0 0
        %2548 = vmatpush1.bf16.msra.mxu0 %v2023
        %2549 = vmatprep.subr.bf16.mxu0 0
        %2550 = vmatpush1.bf16.msra.mxu0 %v2024
        %2551 = vmatprep.subr.bf16.mxu0 0
        %2552 = vmatpush1.bf16.msra.mxu0 %v2025
        %2553 = vmatprep.subr.bf16.mxu0 0
        %2554 = vmatpush1.bf16.msra.mxu0 %v2026
        %2555 = vmatprep.mubr.bf16.mxu0 %v796
        %2556 = vmatmul.mubr.bf16.gmra.mrb[0].mxu0 %v782
        %v2557 = vpop.f32.mrb[0].mxu0
        %v2558 = vadd.f32 0.0, %v2557
        %v2559 = vpop.f32.mrb[0].mxu0
        %v2560 = vpop.f32.mrb[0].mxu0
        %v2561 = vpop.f32.mrb[0].mxu0
        %2562 = vdwg.mxu0
        %2563 = vmatprep.subr.bf16.mxu0 0
        %2564 = vmatpush1.bf16.msra.mxu0 %v2027
        %2565 = vmatprep.subr.bf16.mxu0 0
        %2566 = vmatpush1.bf16.msra.mxu0 %v2028
        %2567 = vmatprep.subr.bf16.mxu0 0
        %2568 = vmatpush1.bf16.msra.mxu0 %v2029
        %2569 = vmatprep.subr.bf16.mxu0 0
        %2570 = vmatpush1.bf16.msra.mxu0 %v2030
        %2571 = vmatprep.subr.bf16.mxu0 0
        %2572 = vmatpush1.bf16.msra.mxu0 %v2031
        %2573 = vmatprep.subr.bf16.mxu0 0
        %2574 = vmatpush1.bf16.msra.mxu0 %v2032
        %2575 = vmatprep.subr.bf16.mxu0 0
        %2576 = vmatpush1.bf16.msra.mxu0 %v2033
        %2577 = vmatprep.subr.bf16.mxu0 0
        %2578 = vmatpush1.bf16.msra.mxu0 %v2034
        %2579 = vmatprep.subr.bf16.mxu0 0
        %2580 = vmatpush1.bf16.msra.mxu0 %v2035
        %2581 = vmatprep.subr.bf16.mxu0 0
        %2582 = vmatpush1.bf16.msra.mxu0 %v2036
        %2583 = vmatprep.subr.bf16.mxu0 0
        %2584 = vmatpush1.bf16.msra.mxu0 %v2037
        %2585 = vmatprep.subr.bf16.mxu0 0
        %2586 = vmatpush1.bf16.msra.mxu0 %v2038
        %2587 = vmatprep.subr.bf16.mxu0 0
        %2588 = vmatpush1.bf16.msra.mxu0 %v2039
        %2589 = vmatprep.subr.bf16.mxu0 0
        %2590 = vmatpush1.bf16.msra.mxu0 %v2040
        %2591 = vmatprep.subr.bf16.mxu0 0
        %2592 = vmatpush1.bf16.msra.mxu0 %v2041
        %2593 = vmatprep.subr.bf16.mxu0 0
        %2594 = vmatpush1.bf16.msra.mxu0 %v2042
        %2595 = vmatprep.mubr.bf16.mxu0 %v806
        %2596 = vmatmul.mubr.bf16.gmra.mrb[0].mxu0 %v804
        %v2597 = vpop.f32.mrb[0].mxu0
        %v2598 = vadd.f32 %v2558, %v2597
        %v2599 = vpop.f32.mrb[0].mxu0
        %v2600 = vpop.f32.mrb[0].mxu0
        %v2601 = vpop.f32.mrb[0].mxu0
        %2602 = vdwg.mxu0
        %2603 = vmatprep.subr.bf16.mxu0 0
        %2604 = vmatpush1.bf16.msra.mxu0 %v2043
        %2605 = vmatprep.subr.bf16.mxu0 0
        %2606 = vmatpush1.bf16.msra.mxu0 %v2044
        %2607 = vmatprep.subr.bf16.mxu0 0
        %2608 = vmatpush1.bf16.msra.mxu0 %v2045
        %2609 = vmatprep.subr.bf16.mxu0 0
        %2610 = vmatpush1.bf16.msra.mxu0 %v2046
        %2611 = vmatprep.subr.bf16.mxu0 0
        %2612 = vmatpush1.bf16.msra.mxu0 %v2047
        %2613 = vmatprep.subr.bf16.mxu0 0
        %2614 = vmatpush1.bf16.msra.mxu0 %v2048
        %2615 = vmatprep.subr.bf16.mxu0 0
        %2616 = vmatpush1.bf16.msra.mxu0 %v2049
        %2617 = vmatprep.subr.bf16.mxu0 0
        %2618 = vmatpush1.bf16.msra.mxu0 %v2050
        %2619 = vmatprep.subr.bf16.mxu0 0
        %2620 = vmatpush1.bf16.msra.mxu0 %v2051
        %2621 = vmatprep.subr.bf16.mxu0 0
        %2622 = vmatpush1.bf16.msra.mxu0 %v2052
        %2623 = vmatprep.subr.bf16.mxu0 0
        %2624 = vmatpush1.bf16.msra.mxu0 %v2053
        %2625 = vmatprep.subr.bf16.mxu0 0
        %2626 = vmatpush1.bf16.msra.mxu0 %v2054
        %2627 = vmatprep.subr.bf16.mxu0 0
        %2628 = vmatpush1.bf16.msra.mxu0 %v2055
        %2629 = vmatprep.subr.bf16.mxu0 0
        %2630 = vmatpush1.bf16.msra.mxu0 %v2056
        %2631 = vmatprep.subr.bf16.mxu0 0
        %2632 = vmatpush1.bf16.msra.mxu0 %v2057
        %2633 = vmatprep.subr.bf16.mxu0 0
        %2634 = vmatpush1.bf16.msra.mxu0 %v2058
        %2635 = vmatprep.mubr.bf16.mxu0 %v803
        %2636 = vmatmul.mubr.bf16.gmra.mrb[0].mxu0 %v789
        %v2637 = vpop.f32.mrb[0].mxu0
        %v2638 = vadd.f32 %v2598, %v2637
        %v2639 = vpop.f32.mrb[0].mxu0
        %v2640 = vpop.f32.mrb[0].mxu0
        %v2641 = vpop.f32.mrb[0].mxu0
        %2642 = vdwg.mxu0
        %2643 = vmatprep.subr.bf16.mxu0 0
        %2644 = vmatpush1.bf16.msra.mxu0 %v2059
        %2645 = vmatprep.subr.bf16.mxu0 0
        %2646 = vmatpush1.bf16.msra.mxu0 %v2060
        %2647 = vmatprep.subr.bf16.mxu0 0
        %2648 = vmatpush1.bf16.msra.mxu0 %v2061
        %2649 = vmatprep.subr.bf16.mxu0 0
        %2650 = vmatpush1.bf16.msra.mxu0 %v2062
        %2651 = vmatprep.subr.bf16.mxu0 0
        %2652 = vmatpush1.bf16.msra.mxu0 %v2063
        %2653 = vmatprep.subr.bf16.mxu0 0
        %2654 = vmatpush1.bf16.msra.mxu0 %v2064
        %2655 = vmatprep.subr.bf16.mxu0 0
        %2656 = vmatpush1.bf16.msra.mxu0 %v2065
        %2657 = vmatprep.subr.bf16.mxu0 0
        %2658 = vmatpush1.bf16.msra.mxu0 %v2066
        %2659 = vmatprep.subr.bf16.mxu0 0
        %2660 = vmatpush1.bf16.msra.mxu0 %v2067
        %2661 = vmatprep.subr.bf16.mxu0 0
        %2662 = vmatpush1.bf16.msra.mxu0 %v2068
        %2663 = vmatprep.subr.bf16.mxu0 0
        %2664 = vmatpush1.bf16.msra.mxu0 %v2069
        %2665 = vmatprep.subr.bf16.mxu0 0
        %2666 = vmatpush1.bf16.msra.mxu0 %v2070
        %2667 = vmatprep.subr.bf16.mxu0 0
        %2668 = vmatpush1.bf16.msra.mxu0 %v2071
        %2669 = vmatprep.subr.bf16.mxu0 0
        %2670 = vmatpush1.bf16.msra.mxu0 %v2072
        %2671 = vmatprep.subr.bf16.mxu0 0
        %2672 = vmatpush1.bf16.msra.mxu0 %v2073
        %2673 = vmatprep.subr.bf16.mxu0 0
        %2674 = vmatpush1.bf16.msra.mxu0 %v2074
        %2675 = vmatprep.mubr.bf16.mxu0 %v807
        %2676 = vmatmul.mubr.bf16.gmra.mrb[0].mxu0 %v805
        %v2677 = vpop.f32.mrb[0].mxu0
        %v2678 = vadd.f32 %v2638, %v2677
        %v2679 = vpop.f32.mrb[0].mxu0
        %v2680 = vpop.f32.mrb[0].mxu0
        %v2681 = vpop.f32.mrb[0].mxu0
        %2682 = vdwg.mxu0
        %2683 = vmatprep.subr.bf16.mxu0 0
        %2684 = vmatpush1.bf16.msra.mxu0 %v2075
        %2685 = vmatprep.subr.bf16.mxu0 0
        %2686 = vmatpush1.bf16.msra.mxu0 %v2076
        %2687 = vmatprep.subr.bf16.mxu0 0
        %2688 = vmatpush1.bf16.msra.mxu0 %v2077
        %2689 = vmatprep.subr.bf16.mxu0 0
        %2690 = vmatpush1.bf16.msra.mxu0 %v2078
        %2691 = vmatprep.subr.bf16.mxu0 0
        %2692 = vmatpush1.bf16.msra.mxu0 %v2079
        %2693 = vmatprep.subr.bf16.mxu0 0
        %2694 = vmatpush1.bf16.msra.mxu0 %v2080
        %2695 = vmatprep.subr.bf16.mxu0 0
        %2696 = vmatpush1.bf16.msra.mxu0 %v2081
        %2697 = vmatprep.subr.bf16.mxu0 0
        %2698 = vmatpush1.bf16.msra.mxu0 %v2082
        %2699 = vmatprep.subr.bf16.mxu0 0
        %2700 = vmatpush1.bf16.msra.mxu0 %v2083
        %2701 = vmatprep.subr.bf16.mxu0 0
        %2702 = vmatpush1.bf16.msra.mxu0 %v2084
        %2703 = vmatprep.subr.bf16.mxu0 0
        %2704 = vmatpush1.bf16.msra.mxu0 %v2085
        %2705 = vmatprep.subr.bf16.mxu0 0
        %2706 = vmatpush1.bf16.msra.mxu0 %v2086
        %2707 = vmatprep.subr.bf16.mxu0 0
        %2708 = vmatpush1.bf16.msra.mxu0 %v2087
        %2709 = vmatprep.subr.bf16.mxu0 0
        %2710 = vmatpush1.bf16.msra.mxu0 %v2088
        %2711 = vmatprep.subr.bf16.mxu0 0
        %2712 = vmatpush1.bf16.msra.mxu0 %v2089
        %2713 = vmatprep.subr.bf16.mxu0 0
        %2714 = vmatpush1.bf16.msra.mxu0 %v2090
        %2715 = vmatprep.mubr.bf16.mxu0 %v845
        %2716 = vmatmul.mubr.bf16.gmra.mrb[0].mxu0 %v831
        %v2717 = vpop.f32.mrb[0].mxu0
        %v2718 = vadd.f32 %v2678, %v2717
        %v2719 = vpop.f32.mrb[0].mxu0
        %v2720 = vpop.f32.mrb[0].mxu0
        %v2721 = vpop.f32.mrb[0].mxu0
        %2722 = vdwg.mxu0
        %2723 = vmatprep.subr.bf16.mxu0 0
        %2724 = vmatpush1.bf16.msra.mxu0 %v2091
        %2725 = vmatprep.subr.bf16.mxu0 0
        %2726 = vmatpush1.bf16.msra.mxu0 %v2092
        %2727 = vmatprep.subr.bf16.mxu0 0
        %2728 = vmatpush1.bf16.msra.mxu0 %v2093
        %2729 = vmatprep.subr.bf16.mxu0 0
        %2730 = vmatpush1.bf16.msra.mxu0 %v2094
        %2731 = vmatprep.subr.bf16.mxu0 0
        %2732 = vmatpush1.bf16.msra.mxu0 %v2095
        %2733 = vmatprep.subr.bf16.mxu0 0
        %2734 = vmatpush1.bf16.msra.mxu0 %v2096
        %2735 = vmatprep.subr.bf16.mxu0 0
        %2736 = vmatpush1.bf16.msra.mxu0 %v2097
        %2737 = vmatprep.subr.bf16.mxu0 0
        %2738 = vmatpush1.bf16.msra.mxu0 %v2098
        %2739 = vmatprep.subr.bf16.mxu0 0
        %2740 = vmatpush1.bf16.msra.mxu0 %v2099
        %2741 = vmatprep.subr.bf16.mxu0 0
        %2742 = vmatpush1.bf16.msra.mxu0 %v2100
        %2743 = vmatprep.subr.bf16.mxu0 0
        %2744 = vmatpush1.bf16.msra.mxu0 %v2101
        %2745 = vmatprep.subr.bf16.mxu0 0
        %2746 = vmatpush1.bf16.msra.mxu0 %v2102
        %2747 = vmatprep.subr.bf16.mxu0 0
        %2748 = vmatpush1.bf16.msra.mxu0 %v2103
        %2749 = vmatprep.subr.bf16.mxu0 0
        %2750 = vmatpush1.bf16.msra.mxu0 %v2104
        %2751 = vmatprep.subr.bf16.mxu0 0
        %2752 = vmatpush1.bf16.msra.mxu0 %v2105
        %2753 = vmatprep.subr.bf16.mxu0 0
        %2754 = vmatpush1.bf16.msra.mxu0 %v2106
        %2755 = vmatprep.mubr.bf16.mxu0 %v855
        %2756 = vmatmul.mubr.bf16.gmra.mrb[0].mxu0 %v853
        %v2757 = vpop.f32.mrb[0].mxu0
        %v2758 = vadd.f32 %v2718, %v2757
        %v2759 = vpop.f32.mrb[0].mxu0
        %v2760 = vpop.f32.mrb[0].mxu0
        %v2761 = vpop.f32.mrb[0].mxu0
        %2762 = vdwg.mxu0
        %2763 = vmatprep.subr.bf16.mxu0 0
        %2764 = vmatpush1.bf16.msra.mxu0 %v2107
        %2765 = vmatprep.subr.bf16.mxu0 0
        %2766 = vmatpush1.bf16.msra.mxu0 %v2108
        %2767 = vmatprep.subr.bf16.mxu0 0
        %2768 = vmatpush1.bf16.msra.mxu0 %v2109
        %2769 = vmatprep.subr.bf16.mxu0 0
        %2770 = vmatpush1.bf16.msra.mxu0 %v2110
        %2771 = vmatprep.subr.bf16.mxu0 0
        %2772 = vmatpush1.bf16.msra.mxu0 %v2111
        %2773 = vmatprep.subr.bf16.mxu0 0
        %2774 = vmatpush1.bf16.msra.mxu0 %v2112
        %2775 = vmatprep.subr.bf16.mxu0 0
        %2776 = vmatpush1.bf16.msra.mxu0 %v2113
        %2777 = vmatprep.subr.bf16.mxu0 0
        %2778 = vmatpush1.bf16.msra.mxu0 %v2114
        %2779 = vmatprep.subr.bf16.mxu0 0
        %2780 = vmatpush1.bf16.msra.mxu0 %v2115
        %2781 = vmatprep.subr.bf16.mxu0 0
        %2782 = vmatpush1.bf16.msra.mxu0 %v2116
        %2783 = vmatprep.subr.bf16.mxu0 0
        %2784 = vmatpush1.bf16.msra.mxu0 %v2117
        %2785 = vmatprep.subr.bf16.mxu0 0
        %2786 = vmatpush1.bf16.msra.mxu0 %v2118
        %2787 = vmatprep.subr.bf16.mxu0 0
        %2788 = vmatpush1.bf16.msra.mxu0 %v2119
        %2789 = vmatprep.subr.bf16.mxu0 0
        %2790 = vmatpush1.bf16.msra.mxu0 %v2120
        %2791 = vmatprep.subr.bf16.mxu0 0
        %2792 = vmatpush1.bf16.msra.mxu0 %v2121
        %2793 = vmatprep.subr.bf16.mxu0 0
        %2794 = vmatpush1.bf16.msra.mxu0 %v2122
        %2795 = vmatprep.mubr.bf16.mxu0 %v852
        %2796 = vmatmul.mubr.bf16.gmra.mrb[0].mxu0 %v838
        %v2797 = vpop.f32.mrb[0].mxu0
        %v2798 = vadd.f32 %v2758, %v2797
        %v2799 = vpop.f32.mrb[0].mxu0
        %v2800 = vpop.f32.mrb[0].mxu0
        %v2801 = vpop.f32.mrb[0].mxu0
        %2802 = vdwg.mxu0
        %2803 = vmatprep.subr.bf16.mxu0 0
        %2804 = vmatpush1.bf16.msra.mxu0 %v2123
        %2805 = vmatprep.subr.bf16.mxu0 0
        %2806 = vmatpush1.bf16.msra.mxu0 %v2124
        %2807 = vmatprep.subr.bf16.mxu0 0
        %2808 = vmatpush1.bf16.msra.mxu0 %v2125
        %2809 = vmatprep.subr.bf16.mxu0 0
        %2810 = vmatpush1.bf16.msra.mxu0 %v2126
        %2811 = vmatprep.subr.bf16.mxu0 0
        %2812 = vmatpush1.bf16.msra.mxu0 %v2127
        %2813 = vmatprep.subr.bf16.mxu0 0
        %2814 = vmatpush1.bf16.msra.mxu0 %v2128
        %2815 = vmatprep.subr.bf16.mxu0 0
        %2816 = vmatpush1.bf16.msra.mxu0 %v2129
        %2817 = vmatprep.subr.bf16.mxu0 0
        %2818 = vmatpush1.bf16.msra.mxu0 %v2130
        %2819 = vmatprep.subr.bf16.mxu0 0
        %2820 = vmatpush1.bf16.msra.mxu0 %v2131
        %2821 = vmatprep.subr.bf16.mxu0 0
        %2822 = vmatpush1.bf16.msra.mxu0 %v2132
        %2823 = vmatprep.subr.bf16.mxu0 0
        %2824 = vmatpush1.bf16.msra.mxu0 %v2133
        %2825 = vmatprep.subr.bf16.mxu0 0
        %2826 = vmatpush1.bf16.msra.mxu0 %v2134
        %2827 = vmatprep.subr.bf16.mxu0 0
        %2828 = vmatpush1.bf16.msra.mxu0 %v2135
        %2829 = vmatprep.subr.bf16.mxu0 0
        %2830 = vmatpush1.bf16.msra.mxu0 %v2136
        %2831 = vmatprep.subr.bf16.mxu0 0
        %2832 = vmatpush1.bf16.msra.mxu0 %v2137
        %2833 = vmatprep.subr.bf16.mxu0 0
        %2834 = vmatpush1.bf16.msra.mxu0 %v2138
        %2835 = vmatprep.mubr.bf16.mxu0 %v856
        %2836 = vmatmul.mubr.bf16.gmra.mrb[0].mxu0 %v854
        %v2837 = vpop.f32.mrb[0].mxu0
        %v2838 = vadd.f32 %v2798, %v2837
        %v2839 = vpop.f32.mrb[0].mxu0
        %v2840 = vpop.f32.mrb[0].mxu0
        %v2841 = vpop.f32.mrb[0].mxu0
        %2842 = vdwg.mxu0
        %2843 = vmatprep.subr.bf16.mxu0 0
        %2844 = vmatpush1.bf16.msra.mxu0 %v2139
        %2845 = vmatprep.subr.bf16.mxu0 0
        %2846 = vmatpush1.bf16.msra.mxu0 %v2140
        %2847 = vmatprep.subr.bf16.mxu0 0
        %2848 = vmatpush1.bf16.msra.mxu0 %v2141
        %2849 = vmatprep.subr.bf16.mxu0 0
        %2850 = vmatpush1.bf16.msra.mxu0 %v2142
        %2851 = vmatprep.subr.bf16.mxu0 0
        %2852 = vmatpush1.bf16.msra.mxu0 %v2143
        %2853 = vmatprep.subr.bf16.mxu0 0
        %2854 = vmatpush1.bf16.msra.mxu0 %v2144
        %2855 = vmatprep.subr.bf16.mxu0 0
        %2856 = vmatpush1.bf16.msra.mxu0 %v2145
        %2857 = vmatprep.subr.bf16.mxu0 0
        %2858 = vmatpush1.bf16.msra.mxu0 %v2146
        %2859 = vmatprep.subr.bf16.mxu0 0
        %2860 = vmatpush1.bf16.msra.mxu0 %v2147
        %2861 = vmatprep.subr.bf16.mxu0 0
        %2862 = vmatpush1.bf16.msra.mxu0 %v2148
        %2863 = vmatprep.subr.bf16.mxu0 0
        %2864 = vmatpush1.bf16.msra.mxu0 %v2149
        %2865 = vmatprep.subr.bf16.mxu0 0
        %2866 = vmatpush1.bf16.msra.mxu0 %v2150
        %2867 = vmatprep.subr.bf16.mxu0 0
        %2868 = vmatpush1.bf16.msra.mxu0 %v2151
        %2869 = vmatprep.subr.bf16.mxu0 0
        %2870 = vmatpush1.bf16.msra.mxu0 %v2152
        %2871 = vmatprep.subr.bf16.mxu0 0
        %2872 = vmatpush1.bf16.msra.mxu0 %v2153
        %2873 = vmatprep.subr.bf16.mxu0 0
        %2874 = vmatpush1.bf16.msra.mxu0 %v2154
        %2875 = vmatprep.mubr.bf16.mxu0 %v894
        %2876 = vmatmul.mubr.bf16.gmra.mrb[0].mxu0 %v880
        %v2877 = vpop.f32.mrb[0].mxu0
        %v2878 = vadd.f32 %v2838, %v2877
        %v2879 = vpop.f32.mrb[0].mxu0
        %v2880 = vpop.f32.mrb[0].mxu0
        %v2881 = vpop.f32.mrb[0].mxu0
        %2882 = vdwg.mxu0
        %2883 = vmatprep.subr.bf16.mxu0 0
        %2884 = vmatpush1.bf16.msra.mxu0 %v2155
        %2885 = vmatprep.subr.bf16.mxu0 0
        %2886 = vmatpush1.bf16.msra.mxu0 %v2156
        %2887 = vmatprep.subr.bf16.mxu0 0
        %2888 = vmatpush1.bf16.msra.mxu0 %v2157
        %2889 = vmatprep.subr.bf16.mxu0 0
        %2890 = vmatpush1.bf16.msra.mxu0 %v2158
        %2891 = vmatprep.subr.bf16.mxu0 0
        %2892 = vmatpush1.bf16.msra.mxu0 %v2159
        %2893 = vmatprep.subr.bf16.mxu0 0
        %2894 = vmatpush1.bf16.msra.mxu0 %v2160
        %2895 = vmatprep.subr.bf16.mxu0 0
        %2896 = vmatpush1.bf16.msra.mxu0 %v2161
        %2897 = vmatprep.subr.bf16.mxu0 0
        %2898 = vmatpush1.bf16.msra.mxu0 %v2162
        %2899 = vmatprep.subr.bf16.mxu0 0
        %2900 = vmatpush1.bf16.msra.mxu0 %v2163
        %2901 = vmatprep.subr.bf16.mxu0 0
        %2902 = vmatpush1.bf16.msra.mxu0 %v2164
        %2903 = vmatprep.subr.bf16.mxu0 0
        %2904 = vmatpush1.bf16.msra.mxu0 %v2165
        %2905 = vmatprep.subr.bf16.mxu0 0
        %2906 = vmatpush1.bf16.msra.mxu0 %v2166
        %2907 = vmatprep.subr.bf16.mxu0 0
        %2908 = vmatpush1.bf16.msra.mxu0 %v2167
        %2909 = vmatprep.subr.bf16.mxu0 0
        %2910 = vmatpush1.bf16.msra.mxu0 %v2168
        %2911 = vmatprep.subr.bf16.mxu0 0
        %2912 = vmatpush1.bf16.msra.mxu0 %v2169
        %2913 = vmatprep.subr.bf16.mxu0 0
        %2914 = vmatpush1.bf16.msra.mxu0 %v2170
        %2915 = vmatprep.mubr.bf16.mxu0 %v904
        %2916 = vmatmul.mubr.bf16.gmra.mrb[0].mxu0 %v902
        %v2917 = vpop.f32.mrb[0].mxu0
        %v2918 = vadd.f32 %v2878, %v2917
        %v2919 = vpop.f32.mrb[0].mxu0
        %v2920 = vpop.f32.mrb[0].mxu0
        %v2921 = vpop.f32.mrb[0].mxu0
        %2922 = vdwg.mxu0
        %2923 = vmatprep.subr.bf16.mxu0 0
        %2924 = vmatpush1.bf16.msra.mxu0 %v2171
        %2925 = vmatprep.subr.bf16.mxu0 0
        %2926 = vmatpush1.bf16.msra.mxu0 %v2172
        %2927 = vmatprep.subr.bf16.mxu0 0
        %2928 = vmatpush1.bf16.msra.mxu0 %v2173
        %2929 = vmatprep.subr.bf16.mxu0 0
        %2930 = vmatpush1.bf16.msra.mxu0 %v2174
        %2931 = vmatprep.subr.bf16.mxu0 0
        %2932 = vmatpush1.bf16.msra.mxu0 %v2175
        %2933 = vmatprep.subr.bf16.mxu0 0
        %2934 = vmatpush1.bf16.msra.mxu0 %v2176
        %2935 = vmatprep.subr.bf16.mxu0 0
        %2936 = vmatpush1.bf16.msra.mxu0 %v2177
        %2937 = vmatprep.subr.bf16.mxu0 0
        %2938 = vmatpush1.bf16.msra.mxu0 %v2178
        %2939 = vmatprep.subr.bf16.mxu0 0
        %2940 = vmatpush1.bf16.msra.mxu0 %v2179
        %2941 = vmatprep.subr.bf16.mxu0 0
        %2942 = vmatpush1.bf16.msra.mxu0 %v2180
        %2943 = vmatprep.subr.bf16.mxu0 0
        %2944 = vmatpush1.bf16.msra.mxu0 %v2181
        %2945 = vmatprep.subr.bf16.mxu0 0
        %2946 = vmatpush1.bf16.msra.mxu0 %v2182
        %2947 = vmatprep.subr.bf16.mxu0 0
        %2948 = vmatpush1.bf16.msra.mxu0 %v2183
        %2949 = vmatprep.subr.bf16.mxu0 0
        %2950 = vmatpush1.bf16.msra.mxu0 %v2184
        %2951 = vmatprep.subr.bf16.mxu0 0
        %2952 = vmatpush1.bf16.msra.mxu0 %v2185
        %2953 = vmatprep.subr.bf16.mxu0 0
        %2954 = vmatpush1.bf16.msra.mxu0 %v2186
        %2955 = vmatprep.mubr.bf16.mxu0 %v901
        %2956 = vmatmul.mubr.bf16.gmra.mrb[0].mxu0 %v887
        %v2957 = vpop.f32.mrb[0].mxu0
        %v2958 = vadd.f32 %v2918, %v2957
        %v2959 = vpop.f32.mrb[0].mxu0
        %v2960 = vpop.f32.mrb[0].mxu0
        %v2961 = vpop.f32.mrb[0].mxu0
        %2962 = vdwg.mxu0
        %2963 = vmatprep.subr.bf16.mxu0 0
        %2964 = vmatpush1.bf16.msra.mxu0 %v2187
        %2965 = vmatprep.subr.bf16.mxu0 0
        %2966 = vmatpush1.bf16.msra.mxu0 %v2188
        %2967 = vmatprep.subr.bf16.mxu0 0
        %2968 = vmatpush1.bf16.msra.mxu0 %v2189
        %2969 = vmatprep.subr.bf16.mxu0 0
        %2970 = vmatpush1.bf16.msra.mxu0 %v2190
        %2971 = vmatprep.subr.bf16.mxu0 0
        %2972 = vmatpush1.bf16.msra.mxu0 %v2191
        %2973 = vmatprep.subr.bf16.mxu0 0
        %2974 = vmatpush1.bf16.msra.mxu0 %v2192
        %2975 = vmatprep.subr.bf16.mxu0 0
        %2976 = vmatpush1.bf16.msra.mxu0 %v2193
        %2977 = vmatprep.subr.bf16.mxu0 0
        %2978 = vmatpush1.bf16.msra.mxu0 %v2194
        %2979 = vmatprep.subr.bf16.mxu0 0
        %2980 = vmatpush1.bf16.msra.mxu0 %v2195
        %2981 = vmatprep.subr.bf16.mxu0 0
        %2982 = vmatpush1.bf16.msra.mxu0 %v2196
        %2983 = vmatprep.subr.bf16.mxu0 0
        %2984 = vmatpush1.bf16.msra.mxu0 %v2197
        %2985 = vmatprep.subr.bf16.mxu0 0
        %2986 = vmatpush1.bf16.msra.mxu0 %v2198
        %2987 = vmatprep.subr.bf16.mxu0 0
        %2988 = vmatpush1.bf16.msra.mxu0 %v2199
        %2989 = vmatprep.subr.bf16.mxu0 0
        %2990 = vmatpush1.bf16.msra.mxu0 %v2200
        %2991 = vmatprep.subr.bf16.mxu0 0
        %2992 = vmatpush1.bf16.msra.mxu0 %v2201
        %2993 = vmatprep.subr.bf16.mxu0 0
        %2994 = vmatpush1.bf16.msra.mxu0 %v2202
        %2995 = vmatprep.mubr.bf16.mxu0 %v905
        %2996 = vmatmul.mubr.bf16.gmra.mrb[0].mxu0 %v903
        %v2997 = vpop.f32.mrb[0].mxu0
        %v2998 = vadd.f32 %v2958, %v2997
        %v2999 = vpop.f32.mrb[0].mxu0
        %v3000 = vpop.f32.mrb[0].mxu0
        %v3001 = vpop.f32.mrb[0].mxu0
        %3002 = vdwg.mxu0
        %3003 = vmatprep.subr.bf16.mxu0 0
        %3004 = vmatpush1.bf16.msra.mxu0 %v2203
        %3005 = vmatprep.subr.bf16.mxu0 0
        %3006 = vmatpush1.bf16.msra.mxu0 %v2204
        %3007 = vmatprep.subr.bf16.mxu0 0
        %3008 = vmatpush1.bf16.msra.mxu0 %v2205
        %3009 = vmatprep.subr.bf16.mxu0 0
        %3010 = vmatpush1.bf16.msra.mxu0 %v2206
        %3011 = vmatprep.subr.bf16.mxu0 0
        %3012 = vmatpush1.bf16.msra.mxu0 %v2207
        %3013 = vmatprep.subr.bf16.mxu0 0
        %3014 = vmatpush1.bf16.msra.mxu0 %v2208
        %3015 = vmatprep.subr.bf16.mxu0 0
        %3016 = vmatpush1.bf16.msra.mxu0 %v2209
        %3017 = vmatprep.subr.bf16.mxu0 0
        %3018 = vmatpush1.bf16.msra.mxu0 %v2210
        %3019 = vmatprep.subr.bf16.mxu0 0
        %3020 = vmatpush1.bf16.msra.mxu0 %v2211
        %3021 = vmatprep.subr.bf16.mxu0 0
        %3022 = vmatpush1.bf16.msra.mxu0 %v2212
        %3023 = vmatprep.subr.bf16.mxu0 0
        %3024 = vmatpush1.bf16.msra.mxu0 %v2213
        %3025 = vmatprep.subr.bf16.mxu0 0
        %3026 = vmatpush1.bf16.msra.mxu0 %v2214
        %3027 = vmatprep.subr.bf16.mxu0 0
        %3028 = vmatpush1.bf16.msra.mxu0 %v2215
        %3029 = vmatprep.subr.bf16.mxu0 0
        %3030 = vmatpush1.bf16.msra.mxu0 %v2216
        %3031 = vmatprep.subr.bf16.mxu0 0
        %3032 = vmatpush1.bf16.msra.mxu0 %v2217
        %3033 = vmatprep.subr.bf16.mxu0 0
        %3034 = vmatpush1.bf16.msra.mxu0 %v2218
        %3035 = vmatprep.mubr.bf16.mxu0 %v943
        %3036 = vmatmul.mubr.bf16.gmra.mrb[0].mxu0 %v929
        %v3037 = vpop.f32.mrb[0].mxu0
        %v3038 = vadd.f32 %v2998, %v3037
        %v3039 = vpop.f32.mrb[0].mxu0
        %v3040 = vpop.f32.mrb[0].mxu0
        %v3041 = vpop.f32.mrb[0].mxu0
        %3042 = vdwg.mxu0
        %3043 = vmatprep.subr.bf16.mxu0 0
        %3044 = vmatpush1.bf16.msra.mxu0 %v2219
        %3045 = vmatprep.subr.bf16.mxu0 0
        %3046 = vmatpush1.bf16.msra.mxu0 %v2220
        %3047 = vmatprep.subr.bf16.mxu0 0
        %3048 = vmatpush1.bf16.msra.mxu0 %v2221
        %3049 = vmatprep.subr.bf16.mxu0 0
        %3050 = vmatpush1.bf16.msra.mxu0 %v2222
        %3051 = vmatprep.subr.bf16.mxu0 0
        %3052 = vmatpush1.bf16.msra.mxu0 %v2223
        %3053 = vmatprep.subr.bf16.mxu0 0
        %3054 = vmatpush1.bf16.msra.mxu0 %v2224
        %3055 = vmatprep.subr.bf16.mxu0 0
        %3056 = vmatpush1.bf16.msra.mxu0 %v2225
        %3057 = vmatprep.subr.bf16.mxu0 0
        %3058 = vmatpush1.bf16.msra.mxu0 %v2226
        %3059 = vmatprep.subr.bf16.mxu0 0
        %3060 = vmatpush1.bf16.msra.mxu0 %v2227
        %3061 = vmatprep.subr.bf16.mxu0 0
        %3062 = vmatpush1.bf16.msra.mxu0 %v2228
        %3063 = vmatprep.subr.bf16.mxu0 0
        %3064 = vmatpush1.bf16.msra.mxu0 %v2229
        %3065 = vmatprep.subr.bf16.mxu0 0
        %3066 = vmatpush1.bf16.msra.mxu0 %v2230
        %3067 = vmatprep.subr.bf16.mxu0 0
        %3068 = vmatpush1.bf16.msra.mxu0 %v2231
        %3069 = vmatprep.subr.bf16.mxu0 0
        %3070 = vmatpush1.bf16.msra.mxu0 %v2232
        %3071 = vmatprep.subr.bf16.mxu0 0
        %3072 = vmatpush1.bf16.msra.mxu0 %v2233
        %3073 = vmatprep.subr.bf16.mxu0 0
        %3074 = vmatpush1.bf16.msra.mxu0 %v2234
        %3075 = vmatprep.mubr.bf16.mxu0 %v953
        %3076 = vmatmul.mubr.bf16.gmra.mrb[0].mxu0 %v951
        %v3077 = vpop.f32.mrb[0].mxu0
        %v3078 = vadd.f32 %v3038, %v3077
        %v3079 = vpop.f32.mrb[0].mxu0
        %v3080 = vpop.f32.mrb[0].mxu0
        %v3081 = vpop.f32.mrb[0].mxu0
        %3082 = vdwg.mxu0
        %3083 = vmatprep.subr.bf16.mxu0 0
        %3084 = vmatpush1.bf16.msra.mxu0 %v2235
        %3085 = vmatprep.subr.bf16.mxu0 0
        %3086 = vmatpush1.bf16.msra.mxu0 %v2236
        %3087 = vmatprep.subr.bf16.mxu0 0
        %3088 = vmatpush1.bf16.msra.mxu0 %v2237
        %3089 = vmatprep.subr.bf16.mxu0 0
        %3090 = vmatpush1.bf16.msra.mxu0 %v2238
        %3091 = vmatprep.subr.bf16.mxu0 0
        %3092 = vmatpush1.bf16.msra.mxu0 %v2239
        %3093 = vmatprep.subr.bf16.mxu0 0
        %3094 = vmatpush1.bf16.msra.mxu0 %v2240
        %3095 = vmatprep.subr.bf16.mxu0 0
        %3096 = vmatpush1.bf16.msra.mxu0 %v2241
        %3097 = vmatprep.subr.bf16.mxu0 0
        %3098 = vmatpush1.bf16.msra.mxu0 %v2242
        %3099 = vmatprep.subr.bf16.mxu0 0
        %3100 = vmatpush1.bf16.msra.mxu0 %v2243
        %3101 = vmatprep.subr.bf16.mxu0 0
        %3102 = vmatpush1.bf16.msra.mxu0 %v2244
        %3103 = vmatprep.subr.bf16.mxu0 0
        %3104 = vmatpush1.bf16.msra.mxu0 %v2245
        %3105 = vmatprep.subr.bf16.mxu0 0
        %3106 = vmatpush1.bf16.msra.mxu0 %v2246
        %3107 = vmatprep.subr.bf16.mxu0 0
        %3108 = vmatpush1.bf16.msra.mxu0 %v2247
        %3109 = vmatprep.subr.bf16.mxu0 0
        %3110 = vmatpush1.bf16.msra.mxu0 %v2248
        %3111 = vmatprep.subr.bf16.mxu0 0
        %3112 = vmatpush1.bf16.msra.mxu0 %v2249
        %3113 = vmatprep.subr.bf16.mxu0 0
        %3114 = vmatpush1.bf16.msra.mxu0 %v2250
        %3115 = vmatprep.mubr.bf16.mxu0 %v950
        %3116 = vmatmul.mubr.bf16.gmra.mrb[0].mxu0 %v936
        %v3117 = vpop.f32.mrb[0].mxu0
        %v3118 = vadd.f32 %v3078, %v3117
        %v3119 = vpop.f32.mrb[0].mxu0
        %v3120 = vpop.f32.mrb[0].mxu0
        %v3121 = vpop.f32.mrb[0].mxu0
        %3122 = vdwg.mxu0
        %3123 = vmatprep.subr.bf16.mxu0 0
        %3124 = vmatpush1.bf16.msra.mxu0 %v2251
        %3125 = vmatprep.subr.bf16.mxu0 0
        %3126 = vmatpush1.bf16.msra.mxu0 %v2252
        %3127 = vmatprep.subr.bf16.mxu0 0
        %3128 = vmatpush1.bf16.msra.mxu0 %v2253
        %3129 = vmatprep.subr.bf16.mxu0 0
        %3130 = vmatpush1.bf16.msra.mxu0 %v2254
        %3131 = vmatprep.subr.bf16.mxu0 0
        %3132 = vmatpush1.bf16.msra.mxu0 %v2255
        %3133 = vmatprep.subr.bf16.mxu0 0
        %3134 = vmatpush1.bf16.msra.mxu0 %v2256
        %3135 = vmatprep.subr.bf16.mxu0 0
        %3136 = vmatpush1.bf16.msra.mxu0 %v2257
        %3137 = vmatprep.subr.bf16.mxu0 0
        %3138 = vmatpush1.bf16.msra.mxu0 %v2258
        %3139 = vmatprep.subr.bf16.mxu0 0
        %3140 = vmatpush1.bf16.msra.mxu0 %v2259
        %3141 = vmatprep.subr.bf16.mxu0 0
        %3142 = vmatpush1.bf16.msra.mxu0 %v2260
        %3143 = vmatprep.subr.bf16.mxu0 0
        %3144 = vmatpush1.bf16.msra.mxu0 %v2261
        %3145 = vmatprep.subr.bf16.mxu0 0
        %3146 = vmatpush1.bf16.msra.mxu0 %v2262
        %3147 = vmatprep.subr.bf16.mxu0 0
        %3148 = vmatpush1.bf16.msra.mxu0 %v2263
        %3149 = vmatprep.subr.bf16.mxu0 0
        %3150 = vmatpush1.bf16.msra.mxu0 %v2264
        %3151 = vmatprep.subr.bf16.mxu0 0
        %3152 = vmatpush1.bf16.msra.mxu0 %v2265
        %3153 = vmatprep.subr.bf16.mxu0 0
        %3154 = vmatpush1.bf16.msra.mxu0 %v2266
        %3155 = vmatprep.mubr.bf16.mxu0 %v954
        %3156 = vmatmul.mubr.bf16.gmra.mrb[0].mxu0 %v952
        %v3157 = vpop.f32.mrb[0].mxu0
        %v3158 = vadd.f32 %v3118, %v3157
        %v3159 = vpop.f32.mrb[0].mxu0
        %v3160 = vpop.f32.mrb[0].mxu0
        %v3161 = vpop.f32.mrb[0].mxu0
        %3162 = vdwg.mxu0
        %v3163 = vadd.f32 %v238, %v3158
        %3164 = vst [vmem:[#allocation2] sm:$0x3] %v3163
        %p3165 = scmp.eq.s32.totalorder %s17, 4
        // Predicated region
        $region45: #{music_cnn_forward.5} parent=39 // pred_check
          %p3166 = pneg %p3165
        $region46: #{music_cnn_forward.5} parent=39 // pred_check_branch
          %3168 = sbr.rel (%p3166) target = $region48
        $region47: #{music_cnn_forward.5} parent=39 // pred_region
          %v3169 = vld [vmem:[#allocation2] sm:$0x3]
          %v3170 = vld [vmem:[%s2] sm:$0x1]
          %v3172 = vlaneseq
          %v3173 = vshrl.u32 %v3172, 7
          %v3174 = vsub.s32 0, %v3173
          %v3175 = vrot.slane %v3170, %v3174
          %v3177 = vadd.f32 %v3169, %v3175
          %v3178 = vmax.f32 %v3177, 0.0
          %v3179 = vld [vmem:[%s3] sm:$0xff]
          %v3180 = vld [vmem:[%s3 + $0x8] sm:$0xff]
          %v3181 = vld [vmem:[%s3 + $0x10] sm:$0xff]
          %v3182 = vld [vmem:[%s3 + $0x18] sm:$0xff]
          %v3183 = vld [vmem:[%s3 + $0x20] sm:$0xff]
          %v3184 = vld [vmem:[%s3 + $0x28] sm:$0xff]
          %v3185 = vld [vmem:[%s3 + $0x30] sm:$0xff]
          %v3186 = vld [vmem:[%s3 + $0x38] sm:$0xff]
          %v3187 = vld [vmem:[%s3 + $0x40] sm:$0xff]
          %v3188 = vld [vmem:[%s3 + $0x48] sm:$0xff]
          %v3189 = vld [vmem:[%s3 + $0x50] sm:$0xff]
          %v3190 = vld [vmem:[%s3 + $0x58] sm:$0xff]
          %v3191 = vld [vmem:[%s3 + $0x60] sm:$0xff]
          %v3192 = vld [vmem:[%s3 + $0x68] sm:$0xff]
          %v3193 = vld [vmem:[%s3 + $0x70] sm:$0xff]
          %v3194 = vld [vmem:[%s3 + $0x78] sm:$0xff]
          %v3195 = vld [vmem:[%s4] sm:$0x1]
          %v3197 = vlaneseq
          %v3198 = vshrl.u32 %v3197, 7
          %v3199 = vsub.s32 0, %v3198
          %v3200 = vrot.slane %v3195, %v3199
          %3202 = vmatprep.subr.mxu0 0.0
          %3203 = vmatpush1.msra.mxu0 %v3179
          %3204 = vmatprep.subr.mxu0 0.0
          %3205 = vmatpush1.msra.mxu0 %v3180
          %3206 = vmatprep.subr.mxu0 0.0
          %3207 = vmatpush1.msra.mxu0 %v3181
          %3208 = vmatprep.subr.mxu0 0.0
          %3209 = vmatpush1.msra.mxu0 %v3182
          %3210 = vmatprep.subr.mxu0 0.0
          %3211 = vmatpush1.msra.mxu0 %v3183
          %3212 = vmatprep.subr.mxu0 0.0
          %3213 = vmatpush1.msra.mxu0 %v3184
          %3214 = vmatprep.subr.mxu0 0.0
          %3215 = vmatpush1.msra.mxu0 %v3185
          %3216 = vmatprep.subr.mxu0 0.0
          %3217 = vmatpush1.msra.mxu0 %v3186
          %3218 = vmatprep.subr.mxu0 0.0
          %3219 = vmatpush1.msra.mxu0 %v3187
          %3220 = vmatprep.subr.mxu0 0.0
          %3221 = vmatpush1.msra.mxu0 %v3188
          %3222 = vmatprep.subr.mxu0 0.0
          %3223 = vmatpush1.msra.mxu0 %v3189
          %3224 = vmatprep.subr.mxu0 0.0
          %3225 = vmatpush1.msra.mxu0 %v3190
          %3226 = vmatprep.subr.mxu0 0.0
          %3227 = vmatpush1.msra.mxu0 %v3191
          %3228 = vmatprep.subr.mxu0 0.0
          %3229 = vmatpush1.msra.mxu0 %v3192
          %3230 = vmatprep.subr.mxu0 0.0
          %3231 = vmatpush1.msra.mxu0 %v3193
          %3232 = vmatprep.subr.mxu0 0.0
          %3233 = vmatpush1.msra.mxu0 %v3194
          %3234 = vmatprep.subr.mxu0 0.0
          %3235 = vmatpush1.msra.mxu0 0.0
          %3236 = vmatprep.subr.mxu0 0.0
          %3237 = vmatpush1.msra.mxu0 0.0
          %3238 = vmatprep.subr.mxu0 0.0
          %3239 = vmatpush1.msra.mxu0 0.0
          %3240 = vmatprep.subr.mxu0 0.0
          %3241 = vmatpush1.msra.mxu0 0.0
          %3242 = vmatprep.subr.mxu0 0.0
          %3243 = vmatpush1.msra.mxu0 0.0
          %3244 = vmatprep.subr.mxu0 0.0
          %3245 = vmatpush1.msra.mxu0 0.0
          %3246 = vmatprep.subr.mxu0 0.0
          %3247 = vmatpush1.msra.mxu0 0.0
          %3248 = vmatprep.subr.mxu0 0.0
          %3249 = vmatpush1.msra.mxu0 0.0
          %3250 = vmatprep.subr.mxu0 0.0
          %3251 = vmatpush1.msra.mxu0 0.0
          %3252 = vmatprep.subr.mxu0 0.0
          %3253 = vmatpush1.msra.mxu0 0.0
          %3254 = vmatprep.subr.mxu0 0.0
          %3255 = vmatpush1.msra.mxu0 0.0
          %3256 = vmatprep.subr.mxu0 0.0
          %3257 = vmatpush1.msra.mxu0 0.0
          %3258 = vmatprep.subr.mxu0 0.0
          %3259 = vmatpush1.msra.mxu0 0.0
          %3260 = vmatprep.subr.mxu0 0.0
          %3261 = vmatpush1.msra.mxu0 0.0
          %3262 = vmatprep.subr.mxu0 0.0
          %3263 = vmatpush1.msra.mxu0 0.0
          %3264 = vmatprep.subr.mxu0 0.0
          %3265 = vmatpush1.msra.mxu0 0.0
          %3266 = vmatprep.mubr.f32.mxu0 0.0
          %3267 = vmatmul.mubr.f32.gmra.mrb[0].mxu0 %v3178
          %v3268 = vpop.f32.mrb[0].mxu0
          %v3269 = vadd.f32 %v3200, %v3268
          %v3270 = vpop.f32.mrb[0].mxu0
          %3271 = vdwg.mxu0
          %vm3272 = vcmask 74752
          %3273 = vst.msk [vmem:[#allocation3] sm:$0x3] %vm3272, %v3269
        $region48: #{music_cnn_forward.5} parent=39 // pred_fallthru
          _
        // Predicated region
        $region49: #{music_cnn_forward.5} parent=39 // pred_check
          %p3274 = pneg %p145
        $region50: #{music_cnn_forward.5} parent=39 // pred_check_branch
          %3276 = sbr.rel (%p3274) target = $region52
        $region51: #{music_cnn_forward.5} parent=39 // pred_region
          %s3278 = ssub.s32 32, 32
          %3279 = vsyncadd [#allocation4], %s3278
          %s3281 = sshll.u32 [#allocation3], 4
          %s3282 = int_to_ptr.vmem [resolvable:$true] %s3281
          %3284 = dma.vmem_to_hbm [thread:$0]  %s3282, 32, %s5, [#allocation4]
        $region52: #{music_cnn_forward.5} parent=39 // pred_fallthru
          _
        // Predicated region
        $region53: #{music_cnn_forward.5} parent=39 // pred_check
          %p3285 = pneg %p145
        $region54: #{music_cnn_forward.5} parent=39 // pred_check_branch
          %3287 = sbr.rel (%p3285) target = $region56
        $region55: #{music_cnn_forward.5} parent=39 // pred_region
          %3288 = dma.done [#allocation4], 32
        $region56: #{music_cnn_forward.5} parent=39 // pred_fallthru
          _
      $region40: #{music_cnn_forward.5} parent=5 // pred_fallthru
        _
      %p3289 = scmp.le.s32.totalorder 2, %s12
      // Predicated region
      $region57: #{music_cnn_forward.5} parent=5 // pred_check
        %p3290 = pneg %p3289
      $region58: #{music_cnn_forward.5} parent=5 // pred_check_branch
        %3292 = sbr.rel (%p3290) target = $region60
      $region59: #{music_cnn_forward.5} parent=5 // pred_region
        %s3293 = ssub.s32 %s12, 2
      $region60: #{music_cnn_forward.5} parent=5 // pred_fallthru
        _
    $region6: #{music_cnn_forward.5} parent=1 // loop_footer
      %s16 = sadd.s32 1, %s12
    $region7: #{music_cnn_forward.5} parent=1 // loop_footer_branch
      %11 = sbr.rel target = $region3
    $region8: #{music_cnn_forward.5} parent=1 // loop_exit
      _
    %3294 = vsyncpa [#allocation4], 1
    %s3295 = scalar_lea.sflag [#allocation4], 1
    %3296 = vsyncpa %s3295, 1

</llo_original>
